<compile_context>
chip_gen: v7x
topology: tpu7x:2x2x1
jax: 0.10.0
libtpu: 0.0.40
codegen_flags: <defaults>
</compile_context>

<pallas_src>
import jax
import jax.numpy as jnp
from jax.experimental import pallas as pl
from jax.experimental.pallas import tpu as pltpu


def _round_up(n, m):
    return ((n + m - 1) // m) * m


def _time_chunk(T, max_chunk=32):
    """Largest chunk <= max_chunk that divides T and is sublane friendly."""
    if T <= max_chunk:
        return T
    for tc in range(max_chunk, 7, -1):
        if tc % 8 == 0 and T % tc == 0:
            return tc
    # TODO(synk): pad T when no aligned divisor exists; falls back to one chunk.
    return T


_VMEM_LIMIT = 48 * 1024 * 1024


def _cparams(dims):
    return pltpu.CompilerParams(dimension_semantics=dims,
                                vmem_limit_bytes=_VMEM_LIMIT)


# ----------------------------------------------------------------------------
# Kernel A: gated merge + LayerNorm + fused {LSTM-input, residual} projections
# ----------------------------------------------------------------------------
def fused_input_kernel(feats_ref, gate_ref, gamma_ref, beta_ref,
                       wih_ref, bih_ref, wres_ref, bres_ref,
                       gx_ref, res_ref):
    x = feats_ref[...] * gate_ref[...]
    mean = jnp.mean(x, axis=-1, keepdims=True)
    var = jnp.mean((x - mean) ** 2, axis=-1, keepdims=True)
    xn = (x - mean) * jax.lax.rsqrt(var + 1e-5) * gamma_ref[...] + beta_ref[...]
    xb = xn.astype(jnp.bfloat16)
    gx_ref[...] = (jnp.dot(xb, wih_ref[...], preferred_element_type=jnp.float32)
                   + bih_ref[...]).astype(gx_ref.dtype)
    res_ref[...] = (jnp.dot(xb, wres_ref[...], preferred_element_type=jnp.float32)
                    + bres_ref[...]).astype(res_ref.dtype)


def fused_input(feats, gate_vec, gamma, beta, wih, bih, wres, bres):
    N, D = feats.shape
    G8 = wih.shape[1]
    R2 = wres.shape[1]
    tr = N if N <= 256 else 256
    grid = (pl.cdiv(N, tr),)
    return pl.pallas_call(
        fused_input_kernel,
        out_shape=(jax.ShapeDtypeStruct((N, G8), jnp.bfloat16),
                   jax.ShapeDtypeStruct((N, R2), jnp.bfloat16)),
        grid=grid,
        in_specs=[
            pl.BlockSpec((tr, D), lambda i: (i, 0)),
            pl.BlockSpec((1, D), lambda i: (0, 0)),
            pl.BlockSpec((1, D), lambda i: (0, 0)),
            pl.BlockSpec((1, D), lambda i: (0, 0)),
            pl.BlockSpec((D, G8), lambda i: (0, 0)),
            pl.BlockSpec((1, G8), lambda i: (0, 0)),
            pl.BlockSpec((D, R2), lambda i: (0, 0)),
            pl.BlockSpec((1, R2), lambda i: (0, 0)),
        ],
        out_specs=(pl.BlockSpec((tr, G8), lambda i: (i, 0)),
                   pl.BlockSpec((tr, R2), lambda i: (i, 0))),
        compiler_params=_cparams(("parallel",)),
    )(feats, gate_vec, gamma, beta, wih, bih, wres, bres)


# ----------------------------------------------------------------------------
# Kernel B: bidirectional LSTM recurrence, gx streamed in time chunks.
#   grid = (T // tc,) "arbitrary"; h/c carries in VMEM scratch; one block-diagonal
#   recurrent matmul per timestep covering both directions; all slices lane-aligned.
# ----------------------------------------------------------------------------
def bilstm_kernel(gxf_ref, gxb_ref, whh_ref, outf_ref, outb_ref, h_scr, c_scr):
    Hp = outf_ref.shape[2]
    tc = gxf_ref.shape[1]

    @pl.when(pl.program_id(0) == 0)
    def _():
        h_scr[...] = jnp.zeros(h_scr.shape, h_scr.dtype)
        c_scr[...] = jnp.zeros(c_scr.shape, c_scr.dtype)

    whh = whh_ref[...]                                    # (2Hp, 8Hp) bf16, resident

    for s in range(tc):                                   # static unroll within chunk
        sb = tc - 1 - s                                   # backward-direction local time
        gx = jnp.concatenate([gxf_ref[:, s, :], gxb_ref[:, sb, :]],
                             axis=-1).astype(jnp.float32)             # (B, 8Hp)
        gates = gx + jnp.dot(h_scr[...].astype(jnp.bfloat16), whh,
                             preferred_element_type=jnp.float32)
        i_g = jax.nn.sigmoid(jnp.concatenate(
            [gates[:, 0 * Hp:1 * Hp], gates[:, 4 * Hp:5 * Hp]], axis=-1))
        f_g = jax.nn.sigmoid(jnp.concatenate(
            [gates[:, 1 * Hp:2 * Hp], gates[:, 5 * Hp:6 * Hp]], axis=-1))
        g_g = jnp.tanh(jnp.concatenate(
            [gates[:, 2 * Hp:3 * Hp], gates[:, 6 * Hp:7 * Hp]], axis=-1))
        o_g = jax.nn.sigmoid(jnp.concatenate(
            [gates[:, 3 * Hp:4 * Hp], gates[:, 7 * Hp:8 * Hp]], axis=-1))
        c_new = f_g * c_scr[...] + i_g * g_g              # (B, 2Hp) = [c_f | c_b]
        h_new = o_g * jnp.tanh(c_new)
        h_scr[...] = h_new
        c_scr[...] = c_new
        outf_ref[:, s, :] = h_new[:, :Hp].astype(outf_ref.dtype)
        outb_ref[:, sb, :] = h_new[:, Hp:].astype(outb_ref.dtype)


def bilstm(gx, whh_blk, Hp):
    B, T, _ = gx.shape
    tc = _time_chunk(T)
    nc = T // tc
    # TODO(synk): v7x — split the two directions across the two TensorCores.
    return pl.pallas_call(
        bilstm_kernel,
        out_shape=(jax.ShapeDtypeStruct((B, T, Hp), jnp.bfloat16),
                   jax.ShapeDtypeStruct((B, T, Hp), jnp.bfloat16)),
        grid=(nc,),
        in_specs=[
            pl.BlockSpec((B, tc, 4 * Hp), lambda c: (0, c, 0)),            # fwd gates
            pl.BlockSpec((B, tc, 4 * Hp), lambda c: (0, nc - 1 - c, 1)),   # bwd gates
            pl.BlockSpec((2 * Hp, 8 * Hp), lambda c: (0, 0)),
        ],
        out_specs=(pl.BlockSpec((B, tc, Hp), lambda c: (0, c, 0)),
                   pl.BlockSpec((B, tc, Hp), lambda c: (0, nc - 1 - c, 0))),
        scratch_shapes=[pltpu.VMEM((B, 2 * Hp), jnp.float32),
                        pltpu.VMEM((B, 2 * Hp), jnp.float32)],
        compiler_params=_cparams(("arbitrary",)),
    )(gx, gx, whh_blk)


# ----------------------------------------------------------------------------
# Kernel C: residual add + fused scorer FNNs (4 heads in one matmul), T padded to Tp.
# ----------------------------------------------------------------------------
def fnn_kernel(res_ref, hf_ref, hb_ref, w_ref, b_ref, out_ref):
    T = res_ref.shape[1]
    Tp = out_ref.shape[1]
    lstm = jnp.concatenate([hf_ref[0], hb_ref[0]], axis=-1)            # (T, 2Hp) bf16
    x = (res_ref[0].astype(jnp.float32) + lstm.astype(jnp.float32)).astype(jnp.bfloat16)
    y = jnp.dot(x, w_ref[...], preferred_element_type=jnp.float32) + b_ref[...]
    if T < Tp:
        out_ref[...] = jnp.zeros(out_ref.shape, out_ref.dtype)
    out_ref[0, :T, :] = y.astype(out_ref.dtype)


def fnn_scores(res, h_fwd, h_bwd, fnn_w, fnn_b, Tp):
    B, T, H2 = res.shape
    Hp = h_fwd.shape[-1]
    M4 = fnn_w.shape[1]
    return pl.pallas_call(
        fnn_kernel,
        out_shape=jax.ShapeDtypeStruct((B, Tp, M4), jnp.bfloat16),
        grid=(B,),
        in_specs=[
            pl.BlockSpec((1, T, H2), lambda b: (b, 0, 0)),
            pl.BlockSpec((1, T, Hp), lambda b: (b, 0, 0)),
            pl.BlockSpec((1, T, Hp), lambda b: (b, 0, 0)),
            pl.BlockSpec((H2, M4), lambda b: (0, 0)),
            pl.BlockSpec((1, M4), lambda b: (0, 0)),
        ],
        out_specs=pl.BlockSpec((1, Tp, M4), lambda b: (b, 0, 0)),
        compiler_params=_cparams(("parallel",)),
    )(res, h_fwd, h_bwd, fnn_w, fnn_b)


# ----------------------------------------------------------------------------
# Kernels D/E: biaffine attention — all L labels as one (L*Tp, Mp)x(Mp, Tp) matmul,
# dep contracted on its last dim (no pre-transpose), head/dep picked via lane blocks.
# ----------------------------------------------------------------------------
def biaffine_kernel(head_ref, dep_ref, u_ref, out_ref):
    Tp, Mp = head_ref.shape[1], head_ref.shape[2]
    L = out_ref.shape[1]
    h = head_ref[0]                                                     # (Tp, Mp) bf16
    d = dep_ref[0]                                                      # (Tp, Mp) bf16
    hu = jnp.dot(h, u_ref[...], preferred_element_type=jnp.float32)     # (Tp, L*Mp)
    hu_rows = jnp.concatenate(
        [hu[:, l * Mp:(l + 1) * Mp] for l in range(L)], axis=0).astype(jnp.bfloat16)
    s = jax.lax.dot_general(hu_rows, d, (((1,), (1,)), ((), ())),
                            preferred_element_type=jnp.float32)         # (L*Tp, Tp)
    out_ref[...] = s.reshape(1, L, Tp, Tp)


def biaffine(fnn, u_mat, head_blk, dep_blk, L):
    B, Tp, M4 = fnn.shape
    Mp = M4 // 4
    return pl.pallas_call(
        biaffine_kernel,
        out_shape=jax.ShapeDtypeStruct((B, L, Tp, Tp), jnp.float32),
        grid=(B,),
        in_specs=[
            pl.BlockSpec((1, Tp, Mp), lambda b: (b, 0, head_blk)),
            pl.BlockSpec((1, Tp, Mp), lambda b: (b, 0, dep_blk)),
            pl.BlockSpec((Mp, L * Mp), lambda b: (0, 0)),
        ],
        out_specs=pl.BlockSpec((1, L, Tp, Tp), lambda b: (b, 0, 0, 0)),
        compiler_params=_cparams(("parallel",)),
    )(fnn, fnn, u_mat)


# ----------------------------------------------------------------------------
# Parameter initialization + one-time packing (padding, fusion, bf16 layouts)
# ----------------------------------------------------------------------------
def init_params(key, n_words, n_pos, n_lemmas, E, H, M, L):
    ks = jax.random.split(key, 16)

    def nrm(k, shape, scale=0.1):
        return (scale * jax.random.normal(k, shape)).astype(jnp.float32)

    D = 3 * E
    return {
        "word_emb": nrm(ks[0], (n_words, E)),
        "pos_emb": nrm(ks[1], (n_pos, E)),
        "lemma_emb": nrm(ks[2], (n_lemmas, E)),
        "gates": jnp.ones((3,), jnp.float32),           # form/pos/lemma gates = 1.0
        "ln_gamma": jnp.ones((D,), jnp.float32),
        "ln_beta": jnp.zeros((D,), jnp.float32),
        # BiLSTM (1 layer, both directions). Gate order: i, f, g, o.
        # NOTE: PyTorch has b_ih + b_hh; here a single pre-summed bias per direction.
        "wih_f": nrm(ks[3], (D, 4 * H)),
        "whh_f": nrm(ks[4], (H, 4 * H)),
        "b_f": jnp.zeros((4 * H,), jnp.float32),
        "wih_b": nrm(ks[5], (D, 4 * H)),
        "whh_b": nrm(ks[6], (H, 4 * H)),
        "b_b": jnp.zeros((4 * H,), jnp.float32),
        # residual projection main_lstm_input -> 2*hidden_lstm
        "res_w": nrm(ks[7], (D, 2 * H)),
        "res_b": jnp.zeros((2 * H,), jnp.float32),
        # Scorer FNNs 2*hidden_lstm -> dim_mlp
        "eh_w": nrm(ks[8], (2 * H, M)), "eh_b": jnp.zeros((M,), jnp.float32),
        "ed_w": nrm(ks[9], (2 * H, M)), "ed_b": jnp.zeros((M,), jnp.float32),
        "lh_w": nrm(ks[10], (2 * H, M)), "lh_b": jnp.zeros((M,), jnp.float32),
        "ld_w": nrm(ks[11], (2 * H, M)), "ld_b": jnp.zeros((M,), jnp.float32),
        # biaffine tensors (bias row/col folded in -> M+1)
        "u_edge": nrm(ks[12], (1, M + 1, M + 1)),
        "u_label": nrm(ks[13], (L, M + 1, M + 1)),
    }


def _pad_gate_cols(w, H, Hp):
    """Pad a (..., 4H) i|f|g|o gate matrix to (..., 4Hp), each gate zero-padded."""
    parts = []
    for g in range(4):
        blk = w[..., g * H:(g + 1) * H]
        pad = [(0, 0)] * (w.ndim - 1) + [(0, Hp - H)]
        parts.append(jnp.pad(blk, pad))
    return jnp.concatenate(parts, axis=-1)


def prepare_params(p, E, H, M, L):
    D = 3 * E
    Hp = _round_up(H, 128)
    M1 = M + 1
    Mp = _round_up(M1, 128)

    gate_vec = jnp.concatenate([
        jnp.full((E,), p["gates"][0], jnp.float32),
        jnp.full((E,), p["gates"][1], jnp.float32),
        jnp.full((E,), p["gates"][2], jnp.float32)]).reshape(1, D)

    # LSTM input projections: per-gate padded to Hp, both directions fused.
    wih = jnp.concatenate([_pad_gate_cols(p["wih_f"], H, Hp),
                           _pad_gate_cols(p["wih_b"], H, Hp)], axis=1)
    bih = jnp.concatenate([_pad_gate_cols(p["b_f"].reshape(1, -1), H, Hp),
                           _pad_gate_cols(p["b_b"].reshape(1, -1), H, Hp)], axis=1)

    # Recurrent weights: block-diagonal [Whh_f 0; 0 Whh_b] -> one MXU matmul / step.
    # Padded h/c lanes stay exactly 0, so the zero padding is numerically exact.
    whh_f = jnp.pad(_pad_gate_cols(p["whh_f"], H, Hp), ((0, Hp - H), (0, 0)))
    whh_b = jnp.pad(_pad_gate_cols(p["whh_b"], H, Hp), ((0, Hp - H), (0, 0)))
    whh_blk = jnp.zeros((2 * Hp, 8 * Hp), jnp.float32)
    whh_blk = whh_blk.at[:Hp, :4 * Hp].set(whh_f)
    whh_blk = whh_blk.at[Hp:, 4 * Hp:].set(whh_b)

    # Residual projection: columns laid out [fwd Hp | bwd Hp] to match the LSTM output.
    res_w = jnp.zeros((D, 2 * Hp), jnp.float32)
    res_w = res_w.at[:, :H].set(p["res_w"][:, :H])
    res_w = res_w.at[:, Hp:Hp + H].set(p["res_w"][:, H:])
    res_b = jnp.zeros((2 * Hp,), jnp.float32)
    res_b = res_b.at[:H].set(p["res_b"][:H]).at[Hp:Hp + H].set(p["res_b"][H:])

    # Scorer FNNs: rows [fwd h (Hp) | bwd h (Hp)], cols padded to Mp; the biaffine
    # "ones" bias column is folded in at index M.
    def pad_fnn(w, b):
        w_p = jnp.zeros((2 * Hp, Mp), jnp.float32)
        w_p = w_p.at[:H, :M].set(w[:H]).at[Hp:Hp + H, :M].set(w[H:])
        b_p = jnp.zeros((Mp,), jnp.float32).at[:M].set(b).at[M].set(1.0)
        return w_p, b_p

    fnn_ws, fnn_bs = [], []
    for wk, bk in (("eh_w", "eh_b"), ("ed_w", "ed_b"),
                   ("lh_w", "lh_b"), ("ld_w", "ld_b")):
        w_p, b_p = pad_fnn(p[wk], p[bk])
        fnn_ws.append(w_p)
        fnn_bs.append(b_p)
    fnn_w = jnp.concatenate(fnn_ws, axis=1)                  # (2Hp, 4*Mp)
    fnn_b = jnp.concatenate(fnn_bs).reshape(1, 4 * Mp)

    def pad_u(u):  # (Lc, M1, M1) -> (Mp, Lc*Mp), zero-padded
        Lc = u.shape[0]
        u_p = jnp.zeros((Lc, Mp, Mp), jnp.float32).at[:, :M1, :M1].set(u)
        return jnp.transpose(u_p, (1, 0, 2)).reshape(Mp, Lc * Mp)

    return {
        "word_emb": p["word_emb"],
        "pos_emb": p["pos_emb"],
        "lemma_emb": p["lemma_emb"],
        "gate_vec": gate_vec,
        "ln_gamma": p["ln_gamma"].reshape(1, D),
        "ln_beta": p["ln_beta"].reshape(1, D),
        "wih": wih.astype(jnp.bfloat16),                     # (D, 8Hp)
        "bih": bih.astype(jnp.float32),                      # (1, 8Hp)
        "whh_blk": whh_blk.astype(jnp.bfloat16),             # (2Hp, 8Hp)
        "res_w": res_w.astype(jnp.bfloat16),                 # (D, 2Hp)
        "res_b": res_b.reshape(1, 2 * Hp),
        "fnn_w": fnn_w.astype(jnp.bfloat16),                 # (2Hp, 4Mp)
        "fnn_b": fnn_b,
        "u_edge": pad_u(p["u_edge"]).astype(jnp.bfloat16),   # (Mp, Mp)
        "u_label": pad_u(p["u_label"]).astype(jnp.bfloat16), # (Mp, L*Mp)
    }


# ----------------------------------------------------------------------------
# Full forward pass (mirrors BiLSTMModel.forward with the chosen settings)
# ----------------------------------------------------------------------------
def bilstm_model_forward(prep, seq_lengths, word_indices, pos_indices,
                         lemma_indices):
    del seq_lengths  # TODO(synk): packing/masking not implemented (full-length).

    # embedding lookups (XLA gather glue)
    form = jnp.take(prep["word_emb"], word_indices, axis=0)      # (B, T, E)
    pos = jnp.take(prep["pos_emb"], pos_indices, axis=0)
    lemma = jnp.take(prep["lemma_emb"], lemma_indices, axis=0)
    feats = jnp.concatenate([form, pos, lemma], axis=-1)         # (B, T, 3E)
    B, T, D = feats.shape
    Hp = prep["whh_blk"].shape[0] // 2
    Mp = prep["u_edge"].shape[0]
    L = prep["u_label"].shape[1] // Mp
    Tp = _round_up(T, 128)

    # A: gated merge + LayerNorm + fused LSTM-input / residual projections (bf16 out)
    gx, res = fused_input(feats.reshape(B * T, D), prep["gate_vec"],
                          prep["ln_gamma"], prep["ln_beta"],
                          prep["wih"], prep["bih"], prep["res_w"], prep["res_b"])
    gx = gx.reshape(B, T, 8 * Hp)
    res = res.reshape(B, T, 2 * Hp)

    # B: bidirectional recurrence (gx streamed in time chunks, carries in scratch)
    h_fwd, h_bwd = bilstm(gx, prep["whh_blk"], Hp)               # (B,T,Hp) each, bf16

    # C: residual add + fused scorer FNNs, token dim padded to Tp
    fnn = fnn_scores(res, h_fwd, h_bwd, prep["fnn_w"], prep["fnn_b"], Tp)

    # D/E: biaffine attention (head/dep are lane blocks 0..3 of the fused FNN output)
    edge = biaffine(fnn, prep["u_edge"], head_blk=0, dep_blk=1, L=1)   # (B,1,Tp,Tp)
    label = biaffine(fnn, prep["u_label"], head_blk=2, dep_blk=3, L=L) # (B,L,Tp,Tp)

    edge_scores = edge[:, 0, :T, :T]
    label_scores = label[:, :, :T, :T]

    other_edge_scores = None   # settings.ot is None
    other_label_scores = None
    return other_edge_scores, other_label_scores, edge_scores, label_scores


# ----------------------------------------------------------------------------
if __name__ == "__main__":
    B, T = 2, 8
    E, H, M, L = 32, 32, 32, 4        # dim_embedding, hidden_lstm, dim_mlp, n_labels
    n_words, n_pos, n_lemmas = 50, 12, 40

    key = jax.random.PRNGKey(0)
    pkey, ikey = jax.random.split(key)
    raw_params = init_params(pkey, n_words, n_pos, n_lemmas, E, H, M, L)
    prep = prepare_params(raw_params, E, H, M, L)

    k1, k2, k3 = jax.random.split(ikey, 3)
    word_indices = jax.random.randint(k1, (B, T), 0, n_words)
    pos_indices = jax.random.randint(k2, (B, T), 0, n_pos)
    lemma_indices = jax.random.randint(k3, (B, T), 0, n_lemmas)
    seq_lengths = jnp.full((B,), T, dtype=jnp.int32)

    fwd = jax.jit(bilstm_model_forward)
    oe, ol, edge_scores, label_scores = fwd(
        prep, seq_lengths, word_indices, pos_indices, lemma_indices)

    jax.block_until_ready((edge_scores, label_scores))
    assert edge_scores.shape == (B, T, T)
    assert label_scores.shape == (B, L, T, T)
    assert oe is None and ol is None
    print("KERNEL_OK")
</pallas_src>

<mosaic_0001>
module attributes {stable_mosaic.version = 11 : i64} {
  func.func @fused_input_kernel(%arg0: i32, %arg1: memref<16x96xf32, #tpu.memory_space<vmem>>, %arg2: memref<1x96xf32, #tpu.memory_space<vmem>>, %arg3: memref<1x96xf32, #tpu.memory_space<vmem>>, %arg4: memref<1x96xf32, #tpu.memory_space<vmem>>, %arg5: memref<96x1024xbf16, #tpu.memory_space<vmem>>, %arg6: memref<1x1024xf32, #tpu.memory_space<vmem>>, %arg7: memref<96x256xbf16, #tpu.memory_space<vmem>>, %arg8: memref<1x256xf32, #tpu.memory_space<vmem>>, %arg9: memref<16x1024xbf16, #tpu.memory_space<vmem>>, %arg10: memref<16x256xbf16, #tpu.memory_space<vmem>>) attributes {dimension_semantics = [#tpu.dimension_semantics<parallel>], iteration_bounds = array<i64: 1>, scalar_prefetch = 0 : i64, scratch_operands = 0 : i64, tpu.core_type = #tpu.core_type<tc>, window_params = [{transform_indices = @transform_0, window_bounds = array<i64: 16, 96>}, {pipeline_mode = #tpu.pipeline_mode<synchronous>, transform_indices = @transform_1, window_bounds = array<i64: 1, 96>}, {pipeline_mode = #tpu.pipeline_mode<synchronous>, transform_indices = @transform_2, window_bounds = array<i64: 1, 96>}, {pipeline_mode = #tpu.pipeline_mode<synchronous>, transform_indices = @transform_3, window_bounds = array<i64: 1, 96>}, {pipeline_mode = #tpu.pipeline_mode<synchronous>, transform_indices = @transform_4, window_bounds = array<i64: 96, 1024>}, {pipeline_mode = #tpu.pipeline_mode<synchronous>, transform_indices = @transform_5, window_bounds = array<i64: 1, 1024>}, {pipeline_mode = #tpu.pipeline_mode<synchronous>, transform_indices = @transform_6, window_bounds = array<i64: 96, 256>}, {pipeline_mode = #tpu.pipeline_mode<synchronous>, transform_indices = @transform_7, window_bounds = array<i64: 1, 256>}, {transform_indices = @transform_8, window_bounds = array<i64: 16, 1024>}, {transform_indices = @transform_9, window_bounds = array<i64: 16, 256>}]} {
    %c0 = arith.constant 0 : index
    %c0_0 = arith.constant 0 : index
    %0 = vector.load %arg1[%c0, %c0_0] : memref<16x96xf32, #tpu.memory_space<vmem>>, vector<16x96xf32>
    %c0_1 = arith.constant 0 : index
    %c0_2 = arith.constant 0 : index
    %1 = vector.load %arg2[%c0_1, %c0_2] : memref<1x96xf32, #tpu.memory_space<vmem>>, vector<1x96xf32>
    %2 = vector.broadcast %1 : vector<1x96xf32> to vector<16x96xf32>
    %3 = arith.mulf %0, %2 : vector<16x96xf32>
    %cst = arith.constant dense<0.000000e+00> : vector<16xf32>
    %4 = vector.multi_reduction <add>, %3, %cst [1] : vector<16x96xf32> to vector<16xf32>
    %5 = vector.shape_cast %4 : vector<16xf32> to vector<16x1xf32>
    %cst_3 = arith.constant 9.600000e+01 : f32
    %6 = vector.broadcast %cst_3 : f32 to vector<16x1xf32>
    %7 = arith.divf %5, %6 : vector<16x1xf32>
    %8 = vector.broadcast %7 : vector<16x1xf32> to vector<16x96xf32>
    %9 = arith.subf %3, %8 : vector<16x96xf32>
    %10 = arith.mulf %9, %9 : vector<16x96xf32>
    %cst_4 = arith.constant dense<0.000000e+00> : vector<16xf32>
    %11 = vector.multi_reduction <add>, %10, %cst_4 [1] : vector<16x96xf32> to vector<16xf32>
    %12 = vector.shape_cast %11 : vector<16xf32> to vector<16x1xf32>
    %cst_5 = arith.constant 9.600000e+01 : f32
    %13 = vector.broadcast %cst_5 : f32 to vector<16x1xf32>
    %14 = arith.divf %12, %13 : vector<16x1xf32>
    %15 = vector.broadcast %7 : vector<16x1xf32> to vector<16x96xf32>
    %16 = arith.subf %3, %15 : vector<16x96xf32>
    %cst_6 = arith.constant 9.99999974E-6 : f32
    %17 = vector.broadcast %cst_6 : f32 to vector<16x1xf32>
    %18 = arith.addf %14, %17 : vector<16x1xf32>
    %19 = math.rsqrt %18 : vector<16x1xf32>
    %20 = vector.broadcast %19 : vector<16x1xf32> to vector<16x96xf32>
    %21 = arith.mulf %16, %20 : vector<16x96xf32>
    %c0_7 = arith.constant 0 : index
    %c0_8 = arith.constant 0 : index
    %22 = vector.load %arg3[%c0_7, %c0_8] : memref<1x96xf32, #tpu.memory_space<vmem>>, vector<1x96xf32>
    %23 = vector.broadcast %22 : vector<1x96xf32> to vector<16x96xf32>
    %24 = arith.mulf %21, %23 : vector<16x96xf32>
    %c0_9 = arith.constant 0 : index
    %c0_10 = arith.constant 0 : index
    %25 = vector.load %arg4[%c0_9, %c0_10] : memref<1x96xf32, #tpu.memory_space<vmem>>, vector<1x96xf32>
    %26 = vector.broadcast %25 : vector<1x96xf32> to vector<16x96xf32>
    %27 = arith.addf %24, %26 : vector<16x96xf32>
    %28 = arith.truncf %27 : vector<16x96xf32> to vector<16x96xbf16>
    %c0_11 = arith.constant 0 : index
    %c0_12 = arith.constant 0 : index
    %29 = vector.load %arg5[%c0_11, %c0_12] : memref<96x1024xbf16, #tpu.memory_space<vmem>>, vector<96x1024xbf16>
    %cst_13 = arith.constant dense<0.000000e+00> : vector<16x1024xf32>
    %30 = tpu.matmul %28, %29, %cst_13 {dimension_numbers = #tpu.dot_dimension_numbers<[1], [0], [0], [1], [0, 0, 1, 1], [], []>} : vector<16x96xbf16>, vector<96x1024xbf16>, vector<16x1024xf32> -> vector<16x1024xf32>
    %c0_14 = arith.constant 0 : index
    %c0_15 = arith.constant 0 : index
    %31 = vector.load %arg6[%c0_14, %c0_15] : memref<1x1024xf32, #tpu.memory_space<vmem>>, vector<1x1024xf32>
    %32 = vector.broadcast %31 : vector<1x1024xf32> to vector<16x1024xf32>
    %33 = arith.addf %30, %32 : vector<16x1024xf32>
    %34 = arith.truncf %33 : vector<16x1024xf32> to vector<16x1024xbf16>
    %c0_16 = arith.constant 0 : index
    %c0_17 = arith.constant 0 : index
    %35 = vector.load %arg9[%c0_16, %c0_17] : memref<16x1024xbf16, #tpu.memory_space<vmem>>, vector<16x1024xbf16>
    tpu.vector_store %arg9[%c0_16, %c0_17], %34 {strides = array<i32>} : memref<16x1024xbf16, #tpu.memory_space<vmem>>, vector<16x1024xbf16>,
    %c0_18 = arith.constant 0 : index
    %c0_19 = arith.constant 0 : index
    %36 = vector.load %arg7[%c0_18, %c0_19] : memref<96x256xbf16, #tpu.memory_space<vmem>>, vector<96x256xbf16>
    %cst_20 = arith.constant dense<0.000000e+00> : vector<16x256xf32>
    %37 = tpu.matmul %28, %36, %cst_20 {dimension_numbers = #tpu.dot_dimension_numbers<[1], [0], [0], [1], [0, 0, 1, 1], [], []>} : vector<16x96xbf16>, vector<96x256xbf16>, vector<16x256xf32> -> vector<16x256xf32>
    %c0_21 = arith.constant 0 : index
    %c0_22 = arith.constant 0 : index
    %38 = vector.load %arg8[%c0_21, %c0_22] : memref<1x256xf32, #tpu.memory_space<vmem>>, vector<1x256xf32>
    %39 = vector.broadcast %38 : vector<1x256xf32> to vector<16x256xf32>
    %40 = arith.addf %37, %39 : vector<16x256xf32>
    %41 = arith.truncf %40 : vector<16x256xf32> to vector<16x256xbf16>
    %c0_23 = arith.constant 0 : index
    %c0_24 = arith.constant 0 : index
    %42 = vector.load %arg10[%c0_23, %c0_24] : memref<16x256xbf16, #tpu.memory_space<vmem>>, vector<16x256xbf16>
    tpu.vector_store %arg10[%c0_23, %c0_24], %41 {strides = array<i32>} : memref<16x256xbf16, #tpu.memory_space<vmem>>, vector<16x256xbf16>,
    return
  }
  func.func @transform_0(%arg0: i32) -> (i32, i32) {
    %c0_i32 = arith.constant 0 : i32
    %c0_i32_0 = arith.constant 0 : i32
    return %arg0, %c0_i32 : i32, i32
  }
  func.func @transform_1(%arg0: i32) -> (i32, i32) {
    %c0_i32 = arith.constant 0 : i32
    %c0_i32_0 = arith.constant 0 : i32
    %c0_i32_1 = arith.constant 0 : i32
    return %c0_i32, %c0_i32_0 : i32, i32
  }
  func.func @transform_2(%arg0: i32) -> (i32, i32) {
    %c0_i32 = arith.constant 0 : i32
    %c0_i32_0 = arith.constant 0 : i32
    %c0_i32_1 = arith.constant 0 : i32
    return %c0_i32, %c0_i32_0 : i32, i32
  }
  func.func @transform_3(%arg0: i32) -> (i32, i32) {
    %c0_i32 = arith.constant 0 : i32
    %c0_i32_0 = arith.constant 0 : i32
    %c0_i32_1 = arith.constant 0 : i32
    return %c0_i32, %c0_i32_0 : i32, i32
  }
  func.func @transform_4(%arg0: i32) -> (i32, i32) {
    %c0_i32 = arith.constant 0 : i32
    %c0_i32_0 = arith.constant 0 : i32
    %c0_i32_1 = arith.constant 0 : i32
    return %c0_i32, %c0_i32_0 : i32, i32
  }
  func.func @transform_5(%arg0: i32) -> (i32, i32) {
    %c0_i32 = arith.constant 0 : i32
    %c0_i32_0 = arith.constant 0 : i32
    %c0_i32_1 = arith.constant 0 : i32
    return %c0_i32, %c0_i32_0 : i32, i32
  }
  func.func @transform_6(%arg0: i32) -> (i32, i32) {
    %c0_i32 = arith.constant 0 : i32
    %c0_i32_0 = arith.constant 0 : i32
    %c0_i32_1 = arith.constant 0 : i32
    return %c0_i32, %c0_i32_0 : i32, i32
  }
  func.func @transform_7(%arg0: i32) -> (i32, i32) {
    %c0_i32 = arith.constant 0 : i32
    %c0_i32_0 = arith.constant 0 : i32
    %c0_i32_1 = arith.constant 0 : i32
    return %c0_i32, %c0_i32_0 : i32, i32
  }
  func.func @transform_8(%arg0: i32) -> (i32, i32) {
    %c0_i32 = arith.constant 0 : i32
    %c0_i32_0 = arith.constant 0 : i32
    return %arg0, %c0_i32 : i32, i32
  }
  func.func @transform_9(%arg0: i32) -> (i32, i32) {
    %c0_i32 = arith.constant 0 : i32
    %c0_i32_0 = arith.constant 0 : i32
    return %arg0, %c0_i32 : i32, i32
  }
}

module attributes {stable_mosaic.version = 11 : i64} {
  func.func @fnn_kernel(%arg0: i32, %arg1: memref<1x8x256xbf16, #tpu.memory_space<vmem>>, %arg2: memref<1x8x128xbf16, #tpu.memory_space<vmem>>, %arg3: memref<1x8x128xbf16, #tpu.memory_space<vmem>>, %arg4: memref<256x512xbf16, #tpu.memory_space<vmem>>, %arg5: memref<1x512xf32, #tpu.memory_space<vmem>>, %arg6: memref<1x128x512xbf16, #tpu.memory_space<vmem>>) attributes {dimension_semantics = [#tpu.dimension_semantics<parallel>], iteration_bounds = array<i64: 2>, scalar_prefetch = 0 : i64, scratch_operands = 0 : i64, tpu.core_type = #tpu.core_type<tc>, window_params = [{transform_indices = @transform_0, window_bounds = array<i64: 1, 8, 256>}, {transform_indices = @transform_1, window_bounds = array<i64: 1, 8, 128>}, {transform_indices = @transform_2, window_bounds = array<i64: 1, 8, 128>}, {pipeline_mode = #tpu.pipeline_mode<synchronous>, transform_indices = @transform_3, window_bounds = array<i64: 256, 512>}, {pipeline_mode = #tpu.pipeline_mode<synchronous>, transform_indices = @transform_4, window_bounds = array<i64: 1, 512>}, {transform_indices = @transform_5, window_bounds = array<i64: 1, 128, 512>}]} {
    %c0 = arith.constant 0 : index
    %c0_0 = arith.constant 0 : index
    %c0_1 = arith.constant 0 : index
    %0 = vector.load %arg2[%c0, %c0_0, %c0_1] : memref<1x8x128xbf16, #tpu.memory_space<vmem>>, vector<1x8x128xbf16>
    %1 = vector.shape_cast %0 : vector<1x8x128xbf16> to vector<8x128xbf16>
    %c0_2 = arith.constant 0 : index
    %c0_3 = arith.constant 0 : index
    %c0_4 = arith.constant 0 : index
    %2 = vector.load %arg3[%c0_2, %c0_3, %c0_4] : memref<1x8x128xbf16, #tpu.memory_space<vmem>>, vector<1x8x128xbf16>
    %3 = vector.shape_cast %2 : vector<1x8x128xbf16> to vector<8x128xbf16>
    %4 = tpu.concatenate %1, %3 in 1 : vector<8x128xbf16>, vector<8x128xbf16> -> vector<8x256xbf16>
    %c0_5 = arith.constant 0 : index
    %c0_6 = arith.constant 0 : index
    %c0_7 = arith.constant 0 : index
    %5 = vector.load %arg1[%c0_5, %c0_6, %c0_7] : memref<1x8x256xbf16, #tpu.memory_space<vmem>>, vector<1x8x256xbf16>
    %6 = vector.shape_cast %5 : vector<1x8x256xbf16> to vector<8x256xbf16>
    %7 = arith.extf %6 : vector<8x256xbf16> to vector<8x256xf32>
    %8 = arith.extf %4 : vector<8x256xbf16> to vector<8x256xf32>
    %9 = arith.addf %7, %8 : vector<8x256xf32>
    %10 = arith.truncf %9 : vector<8x256xf32> to vector<8x256xbf16>
    %c0_8 = arith.constant 0 : index
    %c0_9 = arith.constant 0 : index
    %11 = vector.load %arg4[%c0_8, %c0_9] : memref<256x512xbf16, #tpu.memory_space<vmem>>, vector<256x512xbf16>
    %cst = arith.constant dense<0.000000e+00> : vector<8x512xf32>
    %12 = tpu.matmul %10, %11, %cst {dimension_numbers = #tpu.dot_dimension_numbers<[1], [0], [0], [1], [0, 0, 1, 1], [], []>} : vector<8x256xbf16>, vector<256x512xbf16>, vector<8x512xf32> -> vector<8x512xf32>
    %c0_10 = arith.constant 0 : index
    %c0_11 = arith.constant 0 : index
    %13 = vector.load %arg5[%c0_10, %c0_11] : memref<1x512xf32, #tpu.memory_space<vmem>>, vector<1x512xf32>
    %14 = vector.broadcast %13 : vector<1x512xf32> to vector<8x512xf32>
    %15 = arith.addf %12, %14 : vector<8x512xf32>
    %cst_12 = arith.constant 0.000000e+00 : bf16
    %16 = vector.broadcast %cst_12 : bf16 to vector<1x128x512xbf16>
    %c0_13 = arith.constant 0 : index
    %c0_14 = arith.constant 0 : index
    %c0_15 = arith.constant 0 : index
    %17 = vector.load %arg6[%c0_13, %c0_14, %c0_15] : memref<1x128x512xbf16, #tpu.memory_space<vmem>>, vector<1x128x512xbf16>
    tpu.vector_store %arg6[%c0_13, %c0_14, %c0_15], %16 {strides = array<i32>} : memref<1x128x512xbf16, #tpu.memory_space<vmem>>, vector<1x128x512xbf16>,
    %18 = arith.truncf %15 : vector<8x512xf32> to vector<8x512xbf16>
    %c0_16 = arith.constant 0 : index
    %c0_17 = arith.constant 0 : index
    %c0_18 = arith.constant 0 : index
    %19 = vector.load %arg6[%c0_16, %c0_17, %c0_18] : memref<1x128x512xbf16, #tpu.memory_space<vmem>>, vector<1x8x512xbf16>
    %20 = vector.shape_cast %19 : vector<1x8x512xbf16> to vector<8x512xbf16>
    %21 = vector.shape_cast %18 : vector<8x512xbf16> to vector<1x8x512xbf16>
    tpu.vector_store %arg6[%c0_16, %c0_17, %c0_18], %21 {strides = array<i32>} : memref<1x128x512xbf16, #tpu.memory_space<vmem>>, vector<1x8x512xbf16>,
    return
  }
  func.func @transform_0(%arg0: i32) -> (i32, i32, i32) {
    %c0_i32 = arith.constant 0 : i32
    %c0_i32_0 = arith.constant 0 : i32
    %c0_i32_1 = arith.constant 0 : i32
    return %arg0, %c0_i32, %c0_i32_0 : i32, i32, i32
  }
  func.func @transform_1(%arg0: i32) -> (i32, i32, i32) {
    %c0_i32 = arith.constant 0 : i32
    %c0_i32_0 = arith.constant 0 : i32
    %c0_i32_1 = arith.constant 0 : i32
    return %arg0, %c0_i32, %c0_i32_0 : i32, i32, i32
  }
  func.func @transform_2(%arg0: i32) -> (i32, i32, i32) {
    %c0_i32 = arith.constant 0 : i32
    %c0_i32_0 = arith.constant 0 : i32
    %c0_i32_1 = arith.constant 0 : i32
    return %arg0, %c0_i32, %c0_i32_0 : i32, i32, i32
  }
  func.func @transform_3(%arg0: i32) -> (i32, i32) {
    %c0_i32 = arith.constant 0 : i32
    %c0_i32_0 = arith.constant 0 : i32
    %c0_i32_1 = arith.constant 0 : i32
    return %c0_i32, %c0_i32_0 : i32, i32
  }
  func.func @transform_4(%arg0: i32) -> (i32, i32) {
    %c0_i32 = arith.constant 0 : i32
    %c0_i32_0 = arith.constant 0 : i32
    %c0_i32_1 = arith.constant 0 : i32
    return %c0_i32, %c0_i32_0 : i32, i32
  }
  func.func @transform_5(%arg0: i32) -> (i32, i32, i32) {
    %c0_i32 = arith.constant 0 : i32
    %c0_i32_0 = arith.constant 0 : i32
    %c0_i32_1 = arith.constant 0 : i32
    return %arg0, %c0_i32, %c0_i32_0 : i32, i32, i32
  }
}

module attributes {stable_mosaic.version = 11 : i64} {
  func.func @biaffine_kernel(%arg0: i32, %arg1: memref<1x128x128xbf16, #tpu.memory_space<vmem>>, %arg2: memref<1x128x128xbf16, #tpu.memory_space<vmem>>, %arg3: memref<128x128xbf16, #tpu.memory_space<vmem>>, %arg4: memref<1x1x128x128xf32, #tpu.memory_space<vmem>>) attributes {dimension_semantics = [#tpu.dimension_semantics<parallel>], iteration_bounds = array<i64: 2>, scalar_prefetch = 0 : i64, scratch_operands = 0 : i64, tpu.core_type = #tpu.core_type<tc>, window_params = [{transform_indices = @transform_0, window_bounds = array<i64: 1, 128, 128>}, {transform_indices = @transform_1, window_bounds = array<i64: 1, 128, 128>}, {pipeline_mode = #tpu.pipeline_mode<synchronous>, transform_indices = @transform_2, window_bounds = array<i64: 128, 128>}, {transform_indices = @transform_3, window_bounds = array<i64: 1, 1, 128, 128>}]} {
    %c0 = arith.constant 0 : index
    %c0_0 = arith.constant 0 : index
    %c0_1 = arith.constant 0 : index
    %0 = vector.load %arg1[%c0, %c0_0, %c0_1] : memref<1x128x128xbf16, #tpu.memory_space<vmem>>, vector<1x128x128xbf16>
    %1 = vector.shape_cast %0 : vector<1x128x128xbf16> to vector<128x128xbf16>
    %c0_2 = arith.constant 0 : index
    %c0_3 = arith.constant 0 : index
    %c0_4 = arith.constant 0 : index
    %2 = vector.load %arg2[%c0_2, %c0_3, %c0_4] : memref<1x128x128xbf16, #tpu.memory_space<vmem>>, vector<1x128x128xbf16>
    %3 = vector.shape_cast %2 : vector<1x128x128xbf16> to vector<128x128xbf16>
    %c0_5 = arith.constant 0 : index
    %c0_6 = arith.constant 0 : index
    %4 = vector.load %arg3[%c0_5, %c0_6] : memref<128x128xbf16, #tpu.memory_space<vmem>>, vector<128x128xbf16>
    %cst = arith.constant dense<0.000000e+00> : vector<128x128xf32>
    %5 = tpu.matmul %1, %4, %cst {dimension_numbers = #tpu.dot_dimension_numbers<[1], [0], [0], [1], [0, 0, 1, 1], [], []>} : vector<128x128xbf16>, vector<128x128xbf16>, vector<128x128xf32> -> vector<128x128xf32>
    %6 = arith.truncf %5 : vector<128x128xf32> to vector<128x128xbf16>
    %cst_7 = arith.constant dense<0.000000e+00> : vector<128x128xf32>
    %7 = tpu.matmul %6, %3, %cst_7 {dimension_numbers = #tpu.dot_dimension_numbers<[1], [1], [0], [0], [0, 0, 1, 0], [], []>} : vector<128x128xbf16>, vector<128x128xbf16>, vector<128x128xf32> -> vector<128x128xf32>
    %8 = vector.shape_cast %7 : vector<128x128xf32> to vector<1x1x128x128xf32>
    %c0_8 = arith.constant 0 : index
    %c0_9 = arith.constant 0 : index
    %c0_10 = arith.constant 0 : index
    %c0_11 = arith.constant 0 : index
    %9 = vector.load %arg4[%c0_8, %c0_9, %c0_10, %c0_11] : memref<1x1x128x128xf32, #tpu.memory_space<vmem>>, vector<1x1x128x128xf32>
    tpu.vector_store %arg4[%c0_8, %c0_9, %c0_10, %c0_11], %8 {strides = array<i32>} : memref<1x1x128x128xf32, #tpu.memory_space<vmem>>, vector<1x1x128x128xf32>,
    return
  }
  func.func @transform_0(%arg0: i32) -> (i32, i32, i32) {
    %c0_i32 = arith.constant 0 : i32
    %c0_i32_0 = arith.constant 0 : i32
    %c0_i32_1 = arith.constant 0 : i32
    return %arg0, %c0_i32, %c0_i32_0 : i32, i32, i32
  }
  func.func @transform_1(%arg0: i32) -> (i32, i32, i32) {
    %c0_i32 = arith.constant 0 : i32
    %c1_i32 = arith.constant 1 : i32
    %c0_i32_0 = arith.constant 0 : i32
    return %arg0, %c0_i32, %c1_i32 : i32, i32, i32
  }
  func.func @transform_2(%arg0: i32) -> (i32, i32) {
    %c0_i32 = arith.constant 0 : i32
    %c0_i32_0 = arith.constant 0 : i32
    %c0_i32_1 = arith.constant 0 : i32
    return %c0_i32, %c0_i32_0 : i32, i32
  }
  func.func @transform_3(%arg0: i32) -> (i32, i32, i32, i32) {
    %c0_i32 = arith.constant 0 : i32
    %c0_i32_0 = arith.constant 0 : i32
    %c0_i32_1 = arith.constant 0 : i32
    %c0_i32_2 = arith.constant 0 : i32
    return %arg0, %c0_i32, %c0_i32_0, %c0_i32_1 : i32, i32, i32, i32
  }
}

module attributes {stable_mosaic.version = 11 : i64} {
  func.func @bilstm_kernel(%arg0: i32, %arg1: memref<2x8x512xbf16, #tpu.memory_space<vmem>>, %arg2: memref<2x8x512xbf16, #tpu.memory_space<vmem>>, %arg3: memref<256x1024xbf16, #tpu.memory_space<vmem>>, %arg4: memref<2x8x128xbf16, #tpu.memory_space<vmem>>, %arg5: memref<2x8x128xbf16, #tpu.memory_space<vmem>>, %arg6: memref<2x256xf32, #tpu.memory_space<vmem>>, %arg7: memref<2x256xf32, #tpu.memory_space<vmem>>) attributes {dimension_semantics = [#tpu.dimension_semantics<arbitrary>], iteration_bounds = array<i64: 1>, scalar_prefetch = 0 : i64, scratch_operands = 2 : i64, tpu.core_type = #tpu.core_type<tc>, window_params = [{transform_indices = @transform_0, window_bounds = array<i64: 2, 8, 512>}, {transform_indices = @transform_1, window_bounds = array<i64: 2, 8, 512>}, {pipeline_mode = #tpu.pipeline_mode<synchronous>, transform_indices = @transform_2, window_bounds = array<i64: 256, 1024>}, {transform_indices = @transform_3, window_bounds = array<i64: 2, 8, 128>}, {transform_indices = @transform_4, window_bounds = array<i64: 2, 8, 128>}]} {
    %c0_i32 = arith.constant 0 : i32
    %0 = arith.cmpi eq, %arg0, %c0_i32 : i32
    %1 = arith.extui %0 : i1 to i32
    %c0_i32_0 = arith.constant 0 : i32
    %2 = arith.cmpi ne, %1, %c0_i32_0 : i32
    scf.if %2 {
      %cst_186 = arith.constant 0.000000e+00 : f32
      %452 = vector.broadcast %cst_186 : f32 to vector<2x256xf32>
      %c0_187 = arith.constant 0 : index
      %c0_188 = arith.constant 0 : index
      %453 = vector.load %arg6[%c0_187, %c0_188] : memref<2x256xf32, #tpu.memory_space<vmem>>, vector<2x256xf32>
      tpu.vector_store %arg6[%c0_187, %c0_188], %452 {strides = array<i32>} : memref<2x256xf32, #tpu.memory_space<vmem>>, vector<2x256xf32>,
      %cst_189 = arith.constant 0.000000e+00 : f32
      %454 = vector.broadcast %cst_189 : f32 to vector<2x256xf32>
      %c0_190 = arith.constant 0 : index
      %c0_191 = arith.constant 0 : index
      %455 = vector.load %arg7[%c0_190, %c0_191] : memref<2x256xf32, #tpu.memory_space<vmem>>, vector<2x256xf32>
      tpu.vector_store %arg7[%c0_190, %c0_191], %454 {strides = array<i32>} : memref<2x256xf32, #tpu.memory_space<vmem>>, vector<2x256xf32>,
    } else {
    }
    %c0 = arith.constant 0 : index
    %c0_1 = arith.constant 0 : index
    %3 = vector.load %arg3[%c0, %c0_1] : memref<256x1024xbf16, #tpu.memory_space<vmem>>, vector<256x1024xbf16>
    %c0_2 = arith.constant 0 : index
    %c0_3 = arith.constant 0 : index
    %c0_4 = arith.constant 0 : index
    %4 = vector.load %arg1[%c0_2, %c0_3, %c0_4] : memref<2x8x512xbf16, #tpu.memory_space<vmem>>, vector<2x1x512xbf16>
    %5 = vector.shape_cast %4 : vector<2x1x512xbf16> to vector<2x512xbf16>
    %c0_5 = arith.constant 0 : index
    %c7 = arith.constant 7 : index
    %c0_6 = arith.constant 0 : index
    %6 = vector.load %arg2[%c0_5, %c7, %c0_6] : memref<2x8x512xbf16, #tpu.memory_space<vmem>>, vector<2x1x512xbf16>
    %7 = vector.shape_cast %6 : vector<2x1x512xbf16> to vector<2x512xbf16>
    %8 = tpu.concatenate %5, %7 in 1 : vector<2x512xbf16>, vector<2x512xbf16> -> vector<2x1024xbf16>
    %9 = arith.extf %8 : vector<2x1024xbf16> to vector<2x1024xf32>
    %c0_7 = arith.constant 0 : index
    %c0_8 = arith.constant 0 : index
    %10 = vector.load %arg6[%c0_7, %c0_8] : memref<2x256xf32, #tpu.memory_space<vmem>>, vector<2x256xf32>
    %11 = arith.truncf %10 : vector<2x256xf32> to vector<2x256xbf16>
    %cst = arith.constant dense<0.000000e+00> : vector<2x1024xf32>
    %12 = tpu.matmul %11, %3, %cst {dimension_numbers = #tpu.dot_dimension_numbers<[1], [0], [0], [1], [0, 0, 1, 1], [], []>} : vector<2x256xbf16>, vector<256x1024xbf16>, vector<2x1024xf32> -> vector<2x1024xf32>
    %13 = arith.addf %9, %12 : vector<2x1024xf32>
    %14 = vector.extract_strided_slice %13 {offsets = [0, 0], sizes = [2, 128], strides = [1, 1]} : vector<2x1024xf32> to vector<2x128xf32>
    %15 = vector.extract_strided_slice %13 {offsets = [0, 512], sizes = [2, 128], strides = [1, 1]} : vector<2x1024xf32> to vector<2x128xf32>
    %16 = tpu.concatenate %14, %15 in 1 : vector<2x128xf32>, vector<2x128xf32> -> vector<2x256xf32>
    %17 = arith.negf %16 : vector<2x256xf32>
    %18 = math.exp %17 : vector<2x256xf32>
    %cst_9 = arith.constant 1.000000e+00 : f32
    %19 = vector.broadcast %cst_9 : f32 to vector<2x256xf32>
    %20 = arith.addf %19, %18 : vector<2x256xf32>
    %21 = arith.divf %19, %20 : vector<2x256xf32>
    %22 = vector.extract_strided_slice %13 {offsets = [0, 128], sizes = [2, 128], strides = [1, 1]} : vector<2x1024xf32> to vector<2x128xf32>
    %23 = vector.extract_strided_slice %13 {offsets = [0, 640], sizes = [2, 128], strides = [1, 1]} : vector<2x1024xf32> to vector<2x128xf32>
    %24 = tpu.concatenate %22, %23 in 1 : vector<2x128xf32>, vector<2x128xf32> -> vector<2x256xf32>
    %25 = arith.negf %24 : vector<2x256xf32>
    %26 = math.exp %25 : vector<2x256xf32>
    %cst_10 = arith.constant 1.000000e+00 : f32
    %27 = vector.broadcast %cst_10 : f32 to vector<2x256xf32>
    %28 = arith.addf %27, %26 : vector<2x256xf32>
    %29 = arith.divf %27, %28 : vector<2x256xf32>
    %30 = vector.extract_strided_slice %13 {offsets = [0, 256], sizes = [2, 128], strides = [1, 1]} : vector<2x1024xf32> to vector<2x128xf32>
    %31 = vector.extract_strided_slice %13 {offsets = [0, 768], sizes = [2, 128], strides = [1, 1]} : vector<2x1024xf32> to vector<2x128xf32>
    %32 = tpu.concatenate %30, %31 in 1 : vector<2x128xf32>, vector<2x128xf32> -> vector<2x256xf32>
    %33 = math.tanh %32 : vector<2x256xf32>
    %34 = vector.extract_strided_slice %13 {offsets = [0, 384], sizes = [2, 128], strides = [1, 1]} : vector<2x1024xf32> to vector<2x128xf32>
    %35 = vector.extract_strided_slice %13 {offsets = [0, 896], sizes = [2, 128], strides = [1, 1]} : vector<2x1024xf32> to vector<2x128xf32>
    %36 = tpu.concatenate %34, %35 in 1 : vector<2x128xf32>, vector<2x128xf32> -> vector<2x256xf32>
    %37 = arith.negf %36 : vector<2x256xf32>
    %38 = math.exp %37 : vector<2x256xf32>
    %cst_11 = arith.constant 1.000000e+00 : f32
    %39 = vector.broadcast %cst_11 : f32 to vector<2x256xf32>
    %40 = arith.addf %39, %38 : vector<2x256xf32>
    %41 = arith.divf %39, %40 : vector<2x256xf32>
    %c0_12 = arith.constant 0 : index
    %c0_13 = arith.constant 0 : index
    %42 = vector.load %arg7[%c0_12, %c0_13] : memref<2x256xf32, #tpu.memory_space<vmem>>, vector<2x256xf32>
    %43 = arith.mulf %29, %42 : vector<2x256xf32>
    %44 = arith.mulf %21, %33 : vector<2x256xf32>
    %45 = arith.addf %43, %44 : vector<2x256xf32>
    %46 = math.tanh %45 : vector<2x256xf32>
    %47 = arith.mulf %41, %46 : vector<2x256xf32>
    %c0_14 = arith.constant 0 : index
    %c0_15 = arith.constant 0 : index
    %48 = vector.load %arg6[%c0_14, %c0_15] : memref<2x256xf32, #tpu.memory_space<vmem>>, vector<2x256xf32>
    tpu.vector_store %arg6[%c0_14, %c0_15], %47 {strides = array<i32>} : memref<2x256xf32, #tpu.memory_space<vmem>>, vector<2x256xf32>,
    %c0_16 = arith.constant 0 : index
    %c0_17 = arith.constant 0 : index
    %49 = vector.load %arg7[%c0_16, %c0_17] : memref<2x256xf32, #tpu.memory_space<vmem>>, vector<2x256xf32>
    tpu.vector_store %arg7[%c0_16, %c0_17], %45 {strides = array<i32>} : memref<2x256xf32, #tpu.memory_space<vmem>>, vector<2x256xf32>,
    %50 = vector.extract_strided_slice %47 {offsets = [0, 0], sizes = [2, 128], strides = [1, 1]} : vector<2x256xf32> to vector<2x128xf32>
    %51 = arith.truncf %50 : vector<2x128xf32> to vector<2x128xbf16>
    %c0_18 = arith.constant 0 : index
    %c0_19 = arith.constant 0 : index
    %c0_20 = arith.constant 0 : index
    %52 = vector.load %arg4[%c0_18, %c0_19, %c0_20] : memref<2x8x128xbf16, #tpu.memory_space<vmem>>, vector<2x1x128xbf16>
    %53 = vector.shape_cast %52 : vector<2x1x128xbf16> to vector<2x128xbf16>
    %54 = vector.shape_cast %51 : vector<2x128xbf16> to vector<2x1x128xbf16>
    tpu.vector_store %arg4[%c0_18, %c0_19, %c0_20], %54 {strides = array<i32>} : memref<2x8x128xbf16, #tpu.memory_space<vmem>>, vector<2x1x128xbf16>,
    %55 = vector.extract_strided_slice %47 {offsets = [0, 128], sizes = [2, 128], strides = [1, 1]} : vector<2x256xf32> to vector<2x128xf32>
    %56 = arith.truncf %55 : vector<2x128xf32> to vector<2x128xbf16>
    %c0_21 = arith.constant 0 : index
    %c7_22 = arith.constant 7 : index
    %c0_23 = arith.constant 0 : index
    %57 = vector.load %arg5[%c0_21, %c7_22, %c0_23] : memref<2x8x128xbf16, #tpu.memory_space<vmem>>, vector<2x1x128xbf16>
    %58 = vector.shape_cast %57 : vector<2x1x128xbf16> to vector<2x128xbf16>
    %59 = vector.shape_cast %56 : vector<2x128xbf16> to vector<2x1x128xbf16>
    tpu.vector_store %arg5[%c0_21, %c7_22, %c0_23], %59 {strides = array<i32>} : memref<2x8x128xbf16, #tpu.memory_space<vmem>>, vector<2x1x128xbf16>,
    %c0_24 = arith.constant 0 : index
    %c1 = arith.constant 1 : index
    %c0_25 = arith.constant 0 : index
    %60 = vector.load %arg1[%c0_24, %c1, %c0_25] : memref<2x8x512xbf16, #tpu.memory_space<vmem>>, vector<2x1x512xbf16>
    %61 = vector.shape_cast %60 : vector<2x1x512xbf16> to vector<2x512xbf16>
    %c0_26 = arith.constant 0 : index
    %c6 = arith.constant 6 : index
    %c0_27 = arith.constant 0 : index
    %62 = vector.load %arg2[%c0_26, %c6, %c0_27] : memref<2x8x512xbf16, #tpu.memory_space<vmem>>, vector<2x1x512xbf16>
    %63 = vector.shape_cast %62 : vector<2x1x512xbf16> to vector<2x512xbf16>
    %64 = tpu.concatenate %61, %63 in 1 : vector<2x512xbf16>, vector<2x512xbf16> -> vector<2x1024xbf16>
    %65 = arith.extf %64 : vector<2x1024xbf16> to vector<2x1024xf32>
    %c0_28 = arith.constant 0 : index
    %c0_29 = arith.constant 0 : index
    %66 = vector.load %arg6[%c0_28, %c0_29] : memref<2x256xf32, #tpu.memory_space<vmem>>, vector<2x256xf32>
    %67 = arith.truncf %66 : vector<2x256xf32> to vector<2x256xbf16>
    %cst_30 = arith.constant dense<0.000000e+00> : vector<2x1024xf32>
    %68 = tpu.matmul %67, %3, %cst_30 {dimension_numbers = #tpu.dot_dimension_numbers<[1], [0], [0], [1], [0, 0, 1, 1], [], []>} : vector<2x256xbf16>, vector<256x1024xbf16>, vector<2x1024xf32> -> vector<2x1024xf32>
    %69 = arith.addf %65, %68 : vector<2x1024xf32>
    %70 = vector.extract_strided_slice %69 {offsets = [0, 0], sizes = [2, 128], strides = [1, 1]} : vector<2x1024xf32> to vector<2x128xf32>
    %71 = vector.extract_strided_slice %69 {offsets = [0, 512], sizes = [2, 128], strides = [1, 1]} : vector<2x1024xf32> to vector<2x128xf32>
    %72 = tpu.concatenate %70, %71 in 1 : vector<2x128xf32>, vector<2x128xf32> -> vector<2x256xf32>
    %73 = arith.negf %72 : vector<2x256xf32>
    %74 = math.exp %73 : vector<2x256xf32>
    %cst_31 = arith.constant 1.000000e+00 : f32
    %75 = vector.broadcast %cst_31 : f32 to vector<2x256xf32>
    %76 = arith.addf %75, %74 : vector<2x256xf32>
    %77 = arith.divf %75, %76 : vector<2x256xf32>
    %78 = vector.extract_strided_slice %69 {offsets = [0, 128], sizes = [2, 128], strides = [1, 1]} : vector<2x1024xf32> to vector<2x128xf32>
    %79 = vector.extract_strided_slice %69 {offsets = [0, 640], sizes = [2, 128], strides = [1, 1]} : vector<2x1024xf32> to vector<2x128xf32>
    %80 = tpu.concatenate %78, %79 in 1 : vector<2x128xf32>, vector<2x128xf32> -> vector<2x256xf32>
    %81 = arith.negf %80 : vector<2x256xf32>
    %82 = math.exp %81 : vector<2x256xf32>
    %cst_32 = arith.constant 1.000000e+00 : f32
    %83 = vector.broadcast %cst_32 : f32 to vector<2x256xf32>
    %84 = arith.addf %83, %82 : vector<2x256xf32>
    %85 = arith.divf %83, %84 : vector<2x256xf32>
    %86 = vector.extract_strided_slice %69 {offsets = [0, 256], sizes = [2, 128], strides = [1, 1]} : vector<2x1024xf32> to vector<2x128xf32>
    %87 = vector.extract_strided_slice %69 {offsets = [0, 768], sizes = [2, 128], strides = [1, 1]} : vector<2x1024xf32> to vector<2x128xf32>
    %88 = tpu.concatenate %86, %87 in 1 : vector<2x128xf32>, vector<2x128xf32> -> vector<2x256xf32>
    %89 = math.tanh %88 : vector<2x256xf32>
    %90 = vector.extract_strided_slice %69 {offsets = [0, 384], sizes = [2, 128], strides = [1, 1]} : vector<2x1024xf32> to vector<2x128xf32>
    %91 = vector.extract_strided_slice %69 {offsets = [0, 896], sizes = [2, 128], strides = [1, 1]} : vector<2x1024xf32> to vector<2x128xf32>
    %92 = tpu.concatenate %90, %91 in 1 : vector<2x128xf32>, vector<2x128xf32> -> vector<2x256xf32>
    %93 = arith.negf %92 : vector<2x256xf32>
    %94 = math.exp %93 : vector<2x256xf32>
    %cst_33 = arith.constant 1.000000e+00 : f32
    %95 = vector.broadcast %cst_33 : f32 to vector<2x256xf32>
    %96 = arith.addf %95, %94 : vector<2x256xf32>
    %97 = arith.divf %95, %96 : vector<2x256xf32>
    %c0_34 = arith.constant 0 : index
    %c0_35 = arith.constant 0 : index
    %98 = vector.load %arg7[%c0_34, %c0_35] : memref<2x256xf32, #tpu.memory_space<vmem>>, vector<2x256xf32>
    %99 = arith.mulf %85, %98 : vector<2x256xf32>
    %100 = arith.mulf %77, %89 : vector<2x256xf32>
    %101 = arith.addf %99, %100 : vector<2x256xf32>
    %102 = math.tanh %101 : vector<2x256xf32>
    %103 = arith.mulf %97, %102 : vector<2x256xf32>
    %c0_36 = arith.constant 0 : index
    %c0_37 = arith.constant 0 : index
    %104 = vector.load %arg6[%c0_36, %c0_37] : memref<2x256xf32, #tpu.memory_space<vmem>>, vector<2x256xf32>
    tpu.vector_store %arg6[%c0_36, %c0_37], %103 {strides = array<i32>} : memref<2x256xf32, #tpu.memory_space<vmem>>, vector<2x256xf32>,
    %c0_38 = arith.constant 0 : index
    %c0_39 = arith.constant 0 : index
    %105 = vector.load %arg7[%c0_38, %c0_39] : memref<2x256xf32, #tpu.memory_space<vmem>>, vector<2x256xf32>
    tpu.vector_store %arg7[%c0_38, %c0_39], %101 {strides = array<i32>} : memref<2x256xf32, #tpu.memory_space<vmem>>, vector<2x256xf32>,
    %106 = vector.extract_strided_slice %103 {offsets = [0, 0], sizes = [2, 128], strides = [1, 1]} : vector<2x256xf32> to vector<2x128xf32>
    %107 = arith.truncf %106 : vector<2x128xf32> to vector<2x128xbf16>
    %c0_40 = arith.constant 0 : index
    %c1_41 = arith.constant 1 : index
    %c0_42 = arith.constant 0 : index
    %108 = vector.load %arg4[%c0_40, %c1_41, %c0_42] : memref<2x8x128xbf16, #tpu.memory_space<vmem>>, vector<2x1x128xbf16>
    %109 = vector.shape_cast %108 : vector<2x1x128xbf16> to vector<2x128xbf16>
    %110 = vector.shape_cast %107 : vector<2x128xbf16> to vector<2x1x128xbf16>
    tpu.vector_store %arg4[%c0_40, %c1_41, %c0_42], %110 {strides = array<i32>} : memref<2x8x128xbf16, #tpu.memory_space<vmem>>, vector<2x1x128xbf16>,
    %111 = vector.extract_strided_slice %103 {offsets = [0, 128], sizes = [2, 128], strides = [1, 1]} : vector<2x256xf32> to vector<2x128xf32>
    %112 = arith.truncf %111 : vector<2x128xf32> to vector<2x128xbf16>
    %c0_43 = arith.constant 0 : index
    %c6_44 = arith.constant 6 : index
    %c0_45 = arith.constant 0 : index
    %113 = vector.load %arg5[%c0_43, %c6_44, %c0_45] : memref<2x8x128xbf16, #tpu.memory_space<vmem>>, vector<2x1x128xbf16>
    %114 = vector.shape_cast %113 : vector<2x1x128xbf16> to vector<2x128xbf16>
    %115 = vector.shape_cast %112 : vector<2x128xbf16> to vector<2x1x128xbf16>
    tpu.vector_store %arg5[%c0_43, %c6_44, %c0_45], %115 {strides = array<i32>} : memref<2x8x128xbf16, #tpu.memory_space<vmem>>, vector<2x1x128xbf16>,
    %c0_46 = arith.constant 0 : index
    %c2 = arith.constant 2 : index
    %c0_47 = arith.constant 0 : index
    %116 = vector.load %arg1[%c0_46, %c2, %c0_47] : memref<2x8x512xbf16, #tpu.memory_space<vmem>>, vector<2x1x512xbf16>
    %117 = vector.shape_cast %116 : vector<2x1x512xbf16> to vector<2x512xbf16>
    %c0_48 = arith.constant 0 : index
    %c5 = arith.constant 5 : index
    %c0_49 = arith.constant 0 : index
    %118 = vector.load %arg2[%c0_48, %c5, %c0_49] : memref<2x8x512xbf16, #tpu.memory_space<vmem>>, vector<2x1x512xbf16>
    %119 = vector.shape_cast %118 : vector<2x1x512xbf16> to vector<2x512xbf16>
    %120 = tpu.concatenate %117, %119 in 1 : vector<2x512xbf16>, vector<2x512xbf16> -> vector<2x1024xbf16>
    %121 = arith.extf %120 : vector<2x1024xbf16> to vector<2x1024xf32>
    %c0_50 = arith.constant 0 : index
    %c0_51 = arith.constant 0 : index
    %122 = vector.load %arg6[%c0_50, %c0_51] : memref<2x256xf32, #tpu.memory_space<vmem>>, vector<2x256xf32>
    %123 = arith.truncf %122 : vector<2x256xf32> to vector<2x256xbf16>
    %cst_52 = arith.constant dense<0.000000e+00> : vector<2x1024xf32>
    %124 = tpu.matmul %123, %3, %cst_52 {dimension_numbers = #tpu.dot_dimension_numbers<[1], [0], [0], [1], [0, 0, 1, 1], [], []>} : vector<2x256xbf16>, vector<256x1024xbf16>, vector<2x1024xf32> -> vector<2x1024xf32>
    %125 = arith.addf %121, %124 : vector<2x1024xf32>
    %126 = vector.extract_strided_slice %125 {offsets = [0, 0], sizes = [2, 128], strides = [1, 1]} : vector<2x1024xf32> to vector<2x128xf32>
    %127 = vector.extract_strided_slice %125 {offsets = [0, 512], sizes = [2, 128], strides = [1, 1]} : vector<2x1024xf32> to vector<2x128xf32>
    %128 = tpu.concatenate %126, %127 in 1 : vector<2x128xf32>, vector<2x128xf32> -> vector<2x256xf32>
    %129 = arith.negf %128 : vector<2x256xf32>
    %130 = math.exp %129 : vector<2x256xf32>
    %cst_53 = arith.constant 1.000000e+00 : f32
    %131 = vector.broadcast %cst_53 : f32 to vector<2x256xf32>
    %132 = arith.addf %131, %130 : vector<2x256xf32>
    %133 = arith.divf %131, %132 : vector<2x256xf32>
    %134 = vector.extract_strided_slice %125 {offsets = [0, 128], sizes = [2, 128], strides = [1, 1]} : vector<2x1024xf32> to vector<2x128xf32>
    %135 = vector.extract_strided_slice %125 {offsets = [0, 640], sizes = [2, 128], strides = [1, 1]} : vector<2x1024xf32> to vector<2x128xf32>
    %136 = tpu.concatenate %134, %135 in 1 : vector<2x128xf32>, vector<2x128xf32> -> vector<2x256xf32>
    %137 = arith.negf %136 : vector<2x256xf32>
    %138 = math.exp %137 : vector<2x256xf32>
    %cst_54 = arith.constant 1.000000e+00 : f32
    %139 = vector.broadcast %cst_54 : f32 to vector<2x256xf32>
    %140 = arith.addf %139, %138 : vector<2x256xf32>
    %141 = arith.divf %139, %140 : vector<2x256xf32>
    %142 = vector.extract_strided_slice %125 {offsets = [0, 256], sizes = [2, 128], strides = [1, 1]} : vector<2x1024xf32> to vector<2x128xf32>
    %143 = vector.extract_strided_slice %125 {offsets = [0, 768], sizes = [2, 128], strides = [1, 1]} : vector<2x1024xf32> to vector<2x128xf32>
    %144 = tpu.concatenate %142, %143 in 1 : vector<2x128xf32>, vector<2x128xf32> -> vector<2x256xf32>
    %145 = math.tanh %144 : vector<2x256xf32>
    %146 = vector.extract_strided_slice %125 {offsets = [0, 384], sizes = [2, 128], strides = [1, 1]} : vector<2x1024xf32> to vector<2x128xf32>
    %147 = vector.extract_strided_slice %125 {offsets = [0, 896], sizes = [2, 128], strides = [1, 1]} : vector<2x1024xf32> to vector<2x128xf32>
    %148 = tpu.concatenate %146, %147 in 1 : vector<2x128xf32>, vector<2x128xf32> -> vector<2x256xf32>
    %149 = arith.negf %148 : vector<2x256xf32>
    %150 = math.exp %149 : vector<2x256xf32>
    %cst_55 = arith.constant 1.000000e+00 : f32
    %151 = vector.broadcast %cst_55 : f32 to vector<2x256xf32>
    %152 = arith.addf %151, %150 : vector<2x256xf32>
    %153 = arith.divf %151, %152 : vector<2x256xf32>
    %c0_56 = arith.constant 0 : index
    %c0_57 = arith.constant 0 : index
    %154 = vector.load %arg7[%c0_56, %c0_57] : memref<2x256xf32, #tpu.memory_space<vmem>>, vector<2x256xf32>
    %155 = arith.mulf %141, %154 : vector<2x256xf32>
    %156 = arith.mulf %133, %145 : vector<2x256xf32>
    %157 = arith.addf %155, %156 : vector<2x256xf32>
    %158 = math.tanh %157 : vector<2x256xf32>
    %159 = arith.mulf %153, %158 : vector<2x256xf32>
    %c0_58 = arith.constant 0 : index
    %c0_59 = arith.constant 0 : index
    %160 = vector.load %arg6[%c0_58, %c0_59] : memref<2x256xf32, #tpu.memory_space<vmem>>, vector<2x256xf32>
    tpu.vector_store %arg6[%c0_58, %c0_59], %159 {strides = array<i32>} : memref<2x256xf32, #tpu.memory_space<vmem>>, vector<2x256xf32>,
    %c0_60 = arith.constant 0 : index
    %c0_61 = arith.constant 0 : index
    %161 = vector.load %arg7[%c0_60, %c0_61] : memref<2x256xf32, #tpu.memory_space<vmem>>, vector<2x256xf32>
    tpu.vector_store %arg7[%c0_60, %c0_61], %157 {strides = array<i32>} : memref<2x256xf32, #tpu.memory_space<vmem>>, vector<2x256xf32>,
    %162 = vector.extract_strided_slice %159 {offsets = [0, 0], sizes = [2, 128], strides = [1, 1]} : vector<2x256xf32> to vector<2x128xf32>
    %163 = arith.truncf %162 : vector<2x128xf32> to vector<2x128xbf16>
    %c0_62 = arith.constant 0 : index
    %c2_63 = arith.constant 2 : index
    %c0_64 = arith.constant 0 : index
    %164 = vector.load %arg4[%c0_62, %c2_63, %c0_64] : memref<2x8x128xbf16, #tpu.memory_space<vmem>>, vector<2x1x128xbf16>
    %165 = vector.shape_cast %164 : vector<2x1x128xbf16> to vector<2x128xbf16>
    %166 = vector.shape_cast %163 : vector<2x128xbf16> to vector<2x1x128xbf16>
    tpu.vector_store %arg4[%c0_62, %c2_63, %c0_64], %166 {strides = array<i32>} : memref<2x8x128xbf16, #tpu.memory_space<vmem>>, vector<2x1x128xbf16>,
    %167 = vector.extract_strided_slice %159 {offsets = [0, 128], sizes = [2, 128], strides = [1, 1]} : vector<2x256xf32> to vector<2x128xf32>
    %168 = arith.truncf %167 : vector<2x128xf32> to vector<2x128xbf16>
    %c0_65 = arith.constant 0 : index
    %c5_66 = arith.constant 5 : index
    %c0_67 = arith.constant 0 : index
    %169 = vector.load %arg5[%c0_65, %c5_66, %c0_67] : memref<2x8x128xbf16, #tpu.memory_space<vmem>>, vector<2x1x128xbf16>
    %170 = vector.shape_cast %169 : vector<2x1x128xbf16> to vector<2x128xbf16>
    %171 = vector.shape_cast %168 : vector<2x128xbf16> to vector<2x1x128xbf16>
    tpu.vector_store %arg5[%c0_65, %c5_66, %c0_67], %171 {strides = array<i32>} : memref<2x8x128xbf16, #tpu.memory_space<vmem>>, vector<2x1x128xbf16>,
    %c0_68 = arith.constant 0 : index
    %c3 = arith.constant 3 : index
    %c0_69 = arith.constant 0 : index
    %172 = vector.load %arg1[%c0_68, %c3, %c0_69] : memref<2x8x512xbf16, #tpu.memory_space<vmem>>, vector<2x1x512xbf16>
    %173 = vector.shape_cast %172 : vector<2x1x512xbf16> to vector<2x512xbf16>
    %c0_70 = arith.constant 0 : index
    %c4 = arith.constant 4 : index
    %c0_71 = arith.constant 0 : index
    %174 = vector.load %arg2[%c0_70, %c4, %c0_71] : memref<2x8x512xbf16, #tpu.memory_space<vmem>>, vector<2x1x512xbf16>
    %175 = vector.shape_cast %174 : vector<2x1x512xbf16> to vector<2x512xbf16>
    %176 = tpu.concatenate %173, %175 in 1 : vector<2x512xbf16>, vector<2x512xbf16> -> vector<2x1024xbf16>
    %177 = arith.extf %176 : vector<2x1024xbf16> to vector<2x1024xf32>
    %c0_72 = arith.constant 0 : index
    %c0_73 = arith.constant 0 : index
    %178 = vector.load %arg6[%c0_72, %c0_73] : memref<2x256xf32, #tpu.memory_space<vmem>>, vector<2x256xf32>
    %179 = arith.truncf %178 : vector<2x256xf32> to vector<2x256xbf16>
    %cst_74 = arith.constant dense<0.000000e+00> : vector<2x1024xf32>
    %180 = tpu.matmul %179, %3, %cst_74 {dimension_numbers = #tpu.dot_dimension_numbers<[1], [0], [0], [1], [0, 0, 1, 1], [], []>} : vector<2x256xbf16>, vector<256x1024xbf16>, vector<2x1024xf32> -> vector<2x1024xf32>
    %181 = arith.addf %177, %180 : vector<2x1024xf32>
    %182 = vector.extract_strided_slice %181 {offsets = [0, 0], sizes = [2, 128], strides = [1, 1]} : vector<2x1024xf32> to vector<2x128xf32>
    %183 = vector.extract_strided_slice %181 {offsets = [0, 512], sizes = [2, 128], strides = [1, 1]} : vector<2x1024xf32> to vector<2x128xf32>
    %184 = tpu.concatenate %182, %183 in 1 : vector<2x128xf32>, vector<2x128xf32> -> vector<2x256xf32>
    %185 = arith.negf %184 : vector<2x256xf32>
    %186 = math.exp %185 : vector<2x256xf32>
    %cst_75 = arith.constant 1.000000e+00 : f32
    %187 = vector.broadcast %cst_75 : f32 to vector<2x256xf32>
    %188 = arith.addf %187, %186 : vector<2x256xf32>
    %189 = arith.divf %187, %188 : vector<2x256xf32>
    %190 = vector.extract_strided_slice %181 {offsets = [0, 128], sizes = [2, 128], strides = [1, 1]} : vector<2x1024xf32> to vector<2x128xf32>
    %191 = vector.extract_strided_slice %181 {offsets = [0, 640], sizes = [2, 128], strides = [1, 1]} : vector<2x1024xf32> to vector<2x128xf32>
    %192 = tpu.concatenate %190, %191 in 1 : vector<2x128xf32>, vector<2x128xf32> -> vector<2x256xf32>
    %193 = arith.negf %192 : vector<2x256xf32>
    %194 = math.exp %193 : vector<2x256xf32>
    %cst_76 = arith.constant 1.000000e+00 : f32
    %195 = vector.broadcast %cst_76 : f32 to vector<2x256xf32>
    %196 = arith.addf %195, %194 : vector<2x256xf32>
    %197 = arith.divf %195, %196 : vector<2x256xf32>
    %198 = vector.extract_strided_slice %181 {offsets = [0, 256], sizes = [2, 128], strides = [1, 1]} : vector<2x1024xf32> to vector<2x128xf32>
    %199 = vector.extract_strided_slice %181 {offsets = [0, 768], sizes = [2, 128], strides = [1, 1]} : vector<2x1024xf32> to vector<2x128xf32>
    %200 = tpu.concatenate %198, %199 in 1 : vector<2x128xf32>, vector<2x128xf32> -> vector<2x256xf32>
    %201 = math.tanh %200 : vector<2x256xf32>
    %202 = vector.extract_strided_slice %181 {offsets = [0, 384], sizes = [2, 128], strides = [1, 1]} : vector<2x1024xf32> to vector<2x128xf32>
    %203 = vector.extract_strided_slice %181 {offsets = [0, 896], sizes = [2, 128], strides = [1, 1]} : vector<2x1024xf32> to vector<2x128xf32>
    %204 = tpu.concatenate %202, %203 in 1 : vector<2x128xf32>, vector<2x128xf32> -> vector<2x256xf32>
    %205 = arith.negf %204 : vector<2x256xf32>
    %206 = math.exp %205 : vector<2x256xf32>
    %cst_77 = arith.constant 1.000000e+00 : f32
    %207 = vector.broadcast %cst_77 : f32 to vector<2x256xf32>
    %208 = arith.addf %207, %206 : vector<2x256xf32>
    %209 = arith.divf %207, %208 : vector<2x256xf32>
    %c0_78 = arith.constant 0 : index
    %c0_79 = arith.constant 0 : index
    %210 = vector.load %arg7[%c0_78, %c0_79] : memref<2x256xf32, #tpu.memory_space<vmem>>, vector<2x256xf32>
    %211 = arith.mulf %197, %210 : vector<2x256xf32>
    %212 = arith.mulf %189, %201 : vector<2x256xf32>
    %213 = arith.addf %211, %212 : vector<2x256xf32>
    %214 = math.tanh %213 : vector<2x256xf32>
    %215 = arith.mulf %209, %214 : vector<2x256xf32>
    %c0_80 = arith.constant 0 : index
    %c0_81 = arith.constant 0 : index
    %216 = vector.load %arg6[%c0_80, %c0_81] : memref<2x256xf32, #tpu.memory_space<vmem>>, vector<2x256xf32>
    tpu.vector_store %arg6[%c0_80, %c0_81], %215 {strides = array<i32>} : memref<2x256xf32, #tpu.memory_space<vmem>>, vector<2x256xf32>,
    %c0_82 = arith.constant 0 : index
    %c0_83 = arith.constant 0 : index
    %217 = vector.load %arg7[%c0_82, %c0_83] : memref<2x256xf32, #tpu.memory_space<vmem>>, vector<2x256xf32>
    tpu.vector_store %arg7[%c0_82, %c0_83], %213 {strides = array<i32>} : memref<2x256xf32, #tpu.memory_space<vmem>>, vector<2x256xf32>,
    %218 = vector.extract_strided_slice %215 {offsets = [0, 0], sizes = [2, 128], strides = [1, 1]} : vector<2x256xf32> to vector<2x128xf32>
    %219 = arith.truncf %218 : vector<2x128xf32> to vector<2x128xbf16>
    %c0_84 = arith.constant 0 : index
    %c3_85 = arith.constant 3 : index
    %c0_86 = arith.constant 0 : index
    %220 = vector.load %arg4[%c0_84, %c3_85, %c0_86] : memref<2x8x128xbf16, #tpu.memory_space<vmem>>, vector<2x1x128xbf16>
    %221 = vector.shape_cast %220 : vector<2x1x128xbf16> to vector<2x128xbf16>
    %222 = vector.shape_cast %219 : vector<2x128xbf16> to vector<2x1x128xbf16>
    tpu.vector_store %arg4[%c0_84, %c3_85, %c0_86], %222 {strides = array<i32>} : memref<2x8x128xbf16, #tpu.memory_space<vmem>>, vector<2x1x128xbf16>,
    %223 = vector.extract_strided_slice %215 {offsets = [0, 128], sizes = [2, 128], strides = [1, 1]} : vector<2x256xf32> to vector<2x128xf32>
    %224 = arith.truncf %223 : vector<2x128xf32> to vector<2x128xbf16>
    %c0_87 = arith.constant 0 : index
    %c4_88 = arith.constant 4 : index
    %c0_89 = arith.constant 0 : index
    %225 = vector.load %arg5[%c0_87, %c4_88, %c0_89] : memref<2x8x128xbf16, #tpu.memory_space<vmem>>, vector<2x1x128xbf16>
    %226 = vector.shape_cast %225 : vector<2x1x128xbf16> to vector<2x128xbf16>
    %227 = vector.shape_cast %224 : vector<2x128xbf16> to vector<2x1x128xbf16>
    tpu.vector_store %arg5[%c0_87, %c4_88, %c0_89], %227 {strides = array<i32>} : memref<2x8x128xbf16, #tpu.memory_space<vmem>>, vector<2x1x128xbf16>,
    %c0_90 = arith.constant 0 : index
    %c4_91 = arith.constant 4 : index
    %c0_92 = arith.constant 0 : index
    %228 = vector.load %arg1[%c0_90, %c4_91, %c0_92] : memref<2x8x512xbf16, #tpu.memory_space<vmem>>, vector<2x1x512xbf16>
    %229 = vector.shape_cast %228 : vector<2x1x512xbf16> to vector<2x512xbf16>
    %c0_93 = arith.constant 0 : index
    %c3_94 = arith.constant 3 : index
    %c0_95 = arith.constant 0 : index
    %230 = vector.load %arg2[%c0_93, %c3_94, %c0_95] : memref<2x8x512xbf16, #tpu.memory_space<vmem>>, vector<2x1x512xbf16>
    %231 = vector.shape_cast %230 : vector<2x1x512xbf16> to vector<2x512xbf16>
    %232 = tpu.concatenate %229, %231 in 1 : vector<2x512xbf16>, vector<2x512xbf16> -> vector<2x1024xbf16>
    %233 = arith.extf %232 : vector<2x1024xbf16> to vector<2x1024xf32>
    %c0_96 = arith.constant 0 : index
    %c0_97 = arith.constant 0 : index
    %234 = vector.load %arg6[%c0_96, %c0_97] : memref<2x256xf32, #tpu.memory_space<vmem>>, vector<2x256xf32>
    %235 = arith.truncf %234 : vector<2x256xf32> to vector<2x256xbf16>
    %cst_98 = arith.constant dense<0.000000e+00> : vector<2x1024xf32>
    %236 = tpu.matmul %235, %3, %cst_98 {dimension_numbers = #tpu.dot_dimension_numbers<[1], [0], [0], [1], [0, 0, 1, 1], [], []>} : vector<2x256xbf16>, vector<256x1024xbf16>, vector<2x1024xf32> -> vector<2x1024xf32>
    %237 = arith.addf %233, %236 : vector<2x1024xf32>
    %238 = vector.extract_strided_slice %237 {offsets = [0, 0], sizes = [2, 128], strides = [1, 1]} : vector<2x1024xf32> to vector<2x128xf32>
    %239 = vector.extract_strided_slice %237 {offsets = [0, 512], sizes = [2, 128], strides = [1, 1]} : vector<2x1024xf32> to vector<2x128xf32>
    %240 = tpu.concatenate %238, %239 in 1 : vector<2x128xf32>, vector<2x128xf32> -> vector<2x256xf32>
    %241 = arith.negf %240 : vector<2x256xf32>
    %242 = math.exp %241 : vector<2x256xf32>
    %cst_99 = arith.constant 1.000000e+00 : f32
    %243 = vector.broadcast %cst_99 : f32 to vector<2x256xf32>
    %244 = arith.addf %243, %242 : vector<2x256xf32>
    %245 = arith.divf %243, %244 : vector<2x256xf32>
    %246 = vector.extract_strided_slice %237 {offsets = [0, 128], sizes = [2, 128], strides = [1, 1]} : vector<2x1024xf32> to vector<2x128xf32>
    %247 = vector.extract_strided_slice %237 {offsets = [0, 640], sizes = [2, 128], strides = [1, 1]} : vector<2x1024xf32> to vector<2x128xf32>
    %248 = tpu.concatenate %246, %247 in 1 : vector<2x128xf32>, vector<2x128xf32> -> vector<2x256xf32>
    %249 = arith.negf %248 : vector<2x256xf32>
    %250 = math.exp %249 : vector<2x256xf32>
    %cst_100 = arith.constant 1.000000e+00 : f32
    %251 = vector.broadcast %cst_100 : f32 to vector<2x256xf32>
    %252 = arith.addf %251, %250 : vector<2x256xf32>
    %253 = arith.divf %251, %252 : vector<2x256xf32>
    %254 = vector.extract_strided_slice %237 {offsets = [0, 256], sizes = [2, 128], strides = [1, 1]} : vector<2x1024xf32> to vector<2x128xf32>
    %255 = vector.extract_strided_slice %237 {offsets = [0, 768], sizes = [2, 128], strides = [1, 1]} : vector<2x1024xf32> to vector<2x128xf32>
    %256 = tpu.concatenate %254, %255 in 1 : vector<2x128xf32>, vector<2x128xf32> -> vector<2x256xf32>
    %257 = math.tanh %256 : vector<2x256xf32>
    %258 = vector.extract_strided_slice %237 {offsets = [0, 384], sizes = [2, 128], strides = [1, 1]} : vector<2x1024xf32> to vector<2x128xf32>
    %259 = vector.extract_strided_slice %237 {offsets = [0, 896], sizes = [2, 128], strides = [1, 1]} : vector<2x1024xf32> to vector<2x128xf32>
    %260 = tpu.concatenate %258, %259 in 1 : vector<2x128xf32>, vector<2x128xf32> -> vector<2x256xf32>
    %261 = arith.negf %260 : vector<2x256xf32>
    %262 = math.exp %261 : vector<2x256xf32>
    %cst_101 = arith.constant 1.000000e+00 : f32
    %263 = vector.broadcast %cst_101 : f32 to vector<2x256xf32>
    %264 = arith.addf %263, %262 : vector<2x256xf32>
    %265 = arith.divf %263, %264 : vector<2x256xf32>
    %c0_102 = arith.constant 0 : index
    %c0_103 = arith.constant 0 : index
    %266 = vector.load %arg7[%c0_102, %c0_103] : memref<2x256xf32, #tpu.memory_space<vmem>>, vector<2x256xf32>
    %267 = arith.mulf %253, %266 : vector<2x256xf32>
    %268 = arith.mulf %245, %257 : vector<2x256xf32>
    %269 = arith.addf %267, %268 : vector<2x256xf32>
    %270 = math.tanh %269 : vector<2x256xf32>
    %271 = arith.mulf %265, %270 : vector<2x256xf32>
    %c0_104 = arith.constant 0 : index
    %c0_105 = arith.constant 0 : index
    %272 = vector.load %arg6[%c0_104, %c0_105] : memref<2x256xf32, #tpu.memory_space<vmem>>, vector<2x256xf32>
    tpu.vector_store %arg6[%c0_104, %c0_105], %271 {strides = array<i32>} : memref<2x256xf32, #tpu.memory_space<vmem>>, vector<2x256xf32>,
    %c0_106 = arith.constant 0 : index
    %c0_107 = arith.constant 0 : index
    %273 = vector.load %arg7[%c0_106, %c0_107] : memref<2x256xf32, #tpu.memory_space<vmem>>, vector<2x256xf32>
    tpu.vector_store %arg7[%c0_106, %c0_107], %269 {strides = array<i32>} : memref<2x256xf32, #tpu.memory_space<vmem>>, vector<2x256xf32>,
    %274 = vector.extract_strided_slice %271 {offsets = [0, 0], sizes = [2, 128], strides = [1, 1]} : vector<2x256xf32> to vector<2x128xf32>
    %275 = arith.truncf %274 : vector<2x128xf32> to vector<2x128xbf16>
    %c0_108 = arith.constant 0 : index
    %c4_109 = arith.constant 4 : index
    %c0_110 = arith.constant 0 : index
    %276 = vector.load %arg4[%c0_108, %c4_109, %c0_110] : memref<2x8x128xbf16, #tpu.memory_space<vmem>>, vector<2x1x128xbf16>
    %277 = vector.shape_cast %276 : vector<2x1x128xbf16> to vector<2x128xbf16>
    %278 = vector.shape_cast %275 : vector<2x128xbf16> to vector<2x1x128xbf16>
    tpu.vector_store %arg4[%c0_108, %c4_109, %c0_110], %278 {strides = array<i32>} : memref<2x8x128xbf16, #tpu.memory_space<vmem>>, vector<2x1x128xbf16>,
    %279 = vector.extract_strided_slice %271 {offsets = [0, 128], sizes = [2, 128], strides = [1, 1]} : vector<2x256xf32> to vector<2x128xf32>
    %280 = arith.truncf %279 : vector<2x128xf32> to vector<2x128xbf16>
    %c0_111 = arith.constant 0 : index
    %c3_112 = arith.constant 3 : index
    %c0_113 = arith.constant 0 : index
    %281 = vector.load %arg5[%c0_111, %c3_112, %c0_113] : memref<2x8x128xbf16, #tpu.memory_space<vmem>>, vector<2x1x128xbf16>
    %282 = vector.shape_cast %281 : vector<2x1x128xbf16> to vector<2x128xbf16>
    %283 = vector.shape_cast %280 : vector<2x128xbf16> to vector<2x1x128xbf16>
    tpu.vector_store %arg5[%c0_111, %c3_112, %c0_113], %283 {strides = array<i32>} : memref<2x8x128xbf16, #tpu.memory_space<vmem>>, vector<2x1x128xbf16>,
    %c0_114 = arith.constant 0 : index
    %c5_115 = arith.constant 5 : index
    %c0_116 = arith.constant 0 : index
    %284 = vector.load %arg1[%c0_114, %c5_115, %c0_116] : memref<2x8x512xbf16, #tpu.memory_space<vmem>>, vector<2x1x512xbf16>
    %285 = vector.shape_cast %284 : vector<2x1x512xbf16> to vector<2x512xbf16>
    %c0_117 = arith.constant 0 : index
    %c2_118 = arith.constant 2 : index
    %c0_119 = arith.constant 0 : index
    %286 = vector.load %arg2[%c0_117, %c2_118, %c0_119] : memref<2x8x512xbf16, #tpu.memory_space<vmem>>, vector<2x1x512xbf16>
    %287 = vector.shape_cast %286 : vector<2x1x512xbf16> to vector<2x512xbf16>
    %288 = tpu.concatenate %285, %287 in 1 : vector<2x512xbf16>, vector<2x512xbf16> -> vector<2x1024xbf16>
    %289 = arith.extf %288 : vector<2x1024xbf16> to vector<2x1024xf32>
    %c0_120 = arith.constant 0 : index
    %c0_121 = arith.constant 0 : index
    %290 = vector.load %arg6[%c0_120, %c0_121] : memref<2x256xf32, #tpu.memory_space<vmem>>, vector<2x256xf32>
    %291 = arith.truncf %290 : vector<2x256xf32> to vector<2x256xbf16>
    %cst_122 = arith.constant dense<0.000000e+00> : vector<2x1024xf32>
    %292 = tpu.matmul %291, %3, %cst_122 {dimension_numbers = #tpu.dot_dimension_numbers<[1], [0], [0], [1], [0, 0, 1, 1], [], []>} : vector<2x256xbf16>, vector<256x1024xbf16>, vector<2x1024xf32> -> vector<2x1024xf32>
    %293 = arith.addf %289, %292 : vector<2x1024xf32>
    %294 = vector.extract_strided_slice %293 {offsets = [0, 0], sizes = [2, 128], strides = [1, 1]} : vector<2x1024xf32> to vector<2x128xf32>
    %295 = vector.extract_strided_slice %293 {offsets = [0, 512], sizes = [2, 128], strides = [1, 1]} : vector<2x1024xf32> to vector<2x128xf32>
    %296 = tpu.concatenate %294, %295 in 1 : vector<2x128xf32>, vector<2x128xf32> -> vector<2x256xf32>
    %297 = arith.negf %296 : vector<2x256xf32>
    %298 = math.exp %297 : vector<2x256xf32>
    %cst_123 = arith.constant 1.000000e+00 : f32
    %299 = vector.broadcast %cst_123 : f32 to vector<2x256xf32>
    %300 = arith.addf %299, %298 : vector<2x256xf32>
    %301 = arith.divf %299, %300 : vector<2x256xf32>
    %302 = vector.extract_strided_slice %293 {offsets = [0, 128], sizes = [2, 128], strides = [1, 1]} : vector<2x1024xf32> to vector<2x128xf32>
    %303 = vector.extract_strided_slice %293 {offsets = [0, 640], sizes = [2, 128], strides = [1, 1]} : vector<2x1024xf32> to vector<2x128xf32>
    %304 = tpu.concatenate %302, %303 in 1 : vector<2x128xf32>, vector<2x128xf32> -> vector<2x256xf32>
    %305 = arith.negf %304 : vector<2x256xf32>
    %306 = math.exp %305 : vector<2x256xf32>
    %cst_124 = arith.constant 1.000000e+00 : f32
    %307 = vector.broadcast %cst_124 : f32 to vector<2x256xf32>
    %308 = arith.addf %307, %306 : vector<2x256xf32>
    %309 = arith.divf %307, %308 : vector<2x256xf32>
    %310 = vector.extract_strided_slice %293 {offsets = [0, 256], sizes = [2, 128], strides = [1, 1]} : vector<2x1024xf32> to vector<2x128xf32>
    %311 = vector.extract_strided_slice %293 {offsets = [0, 768], sizes = [2, 128], strides = [1, 1]} : vector<2x1024xf32> to vector<2x128xf32>
    %312 = tpu.concatenate %310, %311 in 1 : vector<2x128xf32>, vector<2x128xf32> -> vector<2x256xf32>
    %313 = math.tanh %312 : vector<2x256xf32>
    %314 = vector.extract_strided_slice %293 {offsets = [0, 384], sizes = [2, 128], strides = [1, 1]} : vector<2x1024xf32> to vector<2x128xf32>
    %315 = vector.extract_strided_slice %293 {offsets = [0, 896], sizes = [2, 128], strides = [1, 1]} : vector<2x1024xf32> to vector<2x128xf32>
    %316 = tpu.concatenate %314, %315 in 1 : vector<2x128xf32>, vector<2x128xf32> -> vector<2x256xf32>
    %317 = arith.negf %316 : vector<2x256xf32>
    %318 = math.exp %317 : vector<2x256xf32>
    %cst_125 = arith.constant 1.000000e+00 : f32
    %319 = vector.broadcast %cst_125 : f32 to vector<2x256xf32>
    %320 = arith.addf %319, %318 : vector<2x256xf32>
    %321 = arith.divf %319, %320 : vector<2x256xf32>
    %c0_126 = arith.constant 0 : index
    %c0_127 = arith.constant 0 : index
    %322 = vector.load %arg7[%c0_126, %c0_127] : memref<2x256xf32, #tpu.memory_space<vmem>>, vector<2x256xf32>
    %323 = arith.mulf %309, %322 : vector<2x256xf32>
    %324 = arith.mulf %301, %313 : vector<2x256xf32>
    %325 = arith.addf %323, %324 : vector<2x256xf32>
    %326 = math.tanh %325 : vector<2x256xf32>
    %327 = arith.mulf %321, %326 : vector<2x256xf32>
    %c0_128 = arith.constant 0 : index
    %c0_129 = arith.constant 0 : index
    %328 = vector.load %arg6[%c0_128, %c0_129] : memref<2x256xf32, #tpu.memory_space<vmem>>, vector<2x256xf32>
    tpu.vector_store %arg6[%c0_128, %c0_129], %327 {strides = array<i32>} : memref<2x256xf32, #tpu.memory_space<vmem>>, vector<2x256xf32>,
    %c0_130 = arith.constant 0 : index
    %c0_131 = arith.constant 0 : index
    %329 = vector.load %arg7[%c0_130, %c0_131] : memref<2x256xf32, #tpu.memory_space<vmem>>, vector<2x256xf32>
    tpu.vector_store %arg7[%c0_130, %c0_131], %325 {strides = array<i32>} : memref<2x256xf32, #tpu.memory_space<vmem>>, vector<2x256xf32>,
    %330 = vector.extract_strided_slice %327 {offsets = [0, 0], sizes = [2, 128], strides = [1, 1]} : vector<2x256xf32> to vector<2x128xf32>
    %331 = arith.truncf %330 : vector<2x128xf32> to vector<2x128xbf16>
    %c0_132 = arith.constant 0 : index
    %c5_133 = arith.constant 5 : index
    %c0_134 = arith.constant 0 : index
    %332 = vector.load %arg4[%c0_132, %c5_133, %c0_134] : memref<2x8x128xbf16, #tpu.memory_space<vmem>>, vector<2x1x128xbf16>
    %333 = vector.shape_cast %332 : vector<2x1x128xbf16> to vector<2x128xbf16>
    %334 = vector.shape_cast %331 : vector<2x128xbf16> to vector<2x1x128xbf16>
    tpu.vector_store %arg4[%c0_132, %c5_133, %c0_134], %334 {strides = array<i32>} : memref<2x8x128xbf16, #tpu.memory_space<vmem>>, vector<2x1x128xbf16>,
    %335 = vector.extract_strided_slice %327 {offsets = [0, 128], sizes = [2, 128], strides = [1, 1]} : vector<2x256xf32> to vector<2x128xf32>
    %336 = arith.truncf %335 : vector<2x128xf32> to vector<2x128xbf16>
    %c0_135 = arith.constant 0 : index
    %c2_136 = arith.constant 2 : index
    %c0_137 = arith.constant 0 : index
    %337 = vector.load %arg5[%c0_135, %c2_136, %c0_137] : memref<2x8x128xbf16, #tpu.memory_space<vmem>>, vector<2x1x128xbf16>
    %338 = vector.shape_cast %337 : vector<2x1x128xbf16> to vector<2x128xbf16>
    %339 = vector.shape_cast %336 : vector<2x128xbf16> to vector<2x1x128xbf16>
    tpu.vector_store %arg5[%c0_135, %c2_136, %c0_137], %339 {strides = array<i32>} : memref<2x8x128xbf16, #tpu.memory_space<vmem>>, vector<2x1x128xbf16>,
    %c0_138 = arith.constant 0 : index
    %c6_139 = arith.constant 6 : index
    %c0_140 = arith.constant 0 : index
    %340 = vector.load %arg1[%c0_138, %c6_139, %c0_140] : memref<2x8x512xbf16, #tpu.memory_space<vmem>>, vector<2x1x512xbf16>
    %341 = vector.shape_cast %340 : vector<2x1x512xbf16> to vector<2x512xbf16>
    %c0_141 = arith.constant 0 : index
    %c1_142 = arith.constant 1 : index
    %c0_143 = arith.constant 0 : index
    %342 = vector.load %arg2[%c0_141, %c1_142, %c0_143] : memref<2x8x512xbf16, #tpu.memory_space<vmem>>, vector<2x1x512xbf16>
    %343 = vector.shape_cast %342 : vector<2x1x512xbf16> to vector<2x512xbf16>
    %344 = tpu.concatenate %341, %343 in 1 : vector<2x512xbf16>, vector<2x512xbf16> -> vector<2x1024xbf16>
    %345 = arith.extf %344 : vector<2x1024xbf16> to vector<2x1024xf32>
    %c0_144 = arith.constant 0 : index
    %c0_145 = arith.constant 0 : index
    %346 = vector.load %arg6[%c0_144, %c0_145] : memref<2x256xf32, #tpu.memory_space<vmem>>, vector<2x256xf32>
    %347 = arith.truncf %346 : vector<2x256xf32> to vector<2x256xbf16>
    %cst_146 = arith.constant dense<0.000000e+00> : vector<2x1024xf32>
    %348 = tpu.matmul %347, %3, %cst_146 {dimension_numbers = #tpu.dot_dimension_numbers<[1], [0], [0], [1], [0, 0, 1, 1], [], []>} : vector<2x256xbf16>, vector<256x1024xbf16>, vector<2x1024xf32> -> vector<2x1024xf32>
    %349 = arith.addf %345, %348 : vector<2x1024xf32>
    %350 = vector.extract_strided_slice %349 {offsets = [0, 0], sizes = [2, 128], strides = [1, 1]} : vector<2x1024xf32> to vector<2x128xf32>
    %351 = vector.extract_strided_slice %349 {offsets = [0, 512], sizes = [2, 128], strides = [1, 1]} : vector<2x1024xf32> to vector<2x128xf32>
    %352 = tpu.concatenate %350, %351 in 1 : vector<2x128xf32>, vector<2x128xf32> -> vector<2x256xf32>
    %353 = arith.negf %352 : vector<2x256xf32>
    %354 = math.exp %353 : vector<2x256xf32>
    %cst_147 = arith.constant 1.000000e+00 : f32
    %355 = vector.broadcast %cst_147 : f32 to vector<2x256xf32>
    %356 = arith.addf %355, %354 : vector<2x256xf32>
    %357 = arith.divf %355, %356 : vector<2x256xf32>
    %358 = vector.extract_strided_slice %349 {offsets = [0, 128], sizes = [2, 128], strides = [1, 1]} : vector<2x1024xf32> to vector<2x128xf32>
    %359 = vector.extract_strided_slice %349 {offsets = [0, 640], sizes = [2, 128], strides = [1, 1]} : vector<2x1024xf32> to vector<2x128xf32>
    %360 = tpu.concatenate %358, %359 in 1 : vector<2x128xf32>, vector<2x128xf32> -> vector<2x256xf32>
    %361 = arith.negf %360 : vector<2x256xf32>
    %362 = math.exp %361 : vector<2x256xf32>
    %cst_148 = arith.constant 1.000000e+00 : f32
    %363 = vector.broadcast %cst_148 : f32 to vector<2x256xf32>
    %364 = arith.addf %363, %362 : vector<2x256xf32>
    %365 = arith.divf %363, %364 : vector<2x256xf32>
    %366 = vector.extract_strided_slice %349 {offsets = [0, 256], sizes = [2, 128], strides = [1, 1]} : vector<2x1024xf32> to vector<2x128xf32>
    %367 = vector.extract_strided_slice %349 {offsets = [0, 768], sizes = [2, 128], strides = [1, 1]} : vector<2x1024xf32> to vector<2x128xf32>
    %368 = tpu.concatenate %366, %367 in 1 : vector<2x128xf32>, vector<2x128xf32> -> vector<2x256xf32>
    %369 = math.tanh %368 : vector<2x256xf32>
    %370 = vector.extract_strided_slice %349 {offsets = [0, 384], sizes = [2, 128], strides = [1, 1]} : vector<2x1024xf32> to vector<2x128xf32>
    %371 = vector.extract_strided_slice %349 {offsets = [0, 896], sizes = [2, 128], strides = [1, 1]} : vector<2x1024xf32> to vector<2x128xf32>
    %372 = tpu.concatenate %370, %371 in 1 : vector<2x128xf32>, vector<2x128xf32> -> vector<2x256xf32>
    %373 = arith.negf %372 : vector<2x256xf32>
    %374 = math.exp %373 : vector<2x256xf32>
    %cst_149 = arith.constant 1.000000e+00 : f32
    %375 = vector.broadcast %cst_149 : f32 to vector<2x256xf32>
    %376 = arith.addf %375, %374 : vector<2x256xf32>
    %377 = arith.divf %375, %376 : vector<2x256xf32>
    %c0_150 = arith.constant 0 : index
    %c0_151 = arith.constant 0 : index
    %378 = vector.load %arg7[%c0_150, %c0_151] : memref<2x256xf32, #tpu.memory_space<vmem>>, vector<2x256xf32>
    %379 = arith.mulf %365, %378 : vector<2x256xf32>
    %380 = arith.mulf %357, %369 : vector<2x256xf32>
    %381 = arith.addf %379, %380 : vector<2x256xf32>
    %382 = math.tanh %381 : vector<2x256xf32>
    %383 = arith.mulf %377, %382 : vector<2x256xf32>
    %c0_152 = arith.constant 0 : index
    %c0_153 = arith.constant 0 : index
    %384 = vector.load %arg6[%c0_152, %c0_153] : memref<2x256xf32, #tpu.memory_space<vmem>>, vector<2x256xf32>
    tpu.vector_store %arg6[%c0_152, %c0_153], %383 {strides = array<i32>} : memref<2x256xf32, #tpu.memory_space<vmem>>, vector<2x256xf32>,
    %c0_154 = arith.constant 0 : index
    %c0_155 = arith.constant 0 : index
    %385 = vector.load %arg7[%c0_154, %c0_155] : memref<2x256xf32, #tpu.memory_space<vmem>>, vector<2x256xf32>
    tpu.vector_store %arg7[%c0_154, %c0_155], %381 {strides = array<i32>} : memref<2x256xf32, #tpu.memory_space<vmem>>, vector<2x256xf32>,
    %386 = vector.extract_strided_slice %383 {offsets = [0, 0], sizes = [2, 128], strides = [1, 1]} : vector<2x256xf32> to vector<2x128xf32>
    %387 = arith.truncf %386 : vector<2x128xf32> to vector<2x128xbf16>
    %c0_156 = arith.constant 0 : index
    %c6_157 = arith.constant 6 : index
    %c0_158 = arith.constant 0 : index
    %388 = vector.load %arg4[%c0_156, %c6_157, %c0_158] : memref<2x8x128xbf16, #tpu.memory_space<vmem>>, vector<2x1x128xbf16>
    %389 = vector.shape_cast %388 : vector<2x1x128xbf16> to vector<2x128xbf16>
    %390 = vector.shape_cast %387 : vector<2x128xbf16> to vector<2x1x128xbf16>
    tpu.vector_store %arg4[%c0_156, %c6_157, %c0_158], %390 {strides = array<i32>} : memref<2x8x128xbf16, #tpu.memory_space<vmem>>, vector<2x1x128xbf16>,
    %391 = vector.extract_strided_slice %383 {offsets = [0, 128], sizes = [2, 128], strides = [1, 1]} : vector<2x256xf32> to vector<2x128xf32>
    %392 = arith.truncf %391 : vector<2x128xf32> to vector<2x128xbf16>
    %c0_159 = arith.constant 0 : index
    %c1_160 = arith.constant 1 : index
    %c0_161 = arith.constant 0 : index
    %393 = vector.load %arg5[%c0_159, %c1_160, %c0_161] : memref<2x8x128xbf16, #tpu.memory_space<vmem>>, vector<2x1x128xbf16>
    %394 = vector.shape_cast %393 : vector<2x1x128xbf16> to vector<2x128xbf16>
    %395 = vector.shape_cast %392 : vector<2x128xbf16> to vector<2x1x128xbf16>
    tpu.vector_store %arg5[%c0_159, %c1_160, %c0_161], %395 {strides = array<i32>} : memref<2x8x128xbf16, #tpu.memory_space<vmem>>, vector<2x1x128xbf16>,
    %c0_162 = arith.constant 0 : index
    %c7_163 = arith.constant 7 : index
    %c0_164 = arith.constant 0 : index
    %396 = vector.load %arg1[%c0_162, %c7_163, %c0_164] : memref<2x8x512xbf16, #tpu.memory_space<vmem>>, vector<2x1x512xbf16>
    %397 = vector.shape_cast %396 : vector<2x1x512xbf16> to vector<2x512xbf16>
    %c0_165 = arith.constant 0 : index
    %c0_166 = arith.constant 0 : index
    %c0_167 = arith.constant 0 : index
    %398 = vector.load %arg2[%c0_165, %c0_166, %c0_167] : memref<2x8x512xbf16, #tpu.memory_space<vmem>>, vector<2x1x512xbf16>
    %399 = vector.shape_cast %398 : vector<2x1x512xbf16> to vector<2x512xbf16>
    %400 = tpu.concatenate %397, %399 in 1 : vector<2x512xbf16>, vector<2x512xbf16> -> vector<2x1024xbf16>
    %401 = arith.extf %400 : vector<2x1024xbf16> to vector<2x1024xf32>
    %c0_168 = arith.constant 0 : index
    %c0_169 = arith.constant 0 : index
    %402 = vector.load %arg6[%c0_168, %c0_169] : memref<2x256xf32, #tpu.memory_space<vmem>>, vector<2x256xf32>
    %403 = arith.truncf %402 : vector<2x256xf32> to vector<2x256xbf16>
    %cst_170 = arith.constant dense<0.000000e+00> : vector<2x1024xf32>
    %404 = tpu.matmul %403, %3, %cst_170 {dimension_numbers = #tpu.dot_dimension_numbers<[1], [0], [0], [1], [0, 0, 1, 1], [], []>} : vector<2x256xbf16>, vector<256x1024xbf16>, vector<2x1024xf32> -> vector<2x1024xf32>
    %405 = arith.addf %401, %404 : vector<2x1024xf32>
    %406 = vector.extract_strided_slice %405 {offsets = [0, 0], sizes = [2, 128], strides = [1, 1]} : vector<2x1024xf32> to vector<2x128xf32>
    %407 = vector.extract_strided_slice %405 {offsets = [0, 512], sizes = [2, 128], strides = [1, 1]} : vector<2x1024xf32> to vector<2x128xf32>
    %408 = tpu.concatenate %406, %407 in 1 : vector<2x128xf32>, vector<2x128xf32> -> vector<2x256xf32>
    %409 = arith.negf %408 : vector<2x256xf32>
    %410 = math.exp %409 : vector<2x256xf32>
    %cst_171 = arith.constant 1.000000e+00 : f32
    %411 = vector.broadcast %cst_171 : f32 to vector<2x256xf32>
    %412 = arith.addf %411, %410 : vector<2x256xf32>
    %413 = arith.divf %411, %412 : vector<2x256xf32>
    %414 = vector.extract_strided_slice %405 {offsets = [0, 128], sizes = [2, 128], strides = [1, 1]} : vector<2x1024xf32> to vector<2x128xf32>
    %415 = vector.extract_strided_slice %405 {offsets = [0, 640], sizes = [2, 128], strides = [1, 1]} : vector<2x1024xf32> to vector<2x128xf32>
    %416 = tpu.concatenate %414, %415 in 1 : vector<2x128xf32>, vector<2x128xf32> -> vector<2x256xf32>
    %417 = arith.negf %416 : vector<2x256xf32>
    %418 = math.exp %417 : vector<2x256xf32>
    %cst_172 = arith.constant 1.000000e+00 : f32
    %419 = vector.broadcast %cst_172 : f32 to vector<2x256xf32>
    %420 = arith.addf %419, %418 : vector<2x256xf32>
    %421 = arith.divf %419, %420 : vector<2x256xf32>
    %422 = vector.extract_strided_slice %405 {offsets = [0, 256], sizes = [2, 128], strides = [1, 1]} : vector<2x1024xf32> to vector<2x128xf32>
    %423 = vector.extract_strided_slice %405 {offsets = [0, 768], sizes = [2, 128], strides = [1, 1]} : vector<2x1024xf32> to vector<2x128xf32>
    %424 = tpu.concatenate %422, %423 in 1 : vector<2x128xf32>, vector<2x128xf32> -> vector<2x256xf32>
    %425 = math.tanh %424 : vector<2x256xf32>
    %426 = vector.extract_strided_slice %405 {offsets = [0, 384], sizes = [2, 128], strides = [1, 1]} : vector<2x1024xf32> to vector<2x128xf32>
    %427 = vector.extract_strided_slice %405 {offsets = [0, 896], sizes = [2, 128], strides = [1, 1]} : vector<2x1024xf32> to vector<2x128xf32>
    %428 = tpu.concatenate %426, %427 in 1 : vector<2x128xf32>, vector<2x128xf32> -> vector<2x256xf32>
    %429 = arith.negf %428 : vector<2x256xf32>
    %430 = math.exp %429 : vector<2x256xf32>
    %cst_173 = arith.constant 1.000000e+00 : f32
    %431 = vector.broadcast %cst_173 : f32 to vector<2x256xf32>
    %432 = arith.addf %431, %430 : vector<2x256xf32>
    %433 = arith.divf %431, %432 : vector<2x256xf32>
    %c0_174 = arith.constant 0 : index
    %c0_175 = arith.constant 0 : index
    %434 = vector.load %arg7[%c0_174, %c0_175] : memref<2x256xf32, #tpu.memory_space<vmem>>, vector<2x256xf32>
    %435 = arith.mulf %421, %434 : vector<2x256xf32>
    %436 = arith.mulf %413, %425 : vector<2x256xf32>
    %437 = arith.addf %435, %436 : vector<2x256xf32>
    %438 = math.tanh %437 : vector<2x256xf32>
    %439 = arith.mulf %433, %438 : vector<2x256xf32>
    %c0_176 = arith.constant 0 : index
    %c0_177 = arith.constant 0 : index
    %440 = vector.load %arg6[%c0_176, %c0_177] : memref<2x256xf32, #tpu.memory_space<vmem>>, vector<2x256xf32>
    tpu.vector_store %arg6[%c0_176, %c0_177], %439 {strides = array<i32>} : memref<2x256xf32, #tpu.memory_space<vmem>>, vector<2x256xf32>,
    %c0_178 = arith.constant 0 : index
    %c0_179 = arith.constant 0 : index
    %441 = vector.load %arg7[%c0_178, %c0_179] : memref<2x256xf32, #tpu.memory_space<vmem>>, vector<2x256xf32>
    tpu.vector_store %arg7[%c0_178, %c0_179], %437 {strides = array<i32>} : memref<2x256xf32, #tpu.memory_space<vmem>>, vector<2x256xf32>,
    %442 = vector.extract_strided_slice %439 {offsets = [0, 0], sizes = [2, 128], strides = [1, 1]} : vector<2x256xf32> to vector<2x128xf32>
    %443 = arith.truncf %442 : vector<2x128xf32> to vector<2x128xbf16>
    %c0_180 = arith.constant 0 : index
    %c7_181 = arith.constant 7 : index
    %c0_182 = arith.constant 0 : index
    %444 = vector.load %arg4[%c0_180, %c7_181, %c0_182] : memref<2x8x128xbf16, #tpu.memory_space<vmem>>, vector<2x1x128xbf16>
    %445 = vector.shape_cast %444 : vector<2x1x128xbf16> to vector<2x128xbf16>
    %446 = vector.shape_cast %443 : vector<2x128xbf16> to vector<2x1x128xbf16>
    tpu.vector_store %arg4[%c0_180, %c7_181, %c0_182], %446 {strides = array<i32>} : memref<2x8x128xbf16, #tpu.memory_space<vmem>>, vector<2x1x128xbf16>,
    %447 = vector.extract_strided_slice %439 {offsets = [0, 128], sizes = [2, 128], strides = [1, 1]} : vector<2x256xf32> to vector<2x128xf32>
    %448 = arith.truncf %447 : vector<2x128xf32> to vector<2x128xbf16>
    %c0_183 = arith.constant 0 : index
    %c0_184 = arith.constant 0 : index
    %c0_185 = arith.constant 0 : index
    %449 = vector.load %arg5[%c0_183, %c0_184, %c0_185] : memref<2x8x128xbf16, #tpu.memory_space<vmem>>, vector<2x1x128xbf16>
    %450 = vector.shape_cast %449 : vector<2x1x128xbf16> to vector<2x128xbf16>
    %451 = vector.shape_cast %448 : vector<2x128xbf16> to vector<2x1x128xbf16>
    tpu.vector_store %arg5[%c0_183, %c0_184, %c0_185], %451 {strides = array<i32>} : memref<2x8x128xbf16, #tpu.memory_space<vmem>>, vector<2x1x128xbf16>,
    return
  }
  func.func @transform_0(%arg0: i32) -> (i32, i32, i32) {
    %c0_i32 = arith.constant 0 : i32
    %c0_i32_0 = arith.constant 0 : i32
    %c0_i32_1 = arith.constant 0 : i32
    return %c0_i32, %arg0, %c0_i32_0 : i32, i32, i32
  }
  func.func @transform_1(%arg0: i32) -> (i32, i32, i32) {
    %c0_i32 = arith.constant 0 : i32
    %0 = arith.subi %c0_i32, %arg0 : i32
    %c0_i32_0 = arith.constant 0 : i32
    %c1_i32 = arith.constant 1 : i32
    %c0_i32_1 = arith.constant 0 : i32
    return %c0_i32_0, %0, %c1_i32 : i32, i32, i32
  }
  func.func @transform_2(%arg0: i32) -> (i32, i32) {
    %c0_i32 = arith.constant 0 : i32
    %c0_i32_0 = arith.constant 0 : i32
    %c0_i32_1 = arith.constant 0 : i32
    return %c0_i32, %c0_i32_0 : i32, i32
  }
  func.func @transform_3(%arg0: i32) -> (i32, i32, i32) {
    %c0_i32 = arith.constant 0 : i32
    %c0_i32_0 = arith.constant 0 : i32
    %c0_i32_1 = arith.constant 0 : i32
    return %c0_i32, %arg0, %c0_i32_0 : i32, i32, i32
  }
  func.func @transform_4(%arg0: i32) -> (i32, i32, i32) {
    %c0_i32 = arith.constant 0 : i32
    %0 = arith.subi %c0_i32, %arg0 : i32
    %c0_i32_0 = arith.constant 0 : i32
    %c0_i32_1 = arith.constant 0 : i32
    %c0_i32_2 = arith.constant 0 : i32
    return %c0_i32_0, %0, %c0_i32_1 : i32, i32, i32
  }
}

module attributes {stable_mosaic.version = 11 : i64} {
  func.func @biaffine_kernel(%arg0: i32, %arg1: memref<1x128x128xbf16, #tpu.memory_space<vmem>>, %arg2: memref<1x128x128xbf16, #tpu.memory_space<vmem>>, %arg3: memref<128x512xbf16, #tpu.memory_space<vmem>>, %arg4: memref<1x4x128x128xf32, #tpu.memory_space<vmem>>) attributes {dimension_semantics = [#tpu.dimension_semantics<parallel>], iteration_bounds = array<i64: 2>, scalar_prefetch = 0 : i64, scratch_operands = 0 : i64, tpu.core_type = #tpu.core_type<tc>, window_params = [{transform_indices = @transform_0, window_bounds = array<i64: 1, 128, 128>}, {transform_indices = @transform_1, window_bounds = array<i64: 1, 128, 128>}, {pipeline_mode = #tpu.pipeline_mode<synchronous>, transform_indices = @transform_2, window_bounds = array<i64: 128, 512>}, {transform_indices = @transform_3, window_bounds = array<i64: 1, 4, 128, 128>}]} {
    %c0 = arith.constant 0 : index
    %c0_0 = arith.constant 0 : index
    %c0_1 = arith.constant 0 : index
    %0 = vector.load %arg1[%c0, %c0_0, %c0_1] : memref<1x128x128xbf16, #tpu.memory_space<vmem>>, vector<1x128x128xbf16>
    %1 = vector.shape_cast %0 : vector<1x128x128xbf16> to vector<128x128xbf16>
    %c0_2 = arith.constant 0 : index
    %c0_3 = arith.constant 0 : index
    %c0_4 = arith.constant 0 : index
    %2 = vector.load %arg2[%c0_2, %c0_3, %c0_4] : memref<1x128x128xbf16, #tpu.memory_space<vmem>>, vector<1x128x128xbf16>
    %3 = vector.shape_cast %2 : vector<1x128x128xbf16> to vector<128x128xbf16>
    %c0_5 = arith.constant 0 : index
    %c0_6 = arith.constant 0 : index
    %4 = vector.load %arg3[%c0_5, %c0_6] : memref<128x512xbf16, #tpu.memory_space<vmem>>, vector<128x512xbf16>
    %cst = arith.constant dense<0.000000e+00> : vector<128x512xf32>
    %5 = tpu.matmul %1, %4, %cst {dimension_numbers = #tpu.dot_dimension_numbers<[1], [0], [0], [1], [0, 0, 1, 1], [], []>} : vector<128x128xbf16>, vector<128x512xbf16>, vector<128x512xf32> -> vector<128x512xf32>
    %6 = vector.extract_strided_slice %5 {offsets = [0, 0], sizes = [128, 128], strides = [1, 1]} : vector<128x512xf32> to vector<128x128xf32>
    %7 = vector.extract_strided_slice %5 {offsets = [0, 128], sizes = [128, 128], strides = [1, 1]} : vector<128x512xf32> to vector<128x128xf32>
    %8 = vector.extract_strided_slice %5 {offsets = [0, 256], sizes = [128, 128], strides = [1, 1]} : vector<128x512xf32> to vector<128x128xf32>
    %9 = vector.extract_strided_slice %5 {offsets = [0, 384], sizes = [128, 128], strides = [1, 1]} : vector<128x512xf32> to vector<128x128xf32>
    %10 = tpu.concatenate %6, %7, %8, %9 in 0 : vector<128x128xf32>, vector<128x128xf32>, vector<128x128xf32>, vector<128x128xf32> -> vector<512x128xf32>
    %11 = arith.truncf %10 : vector<512x128xf32> to vector<512x128xbf16>
    %cst_7 = arith.constant dense<0.000000e+00> : vector<512x128xf32>
    %12 = tpu.matmul %11, %3, %cst_7 {dimension_numbers = #tpu.dot_dimension_numbers<[1], [1], [0], [0], [0, 0, 1, 0], [], []>} : vector<512x128xbf16>, vector<128x128xbf16>, vector<512x128xf32> -> vector<512x128xf32>
    %13 = vector.shape_cast %12 : vector<512x128xf32> to vector<1x4x128x128xf32>
    %c0_8 = arith.constant 0 : index
    %c0_9 = arith.constant 0 : index
    %c0_10 = arith.constant 0 : index
    %c0_11 = arith.constant 0 : index
    %14 = vector.load %arg4[%c0_8, %c0_9, %c0_10, %c0_11] : memref<1x4x128x128xf32, #tpu.memory_space<vmem>>, vector<1x4x128x128xf32>
    tpu.vector_store %arg4[%c0_8, %c0_9, %c0_10, %c0_11], %13 {strides = array<i32>} : memref<1x4x128x128xf32, #tpu.memory_space<vmem>>, vector<1x4x128x128xf32>,
    return
  }
  func.func @transform_0(%arg0: i32) -> (i32, i32, i32) {
    %c0_i32 = arith.constant 0 : i32
    %c2_i32 = arith.constant 2 : i32
    %c0_i32_0 = arith.constant 0 : i32
    return %arg0, %c0_i32, %c2_i32 : i32, i32, i32
  }
  func.func @transform_1(%arg0: i32) -> (i32, i32, i32) {
    %c0_i32 = arith.constant 0 : i32
    %c3_i32 = arith.constant 3 : i32
    %c0_i32_0 = arith.constant 0 : i32
    return %arg0, %c0_i32, %c3_i32 : i32, i32, i32
  }
  func.func @transform_2(%arg0: i32) -> (i32, i32) {
    %c0_i32 = arith.constant 0 : i32
    %c0_i32_0 = arith.constant 0 : i32
    %c0_i32_1 = arith.constant 0 : i32
    return %c0_i32, %c0_i32_0 : i32, i32
  }
  func.func @transform_3(%arg0: i32) -> (i32, i32, i32, i32) {
    %c0_i32 = arith.constant 0 : i32
    %c0_i32_0 = arith.constant 0 : i32
    %c0_i32_1 = arith.constant 0 : i32
    %c0_i32_2 = arith.constant 0 : i32
    return %arg0, %c0_i32, %c0_i32_0, %c0_i32_1 : i32, i32, i32, i32
  }
}

</mosaic_0001>

<llo_original>
// kernel: bilstm_model_forward.7
$region0: #{bilstm_model_forward.7}
  #allocation0 [shape = 'u32[]', space=smem, size = 0x4, offset = 0x4, fixed_abs, tag = 'smem constant byte address 0x4 - core index']
  #allocation1 [shape = 'u32[144,128]{1,0:T(1,128)}', space=vmem, size = 0x12000, scoped, tag = 'internal scratch']
  %s0 = inlined_call_operand.vmem [shape: bf16[2,8,256], index: 0, kind: input, shape index: {}]
  %s1 = inlined_call_operand.vmem [shape: bf16[2,8,128], index: 1, kind: input, shape index: {}]
  %s2 = inlined_call_operand.vmem [shape: bf16[2,8,128], index: 2, kind: input, shape index: {}]
  %s3 = inlined_call_operand.vmem [shape: bf16[256,512], index: 3, kind: input, shape index: {}]
  %s4 = inlined_call_operand.vmem [shape: f32[1,512], index: 4, kind: input, shape index: {}]
  %s5 = inlined_call_operand.vmem [shape: bf16[2,128,512], index: 5, kind: output, shape index: {}]
  %s6 = sld [smem:[#allocation0]]
  $region53: #{bilstm_model_forward.7} parent=0
    _
  %s8 = ssub.s32 1, %s6
  %s9 = scalar_select 0, %s8, %s6
  loop: start=0, step=1, limit=4
  $region2: #{bilstm_model_forward.7} parent=0 // loop_pre_header
    _
  $region3: #{bilstm_model_forward.7} parent=0 // loop_header
    %s11 = sphi 0, %s15
    %p12 = scmp.ge.s32.totalorder %s11, 4
    %s21 = sphi 0, %s23
    %s24 = sphi 0, %s21
    %s25 = sphi 0, %s24
    %s41 = sphi 0, %s25
    %s47 = sphi 0, %s49
    %s50 = sphi 0, %s47
    %s51 = sphi 0, %s50
    %s67 = sphi 0, %s51
    %s73 = sphi 0, %s75
    %s76 = sphi 0, %s73
    %s77 = sphi 0, %s76
    %s93 = sphi 0, %s77
    %s97 = sphi 0, %s97
    %s99 = sphi 0, %s97
    %s100 = sphi 0, %s99
    %s114 = sphi 0, %s100
    %s118 = sphi 0, %s118
    %s120 = sphi 0, %s118
    %s121 = sphi 0, %s120
    %s135 = sphi 0, %s121
    %s141 = sphi 0, %s143
    %s144 = sphi 0, %s141
    %s145 = sphi 0, %s144
    %s161 = sphi 0, %s145
  $region4: #{bilstm_model_forward.7} parent=0 // loop_header_branch
    %14 = sbr.rel (%p12) target = $region8
  $region5: #{bilstm_model_forward.7} parent=0 // loop_body
    %s16 = ssub.s32 %s11, 1
    %s17 = ssub.s32 %s11, 2
    %s18 = sadd.s32 %s11, 1
    %s19 = ssub.s32 %s11, %s18
    %p20 = scmp.eq.s32.totalorder %s19, 0
    %s22 = sadd.s32 %s21, 1
    %s23 = scalar_select %p20, %s21, %s22
    %p26 = pneg %p20
    %p27 = scmp.eq.s32.totalorder %s11, 1
    %p28 = por %p26, %p27
    %p29 = scmp.ne.s32.totalorder %s21, %s24
    %p30 = scmp.eq.s32.totalorder %s11, 0
    %p31 = por %p29, %p30
    %p32 = scmp.ne.s32.totalorder %s21, %s24
    %p33 = scmp.eq.s32.totalorder %s16, 1
    %p34 = por %p32, %p33
    %p35 = scmp.ne.s32.totalorder %s24, %s25
    %p36 = scmp.eq.s32.totalorder %s16, 0
    %p37 = por %p35, %p36
    %p38 = scmp.ne.s32.totalorder %s24, %s25
    %p39 = scmp.eq.s32.totalorder %s17, 1
    %p40 = por %p38, %p39
    %p42 = scmp.ne.s32.totalorder %s25, %s41
    %p43 = scmp.eq.s32.totalorder %s17, 0
    %p44 = por %p42, %p43
    %s45 = ssub.s32 %s11, %s18
    %p46 = scmp.eq.s32.totalorder %s45, 0
    %s48 = sadd.s32 %s47, 1
    %s49 = scalar_select %p46, %s47, %s48
    %p52 = pneg %p46
    %p53 = scmp.eq.s32.totalorder %s11, 1
    %p54 = por %p52, %p53
    %p55 = scmp.ne.s32.totalorder %s47, %s50
    %p56 = scmp.eq.s32.totalorder %s11, 0
    %p57 = por %p55, %p56
    %p58 = scmp.ne.s32.totalorder %s47, %s50
    %p59 = scmp.eq.s32.totalorder %s16, 1
    %p60 = por %p58, %p59
    %p61 = scmp.ne.s32.totalorder %s50, %s51
    %p62 = scmp.eq.s32.totalorder %s16, 0
    %p63 = por %p61, %p62
    %p64 = scmp.ne.s32.totalorder %s50, %s51
    %p65 = scmp.eq.s32.totalorder %s17, 1
    %p66 = por %p64, %p65
    %p68 = scmp.ne.s32.totalorder %s51, %s67
    %p69 = scmp.eq.s32.totalorder %s17, 0
    %p70 = por %p68, %p69
    %s71 = ssub.s32 %s11, %s18
    %p72 = scmp.eq.s32.totalorder %s71, 0
    %s74 = sadd.s32 %s73, 1
    %s75 = scalar_select %p72, %s73, %s74
    %p78 = pneg %p72
    %p79 = scmp.eq.s32.totalorder %s11, 1
    %p80 = por %p78, %p79
    %p81 = scmp.ne.s32.totalorder %s73, %s76
    %p82 = scmp.eq.s32.totalorder %s11, 0
    %p83 = por %p81, %p82
    %p84 = scmp.ne.s32.totalorder %s73, %s76
    %p85 = scmp.eq.s32.totalorder %s16, 1
    %p86 = por %p84, %p85
    %p87 = scmp.ne.s32.totalorder %s76, %s77
    %p88 = scmp.eq.s32.totalorder %s16, 0
    %p89 = por %p87, %p88
    %p90 = scmp.ne.s32.totalorder %s76, %s77
    %p91 = scmp.eq.s32.totalorder %s17, 1
    %p92 = por %p90, %p91
    %p94 = scmp.ne.s32.totalorder %s77, %s93
    %p95 = scmp.eq.s32.totalorder %s17, 0
    %p96 = por %p94, %p95
    %s98 = sadd.s32 %s97, 1
    %p101 = scmp.eq.s32.totalorder %s11, 1
    %p102 = scmp.ne.s32.totalorder %s97, %s99
    %p103 = scmp.eq.s32.totalorder %s11, 0
    %p104 = por %p102, %p103
    %p105 = scmp.ne.s32.totalorder %s97, %s99
    %p106 = scmp.eq.s32.totalorder %s16, 1
    %p107 = por %p105, %p106
    %p108 = scmp.ne.s32.totalorder %s99, %s100
    %p109 = scmp.eq.s32.totalorder %s16, 0
    %p110 = por %p108, %p109
    %p111 = scmp.ne.s32.totalorder %s99, %s100
    %p112 = scmp.eq.s32.totalorder %s17, 1
    %p113 = por %p111, %p112
    %p115 = scmp.ne.s32.totalorder %s100, %s114
    %p116 = scmp.eq.s32.totalorder %s17, 0
    %p117 = por %p115, %p116
    %s119 = sadd.s32 %s118, 1
    %p122 = scmp.eq.s32.totalorder %s11, 1
    %p123 = scmp.ne.s32.totalorder %s118, %s120
    %p124 = scmp.eq.s32.totalorder %s11, 0
    %p125 = por %p123, %p124
    %p126 = scmp.ne.s32.totalorder %s118, %s120
    %p127 = scmp.eq.s32.totalorder %s16, 1
    %p128 = por %p126, %p127
    %p129 = scmp.ne.s32.totalorder %s120, %s121
    %p130 = scmp.eq.s32.totalorder %s16, 0
    %p131 = por %p129, %p130
    %p132 = scmp.ne.s32.totalorder %s120, %s121
    %p133 = scmp.eq.s32.totalorder %s17, 1
    %p134 = por %p132, %p133
    %p136 = scmp.ne.s32.totalorder %s121, %s135
    %p137 = scmp.eq.s32.totalorder %s17, 0
    %p138 = por %p136, %p137
    %s139 = ssub.s32 %s11, %s18
    %p140 = scmp.eq.s32.totalorder %s139, 0
    %s142 = sadd.s32 %s141, 1
    %s143 = scalar_select %p140, %s141, %s142
    %p146 = pneg %p140
    %p147 = scmp.eq.s32.totalorder %s11, 1
    %p148 = por %p146, %p147
    %p149 = scmp.ne.s32.totalorder %s141, %s144
    %p150 = scmp.eq.s32.totalorder %s11, 0
    %p151 = por %p149, %p150
    %p152 = scmp.ne.s32.totalorder %s141, %s144
    %p153 = scmp.eq.s32.totalorder %s16, 1
    %p154 = por %p152, %p153
    %p155 = scmp.ne.s32.totalorder %s144, %s145
    %p156 = scmp.eq.s32.totalorder %s16, 0
    %p157 = por %p155, %p156
    %p158 = scmp.ne.s32.totalorder %s144, %s145
    %p159 = scmp.eq.s32.totalorder %s17, 1
    %p160 = por %p158, %p159
    %p162 = scmp.ne.s32.totalorder %s145, %s161
    %p163 = scmp.eq.s32.totalorder %s17, 0
    %p164 = por %p162, %p163
    %p165 = scmp.le.s32.totalorder 1, %s11
    %p166 = scmp.lt.s32.totalorder %s11, 3
    %p167 = pnand %p165, %p166
    %p168 = pneg %p167
    // Predicated region
    $region9: #{bilstm_model_forward.7} parent=5 // pred_check
      _
    $region10: #{bilstm_model_forward.7} parent=5 // pred_check_branch
      %170 = sbr.rel (%p167) target = $region12
    $region11: #{bilstm_model_forward.7} parent=5 // pred_region
      %s171 = ssub.s32 %s11, 1
      // Predicated region
      $region13: #{bilstm_model_forward.7} parent=11 // pred_check
        %p172 = pneg %p110
      $region14: #{bilstm_model_forward.7} parent=11 // pred_check_branch
        %174 = sbr.rel (%p172) target = $region16
      $region15: #{bilstm_model_forward.7} parent=11 // pred_region
        _
      $region16: #{bilstm_model_forward.7} parent=11 // pred_fallthru
        _
      // Predicated region
      $region17: #{bilstm_model_forward.7} parent=11 // pred_check
        %p175 = pneg %p131
      $region18: #{bilstm_model_forward.7} parent=11 // pred_check_branch
        %177 = sbr.rel (%p175) target = $region20
      $region19: #{bilstm_model_forward.7} parent=11 // pred_region
        _
      $region20: #{bilstm_model_forward.7} parent=11 // pred_fallthru
        _
    $region12: #{bilstm_model_forward.7} parent=5 // pred_fallthru
      _
    %p178 = scmp.lt.s32.totalorder %s11, 2
    // Predicated region
    $region21: #{bilstm_model_forward.7} parent=5 // pred_check
      %p179 = pneg %p178
    $region22: #{bilstm_model_forward.7} parent=5 // pred_check_branch
      %181 = sbr.rel (%p179) target = $region24
    $region23: #{bilstm_model_forward.7} parent=5 // pred_region
      // Predicated region
      $region25: #{bilstm_model_forward.7} parent=23 // pred_check
        %p182 = pneg %p31
      $region26: #{bilstm_model_forward.7} parent=23 // pred_check_branch
        %184 = sbr.rel (%p182) target = $region28
      $region27: #{bilstm_model_forward.7} parent=23 // pred_region
        %p185 = scmp.lt.s32.totalorder %s11, 1
        %s186 = scalar_select %p185, %s11, 1
        %s187 = smul.addr %s186, 2
        %s188 = smul.addr %s187, 4
        %s189 = scalar_lea.vmem %s0, %s188
      $region28: #{bilstm_model_forward.7} parent=23 // pred_fallthru
        _
      // Predicated region
      $region29: #{bilstm_model_forward.7} parent=23 // pred_check
        %p190 = pneg %p57
      $region30: #{bilstm_model_forward.7} parent=23 // pred_check_branch
        %192 = sbr.rel (%p190) target = $region32
      $region31: #{bilstm_model_forward.7} parent=23 // pred_region
        %p193 = scmp.lt.s32.totalorder %s11, 1
        %s194 = scalar_select %p193, %s11, 1
        %s195 = smul.addr %s194, 4
        %s196 = scalar_lea.vmem %s1, %s195
      $region32: #{bilstm_model_forward.7} parent=23 // pred_fallthru
        _
      // Predicated region
      $region33: #{bilstm_model_forward.7} parent=23 // pred_check
        %p197 = pneg %p83
      $region34: #{bilstm_model_forward.7} parent=23 // pred_check_branch
        %199 = sbr.rel (%p197) target = $region36
      $region35: #{bilstm_model_forward.7} parent=23 // pred_region
        %p200 = scmp.lt.s32.totalorder %s11, 1
        %s201 = scalar_select %p200, %s11, 1
        %s202 = smul.addr %s201, 4
        %s203 = scalar_lea.vmem %s2, %s202
      $region36: #{bilstm_model_forward.7} parent=23 // pred_fallthru
        _
    $region24: #{bilstm_model_forward.7} parent=5 // pred_fallthru
      _
    %p204 = scmp.le.s32.totalorder 1, %s11
    %p205 = scmp.lt.s32.totalorder %s11, 3
    %p206 = pnand %p204, %p205
    %p207 = pneg %p206
    // Predicated region
    $region37: #{bilstm_model_forward.7} parent=5 // pred_check
      _
    $region38: #{bilstm_model_forward.7} parent=5 // pred_check_branch
      %209 = sbr.rel (%p206) target = $region40
    $region39: #{bilstm_model_forward.7} parent=5 // pred_region
      %s210 = ssub.s32 %s11, 1
      %p211 = scmp.lt.s32.totalorder %s16, 1
      %s212 = scalar_select %p211, %s16, 1
      %s213 = smul.addr %s212, 2
      %s214 = smul.addr %s213, 4
      %s215 = scalar_lea.vmem %s0, %s214
      %p216 = pneg %p37
      %p217 = pneg %p34
      %p218 = scmp.lt.s32.totalorder %s16, 1
      %s219 = scalar_select %p218, %s16, 1
      %s220 = smul.addr %s219, 4
      %s221 = scalar_lea.vmem %s1, %s220
      %p222 = pneg %p63
      %p223 = pneg %p60
      %p224 = scmp.lt.s32.totalorder %s16, 1
      %s225 = scalar_select %p224, %s16, 1
      %s226 = smul.addr %s225, 4
      %s227 = scalar_lea.vmem %s2, %s226
      %p228 = pneg %p89
      %p229 = pneg %p86
      %p230 = pneg %p110
      %p231 = pneg %p107
      %p232 = pneg %p131
      %p233 = pneg %p128
      %p234 = pneg %p157
      %p235 = pneg %p154
      %p236 = scmp.lt.s32.totalorder %s16, 1
      %s237 = scalar_select %p236, %s16, 1
      %s238 = smul.addr %s237, 64
      %s239 = smul.addr %s238, 4
      %s240 = scalar_lea.vmem %s5, %s239
      %p241 = scmp.lt.s32.totalorder %s16, 1
      %s242 = scalar_select %p241, %s16, 1
      %s243 = smul.addr %s242, 2
      %s244 = smul.addr %s243, 4
      %s245 = scalar_lea.vmem %s0, %s244
      %p246 = scmp.lt.s32.totalorder %s16, 1
      %s247 = scalar_select %p246, %s16, 1
      %s248 = smul.addr %s247, 4
      %s249 = scalar_lea.vmem %s1, %s248
      %p250 = scmp.lt.s32.totalorder %s16, 1
      %s251 = scalar_select %p250, %s16, 1
      %s252 = smul.addr %s251, 4
      %s253 = scalar_lea.vmem %s2, %s252
      %p254 = scmp.lt.s32.totalorder %s16, 1
      %s255 = scalar_select %p254, %s16, 1
      %s256 = smul.addr %s255, 64
      %s257 = smul.addr %s256, 4
      %s258 = scalar_lea.vmem %s5, %s257
      %v260 = vld [vmem:[%s249] sm:$0xf]
      %v261 = vld [vmem:[%s253] sm:$0xf]
      %v262 = vld [vmem:[%s245] sm:$0xff]
      %v263 = vunpack.c.l.bf16 %v262
      %v264 = vunpack.c.h.bf16 %v262
      %v265 = vunpack.c.l.bf16 %v260
      %v266 = vunpack.c.l.bf16 %v261
      %v267 = vadd.f32 %v263, %v265
      %v268 = vadd.f32 %v264, %v266
      %v269 = vpack.c.bf16 %v267, %v267
      %v270 = vpack.c.bf16 %v268, %v268
      %v271 = vld [vmem:[%s3] sm:$0xff]
      %v272 = vld [vmem:[%s3 + $0x8] sm:$0xff]
      %v273 = vld [vmem:[%s3 + $0x10] sm:$0xff]
      %v274 = vld [vmem:[%s3 + $0x18] sm:$0xff]
      %v275 = vld [vmem:[%s3 + $0x20] sm:$0xff]
      %v276 = vld [vmem:[%s3 + $0x28] sm:$0xff]
      %v277 = vld [vmem:[%s3 + $0x30] sm:$0xff]
      %v278 = vld [vmem:[%s3 + $0x38] sm:$0xff]
      %v279 = vld [vmem:[%s3 + $0x40] sm:$0xff]
      %v280 = vld [vmem:[%s3 + $0x48] sm:$0xff]
      %v281 = vld [vmem:[%s3 + $0x50] sm:$0xff]
      %v282 = vld [vmem:[%s3 + $0x58] sm:$0xff]
      %v283 = vld [vmem:[%s3 + $0x60] sm:$0xff]
      %v284 = vld [vmem:[%s3 + $0x68] sm:$0xff]
      %v285 = vld [vmem:[%s3 + $0x70] sm:$0xff]
      %v286 = vld [vmem:[%s3 + $0x78] sm:$0xff]
      %v287 = vld [vmem:[%s3 + $0x80] sm:$0xff]
      %v288 = vld [vmem:[%s3 + $0x88] sm:$0xff]
      %v289 = vld [vmem:[%s3 + $0x90] sm:$0xff]
      %v290 = vld [vmem:[%s3 + $0x98] sm:$0xff]
      %v291 = vld [vmem:[%s3 + $0xa0] sm:$0xff]
      %v292 = vld [vmem:[%s3 + $0xa8] sm:$0xff]
      %v293 = vld [vmem:[%s3 + $0xb0] sm:$0xff]
      %v294 = vld [vmem:[%s3 + $0xb8] sm:$0xff]
      %v295 = vld [vmem:[%s3 + $0xc0] sm:$0xff]
      %v296 = vld [vmem:[%s3 + $0xc8] sm:$0xff]
      %v297 = vld [vmem:[%s3 + $0xd0] sm:$0xff]
      %v298 = vld [vmem:[%s3 + $0xd8] sm:$0xff]
      %v299 = vld [vmem:[%s3 + $0xe0] sm:$0xff]
      %v300 = vld [vmem:[%s3 + $0xe8] sm:$0xff]
      %v301 = vld [vmem:[%s3 + $0xf0] sm:$0xff]
      %v302 = vld [vmem:[%s3 + $0xf8] sm:$0xff]
      %v303 = vld [vmem:[%s3 + $0x100] sm:$0xff]
      %v304 = vld [vmem:[%s3 + $0x108] sm:$0xff]
      %v305 = vld [vmem:[%s3 + $0x110] sm:$0xff]
      %v306 = vld [vmem:[%s3 + $0x118] sm:$0xff]
      %v307 = vld [vmem:[%s3 + $0x120] sm:$0xff]
      %v308 = vld [vmem:[%s3 + $0x128] sm:$0xff]
      %v309 = vld [vmem:[%s3 + $0x130] sm:$0xff]
      %v310 = vld [vmem:[%s3 + $0x138] sm:$0xff]
      %v311 = vld [vmem:[%s3 + $0x140] sm:$0xff]
      %v312 = vld [vmem:[%s3 + $0x148] sm:$0xff]
      %v313 = vld [vmem:[%s3 + $0x150] sm:$0xff]
      %v314 = vld [vmem:[%s3 + $0x158] sm:$0xff]
      %v315 = vld [vmem:[%s3 + $0x160] sm:$0xff]
      %v316 = vld [vmem:[%s3 + $0x168] sm:$0xff]
      %v317 = vld [vmem:[%s3 + $0x170] sm:$0xff]
      %v318 = vld [vmem:[%s3 + $0x178] sm:$0xff]
      %v319 = vld [vmem:[%s3 + $0x180] sm:$0xff]
      %v320 = vld [vmem:[%s3 + $0x188] sm:$0xff]
      %v321 = vld [vmem:[%s3 + $0x190] sm:$0xff]
      %v322 = vld [vmem:[%s3 + $0x198] sm:$0xff]
      %v323 = vld [vmem:[%s3 + $0x1a0] sm:$0xff]
      %v324 = vld [vmem:[%s3 + $0x1a8] sm:$0xff]
      %v325 = vld [vmem:[%s3 + $0x1b0] sm:$0xff]
      %v326 = vld [vmem:[%s3 + $0x1b8] sm:$0xff]
      %v327 = vld [vmem:[%s3 + $0x1c0] sm:$0xff]
      %v328 = vld [vmem:[%s3 + $0x1c8] sm:$0xff]
      %v329 = vld [vmem:[%s3 + $0x1d0] sm:$0xff]
      %v330 = vld [vmem:[%s3 + $0x1d8] sm:$0xff]
      %v331 = vld [vmem:[%s3 + $0x1e0] sm:$0xff]
      %v332 = vld [vmem:[%s3 + $0x1e8] sm:$0xff]
      %v333 = vld [vmem:[%s3 + $0x1f0] sm:$0xff]
      %v334 = vld [vmem:[%s3 + $0x1f8] sm:$0xff]
      %v335 = vld [vmem:[%s4] sm:$0xf]
      %v337 = vlaneseq
      %v338 = vshrl.u32 %v337, 7
      %v339 = vsub.s32 0, %v338
      %v340 = vrot.slane %v335, %v339
      %v341 = vlaneseq
      %v342 = vshrl.u32 %v341, 7
      %v343 = vsub.s32 1, %v342
      %v344 = vrot.slane %v335, %v343
      %v345 = vlaneseq
      %v346 = vshrl.u32 %v345, 7
      %v347 = vsub.s32 2, %v346
      %v348 = vrot.slane %v335, %v347
      %v349 = vlaneseq
      %v350 = vshrl.u32 %v349, 7
      %v351 = vsub.s32 3, %v350
      %v352 = vrot.slane %v335, %v351
      %v421 = vunpack.c.l.b16 %v271
      %v422 = vunpack.c.h.b16 %v271
      %v423 = vunpack.c.l.b16 %v272
      %v424 = vunpack.c.h.b16 %v272
      %v425 = vunpack.c.l.b16 %v273
      %v426 = vunpack.c.h.b16 %v273
      %v427 = vunpack.c.l.b16 %v274
      %v428 = vunpack.c.h.b16 %v274
      %v429 = vunpack.c.l.b16 %v275
      %v430 = vunpack.c.h.b16 %v275
      %v431 = vunpack.c.l.b16 %v276
      %v432 = vunpack.c.h.b16 %v276
      %v433 = vunpack.c.l.b16 %v277
      %v434 = vunpack.c.h.b16 %v277
      %v435 = vunpack.c.l.b16 %v278
      %v436 = vunpack.c.h.b16 %v278
      %v437 = vunpack.c.l.b16 %v279
      %v438 = vunpack.c.h.b16 %v279
      %v439 = vunpack.c.l.b16 %v280
      %v440 = vunpack.c.h.b16 %v280
      %v441 = vunpack.c.l.b16 %v281
      %v442 = vunpack.c.h.b16 %v281
      %v443 = vunpack.c.l.b16 %v282
      %v444 = vunpack.c.h.b16 %v282
      %v445 = vunpack.c.l.b16 %v283
      %v446 = vunpack.c.h.b16 %v283
      %v447 = vunpack.c.l.b16 %v284
      %v448 = vunpack.c.h.b16 %v284
      %v449 = vunpack.c.l.b16 %v285
      %v450 = vunpack.c.h.b16 %v285
      %v451 = vunpack.c.l.b16 %v286
      %v452 = vunpack.c.h.b16 %v286
      %v453 = vunpack.c.l.b16 %v287
      %v454 = vunpack.c.h.b16 %v287
      %v455 = vunpack.c.l.b16 %v288
      %v456 = vunpack.c.h.b16 %v288
      %v457 = vunpack.c.l.b16 %v289
      %v458 = vunpack.c.h.b16 %v289
      %v459 = vunpack.c.l.b16 %v290
      %v460 = vunpack.c.h.b16 %v290
      %v461 = vunpack.c.l.b16 %v291
      %v462 = vunpack.c.h.b16 %v291
      %v463 = vunpack.c.l.b16 %v292
      %v464 = vunpack.c.h.b16 %v292
      %v465 = vunpack.c.l.b16 %v293
      %v466 = vunpack.c.h.b16 %v293
      %v467 = vunpack.c.l.b16 %v294
      %v468 = vunpack.c.h.b16 %v294
      %v469 = vunpack.c.l.b16 %v295
      %v470 = vunpack.c.h.b16 %v295
      %v471 = vunpack.c.l.b16 %v296
      %v472 = vunpack.c.h.b16 %v296
      %v473 = vunpack.c.l.b16 %v297
      %v474 = vunpack.c.h.b16 %v297
      %v475 = vunpack.c.l.b16 %v298
      %v476 = vunpack.c.h.b16 %v298
      %v477 = vunpack.c.l.b16 %v299
      %v478 = vunpack.c.h.b16 %v299
      %v479 = vunpack.c.l.b16 %v300
      %v480 = vunpack.c.h.b16 %v300
      %v481 = vunpack.c.l.b16 %v301
      %v482 = vunpack.c.h.b16 %v301
      %v483 = vunpack.c.l.b16 %v302
      %v484 = vunpack.c.h.b16 %v302
      %v485 = vunpack.c.l.b16 %v303
      %v486 = vunpack.c.h.b16 %v303
      %v487 = vunpack.c.l.b16 %v304
      %v488 = vunpack.c.h.b16 %v304
      %v489 = vunpack.c.l.b16 %v305
      %v490 = vunpack.c.h.b16 %v305
      %v491 = vunpack.c.l.b16 %v306
      %v492 = vunpack.c.h.b16 %v306
      %v493 = vunpack.c.l.b16 %v307
      %v494 = vunpack.c.h.b16 %v307
      %v495 = vunpack.c.l.b16 %v308
      %v496 = vunpack.c.h.b16 %v308
      %v497 = vunpack.c.l.b16 %v309
      %v498 = vunpack.c.h.b16 %v309
      %v499 = vunpack.c.l.b16 %v310
      %v500 = vunpack.c.h.b16 %v310
      %v501 = vunpack.c.l.b16 %v311
      %v502 = vunpack.c.h.b16 %v311
      %v503 = vunpack.c.l.b16 %v312
      %v504 = vunpack.c.h.b16 %v312
      %v505 = vunpack.c.l.b16 %v313
      %v506 = vunpack.c.h.b16 %v313
      %v507 = vunpack.c.l.b16 %v314
      %v508 = vunpack.c.h.b16 %v314
      %v509 = vunpack.c.l.b16 %v315
      %v510 = vunpack.c.h.b16 %v315
      %v511 = vunpack.c.l.b16 %v316
      %v512 = vunpack.c.h.b16 %v316
      %v513 = vunpack.c.l.b16 %v317
      %v514 = vunpack.c.h.b16 %v317
      %v515 = vunpack.c.l.b16 %v318
      %v516 = vunpack.c.h.b16 %v318
      %v517 = vunpack.c.l.b16 %v319
      %v518 = vunpack.c.h.b16 %v319
      %v519 = vunpack.c.l.b16 %v320
      %v520 = vunpack.c.h.b16 %v320
      %v521 = vunpack.c.l.b16 %v321
      %v522 = vunpack.c.h.b16 %v321
      %v523 = vunpack.c.l.b16 %v322
      %v524 = vunpack.c.h.b16 %v322
      %v525 = vunpack.c.l.b16 %v323
      %v526 = vunpack.c.h.b16 %v323
      %v527 = vunpack.c.l.b16 %v324
      %v528 = vunpack.c.h.b16 %v324
      %v529 = vunpack.c.l.b16 %v325
      %v530 = vunpack.c.h.b16 %v325
      %v531 = vunpack.c.l.b16 %v326
      %v532 = vunpack.c.h.b16 %v326
      %v533 = vunpack.c.l.b16 %v327
      %v534 = vunpack.c.h.b16 %v327
      %v535 = vunpack.c.l.b16 %v328
      %v536 = vunpack.c.h.b16 %v328
      %v537 = vunpack.c.l.b16 %v329
      %v538 = vunpack.c.h.b16 %v329
      %v539 = vunpack.c.l.b16 %v330
      %v540 = vunpack.c.h.b16 %v330
      %v541 = vunpack.c.l.b16 %v331
      %v542 = vunpack.c.h.b16 %v331
      %v543 = vunpack.c.l.b16 %v332
      %v544 = vunpack.c.h.b16 %v332
      %v545 = vunpack.c.l.b16 %v333
      %v546 = vunpack.c.h.b16 %v333
      %v547 = vunpack.c.l.b16 %v334
      %v548 = vunpack.c.h.b16 %v334
      %v549 = vpack.c.b16 %v425, %v421
      %v550 = vpack.c.b16 %v426, %v422
      %v551 = vpack.c.b16 %v427, %v423
      %v552 = vpack.c.b16 %v428, %v424
      %v553 = vpack.c.b16 %v433, %v429
      %v554 = vpack.c.b16 %v434, %v430
      %v555 = vpack.c.b16 %v435, %v431
      %v556 = vpack.c.b16 %v436, %v432
      %v557 = vpack.c.b16 %v441, %v437
      %v558 = vpack.c.b16 %v442, %v438
      %v559 = vpack.c.b16 %v443, %v439
      %v560 = vpack.c.b16 %v444, %v440
      %v561 = vpack.c.b16 %v449, %v445
      %v562 = vpack.c.b16 %v450, %v446
      %v563 = vpack.c.b16 %v451, %v447
      %v564 = vpack.c.b16 %v452, %v448
      %v565 = vpack.c.b16 %v457, %v453
      %v566 = vpack.c.b16 %v458, %v454
      %v567 = vpack.c.b16 %v459, %v455
      %v568 = vpack.c.b16 %v460, %v456
      %v569 = vpack.c.b16 %v465, %v461
      %v570 = vpack.c.b16 %v466, %v462
      %v571 = vpack.c.b16 %v467, %v463
      %v572 = vpack.c.b16 %v468, %v464
      %v573 = vpack.c.b16 %v473, %v469
      %v574 = vpack.c.b16 %v474, %v470
      %v575 = vpack.c.b16 %v475, %v471
      %v576 = vpack.c.b16 %v476, %v472
      %v577 = vpack.c.b16 %v481, %v477
      %v578 = vpack.c.b16 %v482, %v478
      %v579 = vpack.c.b16 %v483, %v479
      %v580 = vpack.c.b16 %v484, %v480
      %v581 = vpack.c.b16 %v489, %v485
      %v582 = vpack.c.b16 %v490, %v486
      %v583 = vpack.c.b16 %v491, %v487
      %v584 = vpack.c.b16 %v492, %v488
      %v585 = vpack.c.b16 %v497, %v493
      %v586 = vpack.c.b16 %v498, %v494
      %v587 = vpack.c.b16 %v499, %v495
      %v588 = vpack.c.b16 %v500, %v496
      %v589 = vpack.c.b16 %v505, %v501
      %v590 = vpack.c.b16 %v506, %v502
      %v591 = vpack.c.b16 %v507, %v503
      %v592 = vpack.c.b16 %v508, %v504
      %v593 = vpack.c.b16 %v513, %v509
      %v594 = vpack.c.b16 %v514, %v510
      %v595 = vpack.c.b16 %v515, %v511
      %v596 = vpack.c.b16 %v516, %v512
      %v597 = vpack.c.b16 %v521, %v517
      %v598 = vpack.c.b16 %v522, %v518
      %v599 = vpack.c.b16 %v523, %v519
      %v600 = vpack.c.b16 %v524, %v520
      %v601 = vpack.c.b16 %v529, %v525
      %v602 = vpack.c.b16 %v530, %v526
      %v603 = vpack.c.b16 %v531, %v527
      %v604 = vpack.c.b16 %v532, %v528
      %v605 = vpack.c.b16 %v537, %v533
      %v606 = vpack.c.b16 %v538, %v534
      %v607 = vpack.c.b16 %v539, %v535
      %v608 = vpack.c.b16 %v540, %v536
      %v609 = vpack.c.b16 %v545, %v541
      %v610 = vpack.c.b16 %v546, %v542
      %v611 = vpack.c.b16 %v547, %v543
      %v612 = vpack.c.b16 %v548, %v544
      %677 = vmatprep.subr.bf16.mxu0 %v550
      %678 = vmatpush1.bf16.msra.mxu0 %v549
      %679 = vmatprep.subr.bf16.mxu0 %v554
      %680 = vmatpush1.bf16.msra.mxu0 %v553
      %681 = vmatprep.subr.bf16.mxu0 %v558
      %682 = vmatpush1.bf16.msra.mxu0 %v557
      %683 = vmatprep.subr.bf16.mxu0 %v562
      %684 = vmatpush1.bf16.msra.mxu0 %v561
      %685 = vmatprep.subr.bf16.mxu0 %v566
      %686 = vmatpush1.bf16.msra.mxu0 %v565
      %687 = vmatprep.subr.bf16.mxu0 %v570
      %688 = vmatpush1.bf16.msra.mxu0 %v569
      %689 = vmatprep.subr.bf16.mxu0 %v574
      %690 = vmatpush1.bf16.msra.mxu0 %v573
      %691 = vmatprep.subr.bf16.mxu0 %v578
      %692 = vmatpush1.bf16.msra.mxu0 %v577
      %693 = vmatprep.subr.bf16.mxu0 %v582
      %694 = vmatpush1.bf16.msra.mxu0 %v581
      %695 = vmatprep.subr.bf16.mxu0 %v586
      %696 = vmatpush1.bf16.msra.mxu0 %v585
      %697 = vmatprep.subr.bf16.mxu0 %v590
      %698 = vmatpush1.bf16.msra.mxu0 %v589
      %699 = vmatprep.subr.bf16.mxu0 %v594
      %700 = vmatpush1.bf16.msra.mxu0 %v593
      %701 = vmatprep.subr.bf16.mxu0 %v598
      %702 = vmatpush1.bf16.msra.mxu0 %v597
      %703 = vmatprep.subr.bf16.mxu0 %v602
      %704 = vmatpush1.bf16.msra.mxu0 %v601
      %705 = vmatprep.subr.bf16.mxu0 %v606
      %706 = vmatpush1.bf16.msra.mxu0 %v605
      %707 = vmatprep.subr.bf16.mxu0 %v610
      %708 = vmatpush1.bf16.msra.mxu0 %v609
      %709 = vmatprep.mubr.bf16.mxu0 %v270
      %710 = vmatmul.mubr.bf16.gmra.mrb[0].mxu0 %v269
      %v711 = vpop.f32.mrb[0].mxu0
      %v712 = vadd.f32 %v340, %v711
      %v713 = vpop.f32.mrb[0].mxu0
      %v714 = vadd.f32 %v344, %v713
      %v715 = vpop.f32.mrb[0].mxu0
      %v716 = vpop.f32.mrb[0].mxu0
      %717 = vdwg.mxu0
      %718 = vmatprep.subr.bf16.mxu0 %v552
      %719 = vmatpush1.bf16.msra.mxu0 %v551
      %720 = vmatprep.subr.bf16.mxu0 %v556
      %721 = vmatpush1.bf16.msra.mxu0 %v555
      %722 = vmatprep.subr.bf16.mxu0 %v560
      %723 = vmatpush1.bf16.msra.mxu0 %v559
      %724 = vmatprep.subr.bf16.mxu0 %v564
      %725 = vmatpush1.bf16.msra.mxu0 %v563
      %726 = vmatprep.subr.bf16.mxu0 %v568
      %727 = vmatpush1.bf16.msra.mxu0 %v567
      %728 = vmatprep.subr.bf16.mxu0 %v572
      %729 = vmatpush1.bf16.msra.mxu0 %v571
      %730 = vmatprep.subr.bf16.mxu0 %v576
      %731 = vmatpush1.bf16.msra.mxu0 %v575
      %732 = vmatprep.subr.bf16.mxu0 %v580
      %733 = vmatpush1.bf16.msra.mxu0 %v579
      %734 = vmatprep.subr.bf16.mxu0 %v584
      %735 = vmatpush1.bf16.msra.mxu0 %v583
      %736 = vmatprep.subr.bf16.mxu0 %v588
      %737 = vmatpush1.bf16.msra.mxu0 %v587
      %738 = vmatprep.subr.bf16.mxu0 %v592
      %739 = vmatpush1.bf16.msra.mxu0 %v591
      %740 = vmatprep.subr.bf16.mxu0 %v596
      %741 = vmatpush1.bf16.msra.mxu0 %v595
      %742 = vmatprep.subr.bf16.mxu0 %v600
      %743 = vmatpush1.bf16.msra.mxu0 %v599
      %744 = vmatprep.subr.bf16.mxu0 %v604
      %745 = vmatpush1.bf16.msra.mxu0 %v603
      %746 = vmatprep.subr.bf16.mxu0 %v608
      %747 = vmatpush1.bf16.msra.mxu0 %v607
      %748 = vmatprep.subr.bf16.mxu0 %v612
      %749 = vmatpush1.bf16.msra.mxu0 %v611
      %750 = vmatprep.mubr.bf16.mxu0 %v270
      %751 = vmatmul.mubr.bf16.gmra.mrb[0].mxu0 %v269
      %v752 = vpop.f32.mrb[0].mxu0
      %v753 = vadd.f32 %v348, %v752
      %v754 = vpop.f32.mrb[0].mxu0
      %v755 = vadd.f32 %v352, %v754
      %v756 = vpop.f32.mrb[0].mxu0
      %v757 = vpop.f32.mrb[0].mxu0
      %758 = vdwg.mxu0
      %759 = vst [vmem:[%s258] sm:$0xff] 0
      %760 = vst [vmem:[%s258 + $0x8] sm:$0xff] 0
      %761 = vst [vmem:[%s258 + $0x10] sm:$0xff] 0
      %762 = vst [vmem:[%s258 + $0x18] sm:$0xff] 0
      %763 = vst [vmem:[%s258 + $0x20] sm:$0xff] 0
      %764 = vst [vmem:[%s258 + $0x28] sm:$0xff] 0
      %765 = vst [vmem:[%s258 + $0x30] sm:$0xff] 0
      %766 = vst [vmem:[%s258 + $0x38] sm:$0xff] 0
      %767 = vst [vmem:[%s258 + $0x40] sm:$0xff] 0
      %768 = vst [vmem:[%s258 + $0x48] sm:$0xff] 0
      %769 = vst [vmem:[%s258 + $0x50] sm:$0xff] 0
      %770 = vst [vmem:[%s258 + $0x58] sm:$0xff] 0
      %771 = vst [vmem:[%s258 + $0x60] sm:$0xff] 0
      %772 = vst [vmem:[%s258 + $0x68] sm:$0xff] 0
      %773 = vst [vmem:[%s258 + $0x70] sm:$0xff] 0
      %774 = vst [vmem:[%s258 + $0x78] sm:$0xff] 0
      %775 = vst [vmem:[%s258 + $0x80] sm:$0xff] 0
      %776 = vst [vmem:[%s258 + $0x88] sm:$0xff] 0
      %777 = vst [vmem:[%s258 + $0x90] sm:$0xff] 0
      %778 = vst [vmem:[%s258 + $0x98] sm:$0xff] 0
      %779 = vst [vmem:[%s258 + $0xa0] sm:$0xff] 0
      %780 = vst [vmem:[%s258 + $0xa8] sm:$0xff] 0
      %781 = vst [vmem:[%s258 + $0xb0] sm:$0xff] 0
      %782 = vst [vmem:[%s258 + $0xb8] sm:$0xff] 0
      %783 = vst [vmem:[%s258 + $0xc0] sm:$0xff] 0
      %784 = vst [vmem:[%s258 + $0xc8] sm:$0xff] 0
      %785 = vst [vmem:[%s258 + $0xd0] sm:$0xff] 0
      %786 = vst [vmem:[%s258 + $0xd8] sm:$0xff] 0
      %787 = vst [vmem:[%s258 + $0xe0] sm:$0xff] 0
      %788 = vst [vmem:[%s258 + $0xe8] sm:$0xff] 0
      %789 = vst [vmem:[%s258 + $0xf0] sm:$0xff] 0
      %790 = vst [vmem:[%s258 + $0xf8] sm:$0xff] 0
      %v791 = vpack.c.bf16 %v712, %v712
      %v792 = vpack.c.bf16 %v714, %v714
      %v793 = vpack.c.bf16 %v753, %v753
      %v794 = vpack.c.bf16 %v755, %v755
      %v799 = vunpack.c.l.b16 %v791
      %v800 = vunpack.c.l.b16 %v792
      %v801 = vunpack.c.l.b16 %v793
      %v802 = vunpack.c.l.b16 %v794
      %v803 = vpack.c.b16 %v800, %v799
      %v804 = vpack.c.b16 %v802, %v801
      %807 = vst [vmem:[%s258] sm:$0xff] %v803
      %808 = vst [vmem:[%s258 + $0x8] sm:$0xff] %v804
      %p809 = scmp.lt.s32.totalorder %s16, 1
      %s810 = scalar_select %p809, %s16, 1
      %s811 = smul.addr %s810, 64
      %s812 = smul.addr %s811, 4
      %s813 = scalar_lea.vmem %s5, %s812
      // Predicated region
      $region41: #{bilstm_model_forward.7} parent=39 // pred_check
        %p814 = pneg %p154
      $region42: #{bilstm_model_forward.7} parent=39 // pred_check_branch
        %816 = sbr.rel (%p814) target = $region44
      $region43: #{bilstm_model_forward.7} parent=39 // pred_region
        _
      $region44: #{bilstm_model_forward.7} parent=39 // pred_fallthru
        _
    $region40: #{bilstm_model_forward.7} parent=5 // pred_fallthru
      _
    %p817 = scmp.le.s32.totalorder 2, %s11
    // Predicated region
    $region45: #{bilstm_model_forward.7} parent=5 // pred_check
      %p818 = pneg %p817
    $region46: #{bilstm_model_forward.7} parent=5 // pred_check_branch
      %820 = sbr.rel (%p818) target = $region48
    $region47: #{bilstm_model_forward.7} parent=5 // pred_region
      %s821 = ssub.s32 %s11, 2
      // Predicated region
      $region49: #{bilstm_model_forward.7} parent=47 // pred_check
        %p822 = pneg %p160
      $region50: #{bilstm_model_forward.7} parent=47 // pred_check_branch
        %824 = sbr.rel (%p822) target = $region52
      $region51: #{bilstm_model_forward.7} parent=47 // pred_region
        %p825 = scmp.lt.s32.totalorder %s17, 1
        %s826 = scalar_select %p825, %s17, 1
        %s827 = smul.addr %s826, 64
        %s828 = smul.addr %s827, 4
        %s829 = scalar_lea.vmem %s5, %s828
      $region52: #{bilstm_model_forward.7} parent=47 // pred_fallthru
        _
    $region48: #{bilstm_model_forward.7} parent=5 // pred_fallthru
      _
  $region6: #{bilstm_model_forward.7} parent=0 // loop_footer
    %s15 = sadd.s32 1, %s11
  $region7: #{bilstm_model_forward.7} parent=0 // loop_footer_branch
    %10 = sbr.rel target = $region3
  $region8: #{bilstm_model_forward.7} parent=0 // loop_exit
    _

// kernel: bilstm_model_forward.8
$region0: #{bilstm_model_forward.8}
  #allocation0 [shape = 'u32[]', space=smem, size = 0x4, offset = 0x4, fixed_abs, tag = 'smem constant byte address 0x4 - core index']
  #allocation1 [shape = 'u32[144,128]{1,0:T(1,128)}', space=vmem, size = 0x12000, scoped, tag = 'internal scratch']
  %s0 = inlined_call_operand.vmem [shape: bf16[2,128,512], index: 0, kind: input, shape index: {}, may-alias: {0,1}]
  %s1 = inlined_call_operand.vmem [shape: bf16[2,128,512], index: 1, kind: input, shape index: {}, may-alias: {0,1}]
  %s2 = inlined_call_operand.vmem [shape: bf16[128,128], index: 2, kind: input, shape index: {}]
  %s3 = inlined_call_operand.vmem [shape: f32[2,1,128,128], index: 3, kind: output, shape index: {}]
  %s4 = sld [smem:[#allocation0]]
  $region127: #{bilstm_model_forward.8} parent=0
    _
  %s6 = ssub.s32 1, %s4
  %s7 = scalar_select 0, %s6, %s4
  $region1: #{bilstm_model_forward.8} parent=0
    #allocation2 [shape = 'u8[65536]{0}', space=vmem, size = 0x10000, scoped, tag = 'input window, operand 0']
    #allocation3 [shape = 'u8[65536]{0}', space=vmem, size = 0x10000, scoped, tag = 'input window, operand 1']
    loop: start=0, step=1, limit=4
    $region2: #{bilstm_model_forward.8} parent=1 // loop_pre_header
      _
    $region3: #{bilstm_model_forward.8} parent=1 // loop_header
      %s9 = sphi 0, %s13
      %p10 = scmp.ge.s32.totalorder %s9, 4
      %s19 = sphi 0, %s21
      %s22 = sphi 0, %s19
      %s23 = sphi 0, %s22
      %s39 = sphi 0, %s23
      %s45 = sphi 0, %s47
      %s48 = sphi 0, %s45
      %s49 = sphi 0, %s48
      %s65 = sphi 0, %s49
      %s69 = sphi 0, %s69
      %s71 = sphi 0, %s69
      %s72 = sphi 0, %s71
      %s86 = sphi 0, %s72
      %s92 = sphi 0, %s94
      %s95 = sphi 0, %s92
      %s96 = sphi 0, %s95
      %s112 = sphi 0, %s96
    $region4: #{bilstm_model_forward.8} parent=1 // loop_header_branch
      %12 = sbr.rel (%p10) target = $region8
    $region5: #{bilstm_model_forward.8} parent=1 // loop_body
      %s14 = ssub.s32 %s9, 1
      %s15 = ssub.s32 %s9, 2
      %s16 = sadd.s32 %s9, 1
      %s17 = ssub.s32 %s9, %s16
      %p18 = scmp.eq.s32.totalorder %s17, 0
      %s20 = sadd.s32 %s19, 1
      %s21 = scalar_select %p18, %s19, %s20
      %p24 = pneg %p18
      %p25 = scmp.eq.s32.totalorder %s9, 1
      %p26 = por %p24, %p25
      %p27 = scmp.ne.s32.totalorder %s19, %s22
      %p28 = scmp.eq.s32.totalorder %s9, 0
      %p29 = por %p27, %p28
      %p30 = scmp.ne.s32.totalorder %s19, %s22
      %p31 = scmp.eq.s32.totalorder %s14, 1
      %p32 = por %p30, %p31
      %p33 = scmp.ne.s32.totalorder %s22, %s23
      %p34 = scmp.eq.s32.totalorder %s14, 0
      %p35 = por %p33, %p34
      %p36 = scmp.ne.s32.totalorder %s22, %s23
      %p37 = scmp.eq.s32.totalorder %s15, 1
      %p38 = por %p36, %p37
      %p40 = scmp.ne.s32.totalorder %s23, %s39
      %p41 = scmp.eq.s32.totalorder %s15, 0
      %p42 = por %p40, %p41
      %s43 = ssub.s32 %s9, %s16
      %p44 = scmp.eq.s32.totalorder %s43, 0
      %s46 = sadd.s32 %s45, 1
      %s47 = scalar_select %p44, %s45, %s46
      %p50 = pneg %p44
      %p51 = scmp.eq.s32.totalorder %s9, 1
      %p52 = por %p50, %p51
      %p53 = scmp.ne.s32.totalorder %s45, %s48
      %p54 = scmp.eq.s32.totalorder %s9, 0
      %p55 = por %p53, %p54
      %p56 = scmp.ne.s32.totalorder %s45, %s48
      %p57 = scmp.eq.s32.totalorder %s14, 1
      %p58 = por %p56, %p57
      %p59 = scmp.ne.s32.totalorder %s48, %s49
      %p60 = scmp.eq.s32.totalorder %s14, 0
      %p61 = por %p59, %p60
      %p62 = scmp.ne.s32.totalorder %s48, %s49
      %p63 = scmp.eq.s32.totalorder %s15, 1
      %p64 = por %p62, %p63
      %p66 = scmp.ne.s32.totalorder %s49, %s65
      %p67 = scmp.eq.s32.totalorder %s15, 0
      %p68 = por %p66, %p67
      %s70 = sadd.s32 %s69, 1
      %p73 = scmp.eq.s32.totalorder %s9, 1
      %p74 = scmp.ne.s32.totalorder %s69, %s71
      %p75 = scmp.eq.s32.totalorder %s9, 0
      %p76 = por %p74, %p75
      %p77 = scmp.ne.s32.totalorder %s69, %s71
      %p78 = scmp.eq.s32.totalorder %s14, 1
      %p79 = por %p77, %p78
      %p80 = scmp.ne.s32.totalorder %s71, %s72
      %p81 = scmp.eq.s32.totalorder %s14, 0
      %p82 = por %p80, %p81
      %p83 = scmp.ne.s32.totalorder %s71, %s72
      %p84 = scmp.eq.s32.totalorder %s15, 1
      %p85 = por %p83, %p84
      %p87 = scmp.ne.s32.totalorder %s72, %s86
      %p88 = scmp.eq.s32.totalorder %s15, 0
      %p89 = por %p87, %p88
      %s90 = ssub.s32 %s9, %s16
      %p91 = scmp.eq.s32.totalorder %s90, 0
      %s93 = sadd.s32 %s92, 1
      %s94 = scalar_select %p91, %s92, %s93
      %p97 = pneg %p91
      %p98 = scmp.eq.s32.totalorder %s9, 1
      %p99 = por %p97, %p98
      %p100 = scmp.ne.s32.totalorder %s92, %s95
      %p101 = scmp.eq.s32.totalorder %s9, 0
      %p102 = por %p100, %p101
      %p103 = scmp.ne.s32.totalorder %s92, %s95
      %p104 = scmp.eq.s32.totalorder %s14, 1
      %p105 = por %p103, %p104
      %p106 = scmp.ne.s32.totalorder %s95, %s96
      %p107 = scmp.eq.s32.totalorder %s14, 0
      %p108 = por %p106, %p107
      %p109 = scmp.ne.s32.totalorder %s95, %s96
      %p110 = scmp.eq.s32.totalorder %s15, 1
      %p111 = por %p109, %p110
      %p113 = scmp.ne.s32.totalorder %s96, %s112
      %p114 = scmp.eq.s32.totalorder %s15, 0
      %p115 = por %p113, %p114
      %p116 = scmp.le.s32.totalorder 1, %s9
      %p117 = scmp.lt.s32.totalorder %s9, 3
      %p118 = pnand %p116, %p117
      %p119 = pneg %p118
      // Predicated region
      $region9: #{bilstm_model_forward.8} parent=5 // pred_check
        _
      $region10: #{bilstm_model_forward.8} parent=5 // pred_check_branch
        %121 = sbr.rel (%p118) target = $region12
      $region11: #{bilstm_model_forward.8} parent=5 // pred_region
        %s122 = ssub.s32 %s9, 1
        // Predicated region
        $region13: #{bilstm_model_forward.8} parent=11 // pred_check
          %p123 = pneg %p82
        $region14: #{bilstm_model_forward.8} parent=11 // pred_check_branch
          %125 = sbr.rel (%p123) target = $region16
        $region15: #{bilstm_model_forward.8} parent=11 // pred_region
          _
        $region16: #{bilstm_model_forward.8} parent=11 // pred_fallthru
          _
      $region12: #{bilstm_model_forward.8} parent=5 // pred_fallthru
        _
      %p126 = scmp.lt.s32.totalorder %s9, 2
      // Predicated region
      $region17: #{bilstm_model_forward.8} parent=5 // pred_check
        %p127 = pneg %p126
      $region18: #{bilstm_model_forward.8} parent=5 // pred_check_branch
        %129 = sbr.rel (%p127) target = $region20
      $region19: #{bilstm_model_forward.8} parent=5 // pred_region
        // Predicated region
        $region21: #{bilstm_model_forward.8} parent=19 // pred_check
          %p130 = pneg %p29
        $region22: #{bilstm_model_forward.8} parent=19 // pred_check_branch
          %132 = sbr.rel (%p130) target = $region24
        $region23: #{bilstm_model_forward.8} parent=19 // pred_region
          %s133 = sand.u32 %s19, 1
          %s134 = sand.u32 %s19, 1
          %s135 = smul.addr %s134, 64
          %s136 = scalar_lea.vmem [#allocation2], %s135
          %s137 = smul.addr %s9, 64
          %s138 = smul.addr %s137, 4
          %s139 = scalar_lea.vmem %s0, %s138
          // Predicated region
          $region25: #{bilstm_model_forward.8} parent=23 // pred_check
            _
          $region26: #{bilstm_model_forward.8} parent=23 // pred_check_branch
            %141 = sbr.rel (0) target = $region28
          $region27: #{bilstm_model_forward.8} parent=23 // pred_region
            // Predicated region
            $region29: #{bilstm_model_forward.8} parent=27 // pred_check
              _
            $region30: #{bilstm_model_forward.8} parent=27 // pred_check_branch
              %143 = sbr.rel target = $region32
            $region31: #{bilstm_model_forward.8} parent=27 // pred_region
              // Predicated region
              $region44: #{bilstm_model_forward.8} parent=31 // pred_check
                _
              $region45: #{bilstm_model_forward.8} parent=31 // pred_check_branch
                %188 = sbr.rel (0) target = $region47
              $region46: #{bilstm_model_forward.8} parent=31 // pred_region
                loop: start=0, step=1, limit=1
                $region48: #{bilstm_model_forward.8} parent=46 // loop_pre_header
                  _
                $region49: #{bilstm_model_forward.8} parent=46 // loop_header
                  %s190 = sphi 0, %s194
                  %p191 = scmp.ge.s32.totalorder %s190, 1
                  %s195 = sphi %s139, %s139
                  %s196 = sphi %s136, %s136
                $region50: #{bilstm_model_forward.8} parent=46 // loop_header_branch
                  %193 = sbr.rel (%p191) target = $region54
                $region51: #{bilstm_model_forward.8} parent=46 // loop_body
                  _
                $region52: #{bilstm_model_forward.8} parent=46 // loop_footer
                  %s194 = sadd.s32 1, %s190
                $region53: #{bilstm_model_forward.8} parent=46 // loop_footer_branch
                  %189 = sbr.rel target = $region49
                $region54: #{bilstm_model_forward.8} parent=46 // loop_exit
                  _
                loop: start=0, step=1, limit=1
                $region55: #{bilstm_model_forward.8} parent=46 // loop_pre_header
                  _
                $region56: #{bilstm_model_forward.8} parent=46 // loop_header
                  %s199 = sphi 0, %s203
                  %p200 = scmp.ge.s32.totalorder %s199, 1
                  %s204 = sphi %s139, %s139
                  %s205 = sphi %s136, %s136
                $region57: #{bilstm_model_forward.8} parent=46 // loop_header_branch
                  %202 = sbr.rel (%p200) target = $region61
                $region58: #{bilstm_model_forward.8} parent=46 // loop_body
                  %v206 = vld [vmem:[%s204] sm:$0xf]
                  %207 = vst [vmem:[%s205] sm:$0xf] %v206
                  %v208 = vld [vmem:[%s204 + $0x10] sm:$0xf]
                  %209 = vst [vmem:[%s205 + $0x4] sm:$0xf] %v208
                  %v210 = vld [vmem:[%s204 + $0x20] sm:$0xf]
                  %211 = vst [vmem:[%s205 + $0x8] sm:$0xf] %v210
                  %v212 = vld [vmem:[%s204 + $0x30] sm:$0xf]
                  %213 = vst [vmem:[%s205 + $0xc] sm:$0xf] %v212
                  %v214 = vld [vmem:[%s204 + $0x40] sm:$0xf]
                  %215 = vst [vmem:[%s205 + $0x10] sm:$0xf] %v214
                  %v216 = vld [vmem:[%s204 + $0x50] sm:$0xf]
                  %217 = vst [vmem:[%s205 + $0x14] sm:$0xf] %v216
                  %v218 = vld [vmem:[%s204 + $0x60] sm:$0xf]
                  %219 = vst [vmem:[%s205 + $0x18] sm:$0xf] %v218
                  %v220 = vld [vmem:[%s204 + $0x70] sm:$0xf]
                  %221 = vst [vmem:[%s205 + $0x1c] sm:$0xf] %v220
                  %v222 = vld [vmem:[%s204 + $0x80] sm:$0xf]
                  %223 = vst [vmem:[%s205 + $0x20] sm:$0xf] %v222
                  %v224 = vld [vmem:[%s204 + $0x90] sm:$0xf]
                  %225 = vst [vmem:[%s205 + $0x24] sm:$0xf] %v224
                  %v226 = vld [vmem:[%s204 + $0xa0] sm:$0xf]
                  %227 = vst [vmem:[%s205 + $0x28] sm:$0xf] %v226
                  %v228 = vld [vmem:[%s204 + $0xb0] sm:$0xf]
                  %229 = vst [vmem:[%s205 + $0x2c] sm:$0xf] %v228
                  %v230 = vld [vmem:[%s204 + $0xc0] sm:$0xf]
                  %231 = vst [vmem:[%s205 + $0x30] sm:$0xf] %v230
                  %v232 = vld [vmem:[%s204 + $0xd0] sm:$0xf]
                  %233 = vst [vmem:[%s205 + $0x34] sm:$0xf] %v232
                  %v234 = vld [vmem:[%s204 + $0xe0] sm:$0xf]
                  %235 = vst [vmem:[%s205 + $0x38] sm:$0xf] %v234
                  %v236 = vld [vmem:[%s204 + $0xf0] sm:$0xf]
                  %237 = vst [vmem:[%s205 + $0x3c] sm:$0xf] %v236
                $region59: #{bilstm_model_forward.8} parent=46 // loop_footer
                  %s203 = sadd.s32 1, %s199
                $region60: #{bilstm_model_forward.8} parent=46 // loop_footer_branch
                  %198 = sbr.rel target = $region56
                $region61: #{bilstm_model_forward.8} parent=46 // loop_exit
                  _
              $region47: #{bilstm_model_forward.8} parent=31 // pred_fallthru
                _
            $region32: #{bilstm_model_forward.8} parent=27 // pred_fallthru
              _
            // Predicated region
            $region33: #{bilstm_model_forward.8} parent=27 // pred_check
              _
            $region34: #{bilstm_model_forward.8} parent=27 // pred_check_branch
              %145 = sbr.rel (0) target = $region36
            $region35: #{bilstm_model_forward.8} parent=27 // pred_region
              loop: start=0, step=1, limit=1
              $region37: #{bilstm_model_forward.8} parent=35 // loop_pre_header
                _
              $region38: #{bilstm_model_forward.8} parent=35 // loop_header
                %s148 = sphi 0, %s152
                %p149 = scmp.ge.s32.totalorder %s148, 1
                %s153 = sphi %s139, %s139
                %s154 = sphi %s136, %s136
              $region39: #{bilstm_model_forward.8} parent=35 // loop_header_branch
                %151 = sbr.rel (%p149) target = $region43
              $region40: #{bilstm_model_forward.8} parent=35 // loop_body
                %v155 = vld [vmem:[%s153] sm:$0xf]
                %156 = vst [vmem:[%s154] sm:$0xf] %v155
                %v157 = vld [vmem:[%s153 + $0x10] sm:$0xf]
                %158 = vst [vmem:[%s154 + $0x4] sm:$0xf] %v157
                %v159 = vld [vmem:[%s153 + $0x20] sm:$0xf]
                %160 = vst [vmem:[%s154 + $0x8] sm:$0xf] %v159
                %v161 = vld [vmem:[%s153 + $0x30] sm:$0xf]
                %162 = vst [vmem:[%s154 + $0xc] sm:$0xf] %v161
                %v163 = vld [vmem:[%s153 + $0x40] sm:$0xf]
                %164 = vst [vmem:[%s154 + $0x10] sm:$0xf] %v163
                %v165 = vld [vmem:[%s153 + $0x50] sm:$0xf]
                %166 = vst [vmem:[%s154 + $0x14] sm:$0xf] %v165
                %v167 = vld [vmem:[%s153 + $0x60] sm:$0xf]
                %168 = vst [vmem:[%s154 + $0x18] sm:$0xf] %v167
                %v169 = vld [vmem:[%s153 + $0x70] sm:$0xf]
                %170 = vst [vmem:[%s154 + $0x1c] sm:$0xf] %v169
                %v171 = vld [vmem:[%s153 + $0x80] sm:$0xf]
                %172 = vst [vmem:[%s154 + $0x20] sm:$0xf] %v171
                %v173 = vld [vmem:[%s153 + $0x90] sm:$0xf]
                %174 = vst [vmem:[%s154 + $0x24] sm:$0xf] %v173
                %v175 = vld [vmem:[%s153 + $0xa0] sm:$0xf]
                %176 = vst [vmem:[%s154 + $0x28] sm:$0xf] %v175
                %v177 = vld [vmem:[%s153 + $0xb0] sm:$0xf]
                %178 = vst [vmem:[%s154 + $0x2c] sm:$0xf] %v177
                %v179 = vld [vmem:[%s153 + $0xc0] sm:$0xf]
                %180 = vst [vmem:[%s154 + $0x30] sm:$0xf] %v179
                %v181 = vld [vmem:[%s153 + $0xd0] sm:$0xf]
                %182 = vst [vmem:[%s154 + $0x34] sm:$0xf] %v181
                %v183 = vld [vmem:[%s153 + $0xe0] sm:$0xf]
                %184 = vst [vmem:[%s154 + $0x38] sm:$0xf] %v183
                %v185 = vld [vmem:[%s153 + $0xf0] sm:$0xf]
                %186 = vst [vmem:[%s154 + $0x3c] sm:$0xf] %v185
              $region41: #{bilstm_model_forward.8} parent=35 // loop_footer
                %s152 = sadd.s32 1, %s148
              $region42: #{bilstm_model_forward.8} parent=35 // loop_footer_branch
                %147 = sbr.rel target = $region38
              $region43: #{bilstm_model_forward.8} parent=35 // loop_exit
                _
            $region36: #{bilstm_model_forward.8} parent=27 // pred_fallthru
              _
          $region28: #{bilstm_model_forward.8} parent=23 // pred_fallthru
            _
          %238 = vnop
        $region24: #{bilstm_model_forward.8} parent=19 // pred_fallthru
          _
        // Predicated region
        $region62: #{bilstm_model_forward.8} parent=19 // pred_check
          %p239 = pneg %p55
        $region63: #{bilstm_model_forward.8} parent=19 // pred_check_branch
          %241 = sbr.rel (%p239) target = $region65
        $region64: #{bilstm_model_forward.8} parent=19 // pred_region
          %s242 = sand.u32 %s45, 1
          %s243 = sand.u32 %s45, 1
          %s244 = smul.addr %s243, 64
          %s245 = scalar_lea.vmem [#allocation3], %s244
          %s246 = smul.addr %s9, 64
          %s247 = sadd.s32 1, %s246
          %s248 = smul.addr %s247, 4
          %s249 = scalar_lea.vmem %s1, %s248
          // Predicated region
          $region66: #{bilstm_model_forward.8} parent=64 // pred_check
            _
          $region67: #{bilstm_model_forward.8} parent=64 // pred_check_branch
            %251 = sbr.rel (0) target = $region69
          $region68: #{bilstm_model_forward.8} parent=64 // pred_region
            // Predicated region
            $region70: #{bilstm_model_forward.8} parent=68 // pred_check
              _
            $region71: #{bilstm_model_forward.8} parent=68 // pred_check_branch
              %253 = sbr.rel target = $region73
            $region72: #{bilstm_model_forward.8} parent=68 // pred_region
              // Predicated region
              $region85: #{bilstm_model_forward.8} parent=72 // pred_check
                _
              $region86: #{bilstm_model_forward.8} parent=72 // pred_check_branch
                %298 = sbr.rel (0) target = $region88
              $region87: #{bilstm_model_forward.8} parent=72 // pred_region
                loop: start=0, step=1, limit=1
                $region89: #{bilstm_model_forward.8} parent=87 // loop_pre_header
                  _
                $region90: #{bilstm_model_forward.8} parent=87 // loop_header
                  %s300 = sphi 0, %s304
                  %p301 = scmp.ge.s32.totalorder %s300, 1
                  %s305 = sphi %s249, %s249
                  %s306 = sphi %s245, %s245
                $region91: #{bilstm_model_forward.8} parent=87 // loop_header_branch
                  %303 = sbr.rel (%p301) target = $region95
                $region92: #{bilstm_model_forward.8} parent=87 // loop_body
                  _
                $region93: #{bilstm_model_forward.8} parent=87 // loop_footer
                  %s304 = sadd.s32 1, %s300
                $region94: #{bilstm_model_forward.8} parent=87 // loop_footer_branch
                  %299 = sbr.rel target = $region90
                $region95: #{bilstm_model_forward.8} parent=87 // loop_exit
                  _
                loop: start=0, step=1, limit=1
                $region96: #{bilstm_model_forward.8} parent=87 // loop_pre_header
                  _
                $region97: #{bilstm_model_forward.8} parent=87 // loop_header
                  %s309 = sphi 0, %s313
                  %p310 = scmp.ge.s32.totalorder %s309, 1
                  %s314 = sphi %s249, %s249
                  %s315 = sphi %s245, %s245
                $region98: #{bilstm_model_forward.8} parent=87 // loop_header_branch
                  %312 = sbr.rel (%p310) target = $region102
                $region99: #{bilstm_model_forward.8} parent=87 // loop_body
                  %v316 = vld [vmem:[%s314] sm:$0xf]
                  %317 = vst [vmem:[%s315] sm:$0xf] %v316
                  %v318 = vld [vmem:[%s314 + $0x10] sm:$0xf]
                  %319 = vst [vmem:[%s315 + $0x4] sm:$0xf] %v318
                  %v320 = vld [vmem:[%s314 + $0x20] sm:$0xf]
                  %321 = vst [vmem:[%s315 + $0x8] sm:$0xf] %v320
                  %v322 = vld [vmem:[%s314 + $0x30] sm:$0xf]
                  %323 = vst [vmem:[%s315 + $0xc] sm:$0xf] %v322
                  %v324 = vld [vmem:[%s314 + $0x40] sm:$0xf]
                  %325 = vst [vmem:[%s315 + $0x10] sm:$0xf] %v324
                  %v326 = vld [vmem:[%s314 + $0x50] sm:$0xf]
                  %327 = vst [vmem:[%s315 + $0x14] sm:$0xf] %v326
                  %v328 = vld [vmem:[%s314 + $0x60] sm:$0xf]
                  %329 = vst [vmem:[%s315 + $0x18] sm:$0xf] %v328
                  %v330 = vld [vmem:[%s314 + $0x70] sm:$0xf]
                  %331 = vst [vmem:[%s315 + $0x1c] sm:$0xf] %v330
                  %v332 = vld [vmem:[%s314 + $0x80] sm:$0xf]
                  %333 = vst [vmem:[%s315 + $0x20] sm:$0xf] %v332
                  %v334 = vld [vmem:[%s314 + $0x90] sm:$0xf]
                  %335 = vst [vmem:[%s315 + $0x24] sm:$0xf] %v334
                  %v336 = vld [vmem:[%s314 + $0xa0] sm:$0xf]
                  %337 = vst [vmem:[%s315 + $0x28] sm:$0xf] %v336
                  %v338 = vld [vmem:[%s314 + $0xb0] sm:$0xf]
                  %339 = vst [vmem:[%s315 + $0x2c] sm:$0xf] %v338
                  %v340 = vld [vmem:[%s314 + $0xc0] sm:$0xf]
                  %341 = vst [vmem:[%s315 + $0x30] sm:$0xf] %v340
                  %v342 = vld [vmem:[%s314 + $0xd0] sm:$0xf]
                  %343 = vst [vmem:[%s315 + $0x34] sm:$0xf] %v342
                  %v344 = vld [vmem:[%s314 + $0xe0] sm:$0xf]
                  %345 = vst [vmem:[%s315 + $0x38] sm:$0xf] %v344
                  %v346 = vld [vmem:[%s314 + $0xf0] sm:$0xf]
                  %347 = vst [vmem:[%s315 + $0x3c] sm:$0xf] %v346
                $region100: #{bilstm_model_forward.8} parent=87 // loop_footer
                  %s313 = sadd.s32 1, %s309
                $region101: #{bilstm_model_forward.8} parent=87 // loop_footer_branch
                  %308 = sbr.rel target = $region97
                $region102: #{bilstm_model_forward.8} parent=87 // loop_exit
                  _
              $region88: #{bilstm_model_forward.8} parent=72 // pred_fallthru
                _
            $region73: #{bilstm_model_forward.8} parent=68 // pred_fallthru
              _
            // Predicated region
            $region74: #{bilstm_model_forward.8} parent=68 // pred_check
              _
            $region75: #{bilstm_model_forward.8} parent=68 // pred_check_branch
              %255 = sbr.rel (0) target = $region77
            $region76: #{bilstm_model_forward.8} parent=68 // pred_region
              loop: start=0, step=1, limit=1
              $region78: #{bilstm_model_forward.8} parent=76 // loop_pre_header
                _
              $region79: #{bilstm_model_forward.8} parent=76 // loop_header
                %s258 = sphi 0, %s262
                %p259 = scmp.ge.s32.totalorder %s258, 1
                %s263 = sphi %s249, %s249
                %s264 = sphi %s245, %s245
              $region80: #{bilstm_model_forward.8} parent=76 // loop_header_branch
                %261 = sbr.rel (%p259) target = $region84
              $region81: #{bilstm_model_forward.8} parent=76 // loop_body
                %v265 = vld [vmem:[%s263] sm:$0xf]
                %266 = vst [vmem:[%s264] sm:$0xf] %v265
                %v267 = vld [vmem:[%s263 + $0x10] sm:$0xf]
                %268 = vst [vmem:[%s264 + $0x4] sm:$0xf] %v267
                %v269 = vld [vmem:[%s263 + $0x20] sm:$0xf]
                %270 = vst [vmem:[%s264 + $0x8] sm:$0xf] %v269
                %v271 = vld [vmem:[%s263 + $0x30] sm:$0xf]
                %272 = vst [vmem:[%s264 + $0xc] sm:$0xf] %v271
                %v273 = vld [vmem:[%s263 + $0x40] sm:$0xf]
                %274 = vst [vmem:[%s264 + $0x10] sm:$0xf] %v273
                %v275 = vld [vmem:[%s263 + $0x50] sm:$0xf]
                %276 = vst [vmem:[%s264 + $0x14] sm:$0xf] %v275
                %v277 = vld [vmem:[%s263 + $0x60] sm:$0xf]
                %278 = vst [vmem:[%s264 + $0x18] sm:$0xf] %v277
                %v279 = vld [vmem:[%s263 + $0x70] sm:$0xf]
                %280 = vst [vmem:[%s264 + $0x1c] sm:$0xf] %v279
                %v281 = vld [vmem:[%s263 + $0x80] sm:$0xf]
                %282 = vst [vmem:[%s264 + $0x20] sm:$0xf] %v281
                %v283 = vld [vmem:[%s263 + $0x90] sm:$0xf]
                %284 = vst [vmem:[%s264 + $0x24] sm:$0xf] %v283
                %v285 = vld [vmem:[%s263 + $0xa0] sm:$0xf]
                %286 = vst [vmem:[%s264 + $0x28] sm:$0xf] %v285
                %v287 = vld [vmem:[%s263 + $0xb0] sm:$0xf]
                %288 = vst [vmem:[%s264 + $0x2c] sm:$0xf] %v287
                %v289 = vld [vmem:[%s263 + $0xc0] sm:$0xf]
                %290 = vst [vmem:[%s264 + $0x30] sm:$0xf] %v289
                %v291 = vld [vmem:[%s263 + $0xd0] sm:$0xf]
                %292 = vst [vmem:[%s264 + $0x34] sm:$0xf] %v291
                %v293 = vld [vmem:[%s263 + $0xe0] sm:$0xf]
                %294 = vst [vmem:[%s264 + $0x38] sm:$0xf] %v293
                %v295 = vld [vmem:[%s263 + $0xf0] sm:$0xf]
                %296 = vst [vmem:[%s264 + $0x3c] sm:$0xf] %v295
              $region82: #{bilstm_model_forward.8} parent=76 // loop_footer
                %s262 = sadd.s32 1, %s258
              $region83: #{bilstm_model_forward.8} parent=76 // loop_footer_branch
                %257 = sbr.rel target = $region79
              $region84: #{bilstm_model_forward.8} parent=76 // loop_exit
                _
            $region77: #{bilstm_model_forward.8} parent=68 // pred_fallthru
              _
          $region69: #{bilstm_model_forward.8} parent=64 // pred_fallthru
            _
          %348 = vnop
        $region65: #{bilstm_model_forward.8} parent=19 // pred_fallthru
          _
      $region20: #{bilstm_model_forward.8} parent=5 // pred_fallthru
        _
      %p349 = scmp.le.s32.totalorder 1, %s9
      %p350 = scmp.lt.s32.totalorder %s9, 3
      %p351 = pnand %p349, %p350
      %p352 = pneg %p351
      // Predicated region
      $region103: #{bilstm_model_forward.8} parent=5 // pred_check
        _
      $region104: #{bilstm_model_forward.8} parent=5 // pred_check_branch
        %354 = sbr.rel (%p351) target = $region106
      $region105: #{bilstm_model_forward.8} parent=5 // pred_region
        %s355 = ssub.s32 %s9, 1
        %s356 = sand.u32 %s22, 1
        %s357 = sand.u32 %s22, 1
        %s358 = smul.addr %s357, 64
        %s359 = scalar_lea.vmem [#allocation2], %s358
        // Predicated region
        $region107: #{bilstm_model_forward.8} parent=105 // pred_check
          %p360 = pneg %p35
        $region108: #{bilstm_model_forward.8} parent=105 // pred_check_branch
          %362 = sbr.rel (%p360) target = $region110
        $region109: #{bilstm_model_forward.8} parent=105 // pred_region
          _
        $region110: #{bilstm_model_forward.8} parent=105 // pred_fallthru
          _
        %s363 = sand.u32 %s48, 1
        %s364 = sand.u32 %s48, 1
        %s365 = smul.addr %s364, 64
        %s366 = scalar_lea.vmem [#allocation3], %s365
        // Predicated region
        $region111: #{bilstm_model_forward.8} parent=105 // pred_check
          %p367 = pneg %p61
        $region112: #{bilstm_model_forward.8} parent=105 // pred_check_branch
          %369 = sbr.rel (%p367) target = $region114
        $region113: #{bilstm_model_forward.8} parent=105 // pred_region
          _
        $region114: #{bilstm_model_forward.8} parent=105 // pred_fallthru
          _
        %s370 = sand.u32 %s22, 1
        %s371 = sand.u32 %s22, 1
        %s372 = smul.addr %s371, 64
        %s373 = scalar_lea.vmem [#allocation2], %s372
        %p374 = pneg %p35
        %p375 = pneg %p32
        %s376 = sand.u32 %s48, 1
        %s377 = sand.u32 %s48, 1
        %s378 = smul.addr %s377, 64
        %s379 = scalar_lea.vmem [#allocation3], %s378
        %p380 = pneg %p61
        %p381 = pneg %p58
        %p382 = pneg %p82
        %p383 = pneg %p79
        %p384 = pneg %p108
        %p385 = pneg %p105
        %p386 = scmp.lt.s32.totalorder %s14, 1
        %s387 = scalar_select %p386, %s14, 1
        %s388 = smul.addr %s387, 16
        %s389 = smul.addr %s388, 8
        %s390 = scalar_lea.vmem %s3, %s389
        %p391 = scmp.lt.s32.totalorder %s14, 1
        %s392 = scalar_select %p391, %s14, 1
        %s393 = smul.addr %s392, 16
        %s394 = smul.addr %s393, 8
        %s395 = scalar_lea.vmem %s3, %s394
        %v397 = vld [vmem:[%s359] sm:$0xf]
        %v398 = vld [vmem:[%s359 + $0x4] sm:$0xf]
        %v399 = vld [vmem:[%s359 + $0x8] sm:$0xf]
        %v400 = vld [vmem:[%s359 + $0xc] sm:$0xf]
        %v401 = vld [vmem:[%s359 + $0x10] sm:$0xf]
        %v402 = vld [vmem:[%s359 + $0x14] sm:$0xf]
        %v403 = vld [vmem:[%s359 + $0x18] sm:$0xf]
        %v404 = vld [vmem:[%s359 + $0x1c] sm:$0xf]
        %v405 = vld [vmem:[%s359 + $0x20] sm:$0xf]
        %v406 = vld [vmem:[%s359 + $0x24] sm:$0xf]
        %v407 = vld [vmem:[%s359 + $0x28] sm:$0xf]
        %v408 = vld [vmem:[%s359 + $0x2c] sm:$0xf]
        %v409 = vld [vmem:[%s359 + $0x30] sm:$0xf]
        %v410 = vld [vmem:[%s359 + $0x34] sm:$0xf]
        %v411 = vld [vmem:[%s359 + $0x38] sm:$0xf]
        %v412 = vld [vmem:[%s359 + $0x3c] sm:$0xf]
        %v413 = vld [vmem:[%s366] sm:$0xf]
        %v414 = vld [vmem:[%s366 + $0x4] sm:$0xf]
        %v415 = vld [vmem:[%s366 + $0x8] sm:$0xf]
        %v416 = vld [vmem:[%s366 + $0xc] sm:$0xf]
        %v417 = vld [vmem:[%s366 + $0x10] sm:$0xf]
        %v418 = vld [vmem:[%s366 + $0x14] sm:$0xf]
        %v419 = vld [vmem:[%s366 + $0x18] sm:$0xf]
        %v420 = vld [vmem:[%s366 + $0x1c] sm:$0xf]
        %v421 = vld [vmem:[%s366 + $0x20] sm:$0xf]
        %v422 = vld [vmem:[%s366 + $0x24] sm:$0xf]
        %v423 = vld [vmem:[%s366 + $0x28] sm:$0xf]
        %v424 = vld [vmem:[%s366 + $0x2c] sm:$0xf]
        %v425 = vld [vmem:[%s366 + $0x30] sm:$0xf]
        %v426 = vld [vmem:[%s366 + $0x34] sm:$0xf]
        %v427 = vld [vmem:[%s366 + $0x38] sm:$0xf]
        %v428 = vld [vmem:[%s366 + $0x3c] sm:$0xf]
        %v429 = vld [vmem:[%s2] sm:$0xf]
        %v430 = vld [vmem:[%s2 + $0x4] sm:$0xf]
        %v431 = vld [vmem:[%s2 + $0x8] sm:$0xf]
        %v432 = vld [vmem:[%s2 + $0xc] sm:$0xf]
        %v433 = vld [vmem:[%s2 + $0x10] sm:$0xf]
        %v434 = vld [vmem:[%s2 + $0x14] sm:$0xf]
        %v435 = vld [vmem:[%s2 + $0x18] sm:$0xf]
        %v436 = vld [vmem:[%s2 + $0x1c] sm:$0xf]
        %v437 = vld [vmem:[%s2 + $0x20] sm:$0xf]
        %v438 = vld [vmem:[%s2 + $0x24] sm:$0xf]
        %v439 = vld [vmem:[%s2 + $0x28] sm:$0xf]
        %v440 = vld [vmem:[%s2 + $0x2c] sm:$0xf]
        %v441 = vld [vmem:[%s2 + $0x30] sm:$0xf]
        %v442 = vld [vmem:[%s2 + $0x34] sm:$0xf]
        %v443 = vld [vmem:[%s2 + $0x38] sm:$0xf]
        %v444 = vld [vmem:[%s2 + $0x3c] sm:$0xf]
        %v461 = vunpack.c.l.b16 %v397
        %v462 = vunpack.c.l.b16 %v398
        %v463 = vunpack.c.l.b16 %v399
        %v464 = vunpack.c.l.b16 %v400
        %v465 = vunpack.c.l.b16 %v401
        %v466 = vunpack.c.l.b16 %v402
        %v467 = vunpack.c.l.b16 %v403
        %v468 = vunpack.c.l.b16 %v404
        %v469 = vunpack.c.l.b16 %v405
        %v470 = vunpack.c.l.b16 %v406
        %v471 = vunpack.c.l.b16 %v407
        %v472 = vunpack.c.l.b16 %v408
        %v473 = vunpack.c.l.b16 %v409
        %v474 = vunpack.c.l.b16 %v410
        %v475 = vunpack.c.l.b16 %v411
        %v476 = vunpack.c.l.b16 %v412
        %v477 = vpack.c.b16 %v462, %v461
        %v478 = vpack.c.b16 %v464, %v463
        %v479 = vpack.c.b16 %v466, %v465
        %v480 = vpack.c.b16 %v468, %v467
        %v481 = vpack.c.b16 %v470, %v469
        %v482 = vpack.c.b16 %v472, %v471
        %v483 = vpack.c.b16 %v474, %v473
        %v484 = vpack.c.b16 %v476, %v475
        %v509 = vunpack.c.l.b16 %v429
        %v510 = vunpack.c.l.b16 %v430
        %v511 = vunpack.c.l.b16 %v431
        %v512 = vunpack.c.l.b16 %v432
        %v513 = vunpack.c.l.b16 %v433
        %v514 = vunpack.c.l.b16 %v434
        %v515 = vunpack.c.l.b16 %v435
        %v516 = vunpack.c.l.b16 %v436
        %v517 = vunpack.c.l.b16 %v437
        %v518 = vunpack.c.l.b16 %v438
        %v519 = vunpack.c.l.b16 %v439
        %v520 = vunpack.c.l.b16 %v440
        %v521 = vunpack.c.l.b16 %v441
        %v522 = vunpack.c.l.b16 %v442
        %v523 = vunpack.c.l.b16 %v443
        %v524 = vunpack.c.l.b16 %v444
        %v525 = vpack.c.b16 %v510, %v509
        %v526 = vpack.c.b16 %v512, %v511
        %v527 = vpack.c.b16 %v514, %v513
        %v528 = vpack.c.b16 %v516, %v515
        %v529 = vpack.c.b16 %v518, %v517
        %v530 = vpack.c.b16 %v520, %v519
        %v531 = vpack.c.b16 %v522, %v521
        %v532 = vpack.c.b16 %v524, %v523
        %541 = vmatprep.subr.bf16.mxu0 0
        %542 = vmatpush1.bf16.msra.mxu0 %v525
        %543 = vmatprep.subr.bf16.mxu0 0
        %544 = vmatpush1.bf16.msra.mxu0 %v526
        %545 = vmatprep.subr.bf16.mxu0 0
        %546 = vmatpush1.bf16.msra.mxu0 %v527
        %547 = vmatprep.subr.bf16.mxu0 0
        %548 = vmatpush1.bf16.msra.mxu0 %v528
        %549 = vmatprep.subr.bf16.mxu0 0
        %550 = vmatpush1.bf16.msra.mxu0 %v529
        %551 = vmatprep.subr.bf16.mxu0 0
        %552 = vmatpush1.bf16.msra.mxu0 %v530
        %553 = vmatprep.subr.bf16.mxu0 0
        %554 = vmatpush1.bf16.msra.mxu0 %v531
        %555 = vmatprep.subr.bf16.mxu0 0
        %556 = vmatpush1.bf16.msra.mxu0 %v532
        %557 = vmatprep.subr.bf16.mxu0 0
        %558 = vmatpush1.bf16.msra.mxu0 0
        %559 = vmatprep.subr.bf16.mxu0 0
        %560 = vmatpush1.bf16.msra.mxu0 0
        %561 = vmatprep.subr.bf16.mxu0 0
        %562 = vmatpush1.bf16.msra.mxu0 0
        %563 = vmatprep.subr.bf16.mxu0 0
        %564 = vmatpush1.bf16.msra.mxu0 0
        %565 = vmatprep.subr.bf16.mxu0 0
        %566 = vmatpush1.bf16.msra.mxu0 0
        %567 = vmatprep.subr.bf16.mxu0 0
        %568 = vmatpush1.bf16.msra.mxu0 0
        %569 = vmatprep.subr.bf16.mxu0 0
        %570 = vmatpush1.bf16.msra.mxu0 0
        %571 = vmatprep.subr.bf16.mxu0 0
        %572 = vmatpush1.bf16.msra.mxu0 0
        %573 = vmatprep.mubr.bf16.mxu0 0
        %574 = vmatmul.mubr.bf16.gmra.mrb[0].mxu0 %v477
        %v575 = vpop.f32.mrb[0].mxu0
        %v576 = vadd.f32 0.0, %v575
        %v577 = vpop.f32.mrb[0].mxu0
        %v578 = vpop.f32.mrb[0].mxu0
        %v579 = vadd.f32 0.0, %v578
        %v580 = vpop.f32.mrb[0].mxu0
        %581 = vmatprep.mubr.bf16.mxu0 0
        %582 = vmatmul.mubr.bf16.gmra.mrb[0].mxu0 %v478
        %v583 = vpop.f32.mrb[0].mxu0
        %v584 = vadd.f32 0.0, %v583
        %v585 = vpop.f32.mrb[0].mxu0
        %v586 = vpop.f32.mrb[0].mxu0
        %v587 = vadd.f32 0.0, %v586
        %v588 = vpop.f32.mrb[0].mxu0
        %589 = vmatprep.mubr.bf16.mxu0 0
        %590 = vmatmul.mubr.bf16.gmra.mrb[0].mxu0 %v479
        %v591 = vpop.f32.mrb[0].mxu0
        %v592 = vadd.f32 0.0, %v591
        %v593 = vpop.f32.mrb[0].mxu0
        %v594 = vpop.f32.mrb[0].mxu0
        %v595 = vadd.f32 0.0, %v594
        %v596 = vpop.f32.mrb[0].mxu0
        %597 = vmatprep.mubr.bf16.mxu0 0
        %598 = vmatmul.mubr.bf16.gmra.mrb[0].mxu0 %v480
        %v599 = vpop.f32.mrb[0].mxu0
        %v600 = vadd.f32 0.0, %v599
        %v601 = vpop.f32.mrb[0].mxu0
        %v602 = vpop.f32.mrb[0].mxu0
        %v603 = vadd.f32 0.0, %v602
        %v604 = vpop.f32.mrb[0].mxu0
        %605 = vmatprep.mubr.bf16.mxu0 0
        %606 = vmatmul.mubr.bf16.gmra.mrb[0].mxu0 %v481
        %v607 = vpop.f32.mrb[0].mxu0
        %v608 = vadd.f32 0.0, %v607
        %v609 = vpop.f32.mrb[0].mxu0
        %v610 = vpop.f32.mrb[0].mxu0
        %v611 = vadd.f32 0.0, %v610
        %v612 = vpop.f32.mrb[0].mxu0
        %613 = vmatprep.mubr.bf16.mxu0 0
        %614 = vmatmul.mubr.bf16.gmra.mrb[0].mxu0 %v482
        %v615 = vpop.f32.mrb[0].mxu0
        %v616 = vadd.f32 0.0, %v615
        %v617 = vpop.f32.mrb[0].mxu0
        %v618 = vpop.f32.mrb[0].mxu0
        %v619 = vadd.f32 0.0, %v618
        %v620 = vpop.f32.mrb[0].mxu0
        %621 = vmatprep.mubr.bf16.mxu0 0
        %622 = vmatmul.mubr.bf16.gmra.mrb[0].mxu0 %v483
        %v623 = vpop.f32.mrb[0].mxu0
        %v624 = vadd.f32 0.0, %v623
        %v625 = vpop.f32.mrb[0].mxu0
        %v626 = vpop.f32.mrb[0].mxu0
        %v627 = vadd.f32 0.0, %v626
        %v628 = vpop.f32.mrb[0].mxu0
        %629 = vmatprep.mubr.bf16.mxu0 0
        %630 = vmatmul.mubr.bf16.gmra.mrb[0].mxu0 %v484
        %v631 = vpop.f32.mrb[0].mxu0
        %v632 = vadd.f32 0.0, %v631
        %v633 = vpop.f32.mrb[0].mxu0
        %v634 = vpop.f32.mrb[0].mxu0
        %v635 = vadd.f32 0.0, %v634
        %v636 = vpop.f32.mrb[0].mxu0
        %637 = vdwg.mxu0
        %v638 = vpack.c.bf16 %v579, %v576
        %v639 = vpack.c.bf16 %v587, %v584
        %v640 = vpack.c.bf16 %v595, %v592
        %v641 = vpack.c.bf16 %v603, %v600
        %v642 = vpack.c.bf16 %v611, %v608
        %v643 = vpack.c.bf16 %v619, %v616
        %v644 = vpack.c.bf16 %v627, %v624
        %v645 = vpack.c.bf16 %v635, %v632
        %v662 = vunpack.c.l.b16 %v413
        %v663 = vunpack.c.l.b16 %v414
        %v664 = vunpack.c.l.b16 %v415
        %v665 = vunpack.c.l.b16 %v416
        %v666 = vunpack.c.l.b16 %v417
        %v667 = vunpack.c.l.b16 %v418
        %v668 = vunpack.c.l.b16 %v419
        %v669 = vunpack.c.l.b16 %v420
        %v670 = vunpack.c.l.b16 %v421
        %v671 = vunpack.c.l.b16 %v422
        %v672 = vunpack.c.l.b16 %v423
        %v673 = vunpack.c.l.b16 %v424
        %v674 = vunpack.c.l.b16 %v425
        %v675 = vunpack.c.l.b16 %v426
        %v676 = vunpack.c.l.b16 %v427
        %v677 = vunpack.c.l.b16 %v428
        %v678 = vpack.c.b16 %v663, %v662
        %v679 = vpack.c.b16 %v665, %v664
        %v680 = vpack.c.b16 %v667, %v666
        %v681 = vpack.c.b16 %v669, %v668
        %v682 = vpack.c.b16 %v671, %v670
        %v683 = vpack.c.b16 %v673, %v672
        %v684 = vpack.c.b16 %v675, %v674
        %v685 = vpack.c.b16 %v677, %v676
        %694 = vmatprep.subr.bf16.mxu0 0
        %695 = vmatpush1.bf16.xpose.msra.mxu0 %v678
        %696 = vmatprep.subr.bf16.mxu0 0
        %697 = vmatpush1.bf16.xpose.msra.mxu0 %v679
        %698 = vmatprep.subr.bf16.mxu0 0
        %699 = vmatpush1.bf16.xpose.msra.mxu0 %v680
        %700 = vmatprep.subr.bf16.mxu0 0
        %701 = vmatpush1.bf16.xpose.msra.mxu0 %v681
        %702 = vmatprep.subr.bf16.mxu0 0
        %703 = vmatpush1.bf16.xpose.msra.mxu0 %v682
        %704 = vmatprep.subr.bf16.mxu0 0
        %705 = vmatpush1.bf16.xpose.msra.mxu0 %v683
        %706 = vmatprep.subr.bf16.mxu0 0
        %707 = vmatpush1.bf16.xpose.msra.mxu0 %v684
        %708 = vmatprep.subr.bf16.mxu0 0
        %709 = vmatpush1.bf16.xpose.msra.mxu0 %v685
        %710 = vmatprep.subr.bf16.mxu0 0
        %711 = vmatpush1.bf16.xpose.msra.mxu0 0
        %712 = vmatprep.subr.bf16.mxu0 0
        %713 = vmatpush1.bf16.xpose.msra.mxu0 0
        %714 = vmatprep.subr.bf16.mxu0 0
        %715 = vmatpush1.bf16.xpose.msra.mxu0 0
        %716 = vmatprep.subr.bf16.mxu0 0
        %717 = vmatpush1.bf16.xpose.msra.mxu0 0
        %718 = vmatprep.subr.bf16.mxu0 0
        %719 = vmatpush1.bf16.xpose.msra.mxu0 0
        %720 = vmatprep.subr.bf16.mxu0 0
        %721 = vmatpush1.bf16.xpose.msra.mxu0 0
        %722 = vmatprep.subr.bf16.mxu0 0
        %723 = vmatpush1.bf16.xpose.msra.mxu0 0
        %724 = vmatprep.subr.bf16.mxu0 0
        %725 = vmatpush1.bf16.xpose.msra.mxu0 0
        %726 = vmatprep.mubr.bf16.mxu0 0
        %727 = vmatmul.mubr.bf16.gmra.mrb[0].mxu0 %v638
        %v728 = vpop.f32.mrb[0].mxu0
        %v729 = vadd.f32 0.0, %v728
        %v730 = vpop.f32.mrb[0].mxu0
        %v731 = vpop.f32.mrb[0].mxu0
        %v732 = vadd.f32 0.0, %v731
        %v733 = vpop.f32.mrb[0].mxu0
        %734 = vmatprep.mubr.bf16.mxu0 0
        %735 = vmatmul.mubr.bf16.gmra.mrb[0].mxu0 %v639
        %v736 = vpop.f32.mrb[0].mxu0
        %v737 = vadd.f32 0.0, %v736
        %v738 = vpop.f32.mrb[0].mxu0
        %v739 = vpop.f32.mrb[0].mxu0
        %v740 = vadd.f32 0.0, %v739
        %v741 = vpop.f32.mrb[0].mxu0
        %742 = vmatprep.mubr.bf16.mxu0 0
        %743 = vmatmul.mubr.bf16.gmra.mrb[0].mxu0 %v640
        %v744 = vpop.f32.mrb[0].mxu0
        %v745 = vadd.f32 0.0, %v744
        %v746 = vpop.f32.mrb[0].mxu0
        %v747 = vpop.f32.mrb[0].mxu0
        %v748 = vadd.f32 0.0, %v747
        %v749 = vpop.f32.mrb[0].mxu0
        %750 = vmatprep.mubr.bf16.mxu0 0
        %751 = vmatmul.mubr.bf16.gmra.mrb[0].mxu0 %v641
        %v752 = vpop.f32.mrb[0].mxu0
        %v753 = vadd.f32 0.0, %v752
        %v754 = vpop.f32.mrb[0].mxu0
        %v755 = vpop.f32.mrb[0].mxu0
        %v756 = vadd.f32 0.0, %v755
        %v757 = vpop.f32.mrb[0].mxu0
        %758 = vmatprep.mubr.bf16.mxu0 0
        %759 = vmatmul.mubr.bf16.gmra.mrb[0].mxu0 %v642
        %v760 = vpop.f32.mrb[0].mxu0
        %v761 = vadd.f32 0.0, %v760
        %v762 = vpop.f32.mrb[0].mxu0
        %v763 = vpop.f32.mrb[0].mxu0
        %v764 = vadd.f32 0.0, %v763
        %v765 = vpop.f32.mrb[0].mxu0
        %766 = vmatprep.mubr.bf16.mxu0 0
        %767 = vmatmul.mubr.bf16.gmra.mrb[0].mxu0 %v643
        %v768 = vpop.f32.mrb[0].mxu0
        %v769 = vadd.f32 0.0, %v768
        %v770 = vpop.f32.mrb[0].mxu0
        %v771 = vpop.f32.mrb[0].mxu0
        %v772 = vadd.f32 0.0, %v771
        %v773 = vpop.f32.mrb[0].mxu0
        %774 = vmatprep.mubr.bf16.mxu0 0
        %775 = vmatmul.mubr.bf16.gmra.mrb[0].mxu0 %v644
        %v776 = vpop.f32.mrb[0].mxu0
        %v777 = vadd.f32 0.0, %v776
        %v778 = vpop.f32.mrb[0].mxu0
        %v779 = vpop.f32.mrb[0].mxu0
        %v780 = vadd.f32 0.0, %v779
        %v781 = vpop.f32.mrb[0].mxu0
        %782 = vmatprep.mubr.bf16.mxu0 0
        %783 = vmatmul.mubr.bf16.gmra.mrb[0].mxu0 %v645
        %v784 = vpop.f32.mrb[0].mxu0
        %v785 = vadd.f32 0.0, %v784
        %v786 = vpop.f32.mrb[0].mxu0
        %v787 = vpop.f32.mrb[0].mxu0
        %v788 = vadd.f32 0.0, %v787
        %v789 = vpop.f32.mrb[0].mxu0
        %790 = vdwg.mxu0
        %791 = vst [vmem:[%s395] sm:$0xff] %v729
        %792 = vst [vmem:[%s395 + $0x8] sm:$0xff] %v732
        %793 = vst [vmem:[%s395 + $0x10] sm:$0xff] %v737
        %794 = vst [vmem:[%s395 + $0x18] sm:$0xff] %v740
        %795 = vst [vmem:[%s395 + $0x20] sm:$0xff] %v745
        %796 = vst [vmem:[%s395 + $0x28] sm:$0xff] %v748
        %797 = vst [vmem:[%s395 + $0x30] sm:$0xff] %v753
        %798 = vst [vmem:[%s395 + $0x38] sm:$0xff] %v756
        %799 = vst [vmem:[%s395 + $0x40] sm:$0xff] %v761
        %800 = vst [vmem:[%s395 + $0x48] sm:$0xff] %v764
        %801 = vst [vmem:[%s395 + $0x50] sm:$0xff] %v769
        %802 = vst [vmem:[%s395 + $0x58] sm:$0xff] %v772
        %803 = vst [vmem:[%s395 + $0x60] sm:$0xff] %v777
        %804 = vst [vmem:[%s395 + $0x68] sm:$0xff] %v780
        %805 = vst [vmem:[%s395 + $0x70] sm:$0xff] %v785
        %806 = vst [vmem:[%s395 + $0x78] sm:$0xff] %v788
        %p807 = scmp.lt.s32.totalorder %s14, 1
        %s808 = scalar_select %p807, %s14, 1
        %s809 = smul.addr %s808, 16
        %s810 = smul.addr %s809, 8
        %s811 = scalar_lea.vmem %s3, %s810
        // Predicated region
        $region115: #{bilstm_model_forward.8} parent=105 // pred_check
          %p812 = pneg %p105
        $region116: #{bilstm_model_forward.8} parent=105 // pred_check_branch
          %814 = sbr.rel (%p812) target = $region118
        $region117: #{bilstm_model_forward.8} parent=105 // pred_region
          _
        $region118: #{bilstm_model_forward.8} parent=105 // pred_fallthru
          _
      $region106: #{bilstm_model_forward.8} parent=5 // pred_fallthru
        _
      %p815 = scmp.le.s32.totalorder 2, %s9
      // Predicated region
      $region119: #{bilstm_model_forward.8} parent=5 // pred_check
        %p816 = pneg %p815
      $region120: #{bilstm_model_forward.8} parent=5 // pred_check_branch
        %818 = sbr.rel (%p816) target = $region122
      $region121: #{bilstm_model_forward.8} parent=5 // pred_region
        %s819 = ssub.s32 %s9, 2
        // Predicated region
        $region123: #{bilstm_model_forward.8} parent=121 // pred_check
          %p820 = pneg %p111
        $region124: #{bilstm_model_forward.8} parent=121 // pred_check_branch
          %822 = sbr.rel (%p820) target = $region126
        $region125: #{bilstm_model_forward.8} parent=121 // pred_region
          %p823 = scmp.lt.s32.totalorder %s15, 1
          %s824 = scalar_select %p823, %s15, 1
          %s825 = smul.addr %s824, 16
          %s826 = smul.addr %s825, 8
          %s827 = scalar_lea.vmem %s3, %s826
        $region126: #{bilstm_model_forward.8} parent=121 // pred_fallthru
          _
      $region122: #{bilstm_model_forward.8} parent=5 // pred_fallthru
        _
    $region6: #{bilstm_model_forward.8} parent=1 // loop_footer
      %s13 = sadd.s32 1, %s9
    $region7: #{bilstm_model_forward.8} parent=1 // loop_footer_branch
      %8 = sbr.rel target = $region3
    $region8: #{bilstm_model_forward.8} parent=1 // loop_exit
      _

// kernel: bilstm_model_forward.5
$region0: #{bilstm_model_forward.5}
  #allocation0 [shape = 'u32[]', space=smem, size = 0x4, offset = 0x4, fixed_abs, tag = 'smem constant byte address 0x4 - core index']
  #allocation1 [shape = 'u32[144,128]{1,0:T(1,128)}', space=vmem, size = 0x12000, scoped, tag = 'internal scratch']
  %s0 = inlined_call_operand.vmem [shape: f32[16,96], index: 0, kind: input, shape index: {}]
  %s1 = inlined_call_operand.hbm [shape: f32[1,96], index: 1, kind: input, shape index: {}]
  %s2 = inlined_call_operand.hbm [shape: f32[1,96], index: 2, kind: input, shape index: {}]
  %s3 = inlined_call_operand.hbm [shape: f32[1,96], index: 3, kind: input, shape index: {}]
  %s4 = inlined_call_operand.vmem [shape: bf16[96,1024], index: 4, kind: input, shape index: {}]
  %s5 = inlined_call_operand.hbm [shape: f32[1,1024], index: 5, kind: input, shape index: {}]
  %s6 = inlined_call_operand.hbm [shape: bf16[96,256], index: 6, kind: input, shape index: {}]
  %s7 = inlined_call_operand.hbm [shape: f32[1,256], index: 7, kind: input, shape index: {}]
  %s8 = inlined_call_operand.vmem [shape: bf16[16,1024], index: 8, kind: output, shape index: {0}]
  %s9 = inlined_call_operand.vmem [shape: bf16[16,256], index: 9, kind: output, shape index: {1}]
  %10 = xla_tuple %s8, %s9
  %s11 = sld [smem:[#allocation0]]
  $region74: #{bilstm_model_forward.5} parent=0
    _
  %s13 = ssub.s32 1, %s11
  %s14 = scalar_select 0, %s13, %s11
  $region1: #{bilstm_model_forward.5} parent=0
    #allocation2 [shape = 'u8[512]{0}', space=vmem, size = 0x400, scoped, tag = 'input window, operand 1, single buffered']
    #allocation3 [shape = 's32[1]{0}', space=sflag, size = 0x4, scoped, tag = 'scoped memory for bilstm_model_forward.5']
    #allocation4 [shape = 'u8[512]{0}', space=vmem, size = 0x400, scoped, tag = 'input window, operand 2, single buffered']
    #allocation5 [shape = 's32[1]{0}', space=sflag, size = 0x4, scoped, tag = 'scoped memory for bilstm_model_forward.5']
    #allocation6 [shape = 'u8[512]{0}', space=vmem, size = 0x400, scoped, tag = 'input window, operand 3, single buffered']
    #allocation7 [shape = 'u8[4096]{0}', space=vmem, size = 0x1000, scoped, tag = 'input window, operand 5, single buffered']
    #allocation8 [shape = 's32[1]{0}', space=sflag, size = 0x4, scoped, tag = 'scoped memory for bilstm_model_forward.5']
    #allocation9 [shape = 'u8[49152]{0}', space=vmem, size = 0xc000, scoped, tag = 'input window, operand 6, single buffered']
    #allocation10 [shape = 'u8[1024]{0}', space=vmem, size = 0x400, scoped, tag = 'input window, operand 7, single buffered']
    #allocation11 [shape = 's32[1]{0}', space=sflag, size = 0x4, scoped, tag = 'scoped memory for bilstm_model_forward.5']
    %15 = vsyncpa [#allocation3], 0
    %16 = vsyncpa [#allocation5], 0
    %17 = vsyncpa [#allocation8], 0
    %18 = vsyncpa [#allocation11], 0
    // Predicated region
    $region2: #{bilstm_model_forward.5} parent=1 // pred_check
      _
    $region3: #{bilstm_model_forward.5} parent=1 // pred_check_branch
      %20 = sbr.rel (0) target = $region5
    $region4: #{bilstm_model_forward.5} parent=1 // pred_region
      _
    $region5: #{bilstm_model_forward.5} parent=1 // pred_fallthru
      _
    // Predicated region
    $region6: #{bilstm_model_forward.5} parent=1 // pred_check
      _
    $region7: #{bilstm_model_forward.5} parent=1 // pred_check_branch
      %22 = sbr.rel (0) target = $region9
    $region8: #{bilstm_model_forward.5} parent=1 // pred_region
      %s24 = ssub.s32 16, 16
      %25 = vsyncadd [#allocation3], %s24
      %s27 = sshll.u32 [#allocation2], 4
      %s28 = int_to_ptr.vmem [resolvable:$true] %s27
      %30 = dma.hbm_to_vmem [thread:$0]  %s1, 16, %s28, [#allocation3]
    $region9: #{bilstm_model_forward.5} parent=1 // pred_fallthru
      _
    // Predicated region
    $region10: #{bilstm_model_forward.5} parent=1 // pred_check
      _
    $region11: #{bilstm_model_forward.5} parent=1 // pred_check_branch
      %32 = sbr.rel (0) target = $region13
    $region12: #{bilstm_model_forward.5} parent=1 // pred_region
      %s34 = ssub.s32 16, 16
      %35 = vsyncadd [#allocation5], %s34
      %s37 = sshll.u32 [#allocation4], 4
      %s38 = int_to_ptr.vmem [resolvable:$true] %s37
      %40 = dma.hbm_to_vmem [thread:$0]  %s2, 16, %s38, [#allocation5]
    $region13: #{bilstm_model_forward.5} parent=1 // pred_fallthru
      _
    // Predicated region
    $region14: #{bilstm_model_forward.5} parent=1 // pred_check
      _
    $region15: #{bilstm_model_forward.5} parent=1 // pred_check_branch
      %42 = sbr.rel (0) target = $region17
    $region16: #{bilstm_model_forward.5} parent=1 // pred_region
      %s44 = ssub.s32 16, 16
      %45 = vsyncadd [#allocation5], %s44
      %s47 = sshll.u32 [#allocation6], 4
      %s48 = int_to_ptr.vmem [resolvable:$true] %s47
      %50 = dma.hbm_to_vmem [thread:$0]  %s3, 16, %s48, [#allocation5]
    $region17: #{bilstm_model_forward.5} parent=1 // pred_fallthru
      _
    // Predicated region
    $region18: #{bilstm_model_forward.5} parent=1 // pred_check
      _
    $region19: #{bilstm_model_forward.5} parent=1 // pred_check_branch
      %52 = sbr.rel (0) target = $region21
    $region20: #{bilstm_model_forward.5} parent=1 // pred_region
      _
    $region21: #{bilstm_model_forward.5} parent=1 // pred_fallthru
      _
    // Predicated region
    $region22: #{bilstm_model_forward.5} parent=1 // pred_check
      _
    $region23: #{bilstm_model_forward.5} parent=1 // pred_check_branch
      %54 = sbr.rel (0) target = $region25
    $region24: #{bilstm_model_forward.5} parent=1 // pred_region
      %s56 = ssub.s32 128, 128
      %57 = vsyncadd [#allocation8], %s56
      %s59 = sshll.u32 [#allocation7], 4
      %s60 = int_to_ptr.vmem [resolvable:$true] %s59
      %62 = dma.hbm_to_vmem [thread:$0]  %s5, 128, %s60, [#allocation8]
    $region25: #{bilstm_model_forward.5} parent=1 // pred_fallthru
      _
    // Predicated region
    $region26: #{bilstm_model_forward.5} parent=1 // pred_check
      _
    $region27: #{bilstm_model_forward.5} parent=1 // pred_check_branch
      %64 = sbr.rel (0) target = $region29
    $region28: #{bilstm_model_forward.5} parent=1 // pred_region
      %s66 = ssub.s32 1536, 1536
      %67 = vsyncadd [#allocation8], %s66
      %s68 = sshll.u32 [#allocation9], 4
      %s69 = int_to_ptr.vmem [resolvable:$true] %s68
      %74 = dma.hbm_to_vmem [thread:$0]  %s6, 1536, %s69, [#allocation8], 128, 128, 8
    $region29: #{bilstm_model_forward.5} parent=1 // pred_fallthru
      _
    // Predicated region
    $region30: #{bilstm_model_forward.5} parent=1 // pred_check
      _
    $region31: #{bilstm_model_forward.5} parent=1 // pred_check_branch
      %76 = sbr.rel (0) target = $region33
    $region32: #{bilstm_model_forward.5} parent=1 // pred_region
      %s78 = ssub.s32 32, 32
      %79 = vsyncadd [#allocation11], %s78
      %s81 = sshll.u32 [#allocation10], 4
      %s82 = int_to_ptr.vmem [resolvable:$true] %s81
      %84 = dma.hbm_to_vmem [thread:$0]  %s7, 32, %s82, [#allocation11]
    $region33: #{bilstm_model_forward.5} parent=1 // pred_fallthru
      _
    // Predicated region
    $region34: #{bilstm_model_forward.5} parent=1 // pred_check
      _
    $region35: #{bilstm_model_forward.5} parent=1 // pred_check_branch
      %86 = sbr.rel (0) target = $region37
    $region36: #{bilstm_model_forward.5} parent=1 // pred_region
      %87 = dma.done [#allocation3], 16
    $region37: #{bilstm_model_forward.5} parent=1 // pred_fallthru
      _
    // Predicated region
    $region38: #{bilstm_model_forward.5} parent=1 // pred_check
      _
    $region39: #{bilstm_model_forward.5} parent=1 // pred_check_branch
      %89 = sbr.rel (0) target = $region41
    $region40: #{bilstm_model_forward.5} parent=1 // pred_region
      %90 = dma.done [#allocation5], 16
    $region41: #{bilstm_model_forward.5} parent=1 // pred_fallthru
      _
    // Predicated region
    $region42: #{bilstm_model_forward.5} parent=1 // pred_check
      _
    $region43: #{bilstm_model_forward.5} parent=1 // pred_check_branch
      %92 = sbr.rel (0) target = $region45
    $region44: #{bilstm_model_forward.5} parent=1 // pred_region
      %93 = dma.done [#allocation5], 16
    $region45: #{bilstm_model_forward.5} parent=1 // pred_fallthru
      _
    // Predicated region
    $region46: #{bilstm_model_forward.5} parent=1 // pred_check
      _
    $region47: #{bilstm_model_forward.5} parent=1 // pred_check_branch
      %95 = sbr.rel (0) target = $region49
    $region48: #{bilstm_model_forward.5} parent=1 // pred_region
      %96 = dma.done [#allocation8], 128
    $region49: #{bilstm_model_forward.5} parent=1 // pred_fallthru
      _
    // Predicated region
    $region50: #{bilstm_model_forward.5} parent=1 // pred_check
      _
    $region51: #{bilstm_model_forward.5} parent=1 // pred_check_branch
      %98 = sbr.rel (0) target = $region53
    $region52: #{bilstm_model_forward.5} parent=1 // pred_region
      %99 = dma.done [#allocation8], 1536
    $region53: #{bilstm_model_forward.5} parent=1 // pred_fallthru
      _
    // Predicated region
    $region54: #{bilstm_model_forward.5} parent=1 // pred_check
      _
    $region55: #{bilstm_model_forward.5} parent=1 // pred_check_branch
      %101 = sbr.rel (0) target = $region57
    $region56: #{bilstm_model_forward.5} parent=1 // pred_region
      %102 = dma.done [#allocation11], 32
    $region57: #{bilstm_model_forward.5} parent=1 // pred_fallthru
      _
    %v104 = vld [vmem:[%s0] sm:$0xff]
    %v105 = vld [vmem:[%s0 + $0x8] sm:$0xff]
    %v106 = vld [vmem:[#allocation2] sm:$0x1]
    %v108 = vlaneseq
    %v109 = vshrl.u32 %v108, 7
    %v110 = vsub.s32 0, %v109
    %v111 = vrot.slane %v106, %v110
    %v113 = vmul.f32 %v104, %v111
    %v114 = vmul.f32 %v105, %v111
    %vm115 = vcmask 785408
    %v116 = vsel %vm115, %v113, 0.0
    %117 = vadd.xlane.f32.xlu0 %v116
    %v118 = vpop.xlane.xlu0 %117
    %v119 = vsel %vm115, %v114, 0.0
    %120 = vadd.xlane.f32.xlu0 %v119
    %v121 = vpop.xlane.xlu0 %120
    %v122 = vrcp.pop 96.0
    %v123 = vmul.f32 %v118, %v122
    %v124 = vmul.f32 %v121, %v122
    %v125 = vsub.f32 %v113, %v123
    %v126 = vsub.f32 %v114, %v124
    %v127 = vmul.f32 %v125, %v125
    %v128 = vmul.f32 %v126, %v126
    %v129 = vsel %vm115, %v127, 0.0
    %130 = vadd.xlane.f32.xlu0 %v129
    %v131 = vpop.xlane.xlu0 %130
    %v132 = vsel %vm115, %v128, 0.0
    %133 = vadd.xlane.f32.xlu0 %v132
    %v134 = vpop.xlane.xlu0 %133
    %v135 = vmul.f32 %v131, %v122
    %v136 = vmul.f32 %v134, %v122
    %v137 = vadd.f32 %v135, 1e-05
    %v138 = vadd.f32 %v136, 1e-05
    %v139 = vrsqrt.pop %v137
    %v140 = vrsqrt.pop %v138
    %v141 = vmul.f32 %v125, %v139
    %v142 = vmul.f32 %v126, %v140
    %v143 = vld [vmem:[#allocation4] sm:$0x1]
    %v145 = vlaneseq
    %v146 = vshrl.u32 %v145, 7
    %v147 = vsub.s32 0, %v146
    %v148 = vrot.slane %v143, %v147
    %v150 = vmul.f32 %v141, %v148
    %v151 = vmul.f32 %v142, %v148
    %v152 = vld [vmem:[#allocation6] sm:$0x1]
    %v154 = vlaneseq
    %v155 = vshrl.u32 %v154, 7
    %v156 = vsub.s32 0, %v155
    %v157 = vrot.slane %v152, %v156
    %v159 = vadd.f32 %v150, %v157
    %v160 = vadd.f32 %v151, %v157
    %v161 = vpack.c.bf16 %v160, %v159
    %v162 = vld [vmem:[%s4] sm:$0xff]
    %v163 = vld [vmem:[%s4 + $0x8] sm:$0xff]
    %v164 = vld [vmem:[%s4 + $0x10] sm:$0xff]
    %v165 = vld [vmem:[%s4 + $0x18] sm:$0xff]
    %v166 = vld [vmem:[%s4 + $0x20] sm:$0xff]
    %v167 = vld [vmem:[%s4 + $0x28] sm:$0xff]
    %v168 = vld [vmem:[%s4 + $0x30] sm:$0xff]
    %v169 = vld [vmem:[%s4 + $0x38] sm:$0xff]
    %v170 = vld [vmem:[%s4 + $0x40] sm:$0xff]
    %v171 = vld [vmem:[%s4 + $0x48] sm:$0xff]
    %v172 = vld [vmem:[%s4 + $0x50] sm:$0xff]
    %v173 = vld [vmem:[%s4 + $0x58] sm:$0xff]
    %v174 = vld [vmem:[%s4 + $0x60] sm:$0xff]
    %v175 = vld [vmem:[%s4 + $0x68] sm:$0xff]
    %v176 = vld [vmem:[%s4 + $0x70] sm:$0xff]
    %v177 = vld [vmem:[%s4 + $0x78] sm:$0xff]
    %v178 = vld [vmem:[%s4 + $0x80] sm:$0xff]
    %v179 = vld [vmem:[%s4 + $0x88] sm:$0xff]
    %v180 = vld [vmem:[%s4 + $0x90] sm:$0xff]
    %v181 = vld [vmem:[%s4 + $0x98] sm:$0xff]
    %v182 = vld [vmem:[%s4 + $0xa0] sm:$0xff]
    %v183 = vld [vmem:[%s4 + $0xa8] sm:$0xff]
    %v184 = vld [vmem:[%s4 + $0xb0] sm:$0xff]
    %v185 = vld [vmem:[%s4 + $0xb8] sm:$0xff]
    %v186 = vld [vmem:[%s4 + $0xc0] sm:$0xff]
    %v187 = vld [vmem:[%s4 + $0xc8] sm:$0xff]
    %v188 = vld [vmem:[%s4 + $0xd0] sm:$0xff]
    %v189 = vld [vmem:[%s4 + $0xd8] sm:$0xff]
    %v190 = vld [vmem:[%s4 + $0xe0] sm:$0xff]
    %v191 = vld [vmem:[%s4 + $0xe8] sm:$0xff]
    %v192 = vld [vmem:[%s4 + $0xf0] sm:$0xff]
    %v193 = vld [vmem:[%s4 + $0xf8] sm:$0xff]
    %v194 = vld [vmem:[%s4 + $0x100] sm:$0xff]
    %v195 = vld [vmem:[%s4 + $0x108] sm:$0xff]
    %v196 = vld [vmem:[%s4 + $0x110] sm:$0xff]
    %v197 = vld [vmem:[%s4 + $0x118] sm:$0xff]
    %v198 = vld [vmem:[%s4 + $0x120] sm:$0xff]
    %v199 = vld [vmem:[%s4 + $0x128] sm:$0xff]
    %v200 = vld [vmem:[%s4 + $0x130] sm:$0xff]
    %v201 = vld [vmem:[%s4 + $0x138] sm:$0xff]
    %v202 = vld [vmem:[%s4 + $0x140] sm:$0xff]
    %v203 = vld [vmem:[%s4 + $0x148] sm:$0xff]
    %v204 = vld [vmem:[%s4 + $0x150] sm:$0xff]
    %v205 = vld [vmem:[%s4 + $0x158] sm:$0xff]
    %v206 = vld [vmem:[%s4 + $0x160] sm:$0xff]
    %v207 = vld [vmem:[%s4 + $0x168] sm:$0xff]
    %v208 = vld [vmem:[%s4 + $0x170] sm:$0xff]
    %v209 = vld [vmem:[%s4 + $0x178] sm:$0xff]
    %v210 = vld [vmem:[#allocation7] sm:$0xff]
    %v212 = vlaneseq
    %v213 = vshrl.u32 %v212, 7
    %v214 = vsub.s32 0, %v213
    %v215 = vrot.slane %v210, %v214
    %v216 = vlaneseq
    %v217 = vshrl.u32 %v216, 7
    %v218 = vsub.s32 1, %v217
    %v219 = vrot.slane %v210, %v218
    %v220 = vlaneseq
    %v221 = vshrl.u32 %v220, 7
    %v222 = vsub.s32 2, %v221
    %v223 = vrot.slane %v210, %v222
    %v224 = vlaneseq
    %v225 = vshrl.u32 %v224, 7
    %v226 = vsub.s32 3, %v225
    %v227 = vrot.slane %v210, %v226
    %v228 = vlaneseq
    %v229 = vshrl.u32 %v228, 7
    %v230 = vsub.s32 4, %v229
    %v231 = vrot.slane %v210, %v230
    %v232 = vlaneseq
    %v233 = vshrl.u32 %v232, 7
    %v234 = vsub.s32 5, %v233
    %v235 = vrot.slane %v210, %v234
    %v236 = vlaneseq
    %v237 = vshrl.u32 %v236, 7
    %v238 = vsub.s32 6, %v237
    %v239 = vrot.slane %v210, %v238
    %v240 = vlaneseq
    %v241 = vshrl.u32 %v240, 7
    %v242 = vsub.s32 7, %v241
    %v243 = vrot.slane %v210, %v242
    %v300 = vunpack.c.l.b16 %v162
    %v301 = vunpack.c.h.b16 %v162
    %v302 = vunpack.c.l.b16 %v163
    %v303 = vunpack.c.h.b16 %v163
    %v304 = vunpack.c.l.b16 %v164
    %v305 = vunpack.c.h.b16 %v164
    %v306 = vunpack.c.l.b16 %v165
    %v307 = vunpack.c.h.b16 %v165
    %v308 = vunpack.c.l.b16 %v166
    %v309 = vunpack.c.h.b16 %v166
    %v310 = vunpack.c.l.b16 %v167
    %v311 = vunpack.c.h.b16 %v167
    %v312 = vunpack.c.l.b16 %v168
    %v313 = vunpack.c.h.b16 %v168
    %v314 = vunpack.c.l.b16 %v169
    %v315 = vunpack.c.h.b16 %v169
    %v316 = vunpack.c.l.b16 %v170
    %v317 = vunpack.c.h.b16 %v170
    %v318 = vunpack.c.l.b16 %v171
    %v319 = vunpack.c.h.b16 %v171
    %v320 = vunpack.c.l.b16 %v172
    %v321 = vunpack.c.h.b16 %v172
    %v322 = vunpack.c.l.b16 %v173
    %v323 = vunpack.c.h.b16 %v173
    %v324 = vunpack.c.l.b16 %v174
    %v325 = vunpack.c.h.b16 %v174
    %v326 = vunpack.c.l.b16 %v175
    %v327 = vunpack.c.h.b16 %v175
    %v328 = vunpack.c.l.b16 %v176
    %v329 = vunpack.c.h.b16 %v176
    %v330 = vunpack.c.l.b16 %v177
    %v331 = vunpack.c.h.b16 %v177
    %v332 = vunpack.c.l.b16 %v178
    %v333 = vunpack.c.h.b16 %v178
    %v334 = vunpack.c.l.b16 %v179
    %v335 = vunpack.c.h.b16 %v179
    %v336 = vunpack.c.l.b16 %v180
    %v337 = vunpack.c.h.b16 %v180
    %v338 = vunpack.c.l.b16 %v181
    %v339 = vunpack.c.h.b16 %v181
    %v340 = vunpack.c.l.b16 %v182
    %v341 = vunpack.c.h.b16 %v182
    %v342 = vunpack.c.l.b16 %v183
    %v343 = vunpack.c.h.b16 %v183
    %v344 = vunpack.c.l.b16 %v184
    %v345 = vunpack.c.h.b16 %v184
    %v346 = vunpack.c.l.b16 %v185
    %v347 = vunpack.c.h.b16 %v185
    %v348 = vunpack.c.l.b16 %v186
    %v349 = vunpack.c.h.b16 %v186
    %v350 = vunpack.c.l.b16 %v187
    %v351 = vunpack.c.h.b16 %v187
    %v352 = vunpack.c.l.b16 %v188
    %v353 = vunpack.c.h.b16 %v188
    %v354 = vunpack.c.l.b16 %v189
    %v355 = vunpack.c.h.b16 %v189
    %v356 = vunpack.c.l.b16 %v190
    %v357 = vunpack.c.h.b16 %v190
    %v358 = vunpack.c.l.b16 %v191
    %v359 = vunpack.c.h.b16 %v191
    %v360 = vunpack.c.l.b16 %v192
    %v361 = vunpack.c.h.b16 %v192
    %v362 = vunpack.c.l.b16 %v193
    %v363 = vunpack.c.h.b16 %v193
    %v364 = vunpack.c.l.b16 %v194
    %v365 = vunpack.c.h.b16 %v194
    %v366 = vunpack.c.l.b16 %v195
    %v367 = vunpack.c.h.b16 %v195
    %v368 = vunpack.c.l.b16 %v196
    %v369 = vunpack.c.h.b16 %v196
    %v370 = vunpack.c.l.b16 %v197
    %v371 = vunpack.c.h.b16 %v197
    %v372 = vunpack.c.l.b16 %v198
    %v373 = vunpack.c.h.b16 %v198
    %v374 = vunpack.c.l.b16 %v199
    %v375 = vunpack.c.h.b16 %v199
    %v376 = vunpack.c.l.b16 %v200
    %v377 = vunpack.c.h.b16 %v200
    %v378 = vunpack.c.l.b16 %v201
    %v379 = vunpack.c.h.b16 %v201
    %v380 = vunpack.c.l.b16 %v202
    %v381 = vunpack.c.h.b16 %v202
    %v382 = vunpack.c.l.b16 %v203
    %v383 = vunpack.c.h.b16 %v203
    %v384 = vunpack.c.l.b16 %v204
    %v385 = vunpack.c.h.b16 %v204
    %v386 = vunpack.c.l.b16 %v205
    %v387 = vunpack.c.h.b16 %v205
    %v388 = vunpack.c.l.b16 %v206
    %v389 = vunpack.c.h.b16 %v206
    %v390 = vunpack.c.l.b16 %v207
    %v391 = vunpack.c.h.b16 %v207
    %v392 = vunpack.c.l.b16 %v208
    %v393 = vunpack.c.h.b16 %v208
    %v394 = vunpack.c.l.b16 %v209
    %v395 = vunpack.c.h.b16 %v209
    %v396 = vpack.c.b16 %v308, %v300
    %v397 = vpack.c.b16 %v309, %v301
    %v398 = vpack.c.b16 %v310, %v302
    %v399 = vpack.c.b16 %v311, %v303
    %v400 = vpack.c.b16 %v312, %v304
    %v401 = vpack.c.b16 %v313, %v305
    %v402 = vpack.c.b16 %v314, %v306
    %v403 = vpack.c.b16 %v315, %v307
    %v404 = vpack.c.b16 %v324, %v316
    %v405 = vpack.c.b16 %v325, %v317
    %v406 = vpack.c.b16 %v326, %v318
    %v407 = vpack.c.b16 %v327, %v319
    %v408 = vpack.c.b16 %v328, %v320
    %v409 = vpack.c.b16 %v329, %v321
    %v410 = vpack.c.b16 %v330, %v322
    %v411 = vpack.c.b16 %v331, %v323
    %v412 = vpack.c.b16 %v340, %v332
    %v413 = vpack.c.b16 %v341, %v333
    %v414 = vpack.c.b16 %v342, %v334
    %v415 = vpack.c.b16 %v343, %v335
    %v416 = vpack.c.b16 %v344, %v336
    %v417 = vpack.c.b16 %v345, %v337
    %v418 = vpack.c.b16 %v346, %v338
    %v419 = vpack.c.b16 %v347, %v339
    %v420 = vpack.c.b16 %v356, %v348
    %v421 = vpack.c.b16 %v357, %v349
    %v422 = vpack.c.b16 %v358, %v350
    %v423 = vpack.c.b16 %v359, %v351
    %v424 = vpack.c.b16 %v360, %v352
    %v425 = vpack.c.b16 %v361, %v353
    %v426 = vpack.c.b16 %v362, %v354
    %v427 = vpack.c.b16 %v363, %v355
    %v428 = vpack.c.b16 %v372, %v364
    %v429 = vpack.c.b16 %v373, %v365
    %v430 = vpack.c.b16 %v374, %v366
    %v431 = vpack.c.b16 %v375, %v367
    %v432 = vpack.c.b16 %v376, %v368
    %v433 = vpack.c.b16 %v377, %v369
    %v434 = vpack.c.b16 %v378, %v370
    %v435 = vpack.c.b16 %v379, %v371
    %v436 = vpack.c.b16 %v388, %v380
    %v437 = vpack.c.b16 %v389, %v381
    %v438 = vpack.c.b16 %v390, %v382
    %v439 = vpack.c.b16 %v391, %v383
    %v440 = vpack.c.b16 %v392, %v384
    %v441 = vpack.c.b16 %v393, %v385
    %v442 = vpack.c.b16 %v394, %v386
    %v443 = vpack.c.b16 %v395, %v387
    %v493 = vsel %vm115, %v161, 0
    %495 = vmatprep.subr.bf16.mxu0 %v397
    %496 = vmatpush1.bf16.msra.mxu0 %v396
    %497 = vmatprep.subr.bf16.mxu0 %v405
    %498 = vmatpush1.bf16.msra.mxu0 %v404
    %499 = vmatprep.subr.bf16.mxu0 %v413
    %500 = vmatpush1.bf16.msra.mxu0 %v412
    %501 = vmatprep.subr.bf16.mxu0 %v421
    %502 = vmatpush1.bf16.msra.mxu0 %v420
    %503 = vmatprep.subr.bf16.mxu0 %v429
    %504 = vmatpush1.bf16.msra.mxu0 %v428
    %505 = vmatprep.subr.bf16.mxu0 %v437
    %506 = vmatpush1.bf16.msra.mxu0 %v436
    %507 = vmatprep.subr.bf16.mxu0 0
    %508 = vmatpush1.bf16.msra.mxu0 0
    %509 = vmatprep.subr.bf16.mxu0 0
    %510 = vmatpush1.bf16.msra.mxu0 0
    %511 = vmatprep.subr.bf16.mxu0 0
    %512 = vmatpush1.bf16.msra.mxu0 0
    %513 = vmatprep.subr.bf16.mxu0 0
    %514 = vmatpush1.bf16.msra.mxu0 0
    %515 = vmatprep.subr.bf16.mxu0 0
    %516 = vmatpush1.bf16.msra.mxu0 0
    %517 = vmatprep.subr.bf16.mxu0 0
    %518 = vmatpush1.bf16.msra.mxu0 0
    %519 = vmatprep.subr.bf16.mxu0 0
    %520 = vmatpush1.bf16.msra.mxu0 0
    %521 = vmatprep.subr.bf16.mxu0 0
    %522 = vmatpush1.bf16.msra.mxu0 0
    %523 = vmatprep.subr.bf16.mxu0 0
    %524 = vmatpush1.bf16.msra.mxu0 0
    %525 = vmatprep.subr.bf16.mxu0 0
    %526 = vmatpush1.bf16.msra.mxu0 0
    %527 = vmatprep.mubr.bf16.mxu0 0
    %528 = vmatmul.mubr.bf16.gmra.mrb[0].mxu0 %v493
    %v529 = vpop.f32.mrb[0].mxu0
    %v530 = vadd.f32 %v215, %v529
    %v531 = vpop.f32.mrb[0].mxu0
    %v532 = vadd.f32 %v219, %v531
    %v533 = vpop.f32.mrb[0].mxu0
    %v534 = vadd.f32 %v215, %v533
    %v535 = vpop.f32.mrb[0].mxu0
    %v536 = vadd.f32 %v219, %v535
    %537 = vdwg.mxu0
    %538 = vmatprep.subr.bf16.mxu0 %v399
    %539 = vmatpush1.bf16.msra.mxu0 %v398
    %540 = vmatprep.subr.bf16.mxu0 %v407
    %541 = vmatpush1.bf16.msra.mxu0 %v406
    %542 = vmatprep.subr.bf16.mxu0 %v415
    %543 = vmatpush1.bf16.msra.mxu0 %v414
    %544 = vmatprep.subr.bf16.mxu0 %v423
    %545 = vmatpush1.bf16.msra.mxu0 %v422
    %546 = vmatprep.subr.bf16.mxu0 %v431
    %547 = vmatpush1.bf16.msra.mxu0 %v430
    %548 = vmatprep.subr.bf16.mxu0 %v439
    %549 = vmatpush1.bf16.msra.mxu0 %v438
    %550 = vmatprep.subr.bf16.mxu0 0
    %551 = vmatpush1.bf16.msra.mxu0 0
    %552 = vmatprep.subr.bf16.mxu0 0
    %553 = vmatpush1.bf16.msra.mxu0 0
    %554 = vmatprep.subr.bf16.mxu0 0
    %555 = vmatpush1.bf16.msra.mxu0 0
    %556 = vmatprep.subr.bf16.mxu0 0
    %557 = vmatpush1.bf16.msra.mxu0 0
    %558 = vmatprep.subr.bf16.mxu0 0
    %559 = vmatpush1.bf16.msra.mxu0 0
    %560 = vmatprep.subr.bf16.mxu0 0
    %561 = vmatpush1.bf16.msra.mxu0 0
    %562 = vmatprep.subr.bf16.mxu0 0
    %563 = vmatpush1.bf16.msra.mxu0 0
    %564 = vmatprep.subr.bf16.mxu0 0
    %565 = vmatpush1.bf16.msra.mxu0 0
    %566 = vmatprep.subr.bf16.mxu0 0
    %567 = vmatpush1.bf16.msra.mxu0 0
    %568 = vmatprep.subr.bf16.mxu0 0
    %569 = vmatpush1.bf16.msra.mxu0 0
    %570 = vmatprep.mubr.bf16.mxu0 0
    %571 = vmatmul.mubr.bf16.gmra.mrb[0].mxu0 %v493
    %v572 = vpop.f32.mrb[0].mxu0
    %v573 = vadd.f32 %v223, %v572
    %v574 = vpop.f32.mrb[0].mxu0
    %v575 = vadd.f32 %v227, %v574
    %v576 = vpop.f32.mrb[0].mxu0
    %v577 = vadd.f32 %v223, %v576
    %v578 = vpop.f32.mrb[0].mxu0
    %v579 = vadd.f32 %v227, %v578
    %580 = vdwg.mxu0
    %581 = vmatprep.subr.bf16.mxu0 %v401
    %582 = vmatpush1.bf16.msra.mxu0 %v400
    %583 = vmatprep.subr.bf16.mxu0 %v409
    %584 = vmatpush1.bf16.msra.mxu0 %v408
    %585 = vmatprep.subr.bf16.mxu0 %v417
    %586 = vmatpush1.bf16.msra.mxu0 %v416
    %587 = vmatprep.subr.bf16.mxu0 %v425
    %588 = vmatpush1.bf16.msra.mxu0 %v424
    %589 = vmatprep.subr.bf16.mxu0 %v433
    %590 = vmatpush1.bf16.msra.mxu0 %v432
    %591 = vmatprep.subr.bf16.mxu0 %v441
    %592 = vmatpush1.bf16.msra.mxu0 %v440
    %593 = vmatprep.subr.bf16.mxu0 0
    %594 = vmatpush1.bf16.msra.mxu0 0
    %595 = vmatprep.subr.bf16.mxu0 0
    %596 = vmatpush1.bf16.msra.mxu0 0
    %597 = vmatprep.subr.bf16.mxu0 0
    %598 = vmatpush1.bf16.msra.mxu0 0
    %599 = vmatprep.subr.bf16.mxu0 0
    %600 = vmatpush1.bf16.msra.mxu0 0
    %601 = vmatprep.subr.bf16.mxu0 0
    %602 = vmatpush1.bf16.msra.mxu0 0
    %603 = vmatprep.subr.bf16.mxu0 0
    %604 = vmatpush1.bf16.msra.mxu0 0
    %605 = vmatprep.subr.bf16.mxu0 0
    %606 = vmatpush1.bf16.msra.mxu0 0
    %607 = vmatprep.subr.bf16.mxu0 0
    %608 = vmatpush1.bf16.msra.mxu0 0
    %609 = vmatprep.subr.bf16.mxu0 0
    %610 = vmatpush1.bf16.msra.mxu0 0
    %611 = vmatprep.subr.bf16.mxu0 0
    %612 = vmatpush1.bf16.msra.mxu0 0
    %613 = vmatprep.mubr.bf16.mxu0 0
    %614 = vmatmul.mubr.bf16.gmra.mrb[0].mxu0 %v493
    %v615 = vpop.f32.mrb[0].mxu0
    %v616 = vadd.f32 %v231, %v615
    %v617 = vpop.f32.mrb[0].mxu0
    %v618 = vadd.f32 %v235, %v617
    %v619 = vpop.f32.mrb[0].mxu0
    %v620 = vadd.f32 %v231, %v619
    %v621 = vpop.f32.mrb[0].mxu0
    %v622 = vadd.f32 %v235, %v621
    %623 = vdwg.mxu0
    %624 = vmatprep.subr.bf16.mxu0 %v403
    %625 = vmatpush1.bf16.msra.mxu0 %v402
    %626 = vmatprep.subr.bf16.mxu0 %v411
    %627 = vmatpush1.bf16.msra.mxu0 %v410
    %628 = vmatprep.subr.bf16.mxu0 %v419
    %629 = vmatpush1.bf16.msra.mxu0 %v418
    %630 = vmatprep.subr.bf16.mxu0 %v427
    %631 = vmatpush1.bf16.msra.mxu0 %v426
    %632 = vmatprep.subr.bf16.mxu0 %v435
    %633 = vmatpush1.bf16.msra.mxu0 %v434
    %634 = vmatprep.subr.bf16.mxu0 %v443
    %635 = vmatpush1.bf16.msra.mxu0 %v442
    %636 = vmatprep.subr.bf16.mxu0 0
    %637 = vmatpush1.bf16.msra.mxu0 0
    %638 = vmatprep.subr.bf16.mxu0 0
    %639 = vmatpush1.bf16.msra.mxu0 0
    %640 = vmatprep.subr.bf16.mxu0 0
    %641 = vmatpush1.bf16.msra.mxu0 0
    %642 = vmatprep.subr.bf16.mxu0 0
    %643 = vmatpush1.bf16.msra.mxu0 0
    %644 = vmatprep.subr.bf16.mxu0 0
    %645 = vmatpush1.bf16.msra.mxu0 0
    %646 = vmatprep.subr.bf16.mxu0 0
    %647 = vmatpush1.bf16.msra.mxu0 0
    %648 = vmatprep.subr.bf16.mxu0 0
    %649 = vmatpush1.bf16.msra.mxu0 0
    %650 = vmatprep.subr.bf16.mxu0 0
    %651 = vmatpush1.bf16.msra.mxu0 0
    %652 = vmatprep.subr.bf16.mxu0 0
    %653 = vmatpush1.bf16.msra.mxu0 0
    %654 = vmatprep.subr.bf16.mxu0 0
    %655 = vmatpush1.bf16.msra.mxu0 0
    %656 = vmatprep.mubr.bf16.mxu0 0
    %657 = vmatmul.mubr.bf16.gmra.mrb[0].mxu0 %v493
    %v658 = vpop.f32.mrb[0].mxu0
    %v659 = vadd.f32 %v239, %v658
    %v660 = vpop.f32.mrb[0].mxu0
    %v661 = vadd.f32 %v243, %v660
    %v662 = vpop.f32.mrb[0].mxu0
    %v663 = vadd.f32 %v239, %v662
    %v664 = vpop.f32.mrb[0].mxu0
    %v665 = vadd.f32 %v243, %v664
    %666 = vdwg.mxu0
    %v667 = vpack.c.bf16 %v534, %v530
    %v668 = vpack.c.bf16 %v536, %v532
    %v669 = vpack.c.bf16 %v577, %v573
    %v670 = vpack.c.bf16 %v579, %v575
    %v671 = vpack.c.bf16 %v620, %v616
    %v672 = vpack.c.bf16 %v622, %v618
    %v673 = vpack.c.bf16 %v663, %v659
    %v674 = vpack.c.bf16 %v665, %v661
    %v683 = vunpack.c.l.b16 %v667
    %v684 = vunpack.c.l.b16 %v668
    %v685 = vunpack.c.l.b16 %v669
    %v686 = vunpack.c.l.b16 %v670
    %v687 = vunpack.c.l.b16 %v671
    %v688 = vunpack.c.l.b16 %v672
    %v689 = vunpack.c.l.b16 %v673
    %v690 = vunpack.c.l.b16 %v674
    %v691 = vunpack.c.h.b16 %v667
    %v692 = vunpack.c.h.b16 %v668
    %v693 = vunpack.c.h.b16 %v669
    %v694 = vunpack.c.h.b16 %v670
    %v695 = vunpack.c.h.b16 %v671
    %v696 = vunpack.c.h.b16 %v672
    %v697 = vunpack.c.h.b16 %v673
    %v698 = vunpack.c.h.b16 %v674
    %v699 = vpack.c.b16 %v684, %v683
    %v700 = vpack.c.b16 %v686, %v685
    %v701 = vpack.c.b16 %v688, %v687
    %v702 = vpack.c.b16 %v690, %v689
    %v703 = vpack.c.b16 %v692, %v691
    %v704 = vpack.c.b16 %v694, %v693
    %v705 = vpack.c.b16 %v696, %v695
    %v706 = vpack.c.b16 %v698, %v697
    %715 = vst [vmem:[%s8] sm:$0xff] %v699
    %716 = vst [vmem:[%s8 + $0x8] sm:$0xff] %v700
    %717 = vst [vmem:[%s8 + $0x10] sm:$0xff] %v701
    %718 = vst [vmem:[%s8 + $0x18] sm:$0xff] %v702
    %719 = vst [vmem:[%s8 + $0x20] sm:$0xff] %v703
    %720 = vst [vmem:[%s8 + $0x28] sm:$0xff] %v704
    %721 = vst [vmem:[%s8 + $0x30] sm:$0xff] %v705
    %722 = vst [vmem:[%s8 + $0x38] sm:$0xff] %v706
    %v723 = vld [vmem:[#allocation9] sm:$0xff]
    %v724 = vld [vmem:[#allocation9 + $0x8] sm:$0xff]
    %v725 = vld [vmem:[#allocation9 + $0x10] sm:$0xff]
    %v726 = vld [vmem:[#allocation9 + $0x18] sm:$0xff]
    %v727 = vld [vmem:[#allocation9 + $0x20] sm:$0xff]
    %v728 = vld [vmem:[#allocation9 + $0x28] sm:$0xff]
    %v729 = vld [vmem:[#allocation9 + $0x30] sm:$0xff]
    %v730 = vld [vmem:[#allocation9 + $0x38] sm:$0xff]
    %v731 = vld [vmem:[#allocation9 + $0x40] sm:$0xff]
    %v732 = vld [vmem:[#allocation9 + $0x48] sm:$0xff]
    %v733 = vld [vmem:[#allocation9 + $0x50] sm:$0xff]
    %v734 = vld [vmem:[#allocation9 + $0x58] sm:$0xff]
    %v735 = vld [vmem:[#allocation10] sm:$0x3]
    %v737 = vlaneseq
    %v738 = vshrl.u32 %v737, 7
    %v739 = vsub.s32 0, %v738
    %v740 = vrot.slane %v735, %v739
    %v741 = vlaneseq
    %v742 = vshrl.u32 %v741, 7
    %v743 = vsub.s32 1, %v742
    %v744 = vrot.slane %v735, %v743
    %v759 = vunpack.c.l.b16 %v723
    %v760 = vunpack.c.h.b16 %v723
    %v761 = vunpack.c.l.b16 %v724
    %v762 = vunpack.c.h.b16 %v724
    %v763 = vunpack.c.l.b16 %v725
    %v764 = vunpack.c.h.b16 %v725
    %v765 = vunpack.c.l.b16 %v726
    %v766 = vunpack.c.h.b16 %v726
    %v767 = vunpack.c.l.b16 %v727
    %v768 = vunpack.c.h.b16 %v727
    %v769 = vunpack.c.l.b16 %v728
    %v770 = vunpack.c.h.b16 %v728
    %v771 = vunpack.c.l.b16 %v729
    %v772 = vunpack.c.h.b16 %v729
    %v773 = vunpack.c.l.b16 %v730
    %v774 = vunpack.c.h.b16 %v730
    %v775 = vunpack.c.l.b16 %v731
    %v776 = vunpack.c.h.b16 %v731
    %v777 = vunpack.c.l.b16 %v732
    %v778 = vunpack.c.h.b16 %v732
    %v779 = vunpack.c.l.b16 %v733
    %v780 = vunpack.c.h.b16 %v733
    %v781 = vunpack.c.l.b16 %v734
    %v782 = vunpack.c.h.b16 %v734
    %v783 = vpack.c.b16 %v761, %v759
    %v784 = vpack.c.b16 %v762, %v760
    %v785 = vpack.c.b16 %v765, %v763
    %v786 = vpack.c.b16 %v766, %v764
    %v787 = vpack.c.b16 %v769, %v767
    %v788 = vpack.c.b16 %v770, %v768
    %v789 = vpack.c.b16 %v773, %v771
    %v790 = vpack.c.b16 %v774, %v772
    %v791 = vpack.c.b16 %v777, %v775
    %v792 = vpack.c.b16 %v778, %v776
    %v793 = vpack.c.b16 %v781, %v779
    %v794 = vpack.c.b16 %v782, %v780
    %807 = vmatprep.subr.bf16.mxu0 %v784
    %808 = vmatpush1.bf16.msra.mxu0 %v783
    %809 = vmatprep.subr.bf16.mxu0 %v786
    %810 = vmatpush1.bf16.msra.mxu0 %v785
    %811 = vmatprep.subr.bf16.mxu0 %v788
    %812 = vmatpush1.bf16.msra.mxu0 %v787
    %813 = vmatprep.subr.bf16.mxu0 %v790
    %814 = vmatpush1.bf16.msra.mxu0 %v789
    %815 = vmatprep.subr.bf16.mxu0 %v792
    %816 = vmatpush1.bf16.msra.mxu0 %v791
    %817 = vmatprep.subr.bf16.mxu0 %v794
    %818 = vmatpush1.bf16.msra.mxu0 %v793
    %819 = vmatprep.subr.bf16.mxu0 0
    %820 = vmatpush1.bf16.msra.mxu0 0
    %821 = vmatprep.subr.bf16.mxu0 0
    %822 = vmatpush1.bf16.msra.mxu0 0
    %823 = vmatprep.subr.bf16.mxu0 0
    %824 = vmatpush1.bf16.msra.mxu0 0
    %825 = vmatprep.subr.bf16.mxu0 0
    %826 = vmatpush1.bf16.msra.mxu0 0
    %827 = vmatprep.subr.bf16.mxu0 0
    %828 = vmatpush1.bf16.msra.mxu0 0
    %829 = vmatprep.subr.bf16.mxu0 0
    %830 = vmatpush1.bf16.msra.mxu0 0
    %831 = vmatprep.subr.bf16.mxu0 0
    %832 = vmatpush1.bf16.msra.mxu0 0
    %833 = vmatprep.subr.bf16.mxu0 0
    %834 = vmatpush1.bf16.msra.mxu0 0
    %835 = vmatprep.subr.bf16.mxu0 0
    %836 = vmatpush1.bf16.msra.mxu0 0
    %837 = vmatprep.subr.bf16.mxu0 0
    %838 = vmatpush1.bf16.msra.mxu0 0
    %839 = vmatprep.mubr.bf16.mxu0 0
    %840 = vmatmul.mubr.bf16.gmra.mrb[0].mxu0 %v493
    %v841 = vpop.f32.mrb[0].mxu0
    %v842 = vadd.f32 %v740, %v841
    %v843 = vpop.f32.mrb[0].mxu0
    %v844 = vadd.f32 %v744, %v843
    %v845 = vpop.f32.mrb[0].mxu0
    %v846 = vadd.f32 %v740, %v845
    %v847 = vpop.f32.mrb[0].mxu0
    %v848 = vadd.f32 %v744, %v847
    %849 = vdwg.mxu0
    %v850 = vpack.c.bf16 %v846, %v842
    %v851 = vpack.c.bf16 %v848, %v844
    %v854 = vunpack.c.l.b16 %v850
    %v855 = vunpack.c.l.b16 %v851
    %v856 = vunpack.c.h.b16 %v850
    %v857 = vunpack.c.h.b16 %v851
    %v858 = vpack.c.b16 %v855, %v854
    %v859 = vpack.c.b16 %v857, %v856
    %862 = vst [vmem:[%s9] sm:$0xff] %v858
    %863 = vst [vmem:[%s9 + $0x8] sm:$0xff] %v859
    // Predicated region
    $region58: #{bilstm_model_forward.5} parent=1 // pred_check
      _
    $region59: #{bilstm_model_forward.5} parent=1 // pred_check_branch
      %865 = sbr.rel (0) target = $region61
    $region60: #{bilstm_model_forward.5} parent=1 // pred_region
      _
    $region61: #{bilstm_model_forward.5} parent=1 // pred_fallthru
      _
    // Predicated region
    $region62: #{bilstm_model_forward.5} parent=1 // pred_check
      _
    $region63: #{bilstm_model_forward.5} parent=1 // pred_check_branch
      %867 = sbr.rel (0) target = $region65
    $region64: #{bilstm_model_forward.5} parent=1 // pred_region
      _
    $region65: #{bilstm_model_forward.5} parent=1 // pred_fallthru
      _
    // Predicated region
    $region66: #{bilstm_model_forward.5} parent=1 // pred_check
      _
    $region67: #{bilstm_model_forward.5} parent=1 // pred_check_branch
      %869 = sbr.rel (0) target = $region69
    $region68: #{bilstm_model_forward.5} parent=1 // pred_region
      _
    $region69: #{bilstm_model_forward.5} parent=1 // pred_fallthru
      _
    // Predicated region
    $region70: #{bilstm_model_forward.5} parent=1 // pred_check
      _
    $region71: #{bilstm_model_forward.5} parent=1 // pred_check_branch
      %871 = sbr.rel (0) target = $region73
    $region72: #{bilstm_model_forward.5} parent=1 // pred_region
      _
    $region73: #{bilstm_model_forward.5} parent=1 // pred_fallthru
      _
    %872 = vsyncpa [#allocation3], 1
    %873 = vsyncpa [#allocation5], 1
    %874 = vsyncpa [#allocation8], 1
    %875 = vsyncpa [#allocation11], 1

// kernel: bilstm_model_forward.9
$region0: #{bilstm_model_forward.9}
  #allocation0 [shape = 'u32[]', space=smem, size = 0x4, offset = 0x4, fixed_abs, tag = 'smem constant byte address 0x4 - core index']
  #allocation1 [shape = 'u32[144,128]{1,0:T(1,128)}', space=vmem, size = 0x12000, scoped, tag = 'internal scratch']
  %s0 = inlined_call_operand.vmem [shape: bf16[2,128,512], index: 0, kind: input, shape index: {}, may-alias: {0,1}]
  %s1 = inlined_call_operand.vmem [shape: bf16[2,128,512], index: 1, kind: input, shape index: {}, may-alias: {0,1}]
  %s2 = inlined_call_operand.vmem [shape: bf16[128,512], index: 2, kind: input, shape index: {}]
  %s3 = inlined_call_operand.vmem [shape: f32[2,4,128,128], index: 3, kind: output, shape index: {}]
  %s4 = sld [smem:[#allocation0]]
  $region127: #{bilstm_model_forward.9} parent=0
    _
  %s6 = ssub.s32 1, %s4
  %s7 = scalar_select 0, %s6, %s4
  $region1: #{bilstm_model_forward.9} parent=0
    #allocation2 [shape = 'u8[65536]{0}', space=vmem, size = 0x10000, scoped, tag = 'input window, operand 0']
    #allocation3 [shape = 'u8[65536]{0}', space=vmem, size = 0x10000, scoped, tag = 'input window, operand 1']
    loop: start=0, step=1, limit=4
    $region2: #{bilstm_model_forward.9} parent=1 // loop_pre_header
      _
    $region3: #{bilstm_model_forward.9} parent=1 // loop_header
      %s9 = sphi 0, %s13
      %p10 = scmp.ge.s32.totalorder %s9, 4
      %s19 = sphi 0, %s21
      %s22 = sphi 0, %s19
      %s23 = sphi 0, %s22
      %s39 = sphi 0, %s23
      %s45 = sphi 0, %s47
      %s48 = sphi 0, %s45
      %s49 = sphi 0, %s48
      %s65 = sphi 0, %s49
      %s69 = sphi 0, %s69
      %s71 = sphi 0, %s69
      %s72 = sphi 0, %s71
      %s86 = sphi 0, %s72
      %s92 = sphi 0, %s94
      %s95 = sphi 0, %s92
      %s96 = sphi 0, %s95
      %s112 = sphi 0, %s96
    $region4: #{bilstm_model_forward.9} parent=1 // loop_header_branch
      %12 = sbr.rel (%p10) target = $region8
    $region5: #{bilstm_model_forward.9} parent=1 // loop_body
      %s14 = ssub.s32 %s9, 1
      %s15 = ssub.s32 %s9, 2
      %s16 = sadd.s32 %s9, 1
      %s17 = ssub.s32 %s9, %s16
      %p18 = scmp.eq.s32.totalorder %s17, 0
      %s20 = sadd.s32 %s19, 1
      %s21 = scalar_select %p18, %s19, %s20
      %p24 = pneg %p18
      %p25 = scmp.eq.s32.totalorder %s9, 1
      %p26 = por %p24, %p25
      %p27 = scmp.ne.s32.totalorder %s19, %s22
      %p28 = scmp.eq.s32.totalorder %s9, 0
      %p29 = por %p27, %p28
      %p30 = scmp.ne.s32.totalorder %s19, %s22
      %p31 = scmp.eq.s32.totalorder %s14, 1
      %p32 = por %p30, %p31
      %p33 = scmp.ne.s32.totalorder %s22, %s23
      %p34 = scmp.eq.s32.totalorder %s14, 0
      %p35 = por %p33, %p34
      %p36 = scmp.ne.s32.totalorder %s22, %s23
      %p37 = scmp.eq.s32.totalorder %s15, 1
      %p38 = por %p36, %p37
      %p40 = scmp.ne.s32.totalorder %s23, %s39
      %p41 = scmp.eq.s32.totalorder %s15, 0
      %p42 = por %p40, %p41
      %s43 = ssub.s32 %s9, %s16
      %p44 = scmp.eq.s32.totalorder %s43, 0
      %s46 = sadd.s32 %s45, 1
      %s47 = scalar_select %p44, %s45, %s46
      %p50 = pneg %p44
      %p51 = scmp.eq.s32.totalorder %s9, 1
      %p52 = por %p50, %p51
      %p53 = scmp.ne.s32.totalorder %s45, %s48
      %p54 = scmp.eq.s32.totalorder %s9, 0
      %p55 = por %p53, %p54
      %p56 = scmp.ne.s32.totalorder %s45, %s48
      %p57 = scmp.eq.s32.totalorder %s14, 1
      %p58 = por %p56, %p57
      %p59 = scmp.ne.s32.totalorder %s48, %s49
      %p60 = scmp.eq.s32.totalorder %s14, 0
      %p61 = por %p59, %p60
      %p62 = scmp.ne.s32.totalorder %s48, %s49
      %p63 = scmp.eq.s32.totalorder %s15, 1
      %p64 = por %p62, %p63
      %p66 = scmp.ne.s32.totalorder %s49, %s65
      %p67 = scmp.eq.s32.totalorder %s15, 0
      %p68 = por %p66, %p67
      %s70 = sadd.s32 %s69, 1
      %p73 = scmp.eq.s32.totalorder %s9, 1
      %p74 = scmp.ne.s32.totalorder %s69, %s71
      %p75 = scmp.eq.s32.totalorder %s9, 0
      %p76 = por %p74, %p75
      %p77 = scmp.ne.s32.totalorder %s69, %s71
      %p78 = scmp.eq.s32.totalorder %s14, 1
      %p79 = por %p77, %p78
      %p80 = scmp.ne.s32.totalorder %s71, %s72
      %p81 = scmp.eq.s32.totalorder %s14, 0
      %p82 = por %p80, %p81
      %p83 = scmp.ne.s32.totalorder %s71, %s72
      %p84 = scmp.eq.s32.totalorder %s15, 1
      %p85 = por %p83, %p84
      %p87 = scmp.ne.s32.totalorder %s72, %s86
      %p88 = scmp.eq.s32.totalorder %s15, 0
      %p89 = por %p87, %p88
      %s90 = ssub.s32 %s9, %s16
      %p91 = scmp.eq.s32.totalorder %s90, 0
      %s93 = sadd.s32 %s92, 1
      %s94 = scalar_select %p91, %s92, %s93
      %p97 = pneg %p91
      %p98 = scmp.eq.s32.totalorder %s9, 1
      %p99 = por %p97, %p98
      %p100 = scmp.ne.s32.totalorder %s92, %s95
      %p101 = scmp.eq.s32.totalorder %s9, 0
      %p102 = por %p100, %p101
      %p103 = scmp.ne.s32.totalorder %s92, %s95
      %p104 = scmp.eq.s32.totalorder %s14, 1
      %p105 = por %p103, %p104
      %p106 = scmp.ne.s32.totalorder %s95, %s96
      %p107 = scmp.eq.s32.totalorder %s14, 0
      %p108 = por %p106, %p107
      %p109 = scmp.ne.s32.totalorder %s95, %s96
      %p110 = scmp.eq.s32.totalorder %s15, 1
      %p111 = por %p109, %p110
      %p113 = scmp.ne.s32.totalorder %s96, %s112
      %p114 = scmp.eq.s32.totalorder %s15, 0
      %p115 = por %p113, %p114
      %p116 = scmp.le.s32.totalorder 1, %s9
      %p117 = scmp.lt.s32.totalorder %s9, 3
      %p118 = pnand %p116, %p117
      %p119 = pneg %p118
      // Predicated region
      $region9: #{bilstm_model_forward.9} parent=5 // pred_check
        _
      $region10: #{bilstm_model_forward.9} parent=5 // pred_check_branch
        %121 = sbr.rel (%p118) target = $region12
      $region11: #{bilstm_model_forward.9} parent=5 // pred_region
        %s122 = ssub.s32 %s9, 1
        // Predicated region
        $region13: #{bilstm_model_forward.9} parent=11 // pred_check
          %p123 = pneg %p82
        $region14: #{bilstm_model_forward.9} parent=11 // pred_check_branch
          %125 = sbr.rel (%p123) target = $region16
        $region15: #{bilstm_model_forward.9} parent=11 // pred_region
          _
        $region16: #{bilstm_model_forward.9} parent=11 // pred_fallthru
          _
      $region12: #{bilstm_model_forward.9} parent=5 // pred_fallthru
        _
      %p126 = scmp.lt.s32.totalorder %s9, 2
      // Predicated region
      $region17: #{bilstm_model_forward.9} parent=5 // pred_check
        %p127 = pneg %p126
      $region18: #{bilstm_model_forward.9} parent=5 // pred_check_branch
        %129 = sbr.rel (%p127) target = $region20
      $region19: #{bilstm_model_forward.9} parent=5 // pred_region
        // Predicated region
        $region21: #{bilstm_model_forward.9} parent=19 // pred_check
          %p130 = pneg %p29
        $region22: #{bilstm_model_forward.9} parent=19 // pred_check_branch
          %132 = sbr.rel (%p130) target = $region24
        $region23: #{bilstm_model_forward.9} parent=19 // pred_region
          %s133 = sand.u32 %s19, 1
          %s134 = sand.u32 %s19, 1
          %s135 = smul.addr %s134, 64
          %s136 = scalar_lea.vmem [#allocation2], %s135
          %s137 = smul.addr %s9, 64
          %s138 = sadd.s32 2, %s137
          %s139 = smul.addr %s138, 4
          %s140 = scalar_lea.vmem %s0, %s139
          // Predicated region
          $region25: #{bilstm_model_forward.9} parent=23 // pred_check
            _
          $region26: #{bilstm_model_forward.9} parent=23 // pred_check_branch
            %142 = sbr.rel (0) target = $region28
          $region27: #{bilstm_model_forward.9} parent=23 // pred_region
            // Predicated region
            $region29: #{bilstm_model_forward.9} parent=27 // pred_check
              _
            $region30: #{bilstm_model_forward.9} parent=27 // pred_check_branch
              %144 = sbr.rel target = $region32
            $region31: #{bilstm_model_forward.9} parent=27 // pred_region
              // Predicated region
              $region44: #{bilstm_model_forward.9} parent=31 // pred_check
                _
              $region45: #{bilstm_model_forward.9} parent=31 // pred_check_branch
                %189 = sbr.rel (0) target = $region47
              $region46: #{bilstm_model_forward.9} parent=31 // pred_region
                loop: start=0, step=1, limit=1
                $region48: #{bilstm_model_forward.9} parent=46 // loop_pre_header
                  _
                $region49: #{bilstm_model_forward.9} parent=46 // loop_header
                  %s191 = sphi 0, %s195
                  %p192 = scmp.ge.s32.totalorder %s191, 1
                  %s196 = sphi %s140, %s140
                  %s197 = sphi %s136, %s136
                $region50: #{bilstm_model_forward.9} parent=46 // loop_header_branch
                  %194 = sbr.rel (%p192) target = $region54
                $region51: #{bilstm_model_forward.9} parent=46 // loop_body
                  _
                $region52: #{bilstm_model_forward.9} parent=46 // loop_footer
                  %s195 = sadd.s32 1, %s191
                $region53: #{bilstm_model_forward.9} parent=46 // loop_footer_branch
                  %190 = sbr.rel target = $region49
                $region54: #{bilstm_model_forward.9} parent=46 // loop_exit
                  _
                loop: start=0, step=1, limit=1
                $region55: #{bilstm_model_forward.9} parent=46 // loop_pre_header
                  _
                $region56: #{bilstm_model_forward.9} parent=46 // loop_header
                  %s200 = sphi 0, %s204
                  %p201 = scmp.ge.s32.totalorder %s200, 1
                  %s205 = sphi %s140, %s140
                  %s206 = sphi %s136, %s136
                $region57: #{bilstm_model_forward.9} parent=46 // loop_header_branch
                  %203 = sbr.rel (%p201) target = $region61
                $region58: #{bilstm_model_forward.9} parent=46 // loop_body
                  %v207 = vld [vmem:[%s205] sm:$0xf]
                  %208 = vst [vmem:[%s206] sm:$0xf] %v207
                  %v209 = vld [vmem:[%s205 + $0x10] sm:$0xf]
                  %210 = vst [vmem:[%s206 + $0x4] sm:$0xf] %v209
                  %v211 = vld [vmem:[%s205 + $0x20] sm:$0xf]
                  %212 = vst [vmem:[%s206 + $0x8] sm:$0xf] %v211
                  %v213 = vld [vmem:[%s205 + $0x30] sm:$0xf]
                  %214 = vst [vmem:[%s206 + $0xc] sm:$0xf] %v213
                  %v215 = vld [vmem:[%s205 + $0x40] sm:$0xf]
                  %216 = vst [vmem:[%s206 + $0x10] sm:$0xf] %v215
                  %v217 = vld [vmem:[%s205 + $0x50] sm:$0xf]
                  %218 = vst [vmem:[%s206 + $0x14] sm:$0xf] %v217
                  %v219 = vld [vmem:[%s205 + $0x60] sm:$0xf]
                  %220 = vst [vmem:[%s206 + $0x18] sm:$0xf] %v219
                  %v221 = vld [vmem:[%s205 + $0x70] sm:$0xf]
                  %222 = vst [vmem:[%s206 + $0x1c] sm:$0xf] %v221
                  %v223 = vld [vmem:[%s205 + $0x80] sm:$0xf]
                  %224 = vst [vmem:[%s206 + $0x20] sm:$0xf] %v223
                  %v225 = vld [vmem:[%s205 + $0x90] sm:$0xf]
                  %226 = vst [vmem:[%s206 + $0x24] sm:$0xf] %v225
                  %v227 = vld [vmem:[%s205 + $0xa0] sm:$0xf]
                  %228 = vst [vmem:[%s206 + $0x28] sm:$0xf] %v227
                  %v229 = vld [vmem:[%s205 + $0xb0] sm:$0xf]
                  %230 = vst [vmem:[%s206 + $0x2c] sm:$0xf] %v229
                  %v231 = vld [vmem:[%s205 + $0xc0] sm:$0xf]
                  %232 = vst [vmem:[%s206 + $0x30] sm:$0xf] %v231
                  %v233 = vld [vmem:[%s205 + $0xd0] sm:$0xf]
                  %234 = vst [vmem:[%s206 + $0x34] sm:$0xf] %v233
                  %v235 = vld [vmem:[%s205 + $0xe0] sm:$0xf]
                  %236 = vst [vmem:[%s206 + $0x38] sm:$0xf] %v235
                  %v237 = vld [vmem:[%s205 + $0xf0] sm:$0xf]
                  %238 = vst [vmem:[%s206 + $0x3c] sm:$0xf] %v237
                $region59: #{bilstm_model_forward.9} parent=46 // loop_footer
                  %s204 = sadd.s32 1, %s200
                $region60: #{bilstm_model_forward.9} parent=46 // loop_footer_branch
                  %199 = sbr.rel target = $region56
                $region61: #{bilstm_model_forward.9} parent=46 // loop_exit
                  _
              $region47: #{bilstm_model_forward.9} parent=31 // pred_fallthru
                _
            $region32: #{bilstm_model_forward.9} parent=27 // pred_fallthru
              _
            // Predicated region
            $region33: #{bilstm_model_forward.9} parent=27 // pred_check
              _
            $region34: #{bilstm_model_forward.9} parent=27 // pred_check_branch
              %146 = sbr.rel (0) target = $region36
            $region35: #{bilstm_model_forward.9} parent=27 // pred_region
              loop: start=0, step=1, limit=1
              $region37: #{bilstm_model_forward.9} parent=35 // loop_pre_header
                _
              $region38: #{bilstm_model_forward.9} parent=35 // loop_header
                %s149 = sphi 0, %s153
                %p150 = scmp.ge.s32.totalorder %s149, 1
                %s154 = sphi %s140, %s140
                %s155 = sphi %s136, %s136
              $region39: #{bilstm_model_forward.9} parent=35 // loop_header_branch
                %152 = sbr.rel (%p150) target = $region43
              $region40: #{bilstm_model_forward.9} parent=35 // loop_body
                %v156 = vld [vmem:[%s154] sm:$0xf]
                %157 = vst [vmem:[%s155] sm:$0xf] %v156
                %v158 = vld [vmem:[%s154 + $0x10] sm:$0xf]
                %159 = vst [vmem:[%s155 + $0x4] sm:$0xf] %v158
                %v160 = vld [vmem:[%s154 + $0x20] sm:$0xf]
                %161 = vst [vmem:[%s155 + $0x8] sm:$0xf] %v160
                %v162 = vld [vmem:[%s154 + $0x30] sm:$0xf]
                %163 = vst [vmem:[%s155 + $0xc] sm:$0xf] %v162
                %v164 = vld [vmem:[%s154 + $0x40] sm:$0xf]
                %165 = vst [vmem:[%s155 + $0x10] sm:$0xf] %v164
                %v166 = vld [vmem:[%s154 + $0x50] sm:$0xf]
                %167 = vst [vmem:[%s155 + $0x14] sm:$0xf] %v166
                %v168 = vld [vmem:[%s154 + $0x60] sm:$0xf]
                %169 = vst [vmem:[%s155 + $0x18] sm:$0xf] %v168
                %v170 = vld [vmem:[%s154 + $0x70] sm:$0xf]
                %171 = vst [vmem:[%s155 + $0x1c] sm:$0xf] %v170
                %v172 = vld [vmem:[%s154 + $0x80] sm:$0xf]
                %173 = vst [vmem:[%s155 + $0x20] sm:$0xf] %v172
                %v174 = vld [vmem:[%s154 + $0x90] sm:$0xf]
                %175 = vst [vmem:[%s155 + $0x24] sm:$0xf] %v174
                %v176 = vld [vmem:[%s154 + $0xa0] sm:$0xf]
                %177 = vst [vmem:[%s155 + $0x28] sm:$0xf] %v176
                %v178 = vld [vmem:[%s154 + $0xb0] sm:$0xf]
                %179 = vst [vmem:[%s155 + $0x2c] sm:$0xf] %v178
                %v180 = vld [vmem:[%s154 + $0xc0] sm:$0xf]
                %181 = vst [vmem:[%s155 + $0x30] sm:$0xf] %v180
                %v182 = vld [vmem:[%s154 + $0xd0] sm:$0xf]
                %183 = vst [vmem:[%s155 + $0x34] sm:$0xf] %v182
                %v184 = vld [vmem:[%s154 + $0xe0] sm:$0xf]
                %185 = vst [vmem:[%s155 + $0x38] sm:$0xf] %v184
                %v186 = vld [vmem:[%s154 + $0xf0] sm:$0xf]
                %187 = vst [vmem:[%s155 + $0x3c] sm:$0xf] %v186
              $region41: #{bilstm_model_forward.9} parent=35 // loop_footer
                %s153 = sadd.s32 1, %s149
              $region42: #{bilstm_model_forward.9} parent=35 // loop_footer_branch
                %148 = sbr.rel target = $region38
              $region43: #{bilstm_model_forward.9} parent=35 // loop_exit
                _
            $region36: #{bilstm_model_forward.9} parent=27 // pred_fallthru
              _
          $region28: #{bilstm_model_forward.9} parent=23 // pred_fallthru
            _
          %239 = vnop
        $region24: #{bilstm_model_forward.9} parent=19 // pred_fallthru
          _
        // Predicated region
        $region62: #{bilstm_model_forward.9} parent=19 // pred_check
          %p240 = pneg %p55
        $region63: #{bilstm_model_forward.9} parent=19 // pred_check_branch
          %242 = sbr.rel (%p240) target = $region65
        $region64: #{bilstm_model_forward.9} parent=19 // pred_region
          %s243 = sand.u32 %s45, 1
          %s244 = sand.u32 %s45, 1
          %s245 = smul.addr %s244, 64
          %s246 = scalar_lea.vmem [#allocation3], %s245
          %s247 = smul.addr %s9, 64
          %s248 = sadd.s32 3, %s247
          %s249 = smul.addr %s248, 4
          %s250 = scalar_lea.vmem %s1, %s249
          // Predicated region
          $region66: #{bilstm_model_forward.9} parent=64 // pred_check
            _
          $region67: #{bilstm_model_forward.9} parent=64 // pred_check_branch
            %252 = sbr.rel (0) target = $region69
          $region68: #{bilstm_model_forward.9} parent=64 // pred_region
            // Predicated region
            $region70: #{bilstm_model_forward.9} parent=68 // pred_check
              _
            $region71: #{bilstm_model_forward.9} parent=68 // pred_check_branch
              %254 = sbr.rel target = $region73
            $region72: #{bilstm_model_forward.9} parent=68 // pred_region
              // Predicated region
              $region85: #{bilstm_model_forward.9} parent=72 // pred_check
                _
              $region86: #{bilstm_model_forward.9} parent=72 // pred_check_branch
                %299 = sbr.rel (0) target = $region88
              $region87: #{bilstm_model_forward.9} parent=72 // pred_region
                loop: start=0, step=1, limit=1
                $region89: #{bilstm_model_forward.9} parent=87 // loop_pre_header
                  _
                $region90: #{bilstm_model_forward.9} parent=87 // loop_header
                  %s301 = sphi 0, %s305
                  %p302 = scmp.ge.s32.totalorder %s301, 1
                  %s306 = sphi %s250, %s250
                  %s307 = sphi %s246, %s246
                $region91: #{bilstm_model_forward.9} parent=87 // loop_header_branch
                  %304 = sbr.rel (%p302) target = $region95
                $region92: #{bilstm_model_forward.9} parent=87 // loop_body
                  _
                $region93: #{bilstm_model_forward.9} parent=87 // loop_footer
                  %s305 = sadd.s32 1, %s301
                $region94: #{bilstm_model_forward.9} parent=87 // loop_footer_branch
                  %300 = sbr.rel target = $region90
                $region95: #{bilstm_model_forward.9} parent=87 // loop_exit
                  _
                loop: start=0, step=1, limit=1
                $region96: #{bilstm_model_forward.9} parent=87 // loop_pre_header
                  _
                $region97: #{bilstm_model_forward.9} parent=87 // loop_header
                  %s310 = sphi 0, %s314
                  %p311 = scmp.ge.s32.totalorder %s310, 1
                  %s315 = sphi %s250, %s250
                  %s316 = sphi %s246, %s246
                $region98: #{bilstm_model_forward.9} parent=87 // loop_header_branch
                  %313 = sbr.rel (%p311) target = $region102
                $region99: #{bilstm_model_forward.9} parent=87 // loop_body
                  %v317 = vld [vmem:[%s315] sm:$0xf]
                  %318 = vst [vmem:[%s316] sm:$0xf] %v317
                  %v319 = vld [vmem:[%s315 + $0x10] sm:$0xf]
                  %320 = vst [vmem:[%s316 + $0x4] sm:$0xf] %v319
                  %v321 = vld [vmem:[%s315 + $0x20] sm:$0xf]
                  %322 = vst [vmem:[%s316 + $0x8] sm:$0xf] %v321
                  %v323 = vld [vmem:[%s315 + $0x30] sm:$0xf]
                  %324 = vst [vmem:[%s316 + $0xc] sm:$0xf] %v323
                  %v325 = vld [vmem:[%s315 + $0x40] sm:$0xf]
                  %326 = vst [vmem:[%s316 + $0x10] sm:$0xf] %v325
                  %v327 = vld [vmem:[%s315 + $0x50] sm:$0xf]
                  %328 = vst [vmem:[%s316 + $0x14] sm:$0xf] %v327
                  %v329 = vld [vmem:[%s315 + $0x60] sm:$0xf]
                  %330 = vst [vmem:[%s316 + $0x18] sm:$0xf] %v329
                  %v331 = vld [vmem:[%s315 + $0x70] sm:$0xf]
                  %332 = vst [vmem:[%s316 + $0x1c] sm:$0xf] %v331
                  %v333 = vld [vmem:[%s315 + $0x80] sm:$0xf]
                  %334 = vst [vmem:[%s316 + $0x20] sm:$0xf] %v333
                  %v335 = vld [vmem:[%s315 + $0x90] sm:$0xf]
                  %336 = vst [vmem:[%s316 + $0x24] sm:$0xf] %v335
                  %v337 = vld [vmem:[%s315 + $0xa0] sm:$0xf]
                  %338 = vst [vmem:[%s316 + $0x28] sm:$0xf] %v337
                  %v339 = vld [vmem:[%s315 + $0xb0] sm:$0xf]
                  %340 = vst [vmem:[%s316 + $0x2c] sm:$0xf] %v339
                  %v341 = vld [vmem:[%s315 + $0xc0] sm:$0xf]
                  %342 = vst [vmem:[%s316 + $0x30] sm:$0xf] %v341
                  %v343 = vld [vmem:[%s315 + $0xd0] sm:$0xf]
                  %344 = vst [vmem:[%s316 + $0x34] sm:$0xf] %v343
                  %v345 = vld [vmem:[%s315 + $0xe0] sm:$0xf]
                  %346 = vst [vmem:[%s316 + $0x38] sm:$0xf] %v345
                  %v347 = vld [vmem:[%s315 + $0xf0] sm:$0xf]
                  %348 = vst [vmem:[%s316 + $0x3c] sm:$0xf] %v347
                $region100: #{bilstm_model_forward.9} parent=87 // loop_footer
                  %s314 = sadd.s32 1, %s310
                $region101: #{bilstm_model_forward.9} parent=87 // loop_footer_branch
                  %309 = sbr.rel target = $region97
                $region102: #{bilstm_model_forward.9} parent=87 // loop_exit
                  _
              $region88: #{bilstm_model_forward.9} parent=72 // pred_fallthru
                _
            $region73: #{bilstm_model_forward.9} parent=68 // pred_fallthru
              _
            // Predicated region
            $region74: #{bilstm_model_forward.9} parent=68 // pred_check
              _
            $region75: #{bilstm_model_forward.9} parent=68 // pred_check_branch
              %256 = sbr.rel (0) target = $region77
            $region76: #{bilstm_model_forward.9} parent=68 // pred_region
              loop: start=0, step=1, limit=1
              $region78: #{bilstm_model_forward.9} parent=76 // loop_pre_header
                _
              $region79: #{bilstm_model_forward.9} parent=76 // loop_header
                %s259 = sphi 0, %s263
                %p260 = scmp.ge.s32.totalorder %s259, 1
                %s264 = sphi %s250, %s250
                %s265 = sphi %s246, %s246
              $region80: #{bilstm_model_forward.9} parent=76 // loop_header_branch
                %262 = sbr.rel (%p260) target = $region84
              $region81: #{bilstm_model_forward.9} parent=76 // loop_body
                %v266 = vld [vmem:[%s264] sm:$0xf]
                %267 = vst [vmem:[%s265] sm:$0xf] %v266
                %v268 = vld [vmem:[%s264 + $0x10] sm:$0xf]
                %269 = vst [vmem:[%s265 + $0x4] sm:$0xf] %v268
                %v270 = vld [vmem:[%s264 + $0x20] sm:$0xf]
                %271 = vst [vmem:[%s265 + $0x8] sm:$0xf] %v270
                %v272 = vld [vmem:[%s264 + $0x30] sm:$0xf]
                %273 = vst [vmem:[%s265 + $0xc] sm:$0xf] %v272
                %v274 = vld [vmem:[%s264 + $0x40] sm:$0xf]
                %275 = vst [vmem:[%s265 + $0x10] sm:$0xf] %v274
                %v276 = vld [vmem:[%s264 + $0x50] sm:$0xf]
                %277 = vst [vmem:[%s265 + $0x14] sm:$0xf] %v276
                %v278 = vld [vmem:[%s264 + $0x60] sm:$0xf]
                %279 = vst [vmem:[%s265 + $0x18] sm:$0xf] %v278
                %v280 = vld [vmem:[%s264 + $0x70] sm:$0xf]
                %281 = vst [vmem:[%s265 + $0x1c] sm:$0xf] %v280
                %v282 = vld [vmem:[%s264 + $0x80] sm:$0xf]
                %283 = vst [vmem:[%s265 + $0x20] sm:$0xf] %v282
                %v284 = vld [vmem:[%s264 + $0x90] sm:$0xf]
                %285 = vst [vmem:[%s265 + $0x24] sm:$0xf] %v284
                %v286 = vld [vmem:[%s264 + $0xa0] sm:$0xf]
                %287 = vst [vmem:[%s265 + $0x28] sm:$0xf] %v286
                %v288 = vld [vmem:[%s264 + $0xb0] sm:$0xf]
                %289 = vst [vmem:[%s265 + $0x2c] sm:$0xf] %v288
                %v290 = vld [vmem:[%s264 + $0xc0] sm:$0xf]
                %291 = vst [vmem:[%s265 + $0x30] sm:$0xf] %v290
                %v292 = vld [vmem:[%s264 + $0xd0] sm:$0xf]
                %293 = vst [vmem:[%s265 + $0x34] sm:$0xf] %v292
                %v294 = vld [vmem:[%s264 + $0xe0] sm:$0xf]
                %295 = vst [vmem:[%s265 + $0x38] sm:$0xf] %v294
                %v296 = vld [vmem:[%s264 + $0xf0] sm:$0xf]
                %297 = vst [vmem:[%s265 + $0x3c] sm:$0xf] %v296
              $region82: #{bilstm_model_forward.9} parent=76 // loop_footer
                %s263 = sadd.s32 1, %s259
              $region83: #{bilstm_model_forward.9} parent=76 // loop_footer_branch
                %258 = sbr.rel target = $region79
              $region84: #{bilstm_model_forward.9} parent=76 // loop_exit
                _
            $region77: #{bilstm_model_forward.9} parent=68 // pred_fallthru
              _
          $region69: #{bilstm_model_forward.9} parent=64 // pred_fallthru
            _
          %349 = vnop
        $region65: #{bilstm_model_forward.9} parent=19 // pred_fallthru
          _
      $region20: #{bilstm_model_forward.9} parent=5 // pred_fallthru
        _
      %p350 = scmp.le.s32.totalorder 1, %s9
      %p351 = scmp.lt.s32.totalorder %s9, 3
      %p352 = pnand %p350, %p351
      %p353 = pneg %p352
      // Predicated region
      $region103: #{bilstm_model_forward.9} parent=5 // pred_check
        _
      $region104: #{bilstm_model_forward.9} parent=5 // pred_check_branch
        %355 = sbr.rel (%p352) target = $region106
      $region105: #{bilstm_model_forward.9} parent=5 // pred_region
        %s356 = ssub.s32 %s9, 1
        %s357 = sand.u32 %s22, 1
        %s358 = sand.u32 %s22, 1
        %s359 = smul.addr %s358, 64
        %s360 = scalar_lea.vmem [#allocation2], %s359
        // Predicated region
        $region107: #{bilstm_model_forward.9} parent=105 // pred_check
          %p361 = pneg %p35
        $region108: #{bilstm_model_forward.9} parent=105 // pred_check_branch
          %363 = sbr.rel (%p361) target = $region110
        $region109: #{bilstm_model_forward.9} parent=105 // pred_region
          _
        $region110: #{bilstm_model_forward.9} parent=105 // pred_fallthru
          _
        %s364 = sand.u32 %s48, 1
        %s365 = sand.u32 %s48, 1
        %s366 = smul.addr %s365, 64
        %s367 = scalar_lea.vmem [#allocation3], %s366
        // Predicated region
        $region111: #{bilstm_model_forward.9} parent=105 // pred_check
          %p368 = pneg %p61
        $region112: #{bilstm_model_forward.9} parent=105 // pred_check_branch
          %370 = sbr.rel (%p368) target = $region114
        $region113: #{bilstm_model_forward.9} parent=105 // pred_region
          _
        $region114: #{bilstm_model_forward.9} parent=105 // pred_fallthru
          _
        %s371 = sand.u32 %s22, 1
        %s372 = sand.u32 %s22, 1
        %s373 = smul.addr %s372, 64
        %s374 = scalar_lea.vmem [#allocation2], %s373
        %p375 = pneg %p35
        %p376 = pneg %p32
        %s377 = sand.u32 %s48, 1
        %s378 = sand.u32 %s48, 1
        %s379 = smul.addr %s378, 64
        %s380 = scalar_lea.vmem [#allocation3], %s379
        %p381 = pneg %p61
        %p382 = pneg %p58
        %p383 = pneg %p82
        %p384 = pneg %p79
        %p385 = pneg %p108
        %p386 = pneg %p105
        %p387 = scmp.lt.s32.totalorder %s14, 1
        %s388 = scalar_select %p387, %s14, 1
        %s389 = smul.addr %s388, 64
        %s390 = smul.addr %s389, 8
        %s391 = scalar_lea.vmem %s3, %s390
        %p392 = scmp.lt.s32.totalorder %s14, 1
        %s393 = scalar_select %p392, %s14, 1
        %s394 = smul.addr %s393, 64
        %s395 = smul.addr %s394, 8
        %s396 = scalar_lea.vmem %s3, %s395
        %v398 = vld [vmem:[%s360] sm:$0xf]
        %v399 = vld [vmem:[%s360 + $0x4] sm:$0xf]
        %v400 = vld [vmem:[%s360 + $0x8] sm:$0xf]
        %v401 = vld [vmem:[%s360 + $0xc] sm:$0xf]
        %v402 = vld [vmem:[%s360 + $0x10] sm:$0xf]
        %v403 = vld [vmem:[%s360 + $0x14] sm:$0xf]
        %v404 = vld [vmem:[%s360 + $0x18] sm:$0xf]
        %v405 = vld [vmem:[%s360 + $0x1c] sm:$0xf]
        %v406 = vld [vmem:[%s360 + $0x20] sm:$0xf]
        %v407 = vld [vmem:[%s360 + $0x24] sm:$0xf]
        %v408 = vld [vmem:[%s360 + $0x28] sm:$0xf]
        %v409 = vld [vmem:[%s360 + $0x2c] sm:$0xf]
        %v410 = vld [vmem:[%s360 + $0x30] sm:$0xf]
        %v411 = vld [vmem:[%s360 + $0x34] sm:$0xf]
        %v412 = vld [vmem:[%s360 + $0x38] sm:$0xf]
        %v413 = vld [vmem:[%s360 + $0x3c] sm:$0xf]
        %v414 = vld [vmem:[%s367] sm:$0xf]
        %v415 = vld [vmem:[%s367 + $0x4] sm:$0xf]
        %v416 = vld [vmem:[%s367 + $0x8] sm:$0xf]
        %v417 = vld [vmem:[%s367 + $0xc] sm:$0xf]
        %v418 = vld [vmem:[%s367 + $0x10] sm:$0xf]
        %v419 = vld [vmem:[%s367 + $0x14] sm:$0xf]
        %v420 = vld [vmem:[%s367 + $0x18] sm:$0xf]
        %v421 = vld [vmem:[%s367 + $0x1c] sm:$0xf]
        %v422 = vld [vmem:[%s367 + $0x20] sm:$0xf]
        %v423 = vld [vmem:[%s367 + $0x24] sm:$0xf]
        %v424 = vld [vmem:[%s367 + $0x28] sm:$0xf]
        %v425 = vld [vmem:[%s367 + $0x2c] sm:$0xf]
        %v426 = vld [vmem:[%s367 + $0x30] sm:$0xf]
        %v427 = vld [vmem:[%s367 + $0x34] sm:$0xf]
        %v428 = vld [vmem:[%s367 + $0x38] sm:$0xf]
        %v429 = vld [vmem:[%s367 + $0x3c] sm:$0xf]
        %v430 = vld [vmem:[%s2] sm:$0xff]
        %v431 = vld [vmem:[%s2 + $0x8] sm:$0xff]
        %v432 = vld [vmem:[%s2 + $0x10] sm:$0xff]
        %v433 = vld [vmem:[%s2 + $0x18] sm:$0xff]
        %v434 = vld [vmem:[%s2 + $0x20] sm:$0xff]
        %v435 = vld [vmem:[%s2 + $0x28] sm:$0xff]
        %v436 = vld [vmem:[%s2 + $0x30] sm:$0xff]
        %v437 = vld [vmem:[%s2 + $0x38] sm:$0xff]
        %v438 = vld [vmem:[%s2 + $0x40] sm:$0xff]
        %v439 = vld [vmem:[%s2 + $0x48] sm:$0xff]
        %v440 = vld [vmem:[%s2 + $0x50] sm:$0xff]
        %v441 = vld [vmem:[%s2 + $0x58] sm:$0xff]
        %v442 = vld [vmem:[%s2 + $0x60] sm:$0xff]
        %v443 = vld [vmem:[%s2 + $0x68] sm:$0xff]
        %v444 = vld [vmem:[%s2 + $0x70] sm:$0xff]
        %v445 = vld [vmem:[%s2 + $0x78] sm:$0xff]
        %v446 = vld [vmem:[%s2 + $0x80] sm:$0xff]
        %v447 = vld [vmem:[%s2 + $0x88] sm:$0xff]
        %v448 = vld [vmem:[%s2 + $0x90] sm:$0xff]
        %v449 = vld [vmem:[%s2 + $0x98] sm:$0xff]
        %v450 = vld [vmem:[%s2 + $0xa0] sm:$0xff]
        %v451 = vld [vmem:[%s2 + $0xa8] sm:$0xff]
        %v452 = vld [vmem:[%s2 + $0xb0] sm:$0xff]
        %v453 = vld [vmem:[%s2 + $0xb8] sm:$0xff]
        %v454 = vld [vmem:[%s2 + $0xc0] sm:$0xff]
        %v455 = vld [vmem:[%s2 + $0xc8] sm:$0xff]
        %v456 = vld [vmem:[%s2 + $0xd0] sm:$0xff]
        %v457 = vld [vmem:[%s2 + $0xd8] sm:$0xff]
        %v458 = vld [vmem:[%s2 + $0xe0] sm:$0xff]
        %v459 = vld [vmem:[%s2 + $0xe8] sm:$0xff]
        %v460 = vld [vmem:[%s2 + $0xf0] sm:$0xff]
        %v461 = vld [vmem:[%s2 + $0xf8] sm:$0xff]
        %v478 = vunpack.c.l.b16 %v398
        %v479 = vunpack.c.l.b16 %v399
        %v480 = vunpack.c.l.b16 %v400
        %v481 = vunpack.c.l.b16 %v401
        %v482 = vunpack.c.l.b16 %v402
        %v483 = vunpack.c.l.b16 %v403
        %v484 = vunpack.c.l.b16 %v404
        %v485 = vunpack.c.l.b16 %v405
        %v486 = vunpack.c.l.b16 %v406
        %v487 = vunpack.c.l.b16 %v407
        %v488 = vunpack.c.l.b16 %v408
        %v489 = vunpack.c.l.b16 %v409
        %v490 = vunpack.c.l.b16 %v410
        %v491 = vunpack.c.l.b16 %v411
        %v492 = vunpack.c.l.b16 %v412
        %v493 = vunpack.c.l.b16 %v413
        %v494 = vpack.c.b16 %v479, %v478
        %v495 = vpack.c.b16 %v481, %v480
        %v496 = vpack.c.b16 %v483, %v482
        %v497 = vpack.c.b16 %v485, %v484
        %v498 = vpack.c.b16 %v487, %v486
        %v499 = vpack.c.b16 %v489, %v488
        %v500 = vpack.c.b16 %v491, %v490
        %v501 = vpack.c.b16 %v493, %v492
        %v542 = vunpack.c.l.b16 %v430
        %v543 = vunpack.c.h.b16 %v430
        %v544 = vunpack.c.l.b16 %v431
        %v545 = vunpack.c.h.b16 %v431
        %v546 = vunpack.c.l.b16 %v432
        %v547 = vunpack.c.h.b16 %v432
        %v548 = vunpack.c.l.b16 %v433
        %v549 = vunpack.c.h.b16 %v433
        %v550 = vunpack.c.l.b16 %v434
        %v551 = vunpack.c.h.b16 %v434
        %v552 = vunpack.c.l.b16 %v435
        %v553 = vunpack.c.h.b16 %v435
        %v554 = vunpack.c.l.b16 %v436
        %v555 = vunpack.c.h.b16 %v436
        %v556 = vunpack.c.l.b16 %v437
        %v557 = vunpack.c.h.b16 %v437
        %v558 = vunpack.c.l.b16 %v438
        %v559 = vunpack.c.h.b16 %v438
        %v560 = vunpack.c.l.b16 %v439
        %v561 = vunpack.c.h.b16 %v439
        %v562 = vunpack.c.l.b16 %v440
        %v563 = vunpack.c.h.b16 %v440
        %v564 = vunpack.c.l.b16 %v441
        %v565 = vunpack.c.h.b16 %v441
        %v566 = vunpack.c.l.b16 %v442
        %v567 = vunpack.c.h.b16 %v442
        %v568 = vunpack.c.l.b16 %v443
        %v569 = vunpack.c.h.b16 %v443
        %v570 = vunpack.c.l.b16 %v444
        %v571 = vunpack.c.h.b16 %v444
        %v572 = vunpack.c.l.b16 %v445
        %v573 = vunpack.c.h.b16 %v445
        %v574 = vunpack.c.l.b16 %v446
        %v575 = vunpack.c.h.b16 %v446
        %v576 = vunpack.c.l.b16 %v447
        %v577 = vunpack.c.h.b16 %v447
        %v578 = vunpack.c.l.b16 %v448
        %v579 = vunpack.c.h.b16 %v448
        %v580 = vunpack.c.l.b16 %v449
        %v581 = vunpack.c.h.b16 %v449
        %v582 = vunpack.c.l.b16 %v450
        %v583 = vunpack.c.h.b16 %v450
        %v584 = vunpack.c.l.b16 %v451
        %v585 = vunpack.c.h.b16 %v451
        %v586 = vunpack.c.l.b16 %v452
        %v587 = vunpack.c.h.b16 %v452
        %v588 = vunpack.c.l.b16 %v453
        %v589 = vunpack.c.h.b16 %v453
        %v590 = vunpack.c.l.b16 %v454
        %v591 = vunpack.c.h.b16 %v454
        %v592 = vunpack.c.l.b16 %v455
        %v593 = vunpack.c.h.b16 %v455
        %v594 = vunpack.c.l.b16 %v456
        %v595 = vunpack.c.h.b16 %v456
        %v596 = vunpack.c.l.b16 %v457
        %v597 = vunpack.c.h.b16 %v457
        %v598 = vunpack.c.l.b16 %v458
        %v599 = vunpack.c.h.b16 %v458
        %v600 = vunpack.c.l.b16 %v459
        %v601 = vunpack.c.h.b16 %v459
        %v602 = vunpack.c.l.b16 %v460
        %v603 = vunpack.c.h.b16 %v460
        %v604 = vunpack.c.l.b16 %v461
        %v605 = vunpack.c.h.b16 %v461
        %v606 = vpack.c.b16 %v546, %v542
        %v607 = vpack.c.b16 %v547, %v543
        %v608 = vpack.c.b16 %v548, %v544
        %v609 = vpack.c.b16 %v549, %v545
        %v610 = vpack.c.b16 %v554, %v550
        %v611 = vpack.c.b16 %v555, %v551
        %v612 = vpack.c.b16 %v556, %v552
        %v613 = vpack.c.b16 %v557, %v553
        %v614 = vpack.c.b16 %v562, %v558
        %v615 = vpack.c.b16 %v563, %v559
        %v616 = vpack.c.b16 %v564, %v560
        %v617 = vpack.c.b16 %v565, %v561
        %v618 = vpack.c.b16 %v570, %v566
        %v619 = vpack.c.b16 %v571, %v567
        %v620 = vpack.c.b16 %v572, %v568
        %v621 = vpack.c.b16 %v573, %v569
        %v622 = vpack.c.b16 %v578, %v574
        %v623 = vpack.c.b16 %v579, %v575
        %v624 = vpack.c.b16 %v580, %v576
        %v625 = vpack.c.b16 %v581, %v577
        %v626 = vpack.c.b16 %v586, %v582
        %v627 = vpack.c.b16 %v587, %v583
        %v628 = vpack.c.b16 %v588, %v584
        %v629 = vpack.c.b16 %v589, %v585
        %v630 = vpack.c.b16 %v594, %v590
        %v631 = vpack.c.b16 %v595, %v591
        %v632 = vpack.c.b16 %v596, %v592
        %v633 = vpack.c.b16 %v597, %v593
        %v634 = vpack.c.b16 %v602, %v598
        %v635 = vpack.c.b16 %v603, %v599
        %v636 = vpack.c.b16 %v604, %v600
        %v637 = vpack.c.b16 %v605, %v601
        %670 = vmatprep.subr.bf16.mxu0 %v607
        %671 = vmatpush1.bf16.msra.mxu0 %v606
        %672 = vmatprep.subr.bf16.mxu0 %v611
        %673 = vmatpush1.bf16.msra.mxu0 %v610
        %674 = vmatprep.subr.bf16.mxu0 %v615
        %675 = vmatpush1.bf16.msra.mxu0 %v614
        %676 = vmatprep.subr.bf16.mxu0 %v619
        %677 = vmatpush1.bf16.msra.mxu0 %v618
        %678 = vmatprep.subr.bf16.mxu0 %v623
        %679 = vmatpush1.bf16.msra.mxu0 %v622
        %680 = vmatprep.subr.bf16.mxu0 %v627
        %681 = vmatpush1.bf16.msra.mxu0 %v626
        %682 = vmatprep.subr.bf16.mxu0 %v631
        %683 = vmatpush1.bf16.msra.mxu0 %v630
        %684 = vmatprep.subr.bf16.mxu0 %v635
        %685 = vmatpush1.bf16.msra.mxu0 %v634
        %686 = vmatprep.subr.bf16.mxu0 0
        %687 = vmatpush1.bf16.msra.mxu0 0
        %688 = vmatprep.subr.bf16.mxu0 0
        %689 = vmatpush1.bf16.msra.mxu0 0
        %690 = vmatprep.subr.bf16.mxu0 0
        %691 = vmatpush1.bf16.msra.mxu0 0
        %692 = vmatprep.subr.bf16.mxu0 0
        %693 = vmatpush1.bf16.msra.mxu0 0
        %694 = vmatprep.subr.bf16.mxu0 0
        %695 = vmatpush1.bf16.msra.mxu0 0
        %696 = vmatprep.subr.bf16.mxu0 0
        %697 = vmatpush1.bf16.msra.mxu0 0
        %698 = vmatprep.subr.bf16.mxu0 0
        %699 = vmatpush1.bf16.msra.mxu0 0
        %700 = vmatprep.subr.bf16.mxu0 0
        %701 = vmatpush1.bf16.msra.mxu0 0
        %702 = vmatprep.mubr.bf16.mxu0 0
        %703 = vmatmul.mubr.bf16.gmra.mrb[0].mxu0 %v494
        %v704 = vpop.f32.mrb[0].mxu0
        %v705 = vadd.f32 0.0, %v704
        %v706 = vpop.f32.mrb[0].mxu0
        %v707 = vadd.f32 0.0, %v706
        %v708 = vpop.f32.mrb[0].mxu0
        %v709 = vadd.f32 0.0, %v708
        %v710 = vpop.f32.mrb[0].mxu0
        %v711 = vadd.f32 0.0, %v710
        %712 = vmatprep.mubr.bf16.mxu0 0
        %713 = vmatmul.mubr.bf16.gmra.mrb[0].mxu0 %v495
        %v714 = vpop.f32.mrb[0].mxu0
        %v715 = vadd.f32 0.0, %v714
        %v716 = vpop.f32.mrb[0].mxu0
        %v717 = vadd.f32 0.0, %v716
        %v718 = vpop.f32.mrb[0].mxu0
        %v719 = vadd.f32 0.0, %v718
        %v720 = vpop.f32.mrb[0].mxu0
        %v721 = vadd.f32 0.0, %v720
        %722 = vmatprep.mubr.bf16.mxu0 0
        %723 = vmatmul.mubr.bf16.gmra.mrb[0].mxu0 %v496
        %v724 = vpop.f32.mrb[0].mxu0
        %v725 = vadd.f32 0.0, %v724
        %v726 = vpop.f32.mrb[0].mxu0
        %v727 = vadd.f32 0.0, %v726
        %v728 = vpop.f32.mrb[0].mxu0
        %v729 = vadd.f32 0.0, %v728
        %v730 = vpop.f32.mrb[0].mxu0
        %v731 = vadd.f32 0.0, %v730
        %732 = vmatprep.mubr.bf16.mxu0 0
        %733 = vmatmul.mubr.bf16.gmra.mrb[0].mxu0 %v497
        %v734 = vpop.f32.mrb[0].mxu0
        %v735 = vadd.f32 0.0, %v734
        %v736 = vpop.f32.mrb[0].mxu0
        %v737 = vadd.f32 0.0, %v736
        %v738 = vpop.f32.mrb[0].mxu0
        %v739 = vadd.f32 0.0, %v738
        %v740 = vpop.f32.mrb[0].mxu0
        %v741 = vadd.f32 0.0, %v740
        %742 = vmatprep.mubr.bf16.mxu0 0
        %743 = vmatmul.mubr.bf16.gmra.mrb[0].mxu0 %v498
        %v744 = vpop.f32.mrb[0].mxu0
        %v745 = vadd.f32 0.0, %v744
        %v746 = vpop.f32.mrb[0].mxu0
        %v747 = vadd.f32 0.0, %v746
        %v748 = vpop.f32.mrb[0].mxu0
        %v749 = vadd.f32 0.0, %v748
        %v750 = vpop.f32.mrb[0].mxu0
        %v751 = vadd.f32 0.0, %v750
        %752 = vmatprep.mubr.bf16.mxu0 0
        %753 = vmatmul.mubr.bf16.gmra.mrb[0].mxu0 %v499
        %v754 = vpop.f32.mrb[0].mxu0
        %v755 = vadd.f32 0.0, %v754
        %v756 = vpop.f32.mrb[0].mxu0
        %v757 = vadd.f32 0.0, %v756
        %v758 = vpop.f32.mrb[0].mxu0
        %v759 = vadd.f32 0.0, %v758
        %v760 = vpop.f32.mrb[0].mxu0
        %v761 = vadd.f32 0.0, %v760
        %762 = vmatprep.mubr.bf16.mxu0 0
        %763 = vmatmul.mubr.bf16.gmra.mrb[0].mxu0 %v500
        %v764 = vpop.f32.mrb[0].mxu0
        %v765 = vadd.f32 0.0, %v764
        %v766 = vpop.f32.mrb[0].mxu0
        %v767 = vadd.f32 0.0, %v766
        %v768 = vpop.f32.mrb[0].mxu0
        %v769 = vadd.f32 0.0, %v768
        %v770 = vpop.f32.mrb[0].mxu0
        %v771 = vadd.f32 0.0, %v770
        %772 = vmatprep.mubr.bf16.mxu0 0
        %773 = vmatmul.mubr.bf16.gmra.mrb[0].mxu0 %v501
        %v774 = vpop.f32.mrb[0].mxu0
        %v775 = vadd.f32 0.0, %v774
        %v776 = vpop.f32.mrb[0].mxu0
        %v777 = vadd.f32 0.0, %v776
        %v778 = vpop.f32.mrb[0].mxu0
        %v779 = vadd.f32 0.0, %v778
        %v780 = vpop.f32.mrb[0].mxu0
        %v781 = vadd.f32 0.0, %v780
        %782 = vdwg.mxu0
        %783 = vmatprep.subr.bf16.mxu0 %v609
        %784 = vmatpush1.bf16.msra.mxu0 %v608
        %785 = vmatprep.subr.bf16.mxu0 %v613
        %786 = vmatpush1.bf16.msra.mxu0 %v612
        %787 = vmatprep.subr.bf16.mxu0 %v617
        %788 = vmatpush1.bf16.msra.mxu0 %v616
        %789 = vmatprep.subr.bf16.mxu0 %v621
        %790 = vmatpush1.bf16.msra.mxu0 %v620
        %791 = vmatprep.subr.bf16.mxu0 %v625
        %792 = vmatpush1.bf16.msra.mxu0 %v624
        %793 = vmatprep.subr.bf16.mxu0 %v629
        %794 = vmatpush1.bf16.msra.mxu0 %v628
        %795 = vmatprep.subr.bf16.mxu0 %v633
        %796 = vmatpush1.bf16.msra.mxu0 %v632
        %797 = vmatprep.subr.bf16.mxu0 %v637
        %798 = vmatpush1.bf16.msra.mxu0 %v636
        %799 = vmatprep.subr.bf16.mxu0 0
        %800 = vmatpush1.bf16.msra.mxu0 0
        %801 = vmatprep.subr.bf16.mxu0 0
        %802 = vmatpush1.bf16.msra.mxu0 0
        %803 = vmatprep.subr.bf16.mxu0 0
        %804 = vmatpush1.bf16.msra.mxu0 0
        %805 = vmatprep.subr.bf16.mxu0 0
        %806 = vmatpush1.bf16.msra.mxu0 0
        %807 = vmatprep.subr.bf16.mxu0 0
        %808 = vmatpush1.bf16.msra.mxu0 0
        %809 = vmatprep.subr.bf16.mxu0 0
        %810 = vmatpush1.bf16.msra.mxu0 0
        %811 = vmatprep.subr.bf16.mxu0 0
        %812 = vmatpush1.bf16.msra.mxu0 0
        %813 = vmatprep.subr.bf16.mxu0 0
        %814 = vmatpush1.bf16.msra.mxu0 0
        %815 = vmatprep.mubr.bf16.mxu0 0
        %816 = vmatmul.mubr.bf16.gmra.mrb[0].mxu0 %v494
        %v817 = vpop.f32.mrb[0].mxu0
        %v818 = vadd.f32 0.0, %v817
        %v819 = vpop.f32.mrb[0].mxu0
        %v820 = vadd.f32 0.0, %v819
        %v821 = vpop.f32.mrb[0].mxu0
        %v822 = vadd.f32 0.0, %v821
        %v823 = vpop.f32.mrb[0].mxu0
        %v824 = vadd.f32 0.0, %v823
        %825 = vmatprep.mubr.bf16.mxu0 0
        %826 = vmatmul.mubr.bf16.gmra.mrb[0].mxu0 %v495
        %v827 = vpop.f32.mrb[0].mxu0
        %v828 = vadd.f32 0.0, %v827
        %v829 = vpop.f32.mrb[0].mxu0
        %v830 = vadd.f32 0.0, %v829
        %v831 = vpop.f32.mrb[0].mxu0
        %v832 = vadd.f32 0.0, %v831
        %v833 = vpop.f32.mrb[0].mxu0
        %v834 = vadd.f32 0.0, %v833
        %835 = vmatprep.mubr.bf16.mxu0 0
        %836 = vmatmul.mubr.bf16.gmra.mrb[0].mxu0 %v496
        %v837 = vpop.f32.mrb[0].mxu0
        %v838 = vadd.f32 0.0, %v837
        %v839 = vpop.f32.mrb[0].mxu0
        %v840 = vadd.f32 0.0, %v839
        %v841 = vpop.f32.mrb[0].mxu0
        %v842 = vadd.f32 0.0, %v841
        %v843 = vpop.f32.mrb[0].mxu0
        %v844 = vadd.f32 0.0, %v843
        %845 = vmatprep.mubr.bf16.mxu0 0
        %846 = vmatmul.mubr.bf16.gmra.mrb[0].mxu0 %v497
        %v847 = vpop.f32.mrb[0].mxu0
        %v848 = vadd.f32 0.0, %v847
        %v849 = vpop.f32.mrb[0].mxu0
        %v850 = vadd.f32 0.0, %v849
        %v851 = vpop.f32.mrb[0].mxu0
        %v852 = vadd.f32 0.0, %v851
        %v853 = vpop.f32.mrb[0].mxu0
        %v854 = vadd.f32 0.0, %v853
        %855 = vmatprep.mubr.bf16.mxu0 0
        %856 = vmatmul.mubr.bf16.gmra.mrb[0].mxu0 %v498
        %v857 = vpop.f32.mrb[0].mxu0
        %v858 = vadd.f32 0.0, %v857
        %v859 = vpop.f32.mrb[0].mxu0
        %v860 = vadd.f32 0.0, %v859
        %v861 = vpop.f32.mrb[0].mxu0
        %v862 = vadd.f32 0.0, %v861
        %v863 = vpop.f32.mrb[0].mxu0
        %v864 = vadd.f32 0.0, %v863
        %865 = vmatprep.mubr.bf16.mxu0 0
        %866 = vmatmul.mubr.bf16.gmra.mrb[0].mxu0 %v499
        %v867 = vpop.f32.mrb[0].mxu0
        %v868 = vadd.f32 0.0, %v867
        %v869 = vpop.f32.mrb[0].mxu0
        %v870 = vadd.f32 0.0, %v869
        %v871 = vpop.f32.mrb[0].mxu0
        %v872 = vadd.f32 0.0, %v871
        %v873 = vpop.f32.mrb[0].mxu0
        %v874 = vadd.f32 0.0, %v873
        %875 = vmatprep.mubr.bf16.mxu0 0
        %876 = vmatmul.mubr.bf16.gmra.mrb[0].mxu0 %v500
        %v877 = vpop.f32.mrb[0].mxu0
        %v878 = vadd.f32 0.0, %v877
        %v879 = vpop.f32.mrb[0].mxu0
        %v880 = vadd.f32 0.0, %v879
        %v881 = vpop.f32.mrb[0].mxu0
        %v882 = vadd.f32 0.0, %v881
        %v883 = vpop.f32.mrb[0].mxu0
        %v884 = vadd.f32 0.0, %v883
        %885 = vmatprep.mubr.bf16.mxu0 0
        %886 = vmatmul.mubr.bf16.gmra.mrb[0].mxu0 %v501
        %v887 = vpop.f32.mrb[0].mxu0
        %v888 = vadd.f32 0.0, %v887
        %v889 = vpop.f32.mrb[0].mxu0
        %v890 = vadd.f32 0.0, %v889
        %v891 = vpop.f32.mrb[0].mxu0
        %v892 = vadd.f32 0.0, %v891
        %v893 = vpop.f32.mrb[0].mxu0
        %v894 = vadd.f32 0.0, %v893
        %895 = vdwg.mxu0
        %v896 = vpack.c.bf16 %v709, %v705
        %v897 = vpack.c.bf16 %v719, %v715
        %v898 = vpack.c.bf16 %v729, %v725
        %v899 = vpack.c.bf16 %v739, %v735
        %v900 = vpack.c.bf16 %v749, %v745
        %v901 = vpack.c.bf16 %v759, %v755
        %v902 = vpack.c.bf16 %v769, %v765
        %v903 = vpack.c.bf16 %v779, %v775
        %v904 = vpack.c.bf16 %v711, %v707
        %v905 = vpack.c.bf16 %v721, %v717
        %v906 = vpack.c.bf16 %v731, %v727
        %v907 = vpack.c.bf16 %v741, %v737
        %v908 = vpack.c.bf16 %v751, %v747
        %v909 = vpack.c.bf16 %v761, %v757
        %v910 = vpack.c.bf16 %v771, %v767
        %v911 = vpack.c.bf16 %v781, %v777
        %v912 = vpack.c.bf16 %v822, %v818
        %v913 = vpack.c.bf16 %v832, %v828
        %v914 = vpack.c.bf16 %v842, %v838
        %v915 = vpack.c.bf16 %v852, %v848
        %v916 = vpack.c.bf16 %v862, %v858
        %v917 = vpack.c.bf16 %v872, %v868
        %v918 = vpack.c.bf16 %v882, %v878
        %v919 = vpack.c.bf16 %v892, %v888
        %v920 = vpack.c.bf16 %v824, %v820
        %v921 = vpack.c.bf16 %v834, %v830
        %v922 = vpack.c.bf16 %v844, %v840
        %v923 = vpack.c.bf16 %v854, %v850
        %v924 = vpack.c.bf16 %v864, %v860
        %v925 = vpack.c.bf16 %v874, %v870
        %v926 = vpack.c.bf16 %v884, %v880
        %v927 = vpack.c.bf16 %v894, %v890
        %v944 = vunpack.c.l.b16 %v414
        %v945 = vunpack.c.l.b16 %v415
        %v946 = vunpack.c.l.b16 %v416
        %v947 = vunpack.c.l.b16 %v417
        %v948 = vunpack.c.l.b16 %v418
        %v949 = vunpack.c.l.b16 %v419
        %v950 = vunpack.c.l.b16 %v420
        %v951 = vunpack.c.l.b16 %v421
        %v952 = vunpack.c.l.b16 %v422
        %v953 = vunpack.c.l.b16 %v423
        %v954 = vunpack.c.l.b16 %v424
        %v955 = vunpack.c.l.b16 %v425
        %v956 = vunpack.c.l.b16 %v426
        %v957 = vunpack.c.l.b16 %v427
        %v958 = vunpack.c.l.b16 %v428
        %v959 = vunpack.c.l.b16 %v429
        %v960 = vpack.c.b16 %v945, %v944
        %v961 = vpack.c.b16 %v947, %v946
        %v962 = vpack.c.b16 %v949, %v948
        %v963 = vpack.c.b16 %v951, %v950
        %v964 = vpack.c.b16 %v953, %v952
        %v965 = vpack.c.b16 %v955, %v954
        %v966 = vpack.c.b16 %v957, %v956
        %v967 = vpack.c.b16 %v959, %v958
        %976 = vmatprep.subr.bf16.mxu0 0
        %977 = vmatpush1.bf16.xpose.msra.mxu0 %v960
        %978 = vmatprep.subr.bf16.mxu0 0
        %979 = vmatpush1.bf16.xpose.msra.mxu0 %v961
        %980 = vmatprep.subr.bf16.mxu0 0
        %981 = vmatpush1.bf16.xpose.msra.mxu0 %v962
        %982 = vmatprep.subr.bf16.mxu0 0
        %983 = vmatpush1.bf16.xpose.msra.mxu0 %v963
        %984 = vmatprep.subr.bf16.mxu0 0
        %985 = vmatpush1.bf16.xpose.msra.mxu0 %v964
        %986 = vmatprep.subr.bf16.mxu0 0
        %987 = vmatpush1.bf16.xpose.msra.mxu0 %v965
        %988 = vmatprep.subr.bf16.mxu0 0
        %989 = vmatpush1.bf16.xpose.msra.mxu0 %v966
        %990 = vmatprep.subr.bf16.mxu0 0
        %991 = vmatpush1.bf16.xpose.msra.mxu0 %v967
        %992 = vmatprep.subr.bf16.mxu0 0
        %993 = vmatpush1.bf16.xpose.msra.mxu0 0
        %994 = vmatprep.subr.bf16.mxu0 0
        %995 = vmatpush1.bf16.xpose.msra.mxu0 0
        %996 = vmatprep.subr.bf16.mxu0 0
        %997 = vmatpush1.bf16.xpose.msra.mxu0 0
        %998 = vmatprep.subr.bf16.mxu0 0
        %999 = vmatpush1.bf16.xpose.msra.mxu0 0
        %1000 = vmatprep.subr.bf16.mxu0 0
        %1001 = vmatpush1.bf16.xpose.msra.mxu0 0
        %1002 = vmatprep.subr.bf16.mxu0 0
        %1003 = vmatpush1.bf16.xpose.msra.mxu0 0
        %1004 = vmatprep.subr.bf16.mxu0 0
        %1005 = vmatpush1.bf16.xpose.msra.mxu0 0
        %1006 = vmatprep.subr.bf16.mxu0 0
        %1007 = vmatpush1.bf16.xpose.msra.mxu0 0
        %1008 = vmatprep.mubr.bf16.mxu0 0
        %1009 = vmatmul.mubr.bf16.gmra.mrb[0].mxu0 %v896
        %v1010 = vpop.f32.mrb[0].mxu0
        %v1011 = vadd.f32 0.0, %v1010
        %v1012 = vpop.f32.mrb[0].mxu0
        %v1013 = vpop.f32.mrb[0].mxu0
        %v1014 = vadd.f32 0.0, %v1013
        %v1015 = vpop.f32.mrb[0].mxu0
        %1016 = vmatprep.mubr.bf16.mxu0 0
        %1017 = vmatmul.mubr.bf16.gmra.mrb[0].mxu0 %v897
        %v1018 = vpop.f32.mrb[0].mxu0
        %v1019 = vadd.f32 0.0, %v1018
        %v1020 = vpop.f32.mrb[0].mxu0
        %v1021 = vpop.f32.mrb[0].mxu0
        %v1022 = vadd.f32 0.0, %v1021
        %v1023 = vpop.f32.mrb[0].mxu0
        %1024 = vmatprep.mubr.bf16.mxu0 0
        %1025 = vmatmul.mubr.bf16.gmra.mrb[0].mxu0 %v898
        %v1026 = vpop.f32.mrb[0].mxu0
        %v1027 = vadd.f32 0.0, %v1026
        %v1028 = vpop.f32.mrb[0].mxu0
        %v1029 = vpop.f32.mrb[0].mxu0
        %v1030 = vadd.f32 0.0, %v1029
        %v1031 = vpop.f32.mrb[0].mxu0
        %1032 = vmatprep.mubr.bf16.mxu0 0
        %1033 = vmatmul.mubr.bf16.gmra.mrb[0].mxu0 %v899
        %v1034 = vpop.f32.mrb[0].mxu0
        %v1035 = vadd.f32 0.0, %v1034
        %v1036 = vpop.f32.mrb[0].mxu0
        %v1037 = vpop.f32.mrb[0].mxu0
        %v1038 = vadd.f32 0.0, %v1037
        %v1039 = vpop.f32.mrb[0].mxu0
        %1040 = vmatprep.mubr.bf16.mxu0 0
        %1041 = vmatmul.mubr.bf16.gmra.mrb[0].mxu0 %v900
        %v1042 = vpop.f32.mrb[0].mxu0
        %v1043 = vadd.f32 0.0, %v1042
        %v1044 = vpop.f32.mrb[0].mxu0
        %v1045 = vpop.f32.mrb[0].mxu0
        %v1046 = vadd.f32 0.0, %v1045
        %v1047 = vpop.f32.mrb[0].mxu0
        %1048 = vmatprep.mubr.bf16.mxu0 0
        %1049 = vmatmul.mubr.bf16.gmra.mrb[0].mxu0 %v901
        %v1050 = vpop.f32.mrb[0].mxu0
        %v1051 = vadd.f32 0.0, %v1050
        %v1052 = vpop.f32.mrb[0].mxu0
        %v1053 = vpop.f32.mrb[0].mxu0
        %v1054 = vadd.f32 0.0, %v1053
        %v1055 = vpop.f32.mrb[0].mxu0
        %1056 = vmatprep.mubr.bf16.mxu0 0
        %1057 = vmatmul.mubr.bf16.gmra.mrb[0].mxu0 %v902
        %v1058 = vpop.f32.mrb[0].mxu0
        %v1059 = vadd.f32 0.0, %v1058
        %v1060 = vpop.f32.mrb[0].mxu0
        %v1061 = vpop.f32.mrb[0].mxu0
        %v1062 = vadd.f32 0.0, %v1061
        %v1063 = vpop.f32.mrb[0].mxu0
        %1064 = vmatprep.mubr.bf16.mxu0 0
        %1065 = vmatmul.mubr.bf16.gmra.mrb[0].mxu0 %v903
        %v1066 = vpop.f32.mrb[0].mxu0
        %v1067 = vadd.f32 0.0, %v1066
        %v1068 = vpop.f32.mrb[0].mxu0
        %v1069 = vpop.f32.mrb[0].mxu0
        %v1070 = vadd.f32 0.0, %v1069
        %v1071 = vpop.f32.mrb[0].mxu0
        %1072 = vmatprep.mubr.bf16.mxu0 0
        %1073 = vmatmul.mubr.bf16.gmra.mrb[0].mxu0 %v904
        %v1074 = vpop.f32.mrb[0].mxu0
        %v1075 = vadd.f32 0.0, %v1074
        %v1076 = vpop.f32.mrb[0].mxu0
        %v1077 = vpop.f32.mrb[0].mxu0
        %v1078 = vadd.f32 0.0, %v1077
        %v1079 = vpop.f32.mrb[0].mxu0
        %1080 = vmatprep.mubr.bf16.mxu0 0
        %1081 = vmatmul.mubr.bf16.gmra.mrb[0].mxu0 %v905
        %v1082 = vpop.f32.mrb[0].mxu0
        %v1083 = vadd.f32 0.0, %v1082
        %v1084 = vpop.f32.mrb[0].mxu0
        %v1085 = vpop.f32.mrb[0].mxu0
        %v1086 = vadd.f32 0.0, %v1085
        %v1087 = vpop.f32.mrb[0].mxu0
        %1088 = vmatprep.mubr.bf16.mxu0 0
        %1089 = vmatmul.mubr.bf16.gmra.mrb[0].mxu0 %v906
        %v1090 = vpop.f32.mrb[0].mxu0
        %v1091 = vadd.f32 0.0, %v1090
        %v1092 = vpop.f32.mrb[0].mxu0
        %v1093 = vpop.f32.mrb[0].mxu0
        %v1094 = vadd.f32 0.0, %v1093
        %v1095 = vpop.f32.mrb[0].mxu0
        %1096 = vmatprep.mubr.bf16.mxu0 0
        %1097 = vmatmul.mubr.bf16.gmra.mrb[0].mxu0 %v907
        %v1098 = vpop.f32.mrb[0].mxu0
        %v1099 = vadd.f32 0.0, %v1098
        %v1100 = vpop.f32.mrb[0].mxu0
        %v1101 = vpop.f32.mrb[0].mxu0
        %v1102 = vadd.f32 0.0, %v1101
        %v1103 = vpop.f32.mrb[0].mxu0
        %1104 = vmatprep.mubr.bf16.mxu0 0
        %1105 = vmatmul.mubr.bf16.gmra.mrb[0].mxu0 %v908
        %v1106 = vpop.f32.mrb[0].mxu0
        %v1107 = vadd.f32 0.0, %v1106
        %v1108 = vpop.f32.mrb[0].mxu0
        %v1109 = vpop.f32.mrb[0].mxu0
        %v1110 = vadd.f32 0.0, %v1109
        %v1111 = vpop.f32.mrb[0].mxu0
        %1112 = vmatprep.mubr.bf16.mxu0 0
        %1113 = vmatmul.mubr.bf16.gmra.mrb[0].mxu0 %v909
        %v1114 = vpop.f32.mrb[0].mxu0
        %v1115 = vadd.f32 0.0, %v1114
        %v1116 = vpop.f32.mrb[0].mxu0
        %v1117 = vpop.f32.mrb[0].mxu0
        %v1118 = vadd.f32 0.0, %v1117
        %v1119 = vpop.f32.mrb[0].mxu0
        %1120 = vmatprep.mubr.bf16.mxu0 0
        %1121 = vmatmul.mubr.bf16.gmra.mrb[0].mxu0 %v910
        %v1122 = vpop.f32.mrb[0].mxu0
        %v1123 = vadd.f32 0.0, %v1122
        %v1124 = vpop.f32.mrb[0].mxu0
        %v1125 = vpop.f32.mrb[0].mxu0
        %v1126 = vadd.f32 0.0, %v1125
        %v1127 = vpop.f32.mrb[0].mxu0
        %1128 = vmatprep.mubr.bf16.mxu0 0
        %1129 = vmatmul.mubr.bf16.gmra.mrb[0].mxu0 %v911
        %v1130 = vpop.f32.mrb[0].mxu0
        %v1131 = vadd.f32 0.0, %v1130
        %v1132 = vpop.f32.mrb[0].mxu0
        %v1133 = vpop.f32.mrb[0].mxu0
        %v1134 = vadd.f32 0.0, %v1133
        %v1135 = vpop.f32.mrb[0].mxu0
        %1136 = vmatprep.mubr.bf16.mxu0 0
        %1137 = vmatmul.mubr.bf16.gmra.mrb[0].mxu0 %v912
        %v1138 = vpop.f32.mrb[0].mxu0
        %v1139 = vadd.f32 0.0, %v1138
        %v1140 = vpop.f32.mrb[0].mxu0
        %v1141 = vpop.f32.mrb[0].mxu0
        %v1142 = vadd.f32 0.0, %v1141
        %v1143 = vpop.f32.mrb[0].mxu0
        %1144 = vmatprep.mubr.bf16.mxu0 0
        %1145 = vmatmul.mubr.bf16.gmra.mrb[0].mxu0 %v913
        %v1146 = vpop.f32.mrb[0].mxu0
        %v1147 = vadd.f32 0.0, %v1146
        %v1148 = vpop.f32.mrb[0].mxu0
        %v1149 = vpop.f32.mrb[0].mxu0
        %v1150 = vadd.f32 0.0, %v1149
        %v1151 = vpop.f32.mrb[0].mxu0
        %1152 = vmatprep.mubr.bf16.mxu0 0
        %1153 = vmatmul.mubr.bf16.gmra.mrb[0].mxu0 %v914
        %v1154 = vpop.f32.mrb[0].mxu0
        %v1155 = vadd.f32 0.0, %v1154
        %v1156 = vpop.f32.mrb[0].mxu0
        %v1157 = vpop.f32.mrb[0].mxu0
        %v1158 = vadd.f32 0.0, %v1157
        %v1159 = vpop.f32.mrb[0].mxu0
        %1160 = vmatprep.mubr.bf16.mxu0 0
        %1161 = vmatmul.mubr.bf16.gmra.mrb[0].mxu0 %v915
        %v1162 = vpop.f32.mrb[0].mxu0
        %v1163 = vadd.f32 0.0, %v1162
        %v1164 = vpop.f32.mrb[0].mxu0
        %v1165 = vpop.f32.mrb[0].mxu0
        %v1166 = vadd.f32 0.0, %v1165
        %v1167 = vpop.f32.mrb[0].mxu0
        %1168 = vmatprep.mubr.bf16.mxu0 0
        %1169 = vmatmul.mubr.bf16.gmra.mrb[0].mxu0 %v916
        %v1170 = vpop.f32.mrb[0].mxu0
        %v1171 = vadd.f32 0.0, %v1170
        %v1172 = vpop.f32.mrb[0].mxu0
        %v1173 = vpop.f32.mrb[0].mxu0
        %v1174 = vadd.f32 0.0, %v1173
        %v1175 = vpop.f32.mrb[0].mxu0
        %1176 = vmatprep.mubr.bf16.mxu0 0
        %1177 = vmatmul.mubr.bf16.gmra.mrb[0].mxu0 %v917
        %v1178 = vpop.f32.mrb[0].mxu0
        %v1179 = vadd.f32 0.0, %v1178
        %v1180 = vpop.f32.mrb[0].mxu0
        %v1181 = vpop.f32.mrb[0].mxu0
        %v1182 = vadd.f32 0.0, %v1181
        %v1183 = vpop.f32.mrb[0].mxu0
        %1184 = vmatprep.mubr.bf16.mxu0 0
        %1185 = vmatmul.mubr.bf16.gmra.mrb[0].mxu0 %v918
        %v1186 = vpop.f32.mrb[0].mxu0
        %v1187 = vadd.f32 0.0, %v1186
        %v1188 = vpop.f32.mrb[0].mxu0
        %v1189 = vpop.f32.mrb[0].mxu0
        %v1190 = vadd.f32 0.0, %v1189
        %v1191 = vpop.f32.mrb[0].mxu0
        %1192 = vmatprep.mubr.bf16.mxu0 0
        %1193 = vmatmul.mubr.bf16.gmra.mrb[0].mxu0 %v919
        %v1194 = vpop.f32.mrb[0].mxu0
        %v1195 = vadd.f32 0.0, %v1194
        %v1196 = vpop.f32.mrb[0].mxu0
        %v1197 = vpop.f32.mrb[0].mxu0
        %v1198 = vadd.f32 0.0, %v1197
        %v1199 = vpop.f32.mrb[0].mxu0
        %1200 = vmatprep.mubr.bf16.mxu0 0
        %1201 = vmatmul.mubr.bf16.gmra.mrb[0].mxu0 %v920
        %v1202 = vpop.f32.mrb[0].mxu0
        %v1203 = vadd.f32 0.0, %v1202
        %v1204 = vpop.f32.mrb[0].mxu0
        %v1205 = vpop.f32.mrb[0].mxu0
        %v1206 = vadd.f32 0.0, %v1205
        %v1207 = vpop.f32.mrb[0].mxu0
        %1208 = vmatprep.mubr.bf16.mxu0 0
        %1209 = vmatmul.mubr.bf16.gmra.mrb[0].mxu0 %v921
        %v1210 = vpop.f32.mrb[0].mxu0
        %v1211 = vadd.f32 0.0, %v1210
        %v1212 = vpop.f32.mrb[0].mxu0
        %v1213 = vpop.f32.mrb[0].mxu0
        %v1214 = vadd.f32 0.0, %v1213
        %v1215 = vpop.f32.mrb[0].mxu0
        %1216 = vmatprep.mubr.bf16.mxu0 0
        %1217 = vmatmul.mubr.bf16.gmra.mrb[0].mxu0 %v922
        %v1218 = vpop.f32.mrb[0].mxu0
        %v1219 = vadd.f32 0.0, %v1218
        %v1220 = vpop.f32.mrb[0].mxu0
        %v1221 = vpop.f32.mrb[0].mxu0
        %v1222 = vadd.f32 0.0, %v1221
        %v1223 = vpop.f32.mrb[0].mxu0
        %1224 = vmatprep.mubr.bf16.mxu0 0
        %1225 = vmatmul.mubr.bf16.gmra.mrb[0].mxu0 %v923
        %v1226 = vpop.f32.mrb[0].mxu0
        %v1227 = vadd.f32 0.0, %v1226
        %v1228 = vpop.f32.mrb[0].mxu0
        %v1229 = vpop.f32.mrb[0].mxu0
        %v1230 = vadd.f32 0.0, %v1229
        %v1231 = vpop.f32.mrb[0].mxu0
        %1232 = vmatprep.mubr.bf16.mxu0 0
        %1233 = vmatmul.mubr.bf16.gmra.mrb[0].mxu0 %v924
        %v1234 = vpop.f32.mrb[0].mxu0
        %v1235 = vadd.f32 0.0, %v1234
        %v1236 = vpop.f32.mrb[0].mxu0
        %v1237 = vpop.f32.mrb[0].mxu0
        %v1238 = vadd.f32 0.0, %v1237
        %v1239 = vpop.f32.mrb[0].mxu0
        %1240 = vmatprep.mubr.bf16.mxu0 0
        %1241 = vmatmul.mubr.bf16.gmra.mrb[0].mxu0 %v925
        %v1242 = vpop.f32.mrb[0].mxu0
        %v1243 = vadd.f32 0.0, %v1242
        %v1244 = vpop.f32.mrb[0].mxu0
        %v1245 = vpop.f32.mrb[0].mxu0
        %v1246 = vadd.f32 0.0, %v1245
        %v1247 = vpop.f32.mrb[0].mxu0
        %1248 = vmatprep.mubr.bf16.mxu0 0
        %1249 = vmatmul.mubr.bf16.gmra.mrb[0].mxu0 %v926
        %v1250 = vpop.f32.mrb[0].mxu0
        %v1251 = vadd.f32 0.0, %v1250
        %v1252 = vpop.f32.mrb[0].mxu0
        %v1253 = vpop.f32.mrb[0].mxu0
        %v1254 = vadd.f32 0.0, %v1253
        %v1255 = vpop.f32.mrb[0].mxu0
        %1256 = vmatprep.mubr.bf16.mxu0 0
        %1257 = vmatmul.mubr.bf16.gmra.mrb[0].mxu0 %v927
        %v1258 = vpop.f32.mrb[0].mxu0
        %v1259 = vadd.f32 0.0, %v1258
        %v1260 = vpop.f32.mrb[0].mxu0
        %v1261 = vpop.f32.mrb[0].mxu0
        %v1262 = vadd.f32 0.0, %v1261
        %v1263 = vpop.f32.mrb[0].mxu0
        %1264 = vdwg.mxu0
        %1265 = vst [vmem:[%s396] sm:$0xff] %v1011
        %1266 = vst [vmem:[%s396 + $0x8] sm:$0xff] %v1014
        %1267 = vst [vmem:[%s396 + $0x10] sm:$0xff] %v1019
        %1268 = vst [vmem:[%s396 + $0x18] sm:$0xff] %v1022
        %1269 = vst [vmem:[%s396 + $0x20] sm:$0xff] %v1027
        %1270 = vst [vmem:[%s396 + $0x28] sm:$0xff] %v1030
        %1271 = vst [vmem:[%s396 + $0x30] sm:$0xff] %v1035
        %1272 = vst [vmem:[%s396 + $0x38] sm:$0xff] %v1038
        %1273 = vst [vmem:[%s396 + $0x40] sm:$0xff] %v1043
        %1274 = vst [vmem:[%s396 + $0x48] sm:$0xff] %v1046
        %1275 = vst [vmem:[%s396 + $0x50] sm:$0xff] %v1051
        %1276 = vst [vmem:[%s396 + $0x58] sm:$0xff] %v1054
        %1277 = vst [vmem:[%s396 + $0x60] sm:$0xff] %v1059
        %1278 = vst [vmem:[%s396 + $0x68] sm:$0xff] %v1062
        %1279 = vst [vmem:[%s396 + $0x70] sm:$0xff] %v1067
        %1280 = vst [vmem:[%s396 + $0x78] sm:$0xff] %v1070
        %1281 = vst [vmem:[%s396 + $0x80] sm:$0xff] %v1075
        %1282 = vst [vmem:[%s396 + $0x88] sm:$0xff] %v1078
        %1283 = vst [vmem:[%s396 + $0x90] sm:$0xff] %v1083
        %1284 = vst [vmem:[%s396 + $0x98] sm:$0xff] %v1086
        %1285 = vst [vmem:[%s396 + $0xa0] sm:$0xff] %v1091
        %1286 = vst [vmem:[%s396 + $0xa8] sm:$0xff] %v1094
        %1287 = vst [vmem:[%s396 + $0xb0] sm:$0xff] %v1099
        %1288 = vst [vmem:[%s396 + $0xb8] sm:$0xff] %v1102
        %1289 = vst [vmem:[%s396 + $0xc0] sm:$0xff] %v1107
        %1290 = vst [vmem:[%s396 + $0xc8] sm:$0xff] %v1110
        %1291 = vst [vmem:[%s396 + $0xd0] sm:$0xff] %v1115
        %1292 = vst [vmem:[%s396 + $0xd8] sm:$0xff] %v1118
        %1293 = vst [vmem:[%s396 + $0xe0] sm:$0xff] %v1123
        %1294 = vst [vmem:[%s396 + $0xe8] sm:$0xff] %v1126
        %1295 = vst [vmem:[%s396 + $0xf0] sm:$0xff] %v1131
        %1296 = vst [vmem:[%s396 + $0xf8] sm:$0xff] %v1134
        %1297 = vst [vmem:[%s396 + $0x100] sm:$0xff] %v1139
        %1298 = vst [vmem:[%s396 + $0x108] sm:$0xff] %v1142
        %1299 = vst [vmem:[%s396 + $0x110] sm:$0xff] %v1147
        %1300 = vst [vmem:[%s396 + $0x118] sm:$0xff] %v1150
        %1301 = vst [vmem:[%s396 + $0x120] sm:$0xff] %v1155
        %1302 = vst [vmem:[%s396 + $0x128] sm:$0xff] %v1158
        %1303 = vst [vmem:[%s396 + $0x130] sm:$0xff] %v1163
        %1304 = vst [vmem:[%s396 + $0x138] sm:$0xff] %v1166
        %1305 = vst [vmem:[%s396 + $0x140] sm:$0xff] %v1171
        %1306 = vst [vmem:[%s396 + $0x148] sm:$0xff] %v1174
        %1307 = vst [vmem:[%s396 + $0x150] sm:$0xff] %v1179
        %1308 = vst [vmem:[%s396 + $0x158] sm:$0xff] %v1182
        %1309 = vst [vmem:[%s396 + $0x160] sm:$0xff] %v1187
        %1310 = vst [vmem:[%s396 + $0x168] sm:$0xff] %v1190
        %1311 = vst [vmem:[%s396 + $0x170] sm:$0xff] %v1195
        %1312 = vst [vmem:[%s396 + $0x178] sm:$0xff] %v1198
        %1313 = vst [vmem:[%s396 + $0x180] sm:$0xff] %v1203
        %1314 = vst [vmem:[%s396 + $0x188] sm:$0xff] %v1206
        %1315 = vst [vmem:[%s396 + $0x190] sm:$0xff] %v1211
        %1316 = vst [vmem:[%s396 + $0x198] sm:$0xff] %v1214
        %1317 = vst [vmem:[%s396 + $0x1a0] sm:$0xff] %v1219
        %1318 = vst [vmem:[%s396 + $0x1a8] sm:$0xff] %v1222
        %1319 = vst [vmem:[%s396 + $0x1b0] sm:$0xff] %v1227
        %1320 = vst [vmem:[%s396 + $0x1b8] sm:$0xff] %v1230
        %1321 = vst [vmem:[%s396 + $0x1c0] sm:$0xff] %v1235
        %1322 = vst [vmem:[%s396 + $0x1c8] sm:$0xff] %v1238
        %1323 = vst [vmem:[%s396 + $0x1d0] sm:$0xff] %v1243
        %1324 = vst [vmem:[%s396 + $0x1d8] sm:$0xff] %v1246
        %1325 = vst [vmem:[%s396 + $0x1e0] sm:$0xff] %v1251
        %1326 = vst [vmem:[%s396 + $0x1e8] sm:$0xff] %v1254
        %1327 = vst [vmem:[%s396 + $0x1f0] sm:$0xff] %v1259
        %1328 = vst [vmem:[%s396 + $0x1f8] sm:$0xff] %v1262
        %p1329 = scmp.lt.s32.totalorder %s14, 1
        %s1330 = scalar_select %p1329, %s14, 1
        %s1331 = smul.addr %s1330, 64
        %s1332 = smul.addr %s1331, 8
        %s1333 = scalar_lea.vmem %s3, %s1332
        // Predicated region
        $region115: #{bilstm_model_forward.9} parent=105 // pred_check
          %p1334 = pneg %p105
        $region116: #{bilstm_model_forward.9} parent=105 // pred_check_branch
          %1336 = sbr.rel (%p1334) target = $region118
        $region117: #{bilstm_model_forward.9} parent=105 // pred_region
          _
        $region118: #{bilstm_model_forward.9} parent=105 // pred_fallthru
          _
      $region106: #{bilstm_model_forward.9} parent=5 // pred_fallthru
        _
      %p1337 = scmp.le.s32.totalorder 2, %s9
      // Predicated region
      $region119: #{bilstm_model_forward.9} parent=5 // pred_check
        %p1338 = pneg %p1337
      $region120: #{bilstm_model_forward.9} parent=5 // pred_check_branch
        %1340 = sbr.rel (%p1338) target = $region122
      $region121: #{bilstm_model_forward.9} parent=5 // pred_region
        %s1341 = ssub.s32 %s9, 2
        // Predicated region
        $region123: #{bilstm_model_forward.9} parent=121 // pred_check
          %p1342 = pneg %p111
        $region124: #{bilstm_model_forward.9} parent=121 // pred_check_branch
          %1344 = sbr.rel (%p1342) target = $region126
        $region125: #{bilstm_model_forward.9} parent=121 // pred_region
          %p1345 = scmp.lt.s32.totalorder %s15, 1
          %s1346 = scalar_select %p1345, %s15, 1
          %s1347 = smul.addr %s1346, 64
          %s1348 = smul.addr %s1347, 8
          %s1349 = scalar_lea.vmem %s3, %s1348
        $region126: #{bilstm_model_forward.9} parent=121 // pred_fallthru
          _
      $region122: #{bilstm_model_forward.9} parent=5 // pred_fallthru
        _
    $region6: #{bilstm_model_forward.9} parent=1 // loop_footer
      %s13 = sadd.s32 1, %s9
    $region7: #{bilstm_model_forward.9} parent=1 // loop_footer_branch
      %8 = sbr.rel target = $region3
    $region8: #{bilstm_model_forward.9} parent=1 // loop_exit
      _

// kernel: bilstm_model_forward.6
$region0: #{bilstm_model_forward.6}
  #allocation0 [shape = 'u32[]', space=smem, size = 0x4, offset = 0x4, fixed_abs, tag = 'smem constant byte address 0x4 - core index']
  #allocation1 [shape = 'u32[144,128]{1,0:T(1,128)}', space=vmem, size = 0x12000, scoped, tag = 'internal scratch']
  #allocation2 [shape = 'f32[2,256]{1,0:T(2,128)}', space=vmem, size = 0x800, scoped, tag = 'scratch operand']
  #allocation3 [shape = 'f32[2,256]{1,0:T(2,128)}', space=vmem, size = 0x800, scoped, tag = 'scratch operand']
  %s0 = inlined_call_operand.vmem [shape: bf16[2,8,1024], index: 0, kind: input, shape index: {}, may-alias: {0,1}]
  %s1 = inlined_call_operand.vmem [shape: bf16[2,8,1024], index: 1, kind: input, shape index: {}, may-alias: {0,1}]
  %s2 = inlined_call_operand.vmem [shape: bf16[256,1024], index: 2, kind: input, shape index: {}]
  %s3 = inlined_call_operand.vmem [shape: bf16[2,8,128], index: 3, kind: output, shape index: {0}]
  %s4 = inlined_call_operand.vmem [shape: bf16[2,8,128], index: 4, kind: output, shape index: {1}]
  %5 = xla_tuple %s3, %s4
  %s6 = sld [smem:[#allocation0]]
  $region80: #{bilstm_model_forward.6} parent=0
    _
  %s8 = ssub.s32 1, %s6
  %s9 = scalar_select 0, %s8, %s6
  $region1: #{bilstm_model_forward.6} parent=0
    #allocation4 [shape = 'u8[16384]{0}', space=vmem, size = 0x4000, scoped, tag = 'input window, operand 0, single buffered']
    #allocation5 [shape = 'u8[16384]{0}', space=vmem, size = 0x4000, scoped, tag = 'input window, operand 1, single buffered']
    // Predicated region
    $region2: #{bilstm_model_forward.6} parent=1 // pred_check
      _
    $region3: #{bilstm_model_forward.6} parent=1 // pred_check_branch
      %11 = sbr.rel (0) target = $region5
    $region4: #{bilstm_model_forward.6} parent=1 // pred_region
      // Predicated region
      $region6: #{bilstm_model_forward.6} parent=4 // pred_check
        _
      $region7: #{bilstm_model_forward.6} parent=4 // pred_check_branch
        %13 = sbr.rel (0) target = $region9
      $region8: #{bilstm_model_forward.6} parent=4 // pred_region
        // Predicated region
        $region10: #{bilstm_model_forward.6} parent=8 // pred_check
          _
        $region11: #{bilstm_model_forward.6} parent=8 // pred_check_branch
          %15 = sbr.rel (0) target = $region13
        $region12: #{bilstm_model_forward.6} parent=8 // pred_region
          loop: start=0, step=1, limit=1
          $region14: #{bilstm_model_forward.6} parent=12 // loop_pre_header
            _
          $region15: #{bilstm_model_forward.6} parent=12 // loop_header
            %s17 = sphi 0, %s21
            %p18 = scmp.ge.s32.totalorder %s17, 1
            %s22 = sphi %s0, %s0
            %s23 = sphi [#allocation4], [#allocation4]
          $region16: #{bilstm_model_forward.6} parent=12 // loop_header_branch
            %20 = sbr.rel (%p18) target = $region20
          $region17: #{bilstm_model_forward.6} parent=12 // loop_body
            %v24 = vld [vmem:[%s22] sm:$0xff]
            %25 = vst [vmem:[%s23] sm:$0xff] %v24
            %v26 = vld [vmem:[%s22 + $0x8] sm:$0xff]
            %27 = vst [vmem:[%s23 + $0x8] sm:$0xff] %v26
            %v28 = vld [vmem:[%s22 + $0x20] sm:$0xff]
            %29 = vst [vmem:[%s23 + $0x10] sm:$0xff] %v28
            %v30 = vld [vmem:[%s22 + $0x28] sm:$0xff]
            %31 = vst [vmem:[%s23 + $0x18] sm:$0xff] %v30
          $region18: #{bilstm_model_forward.6} parent=12 // loop_footer
            %s21 = sadd.s32 1, %s17
          $region19: #{bilstm_model_forward.6} parent=12 // loop_footer_branch
            %16 = sbr.rel target = $region15
          $region20: #{bilstm_model_forward.6} parent=12 // loop_exit
            _
        $region13: #{bilstm_model_forward.6} parent=8 // pred_fallthru
          _
        // Predicated region
        $region21: #{bilstm_model_forward.6} parent=8 // pred_check
          _
        $region22: #{bilstm_model_forward.6} parent=8 // pred_check_branch
          %33 = sbr.rel target = $region24
        $region23: #{bilstm_model_forward.6} parent=8 // pred_region
          _
        $region24: #{bilstm_model_forward.6} parent=8 // pred_fallthru
          _
      $region9: #{bilstm_model_forward.6} parent=4 // pred_fallthru
        _
      %34 = vnop
    $region5: #{bilstm_model_forward.6} parent=1 // pred_fallthru
      _
    // Predicated region
    $region25: #{bilstm_model_forward.6} parent=1 // pred_check
      _
    $region26: #{bilstm_model_forward.6} parent=1 // pred_check_branch
      %36 = sbr.rel (0) target = $region28
    $region27: #{bilstm_model_forward.6} parent=1 // pred_region
      %s37 = ssub.s32 0, 0
      %s38 = smul.addr %s37, 8
      %s39 = sadd.s32 4, %s38
      %s40 = smul.addr %s39, 4
      %s41 = scalar_lea.vmem %s1, %s40
      // Predicated region
      $region29: #{bilstm_model_forward.6} parent=27 // pred_check
        _
      $region30: #{bilstm_model_forward.6} parent=27 // pred_check_branch
        %43 = sbr.rel (0) target = $region32
      $region31: #{bilstm_model_forward.6} parent=27 // pred_region
        // Predicated region
        $region33: #{bilstm_model_forward.6} parent=31 // pred_check
          _
        $region34: #{bilstm_model_forward.6} parent=31 // pred_check_branch
          %45 = sbr.rel (0) target = $region36
        $region35: #{bilstm_model_forward.6} parent=31 // pred_region
          loop: start=0, step=1, limit=1
          $region37: #{bilstm_model_forward.6} parent=35 // loop_pre_header
            _
          $region38: #{bilstm_model_forward.6} parent=35 // loop_header
            %s47 = sphi 0, %s51
            %p48 = scmp.ge.s32.totalorder %s47, 1
            %s52 = sphi %s41, %s41
            %s53 = sphi [#allocation5], [#allocation5]
          $region39: #{bilstm_model_forward.6} parent=35 // loop_header_branch
            %50 = sbr.rel (%p48) target = $region43
          $region40: #{bilstm_model_forward.6} parent=35 // loop_body
            %v54 = vld [vmem:[%s52] sm:$0xff]
            %55 = vst [vmem:[%s53] sm:$0xff] %v54
            %v56 = vld [vmem:[%s52 + $0x8] sm:$0xff]
            %57 = vst [vmem:[%s53 + $0x8] sm:$0xff] %v56
            %v58 = vld [vmem:[%s52 + $0x20] sm:$0xff]
            %59 = vst [vmem:[%s53 + $0x10] sm:$0xff] %v58
            %v60 = vld [vmem:[%s52 + $0x28] sm:$0xff]
            %61 = vst [vmem:[%s53 + $0x18] sm:$0xff] %v60
          $region41: #{bilstm_model_forward.6} parent=35 // loop_footer
            %s51 = sadd.s32 1, %s47
          $region42: #{bilstm_model_forward.6} parent=35 // loop_footer_branch
            %46 = sbr.rel target = $region38
          $region43: #{bilstm_model_forward.6} parent=35 // loop_exit
            _
        $region36: #{bilstm_model_forward.6} parent=31 // pred_fallthru
          _
        // Predicated region
        $region44: #{bilstm_model_forward.6} parent=31 // pred_check
          _
        $region45: #{bilstm_model_forward.6} parent=31 // pred_check_branch
          %63 = sbr.rel target = $region47
        $region46: #{bilstm_model_forward.6} parent=31 // pred_region
          _
        $region47: #{bilstm_model_forward.6} parent=31 // pred_fallthru
          _
      $region32: #{bilstm_model_forward.6} parent=27 // pred_fallthru
        _
      %64 = vnop
    $region28: #{bilstm_model_forward.6} parent=1 // pred_fallthru
      _
    // Predicated region
    $region48: #{bilstm_model_forward.6} parent=1 // pred_check
      _
    $region49: #{bilstm_model_forward.6} parent=1 // pred_check_branch
      %66 = sbr.rel (0) target = $region51
    $region50: #{bilstm_model_forward.6} parent=1 // pred_region
      _
    $region51: #{bilstm_model_forward.6} parent=1 // pred_fallthru
      _
    // Predicated region
    $region52: #{bilstm_model_forward.6} parent=1 // pred_check
      _
    $region53: #{bilstm_model_forward.6} parent=1 // pred_check_branch
      %68 = sbr.rel (0) target = $region55
    $region54: #{bilstm_model_forward.6} parent=1 // pred_region
      _
    $region55: #{bilstm_model_forward.6} parent=1 // pred_fallthru
      _
    // Predicated region
    $region56: #{bilstm_model_forward.6} parent=1 // pred_check
      _
    $region57: #{bilstm_model_forward.6} parent=1 // pred_check_branch
      %70 = sbr.rel (0) target = $region59
    $region58: #{bilstm_model_forward.6} parent=1 // pred_region
      _
    $region59: #{bilstm_model_forward.6} parent=1 // pred_fallthru
      _
    %s71 = ssub.s32 0, 0
    %p72 = scmp.lt.s32.totalorder %s71, 0
    %s73 = scalar_select %p72, %s71, 0
    %s74 = smul.addr %s73, 4
    %s75 = scalar_lea.vmem %s4, %s74
    %s76 = ssub.s32 0, 0
    %s77 = ssub.s32 0, 0
    %p78 = scmp.lt.s32.totalorder %s77, 0
    %s79 = scalar_select %p78, %s77, 0
    %s80 = smul.addr %s79, 4
    %s81 = scalar_lea.vmem %s4, %s80
    %s82 = ssub.s32 0, 0
    %p83 = scmp.eq.s32.totalorder 0, 0
    // Predicated region
    $region60: #{bilstm_model_forward.6} parent=1 // pred_check
      %p84 = pneg %p83
    $region61: #{bilstm_model_forward.6} parent=1 // pred_check_branch
      %86 = sbr.rel (%p84) target = $region63
    $region62: #{bilstm_model_forward.6} parent=1 // pred_region
      %87 = vst [vmem:[#allocation2] sm:$0xf] 0.0
      %88 = vst [vmem:[#allocation3] sm:$0xf] 0.0
    $region63: #{bilstm_model_forward.6} parent=1 // pred_fallthru
      _
    %v89 = vld [vmem:[%s2] sm:$0xff]
    %v90 = vld [vmem:[%s2 + $0x8] sm:$0xff]
    %v91 = vld [vmem:[%s2 + $0x10] sm:$0xff]
    %v92 = vld [vmem:[%s2 + $0x18] sm:$0xff]
    %v93 = vld [vmem:[%s2 + $0x20] sm:$0xff]
    %v94 = vld [vmem:[%s2 + $0x28] sm:$0xff]
    %v95 = vld [vmem:[%s2 + $0x30] sm:$0xff]
    %v96 = vld [vmem:[%s2 + $0x38] sm:$0xff]
    %v97 = vld [vmem:[%s2 + $0x40] sm:$0xff]
    %v98 = vld [vmem:[%s2 + $0x48] sm:$0xff]
    %v99 = vld [vmem:[%s2 + $0x50] sm:$0xff]
    %v100 = vld [vmem:[%s2 + $0x58] sm:$0xff]
    %v101 = vld [vmem:[%s2 + $0x60] sm:$0xff]
    %v102 = vld [vmem:[%s2 + $0x68] sm:$0xff]
    %v103 = vld [vmem:[%s2 + $0x70] sm:$0xff]
    %v104 = vld [vmem:[%s2 + $0x78] sm:$0xff]
    %v105 = vld [vmem:[%s2 + $0x80] sm:$0xff]
    %v106 = vld [vmem:[%s2 + $0x88] sm:$0xff]
    %v107 = vld [vmem:[%s2 + $0x90] sm:$0xff]
    %v108 = vld [vmem:[%s2 + $0x98] sm:$0xff]
    %v109 = vld [vmem:[%s2 + $0xa0] sm:$0xff]
    %v110 = vld [vmem:[%s2 + $0xa8] sm:$0xff]
    %v111 = vld [vmem:[%s2 + $0xb0] sm:$0xff]
    %v112 = vld [vmem:[%s2 + $0xb8] sm:$0xff]
    %v113 = vld [vmem:[%s2 + $0xc0] sm:$0xff]
    %v114 = vld [vmem:[%s2 + $0xc8] sm:$0xff]
    %v115 = vld [vmem:[%s2 + $0xd0] sm:$0xff]
    %v116 = vld [vmem:[%s2 + $0xd8] sm:$0xff]
    %v117 = vld [vmem:[%s2 + $0xe0] sm:$0xff]
    %v118 = vld [vmem:[%s2 + $0xe8] sm:$0xff]
    %v119 = vld [vmem:[%s2 + $0xf0] sm:$0xff]
    %v120 = vld [vmem:[%s2 + $0xf8] sm:$0xff]
    %v121 = vld [vmem:[%s2 + $0x100] sm:$0xff]
    %v122 = vld [vmem:[%s2 + $0x108] sm:$0xff]
    %v123 = vld [vmem:[%s2 + $0x110] sm:$0xff]
    %v124 = vld [vmem:[%s2 + $0x118] sm:$0xff]
    %v125 = vld [vmem:[%s2 + $0x120] sm:$0xff]
    %v126 = vld [vmem:[%s2 + $0x128] sm:$0xff]
    %v127 = vld [vmem:[%s2 + $0x130] sm:$0xff]
    %v128 = vld [vmem:[%s2 + $0x138] sm:$0xff]
    %v129 = vld [vmem:[%s2 + $0x140] sm:$0xff]
    %v130 = vld [vmem:[%s2 + $0x148] sm:$0xff]
    %v131 = vld [vmem:[%s2 + $0x150] sm:$0xff]
    %v132 = vld [vmem:[%s2 + $0x158] sm:$0xff]
    %v133 = vld [vmem:[%s2 + $0x160] sm:$0xff]
    %v134 = vld [vmem:[%s2 + $0x168] sm:$0xff]
    %v135 = vld [vmem:[%s2 + $0x170] sm:$0xff]
    %v136 = vld [vmem:[%s2 + $0x178] sm:$0xff]
    %v137 = vld [vmem:[%s2 + $0x180] sm:$0xff]
    %v138 = vld [vmem:[%s2 + $0x188] sm:$0xff]
    %v139 = vld [vmem:[%s2 + $0x190] sm:$0xff]
    %v140 = vld [vmem:[%s2 + $0x198] sm:$0xff]
    %v141 = vld [vmem:[%s2 + $0x1a0] sm:$0xff]
    %v142 = vld [vmem:[%s2 + $0x1a8] sm:$0xff]
    %v143 = vld [vmem:[%s2 + $0x1b0] sm:$0xff]
    %v144 = vld [vmem:[%s2 + $0x1b8] sm:$0xff]
    %v145 = vld [vmem:[%s2 + $0x1c0] sm:$0xff]
    %v146 = vld [vmem:[%s2 + $0x1c8] sm:$0xff]
    %v147 = vld [vmem:[%s2 + $0x1d0] sm:$0xff]
    %v148 = vld [vmem:[%s2 + $0x1d8] sm:$0xff]
    %v149 = vld [vmem:[%s2 + $0x1e0] sm:$0xff]
    %v150 = vld [vmem:[%s2 + $0x1e8] sm:$0xff]
    %v151 = vld [vmem:[%s2 + $0x1f0] sm:$0xff]
    %v152 = vld [vmem:[%s2 + $0x1f8] sm:$0xff]
    %v153 = vld [vmem:[%s2 + $0x200] sm:$0xff]
    %v154 = vld [vmem:[%s2 + $0x208] sm:$0xff]
    %v155 = vld [vmem:[%s2 + $0x210] sm:$0xff]
    %v156 = vld [vmem:[%s2 + $0x218] sm:$0xff]
    %v157 = vld [vmem:[%s2 + $0x220] sm:$0xff]
    %v158 = vld [vmem:[%s2 + $0x228] sm:$0xff]
    %v159 = vld [vmem:[%s2 + $0x230] sm:$0xff]
    %v160 = vld [vmem:[%s2 + $0x238] sm:$0xff]
    %v161 = vld [vmem:[%s2 + $0x240] sm:$0xff]
    %v162 = vld [vmem:[%s2 + $0x248] sm:$0xff]
    %v163 = vld [vmem:[%s2 + $0x250] sm:$0xff]
    %v164 = vld [vmem:[%s2 + $0x258] sm:$0xff]
    %v165 = vld [vmem:[%s2 + $0x260] sm:$0xff]
    %v166 = vld [vmem:[%s2 + $0x268] sm:$0xff]
    %v167 = vld [vmem:[%s2 + $0x270] sm:$0xff]
    %v168 = vld [vmem:[%s2 + $0x278] sm:$0xff]
    %v169 = vld [vmem:[%s2 + $0x280] sm:$0xff]
    %v170 = vld [vmem:[%s2 + $0x288] sm:$0xff]
    %v171 = vld [vmem:[%s2 + $0x290] sm:$0xff]
    %v172 = vld [vmem:[%s2 + $0x298] sm:$0xff]
    %v173 = vld [vmem:[%s2 + $0x2a0] sm:$0xff]
    %v174 = vld [vmem:[%s2 + $0x2a8] sm:$0xff]
    %v175 = vld [vmem:[%s2 + $0x2b0] sm:$0xff]
    %v176 = vld [vmem:[%s2 + $0x2b8] sm:$0xff]
    %v177 = vld [vmem:[%s2 + $0x2c0] sm:$0xff]
    %v178 = vld [vmem:[%s2 + $0x2c8] sm:$0xff]
    %v179 = vld [vmem:[%s2 + $0x2d0] sm:$0xff]
    %v180 = vld [vmem:[%s2 + $0x2d8] sm:$0xff]
    %v181 = vld [vmem:[%s2 + $0x2e0] sm:$0xff]
    %v182 = vld [vmem:[%s2 + $0x2e8] sm:$0xff]
    %v183 = vld [vmem:[%s2 + $0x2f0] sm:$0xff]
    %v184 = vld [vmem:[%s2 + $0x2f8] sm:$0xff]
    %v185 = vld [vmem:[%s2 + $0x300] sm:$0xff]
    %v186 = vld [vmem:[%s2 + $0x308] sm:$0xff]
    %v187 = vld [vmem:[%s2 + $0x310] sm:$0xff]
    %v188 = vld [vmem:[%s2 + $0x318] sm:$0xff]
    %v189 = vld [vmem:[%s2 + $0x320] sm:$0xff]
    %v190 = vld [vmem:[%s2 + $0x328] sm:$0xff]
    %v191 = vld [vmem:[%s2 + $0x330] sm:$0xff]
    %v192 = vld [vmem:[%s2 + $0x338] sm:$0xff]
    %v193 = vld [vmem:[%s2 + $0x340] sm:$0xff]
    %v194 = vld [vmem:[%s2 + $0x348] sm:$0xff]
    %v195 = vld [vmem:[%s2 + $0x350] sm:$0xff]
    %v196 = vld [vmem:[%s2 + $0x358] sm:$0xff]
    %v197 = vld [vmem:[%s2 + $0x360] sm:$0xff]
    %v198 = vld [vmem:[%s2 + $0x368] sm:$0xff]
    %v199 = vld [vmem:[%s2 + $0x370] sm:$0xff]
    %v200 = vld [vmem:[%s2 + $0x378] sm:$0xff]
    %v201 = vld [vmem:[%s2 + $0x380] sm:$0xff]
    %v202 = vld [vmem:[%s2 + $0x388] sm:$0xff]
    %v203 = vld [vmem:[%s2 + $0x390] sm:$0xff]
    %v204 = vld [vmem:[%s2 + $0x398] sm:$0xff]
    %v205 = vld [vmem:[%s2 + $0x3a0] sm:$0xff]
    %v206 = vld [vmem:[%s2 + $0x3a8] sm:$0xff]
    %v207 = vld [vmem:[%s2 + $0x3b0] sm:$0xff]
    %v208 = vld [vmem:[%s2 + $0x3b8] sm:$0xff]
    %v209 = vld [vmem:[%s2 + $0x3c0] sm:$0xff]
    %v210 = vld [vmem:[%s2 + $0x3c8] sm:$0xff]
    %v211 = vld [vmem:[%s2 + $0x3d0] sm:$0xff]
    %v212 = vld [vmem:[%s2 + $0x3d8] sm:$0xff]
    %v213 = vld [vmem:[%s2 + $0x3e0] sm:$0xff]
    %v214 = vld [vmem:[%s2 + $0x3e8] sm:$0xff]
    %v215 = vld [vmem:[%s2 + $0x3f0] sm:$0xff]
    %v216 = vld [vmem:[%s2 + $0x3f8] sm:$0xff]
    %v217 = vld [vmem:[#allocation4] sm:$0x11]
    %v218 = vld [vmem:[#allocation4 + $0x8] sm:$0x11]
    %v219 = vld [vmem:[#allocation4 + $0x10] sm:$0x11]
    %v220 = vld [vmem:[#allocation4 + $0x18] sm:$0x11]
    %v221 = vld [vmem:[#allocation5] sm:$0x88]
    %v222 = vld [vmem:[#allocation5 + $0x8] sm:$0x88]
    %v223 = vld [vmem:[#allocation5 + $0x10] sm:$0x88]
    %v224 = vld [vmem:[#allocation5 + $0x18] sm:$0x88]
    %v229 = vunpack.c.l.b16 %v217
    %v230 = vunpack.c.h.b16 %v217
    %v231 = vunpack.c.l.b16 %v218
    %v232 = vunpack.c.h.b16 %v218
    %v233 = vunpack.c.l.b16 %v219
    %v234 = vunpack.c.h.b16 %v219
    %v235 = vunpack.c.l.b16 %v220
    %v236 = vunpack.c.h.b16 %v220
    %v237 = vpack.c.b16 %v229, %v229
    %v238 = vpack.c.b16 %v230, %v230
    %v239 = vpack.c.b16 %v231, %v231
    %v240 = vpack.c.b16 %v232, %v232
    %v241 = vpack.c.b16 %v233, %v233
    %v242 = vpack.c.b16 %v234, %v234
    %v243 = vpack.c.b16 %v235, %v235
    %v244 = vpack.c.b16 %v236, %v236
    %v245 = vunpack.c.l.b16 %v237
    %v246 = vunpack.c.l.b16 %v238
    %v247 = vunpack.c.l.b16 %v239
    %v248 = vunpack.c.l.b16 %v240
    %v249 = vunpack.c.l.b16 %v241
    %v250 = vunpack.c.l.b16 %v242
    %v251 = vunpack.c.l.b16 %v243
    %v252 = vunpack.c.l.b16 %v244
    %v253 = vrot.slane %v249, 7
    %vm254 = vcmask 1041409
    %v255 = vsel %vm254, %v253, %v245
    %v256 = vrot.slane %v250, 7
    %v257 = vsel %vm254, %v256, %v246
    %v258 = vrot.slane %v251, 7
    %v259 = vsel %vm254, %v258, %v247
    %v260 = vrot.slane %v252, 7
    %v261 = vsel %vm254, %v260, %v248
    %v262 = vpack.c.b16 %v255, %v255
    %v263 = vpack.c.b16 %v257, %v257
    %v264 = vpack.c.b16 %v259, %v259
    %v265 = vpack.c.b16 %v261, %v261
    %v274 = vunpack.c.l.b16 %v221
    %v275 = vunpack.c.h.b16 %v221
    %v276 = vunpack.c.l.b16 %v222
    %v277 = vunpack.c.h.b16 %v222
    %v278 = vunpack.c.l.b16 %v223
    %v279 = vunpack.c.h.b16 %v223
    %v280 = vunpack.c.l.b16 %v224
    %v281 = vunpack.c.h.b16 %v224
    %v282 = vpack.c.b16 %v274, %v274
    %v283 = vpack.c.b16 %v275, %v275
    %v284 = vpack.c.b16 %v276, %v276
    %v285 = vpack.c.b16 %v277, %v277
    %v286 = vpack.c.b16 %v278, %v278
    %v287 = vpack.c.b16 %v279, %v279
    %v288 = vpack.c.b16 %v280, %v280
    %v289 = vpack.c.b16 %v281, %v281
    %v290 = vunpack.c.l.b16 %v282
    %v291 = vunpack.c.l.b16 %v283
    %v292 = vunpack.c.l.b16 %v284
    %v293 = vunpack.c.l.b16 %v285
    %v294 = vunpack.c.l.b16 %v286
    %v295 = vunpack.c.l.b16 %v287
    %v296 = vunpack.c.l.b16 %v288
    %v297 = vunpack.c.l.b16 %v289
    %v298 = vrot.slane %v290, 7
    %v299 = vrot.slane %v294, 6
    %v300 = vsel %vm254, %v299, %v298
    %v301 = vrot.slane %v291, 7
    %v302 = vrot.slane %v295, 6
    %v303 = vsel %vm254, %v302, %v301
    %v304 = vrot.slane %v292, 7
    %v305 = vrot.slane %v296, 6
    %v306 = vsel %vm254, %v305, %v304
    %v307 = vrot.slane %v293, 7
    %v308 = vrot.slane %v297, 6
    %v309 = vsel %vm254, %v308, %v307
    %v310 = vpack.c.b16 %v300, %v300
    %v311 = vpack.c.b16 %v303, %v303
    %v312 = vpack.c.b16 %v306, %v306
    %v313 = vpack.c.b16 %v309, %v309
    %v318 = vunpack.c.l.bf16 %v262
    %v319 = vunpack.c.l.bf16 %v263
    %v320 = vunpack.c.l.bf16 %v264
    %v321 = vunpack.c.l.bf16 %v265
    %v322 = vunpack.c.l.bf16 %v310
    %v323 = vunpack.c.l.bf16 %v311
    %v324 = vunpack.c.l.bf16 %v312
    %v325 = vunpack.c.l.bf16 %v313
    %v326 = vld [vmem:[#allocation2] sm:$0xf]
    %v329 = vunpack.c.l.s4 1983009808
    %v330 = vunpack.c.0.s8 %v329
    %v331 = vlaneseq
    %v332 = vshrl.u32 %v331, 7
    %v333 = vsub.s32 %v330, %v332
    %v334 = vrot.slane %v326, %v333
    %v335 = vcombine.high %v334, %v334
    %v338 = vpack.c.bf16 %v334, %v334
    %v339 = vpack.c.bf16 %v335, %v335
    %v468 = vunpack.c.l.b16 %v89
    %v469 = vunpack.c.h.b16 %v89
    %v470 = vunpack.c.l.b16 %v90
    %v471 = vunpack.c.h.b16 %v90
    %v472 = vunpack.c.l.b16 %v91
    %v473 = vunpack.c.h.b16 %v91
    %v474 = vunpack.c.l.b16 %v92
    %v475 = vunpack.c.h.b16 %v92
    %v476 = vunpack.c.l.b16 %v93
    %v477 = vunpack.c.h.b16 %v93
    %v478 = vunpack.c.l.b16 %v94
    %v479 = vunpack.c.h.b16 %v94
    %v480 = vunpack.c.l.b16 %v95
    %v481 = vunpack.c.h.b16 %v95
    %v482 = vunpack.c.l.b16 %v96
    %v483 = vunpack.c.h.b16 %v96
    %v484 = vunpack.c.l.b16 %v97
    %v485 = vunpack.c.h.b16 %v97
    %v486 = vunpack.c.l.b16 %v98
    %v487 = vunpack.c.h.b16 %v98
    %v488 = vunpack.c.l.b16 %v99
    %v489 = vunpack.c.h.b16 %v99
    %v490 = vunpack.c.l.b16 %v100
    %v491 = vunpack.c.h.b16 %v100
    %v492 = vunpack.c.l.b16 %v101
    %v493 = vunpack.c.h.b16 %v101
    %v494 = vunpack.c.l.b16 %v102
    %v495 = vunpack.c.h.b16 %v102
    %v496 = vunpack.c.l.b16 %v103
    %v497 = vunpack.c.h.b16 %v103
    %v498 = vunpack.c.l.b16 %v104
    %v499 = vunpack.c.h.b16 %v104
    %v500 = vunpack.c.l.b16 %v105
    %v501 = vunpack.c.h.b16 %v105
    %v502 = vunpack.c.l.b16 %v106
    %v503 = vunpack.c.h.b16 %v106
    %v504 = vunpack.c.l.b16 %v107
    %v505 = vunpack.c.h.b16 %v107
    %v506 = vunpack.c.l.b16 %v108
    %v507 = vunpack.c.h.b16 %v108
    %v508 = vunpack.c.l.b16 %v109
    %v509 = vunpack.c.h.b16 %v109
    %v510 = vunpack.c.l.b16 %v110
    %v511 = vunpack.c.h.b16 %v110
    %v512 = vunpack.c.l.b16 %v111
    %v513 = vunpack.c.h.b16 %v111
    %v514 = vunpack.c.l.b16 %v112
    %v515 = vunpack.c.h.b16 %v112
    %v516 = vunpack.c.l.b16 %v113
    %v517 = vunpack.c.h.b16 %v113
    %v518 = vunpack.c.l.b16 %v114
    %v519 = vunpack.c.h.b16 %v114
    %v520 = vunpack.c.l.b16 %v115
    %v521 = vunpack.c.h.b16 %v115
    %v522 = vunpack.c.l.b16 %v116
    %v523 = vunpack.c.h.b16 %v116
    %v524 = vunpack.c.l.b16 %v117
    %v525 = vunpack.c.h.b16 %v117
    %v526 = vunpack.c.l.b16 %v118
    %v527 = vunpack.c.h.b16 %v118
    %v528 = vunpack.c.l.b16 %v119
    %v529 = vunpack.c.h.b16 %v119
    %v530 = vunpack.c.l.b16 %v120
    %v531 = vunpack.c.h.b16 %v120
    %v532 = vunpack.c.l.b16 %v121
    %v533 = vunpack.c.h.b16 %v121
    %v534 = vunpack.c.l.b16 %v122
    %v535 = vunpack.c.h.b16 %v122
    %v536 = vunpack.c.l.b16 %v123
    %v537 = vunpack.c.h.b16 %v123
    %v538 = vunpack.c.l.b16 %v124
    %v539 = vunpack.c.h.b16 %v124
    %v540 = vunpack.c.l.b16 %v125
    %v541 = vunpack.c.h.b16 %v125
    %v542 = vunpack.c.l.b16 %v126
    %v543 = vunpack.c.h.b16 %v126
    %v544 = vunpack.c.l.b16 %v127
    %v545 = vunpack.c.h.b16 %v127
    %v546 = vunpack.c.l.b16 %v128
    %v547 = vunpack.c.h.b16 %v128
    %v548 = vunpack.c.l.b16 %v129
    %v549 = vunpack.c.h.b16 %v129
    %v550 = vunpack.c.l.b16 %v130
    %v551 = vunpack.c.h.b16 %v130
    %v552 = vunpack.c.l.b16 %v131
    %v553 = vunpack.c.h.b16 %v131
    %v554 = vunpack.c.l.b16 %v132
    %v555 = vunpack.c.h.b16 %v132
    %v556 = vunpack.c.l.b16 %v133
    %v557 = vunpack.c.h.b16 %v133
    %v558 = vunpack.c.l.b16 %v134
    %v559 = vunpack.c.h.b16 %v134
    %v560 = vunpack.c.l.b16 %v135
    %v561 = vunpack.c.h.b16 %v135
    %v562 = vunpack.c.l.b16 %v136
    %v563 = vunpack.c.h.b16 %v136
    %v564 = vunpack.c.l.b16 %v137
    %v565 = vunpack.c.h.b16 %v137
    %v566 = vunpack.c.l.b16 %v138
    %v567 = vunpack.c.h.b16 %v138
    %v568 = vunpack.c.l.b16 %v139
    %v569 = vunpack.c.h.b16 %v139
    %v570 = vunpack.c.l.b16 %v140
    %v571 = vunpack.c.h.b16 %v140
    %v572 = vunpack.c.l.b16 %v141
    %v573 = vunpack.c.h.b16 %v141
    %v574 = vunpack.c.l.b16 %v142
    %v575 = vunpack.c.h.b16 %v142
    %v576 = vunpack.c.l.b16 %v143
    %v577 = vunpack.c.h.b16 %v143
    %v578 = vunpack.c.l.b16 %v144
    %v579 = vunpack.c.h.b16 %v144
    %v580 = vunpack.c.l.b16 %v145
    %v581 = vunpack.c.h.b16 %v145
    %v582 = vunpack.c.l.b16 %v146
    %v583 = vunpack.c.h.b16 %v146
    %v584 = vunpack.c.l.b16 %v147
    %v585 = vunpack.c.h.b16 %v147
    %v586 = vunpack.c.l.b16 %v148
    %v587 = vunpack.c.h.b16 %v148
    %v588 = vunpack.c.l.b16 %v149
    %v589 = vunpack.c.h.b16 %v149
    %v590 = vunpack.c.l.b16 %v150
    %v591 = vunpack.c.h.b16 %v150
    %v592 = vunpack.c.l.b16 %v151
    %v593 = vunpack.c.h.b16 %v151
    %v594 = vunpack.c.l.b16 %v152
    %v595 = vunpack.c.h.b16 %v152
    %v596 = vunpack.c.l.b16 %v153
    %v597 = vunpack.c.h.b16 %v153
    %v598 = vunpack.c.l.b16 %v154
    %v599 = vunpack.c.h.b16 %v154
    %v600 = vunpack.c.l.b16 %v155
    %v601 = vunpack.c.h.b16 %v155
    %v602 = vunpack.c.l.b16 %v156
    %v603 = vunpack.c.h.b16 %v156
    %v604 = vunpack.c.l.b16 %v157
    %v605 = vunpack.c.h.b16 %v157
    %v606 = vunpack.c.l.b16 %v158
    %v607 = vunpack.c.h.b16 %v158
    %v608 = vunpack.c.l.b16 %v159
    %v609 = vunpack.c.h.b16 %v159
    %v610 = vunpack.c.l.b16 %v160
    %v611 = vunpack.c.h.b16 %v160
    %v612 = vunpack.c.l.b16 %v161
    %v613 = vunpack.c.h.b16 %v161
    %v614 = vunpack.c.l.b16 %v162
    %v615 = vunpack.c.h.b16 %v162
    %v616 = vunpack.c.l.b16 %v163
    %v617 = vunpack.c.h.b16 %v163
    %v618 = vunpack.c.l.b16 %v164
    %v619 = vunpack.c.h.b16 %v164
    %v620 = vunpack.c.l.b16 %v165
    %v621 = vunpack.c.h.b16 %v165
    %v622 = vunpack.c.l.b16 %v166
    %v623 = vunpack.c.h.b16 %v166
    %v624 = vunpack.c.l.b16 %v167
    %v625 = vunpack.c.h.b16 %v167
    %v626 = vunpack.c.l.b16 %v168
    %v627 = vunpack.c.h.b16 %v168
    %v628 = vunpack.c.l.b16 %v169
    %v629 = vunpack.c.h.b16 %v169
    %v630 = vunpack.c.l.b16 %v170
    %v631 = vunpack.c.h.b16 %v170
    %v632 = vunpack.c.l.b16 %v171
    %v633 = vunpack.c.h.b16 %v171
    %v634 = vunpack.c.l.b16 %v172
    %v635 = vunpack.c.h.b16 %v172
    %v636 = vunpack.c.l.b16 %v173
    %v637 = vunpack.c.h.b16 %v173
    %v638 = vunpack.c.l.b16 %v174
    %v639 = vunpack.c.h.b16 %v174
    %v640 = vunpack.c.l.b16 %v175
    %v641 = vunpack.c.h.b16 %v175
    %v642 = vunpack.c.l.b16 %v176
    %v643 = vunpack.c.h.b16 %v176
    %v644 = vunpack.c.l.b16 %v177
    %v645 = vunpack.c.h.b16 %v177
    %v646 = vunpack.c.l.b16 %v178
    %v647 = vunpack.c.h.b16 %v178
    %v648 = vunpack.c.l.b16 %v179
    %v649 = vunpack.c.h.b16 %v179
    %v650 = vunpack.c.l.b16 %v180
    %v651 = vunpack.c.h.b16 %v180
    %v652 = vunpack.c.l.b16 %v181
    %v653 = vunpack.c.h.b16 %v181
    %v654 = vunpack.c.l.b16 %v182
    %v655 = vunpack.c.h.b16 %v182
    %v656 = vunpack.c.l.b16 %v183
    %v657 = vunpack.c.h.b16 %v183
    %v658 = vunpack.c.l.b16 %v184
    %v659 = vunpack.c.h.b16 %v184
    %v660 = vunpack.c.l.b16 %v185
    %v661 = vunpack.c.h.b16 %v185
    %v662 = vunpack.c.l.b16 %v186
    %v663 = vunpack.c.h.b16 %v186
    %v664 = vunpack.c.l.b16 %v187
    %v665 = vunpack.c.h.b16 %v187
    %v666 = vunpack.c.l.b16 %v188
    %v667 = vunpack.c.h.b16 %v188
    %v668 = vunpack.c.l.b16 %v189
    %v669 = vunpack.c.h.b16 %v189
    %v670 = vunpack.c.l.b16 %v190
    %v671 = vunpack.c.h.b16 %v190
    %v672 = vunpack.c.l.b16 %v191
    %v673 = vunpack.c.h.b16 %v191
    %v674 = vunpack.c.l.b16 %v192
    %v675 = vunpack.c.h.b16 %v192
    %v676 = vunpack.c.l.b16 %v193
    %v677 = vunpack.c.h.b16 %v193
    %v678 = vunpack.c.l.b16 %v194
    %v679 = vunpack.c.h.b16 %v194
    %v680 = vunpack.c.l.b16 %v195
    %v681 = vunpack.c.h.b16 %v195
    %v682 = vunpack.c.l.b16 %v196
    %v683 = vunpack.c.h.b16 %v196
    %v684 = vunpack.c.l.b16 %v197
    %v685 = vunpack.c.h.b16 %v197
    %v686 = vunpack.c.l.b16 %v198
    %v687 = vunpack.c.h.b16 %v198
    %v688 = vunpack.c.l.b16 %v199
    %v689 = vunpack.c.h.b16 %v199
    %v690 = vunpack.c.l.b16 %v200
    %v691 = vunpack.c.h.b16 %v200
    %v692 = vunpack.c.l.b16 %v201
    %v693 = vunpack.c.h.b16 %v201
    %v694 = vunpack.c.l.b16 %v202
    %v695 = vunpack.c.h.b16 %v202
    %v696 = vunpack.c.l.b16 %v203
    %v697 = vunpack.c.h.b16 %v203
    %v698 = vunpack.c.l.b16 %v204
    %v699 = vunpack.c.h.b16 %v204
    %v700 = vunpack.c.l.b16 %v205
    %v701 = vunpack.c.h.b16 %v205
    %v702 = vunpack.c.l.b16 %v206
    %v703 = vunpack.c.h.b16 %v206
    %v704 = vunpack.c.l.b16 %v207
    %v705 = vunpack.c.h.b16 %v207
    %v706 = vunpack.c.l.b16 %v208
    %v707 = vunpack.c.h.b16 %v208
    %v708 = vunpack.c.l.b16 %v209
    %v709 = vunpack.c.h.b16 %v209
    %v710 = vunpack.c.l.b16 %v210
    %v711 = vunpack.c.h.b16 %v210
    %v712 = vunpack.c.l.b16 %v211
    %v713 = vunpack.c.h.b16 %v211
    %v714 = vunpack.c.l.b16 %v212
    %v715 = vunpack.c.h.b16 %v212
    %v716 = vunpack.c.l.b16 %v213
    %v717 = vunpack.c.h.b16 %v213
    %v718 = vunpack.c.l.b16 %v214
    %v719 = vunpack.c.h.b16 %v214
    %v720 = vunpack.c.l.b16 %v215
    %v721 = vunpack.c.h.b16 %v215
    %v722 = vunpack.c.l.b16 %v216
    %v723 = vunpack.c.h.b16 %v216
    %v724 = vpack.c.b16 %v476, %v468
    %v725 = vpack.c.b16 %v477, %v469
    %v726 = vpack.c.b16 %v478, %v470
    %v727 = vpack.c.b16 %v479, %v471
    %v728 = vpack.c.b16 %v480, %v472
    %v729 = vpack.c.b16 %v481, %v473
    %v730 = vpack.c.b16 %v482, %v474
    %v731 = vpack.c.b16 %v483, %v475
    %v732 = vpack.c.b16 %v492, %v484
    %v733 = vpack.c.b16 %v493, %v485
    %v734 = vpack.c.b16 %v494, %v486
    %v735 = vpack.c.b16 %v495, %v487
    %v736 = vpack.c.b16 %v496, %v488
    %v737 = vpack.c.b16 %v497, %v489
    %v738 = vpack.c.b16 %v498, %v490
    %v739 = vpack.c.b16 %v499, %v491
    %v740 = vpack.c.b16 %v508, %v500
    %v741 = vpack.c.b16 %v509, %v501
    %v742 = vpack.c.b16 %v510, %v502
    %v743 = vpack.c.b16 %v511, %v503
    %v744 = vpack.c.b16 %v512, %v504
    %v745 = vpack.c.b16 %v513, %v505
    %v746 = vpack.c.b16 %v514, %v506
    %v747 = vpack.c.b16 %v515, %v507
    %v748 = vpack.c.b16 %v524, %v516
    %v749 = vpack.c.b16 %v525, %v517
    %v750 = vpack.c.b16 %v526, %v518
    %v751 = vpack.c.b16 %v527, %v519
    %v752 = vpack.c.b16 %v528, %v520
    %v753 = vpack.c.b16 %v529, %v521
    %v754 = vpack.c.b16 %v530, %v522
    %v755 = vpack.c.b16 %v531, %v523
    %v756 = vpack.c.b16 %v540, %v532
    %v757 = vpack.c.b16 %v541, %v533
    %v758 = vpack.c.b16 %v542, %v534
    %v759 = vpack.c.b16 %v543, %v535
    %v760 = vpack.c.b16 %v544, %v536
    %v761 = vpack.c.b16 %v545, %v537
    %v762 = vpack.c.b16 %v546, %v538
    %v763 = vpack.c.b16 %v547, %v539
    %v764 = vpack.c.b16 %v556, %v548
    %v765 = vpack.c.b16 %v557, %v549
    %v766 = vpack.c.b16 %v558, %v550
    %v767 = vpack.c.b16 %v559, %v551
    %v768 = vpack.c.b16 %v560, %v552
    %v769 = vpack.c.b16 %v561, %v553
    %v770 = vpack.c.b16 %v562, %v554
    %v771 = vpack.c.b16 %v563, %v555
    %v772 = vpack.c.b16 %v572, %v564
    %v773 = vpack.c.b16 %v573, %v565
    %v774 = vpack.c.b16 %v574, %v566
    %v775 = vpack.c.b16 %v575, %v567
    %v776 = vpack.c.b16 %v576, %v568
    %v777 = vpack.c.b16 %v577, %v569
    %v778 = vpack.c.b16 %v578, %v570
    %v779 = vpack.c.b16 %v579, %v571
    %v780 = vpack.c.b16 %v588, %v580
    %v781 = vpack.c.b16 %v589, %v581
    %v782 = vpack.c.b16 %v590, %v582
    %v783 = vpack.c.b16 %v591, %v583
    %v784 = vpack.c.b16 %v592, %v584
    %v785 = vpack.c.b16 %v593, %v585
    %v786 = vpack.c.b16 %v594, %v586
    %v787 = vpack.c.b16 %v595, %v587
    %v788 = vpack.c.b16 %v604, %v596
    %v789 = vpack.c.b16 %v605, %v597
    %v790 = vpack.c.b16 %v606, %v598
    %v791 = vpack.c.b16 %v607, %v599
    %v792 = vpack.c.b16 %v608, %v600
    %v793 = vpack.c.b16 %v609, %v601
    %v794 = vpack.c.b16 %v610, %v602
    %v795 = vpack.c.b16 %v611, %v603
    %v796 = vpack.c.b16 %v620, %v612
    %v797 = vpack.c.b16 %v621, %v613
    %v798 = vpack.c.b16 %v622, %v614
    %v799 = vpack.c.b16 %v623, %v615
    %v800 = vpack.c.b16 %v624, %v616
    %v801 = vpack.c.b16 %v625, %v617
    %v802 = vpack.c.b16 %v626, %v618
    %v803 = vpack.c.b16 %v627, %v619
    %v804 = vpack.c.b16 %v636, %v628
    %v805 = vpack.c.b16 %v637, %v629
    %v806 = vpack.c.b16 %v638, %v630
    %v807 = vpack.c.b16 %v639, %v631
    %v808 = vpack.c.b16 %v640, %v632
    %v809 = vpack.c.b16 %v641, %v633
    %v810 = vpack.c.b16 %v642, %v634
    %v811 = vpack.c.b16 %v643, %v635
    %v812 = vpack.c.b16 %v652, %v644
    %v813 = vpack.c.b16 %v653, %v645
    %v814 = vpack.c.b16 %v654, %v646
    %v815 = vpack.c.b16 %v655, %v647
    %v816 = vpack.c.b16 %v656, %v648
    %v817 = vpack.c.b16 %v657, %v649
    %v818 = vpack.c.b16 %v658, %v650
    %v819 = vpack.c.b16 %v659, %v651
    %v820 = vpack.c.b16 %v668, %v660
    %v821 = vpack.c.b16 %v669, %v661
    %v822 = vpack.c.b16 %v670, %v662
    %v823 = vpack.c.b16 %v671, %v663
    %v824 = vpack.c.b16 %v672, %v664
    %v825 = vpack.c.b16 %v673, %v665
    %v826 = vpack.c.b16 %v674, %v666
    %v827 = vpack.c.b16 %v675, %v667
    %v828 = vpack.c.b16 %v684, %v676
    %v829 = vpack.c.b16 %v685, %v677
    %v830 = vpack.c.b16 %v686, %v678
    %v831 = vpack.c.b16 %v687, %v679
    %v832 = vpack.c.b16 %v688, %v680
    %v833 = vpack.c.b16 %v689, %v681
    %v834 = vpack.c.b16 %v690, %v682
    %v835 = vpack.c.b16 %v691, %v683
    %v836 = vpack.c.b16 %v700, %v692
    %v837 = vpack.c.b16 %v701, %v693
    %v838 = vpack.c.b16 %v702, %v694
    %v839 = vpack.c.b16 %v703, %v695
    %v840 = vpack.c.b16 %v704, %v696
    %v841 = vpack.c.b16 %v705, %v697
    %v842 = vpack.c.b16 %v706, %v698
    %v843 = vpack.c.b16 %v707, %v699
    %v844 = vpack.c.b16 %v716, %v708
    %v845 = vpack.c.b16 %v717, %v709
    %v846 = vpack.c.b16 %v718, %v710
    %v847 = vpack.c.b16 %v719, %v711
    %v848 = vpack.c.b16 %v720, %v712
    %v849 = vpack.c.b16 %v721, %v713
    %v850 = vpack.c.b16 %v722, %v714
    %v851 = vpack.c.b16 %v723, %v715
    %980 = vmatprep.subr.bf16.mxu0 %v725
    %981 = vmatpush1.bf16.msra.mxu0 %v724
    %982 = vmatprep.subr.bf16.mxu0 %v733
    %983 = vmatpush1.bf16.msra.mxu0 %v732
    %984 = vmatprep.subr.bf16.mxu0 %v741
    %985 = vmatpush1.bf16.msra.mxu0 %v740
    %986 = vmatprep.subr.bf16.mxu0 %v749
    %987 = vmatpush1.bf16.msra.mxu0 %v748
    %988 = vmatprep.subr.bf16.mxu0 %v757
    %989 = vmatpush1.bf16.msra.mxu0 %v756
    %990 = vmatprep.subr.bf16.mxu0 %v765
    %991 = vmatpush1.bf16.msra.mxu0 %v764
    %992 = vmatprep.subr.bf16.mxu0 %v773
    %993 = vmatpush1.bf16.msra.mxu0 %v772
    %994 = vmatprep.subr.bf16.mxu0 %v781
    %995 = vmatpush1.bf16.msra.mxu0 %v780
    %996 = vmatprep.subr.bf16.mxu0 %v789
    %997 = vmatpush1.bf16.msra.mxu0 %v788
    %998 = vmatprep.subr.bf16.mxu0 %v797
    %999 = vmatpush1.bf16.msra.mxu0 %v796
    %1000 = vmatprep.subr.bf16.mxu0 %v805
    %1001 = vmatpush1.bf16.msra.mxu0 %v804
    %1002 = vmatprep.subr.bf16.mxu0 %v813
    %1003 = vmatpush1.bf16.msra.mxu0 %v812
    %1004 = vmatprep.subr.bf16.mxu0 %v821
    %1005 = vmatpush1.bf16.msra.mxu0 %v820
    %1006 = vmatprep.subr.bf16.mxu0 %v829
    %1007 = vmatpush1.bf16.msra.mxu0 %v828
    %1008 = vmatprep.subr.bf16.mxu0 %v837
    %1009 = vmatpush1.bf16.msra.mxu0 %v836
    %1010 = vmatprep.subr.bf16.mxu0 %v845
    %1011 = vmatpush1.bf16.msra.mxu0 %v844
    %1012 = vmatprep.mubr.bf16.mxu0 %v339
    %1013 = vmatmul.mubr.bf16.gmra.mrb[0].mxu0 %v338
    %v1014 = vpop.f32.mrb[0].mxu0
    %v1015 = vadd.f32 0.0, %v1014
    %v1016 = vpop.f32.mrb[0].mxu0
    %v1017 = vadd.f32 0.0, %v1016
    %v1018 = vpop.f32.mrb[0].mxu0
    %v1019 = vpop.f32.mrb[0].mxu0
    %1020 = vdwg.mxu0
    %1021 = vmatprep.subr.bf16.mxu0 %v727
    %1022 = vmatpush1.bf16.msra.mxu0 %v726
    %1023 = vmatprep.subr.bf16.mxu0 %v735
    %1024 = vmatpush1.bf16.msra.mxu0 %v734
    %1025 = vmatprep.subr.bf16.mxu0 %v743
    %1026 = vmatpush1.bf16.msra.mxu0 %v742
    %1027 = vmatprep.subr.bf16.mxu0 %v751
    %1028 = vmatpush1.bf16.msra.mxu0 %v750
    %1029 = vmatprep.subr.bf16.mxu0 %v759
    %1030 = vmatpush1.bf16.msra.mxu0 %v758
    %1031 = vmatprep.subr.bf16.mxu0 %v767
    %1032 = vmatpush1.bf16.msra.mxu0 %v766
    %1033 = vmatprep.subr.bf16.mxu0 %v775
    %1034 = vmatpush1.bf16.msra.mxu0 %v774
    %1035 = vmatprep.subr.bf16.mxu0 %v783
    %1036 = vmatpush1.bf16.msra.mxu0 %v782
    %1037 = vmatprep.subr.bf16.mxu0 %v791
    %1038 = vmatpush1.bf16.msra.mxu0 %v790
    %1039 = vmatprep.subr.bf16.mxu0 %v799
    %1040 = vmatpush1.bf16.msra.mxu0 %v798
    %1041 = vmatprep.subr.bf16.mxu0 %v807
    %1042 = vmatpush1.bf16.msra.mxu0 %v806
    %1043 = vmatprep.subr.bf16.mxu0 %v815
    %1044 = vmatpush1.bf16.msra.mxu0 %v814
    %1045 = vmatprep.subr.bf16.mxu0 %v823
    %1046 = vmatpush1.bf16.msra.mxu0 %v822
    %1047 = vmatprep.subr.bf16.mxu0 %v831
    %1048 = vmatpush1.bf16.msra.mxu0 %v830
    %1049 = vmatprep.subr.bf16.mxu0 %v839
    %1050 = vmatpush1.bf16.msra.mxu0 %v838
    %1051 = vmatprep.subr.bf16.mxu0 %v847
    %1052 = vmatpush1.bf16.msra.mxu0 %v846
    %1053 = vmatprep.mubr.bf16.mxu0 %v339
    %1054 = vmatmul.mubr.bf16.gmra.mrb[0].mxu0 %v338
    %v1055 = vpop.f32.mrb[0].mxu0
    %v1056 = vadd.f32 0.0, %v1055
    %v1057 = vpop.f32.mrb[0].mxu0
    %v1058 = vadd.f32 0.0, %v1057
    %v1059 = vpop.f32.mrb[0].mxu0
    %v1060 = vpop.f32.mrb[0].mxu0
    %1061 = vdwg.mxu0
    %1062 = vmatprep.subr.bf16.mxu0 %v729
    %1063 = vmatpush1.bf16.msra.mxu0 %v728
    %1064 = vmatprep.subr.bf16.mxu0 %v737
    %1065 = vmatpush1.bf16.msra.mxu0 %v736
    %1066 = vmatprep.subr.bf16.mxu0 %v745
    %1067 = vmatpush1.bf16.msra.mxu0 %v744
    %1068 = vmatprep.subr.bf16.mxu0 %v753
    %1069 = vmatpush1.bf16.msra.mxu0 %v752
    %1070 = vmatprep.subr.bf16.mxu0 %v761
    %1071 = vmatpush1.bf16.msra.mxu0 %v760
    %1072 = vmatprep.subr.bf16.mxu0 %v769
    %1073 = vmatpush1.bf16.msra.mxu0 %v768
    %1074 = vmatprep.subr.bf16.mxu0 %v777
    %1075 = vmatpush1.bf16.msra.mxu0 %v776
    %1076 = vmatprep.subr.bf16.mxu0 %v785
    %1077 = vmatpush1.bf16.msra.mxu0 %v784
    %1078 = vmatprep.subr.bf16.mxu0 %v793
    %1079 = vmatpush1.bf16.msra.mxu0 %v792
    %1080 = vmatprep.subr.bf16.mxu0 %v801
    %1081 = vmatpush1.bf16.msra.mxu0 %v800
    %1082 = vmatprep.subr.bf16.mxu0 %v809
    %1083 = vmatpush1.bf16.msra.mxu0 %v808
    %1084 = vmatprep.subr.bf16.mxu0 %v817
    %1085 = vmatpush1.bf16.msra.mxu0 %v816
    %1086 = vmatprep.subr.bf16.mxu0 %v825
    %1087 = vmatpush1.bf16.msra.mxu0 %v824
    %1088 = vmatprep.subr.bf16.mxu0 %v833
    %1089 = vmatpush1.bf16.msra.mxu0 %v832
    %1090 = vmatprep.subr.bf16.mxu0 %v841
    %1091 = vmatpush1.bf16.msra.mxu0 %v840
    %1092 = vmatprep.subr.bf16.mxu0 %v849
    %1093 = vmatpush1.bf16.msra.mxu0 %v848
    %1094 = vmatprep.mubr.bf16.mxu0 %v339
    %1095 = vmatmul.mubr.bf16.gmra.mrb[0].mxu0 %v338
    %v1096 = vpop.f32.mrb[0].mxu0
    %v1097 = vadd.f32 0.0, %v1096
    %v1098 = vpop.f32.mrb[0].mxu0
    %v1099 = vadd.f32 0.0, %v1098
    %v1100 = vpop.f32.mrb[0].mxu0
    %v1101 = vpop.f32.mrb[0].mxu0
    %1102 = vdwg.mxu0
    %1103 = vmatprep.subr.bf16.mxu0 %v731
    %1104 = vmatpush1.bf16.msra.mxu0 %v730
    %1105 = vmatprep.subr.bf16.mxu0 %v739
    %1106 = vmatpush1.bf16.msra.mxu0 %v738
    %1107 = vmatprep.subr.bf16.mxu0 %v747
    %1108 = vmatpush1.bf16.msra.mxu0 %v746
    %1109 = vmatprep.subr.bf16.mxu0 %v755
    %1110 = vmatpush1.bf16.msra.mxu0 %v754
    %1111 = vmatprep.subr.bf16.mxu0 %v763
    %1112 = vmatpush1.bf16.msra.mxu0 %v762
    %1113 = vmatprep.subr.bf16.mxu0 %v771
    %1114 = vmatpush1.bf16.msra.mxu0 %v770
    %1115 = vmatprep.subr.bf16.mxu0 %v779
    %1116 = vmatpush1.bf16.msra.mxu0 %v778
    %1117 = vmatprep.subr.bf16.mxu0 %v787
    %1118 = vmatpush1.bf16.msra.mxu0 %v786
    %1119 = vmatprep.subr.bf16.mxu0 %v795
    %1120 = vmatpush1.bf16.msra.mxu0 %v794
    %1121 = vmatprep.subr.bf16.mxu0 %v803
    %1122 = vmatpush1.bf16.msra.mxu0 %v802
    %1123 = vmatprep.subr.bf16.mxu0 %v811
    %1124 = vmatpush1.bf16.msra.mxu0 %v810
    %1125 = vmatprep.subr.bf16.mxu0 %v819
    %1126 = vmatpush1.bf16.msra.mxu0 %v818
    %1127 = vmatprep.subr.bf16.mxu0 %v827
    %1128 = vmatpush1.bf16.msra.mxu0 %v826
    %1129 = vmatprep.subr.bf16.mxu0 %v835
    %1130 = vmatpush1.bf16.msra.mxu0 %v834
    %1131 = vmatprep.subr.bf16.mxu0 %v843
    %1132 = vmatpush1.bf16.msra.mxu0 %v842
    %1133 = vmatprep.subr.bf16.mxu0 %v851
    %1134 = vmatpush1.bf16.msra.mxu0 %v850
    %1135 = vmatprep.mubr.bf16.mxu0 %v339
    %1136 = vmatmul.mubr.bf16.gmra.mrb[0].mxu0 %v338
    %v1137 = vpop.f32.mrb[0].mxu0
    %v1138 = vadd.f32 0.0, %v1137
    %v1139 = vpop.f32.mrb[0].mxu0
    %v1140 = vadd.f32 0.0, %v1139
    %v1141 = vpop.f32.mrb[0].mxu0
    %v1142 = vpop.f32.mrb[0].mxu0
    %1143 = vdwg.mxu0
    %v1144 = vadd.f32 %v318, %v1015
    %v1145 = vadd.f32 %v319, %v1017
    %v1146 = vadd.f32 %v320, %v1056
    %v1147 = vadd.f32 %v321, %v1058
    %v1148 = vadd.f32 %v322, %v1097
    %v1149 = vadd.f32 %v323, %v1099
    %v1150 = vadd.f32 %v324, %v1138
    %v1151 = vadd.f32 %v325, %v1140
    %v1152 = vxor.u32 %v1144, 2147483648
    %v1153 = vxor.u32 %v1148, 2147483648
    %v1154 = vmul.f32 %v1152, 1.442695
    %v1155 = vpow.pop %v1154
    %v1156 = vmul.f32 %v1153, 1.442695
    %v1157 = vpow.pop %v1156
    %v1158 = vadd.f32 %v1155, 1.0
    %v1159 = vadd.f32 %v1157, 1.0
    %v1160 = vrcp.pop %v1158
    %v1161 = vmul.f32 1.0, %v1160
    %v1162 = vrcp.pop %v1159
    %v1163 = vmul.f32 1.0, %v1162
    %v1164 = vxor.u32 %v1145, 2147483648
    %v1165 = vxor.u32 %v1149, 2147483648
    %v1166 = vmul.f32 %v1164, 1.442695
    %v1167 = vpow.pop %v1166
    %v1168 = vmul.f32 %v1165, 1.442695
    %v1169 = vpow.pop %v1168
    %v1170 = vadd.f32 %v1167, 1.0
    %v1171 = vadd.f32 %v1169, 1.0
    %v1172 = vrcp.pop %v1170
    %v1173 = vmul.f32 1.0, %v1172
    %v1174 = vrcp.pop %v1171
    %v1175 = vmul.f32 1.0, %v1174
    %v1176 = vtanh.pop %v1146
    %v1177 = vtanh.pop %v1150
    %v1178 = vxor.u32 %v1147, 2147483648
    %v1179 = vxor.u32 %v1151, 2147483648
    %v1180 = vmul.f32 %v1178, 1.442695
    %v1181 = vpow.pop %v1180
    %v1182 = vmul.f32 %v1179, 1.442695
    %v1183 = vpow.pop %v1182
    %v1184 = vadd.f32 %v1181, 1.0
    %v1185 = vadd.f32 %v1183, 1.0
    %v1186 = vrcp.pop %v1184
    %v1187 = vmul.f32 1.0, %v1186
    %v1188 = vrcp.pop %v1185
    %v1189 = vmul.f32 1.0, %v1188
    %v1190 = vld [vmem:[#allocation3] sm:$0xf]
    %v1193 = vunpack.c.l.s4 1983009808
    %v1194 = vunpack.c.0.s8 %v1193
    %v1195 = vlaneseq
    %v1196 = vshrl.u32 %v1195, 7
    %v1197 = vsub.s32 %v1194, %v1196
    %v1198 = vrot.slane %v1190, %v1197
    %v1199 = vcombine.high %v1198, %v1198
    %v1202 = vmul.f32 %v1173, %v1198
    %v1203 = vmul.f32 %v1175, %v1199
    %v1204 = vmul.f32 %v1161, %v1176
    %v1205 = vmul.f32 %v1163, %v1177
    %v1206 = vadd.f32 %v1202, %v1204
    %v1207 = vadd.f32 %v1203, %v1205
    %v1208 = vtanh.pop %v1206
    %v1209 = vtanh.pop %v1207
    %v1210 = vmul.f32 %v1187, %v1208
    %v1211 = vmul.f32 %v1189, %v1209
    %v1214 = vcombine.low %v1210, %v1211
    %v1216 = vunpack.c.l.s4 1983009808
    %v1217 = vunpack.c.0.s8 %v1216
    %v1218 = vlaneseq
    %v1219 = vshrl.u32 %v1218, 7
    %v1220 = vsub.s32 %v1217, %v1219
    %v1221 = vrot.slane %v1214, %v1220
    %1223 = vst [vmem:[#allocation2] sm:$0xf] %v1221
    %v1226 = vcombine.low %v1206, %v1207
    %v1228 = vunpack.c.l.s4 1983009808
    %v1229 = vunpack.c.0.s8 %v1228
    %v1230 = vlaneseq
    %v1231 = vshrl.u32 %v1230, 7
    %v1232 = vsub.s32 %v1229, %v1231
    %v1233 = vrot.slane %v1226, %v1232
    %1235 = vst [vmem:[#allocation3] sm:$0xf] %v1233
    %v1236 = vpack.c.bf16 %v1210, %v1210
    %v1239 = vunpack.c.l.s4 1966171168
    %v1240 = vunpack.c.0.s8 %v1239
    %v1241 = vlaneseq
    %v1242 = vshrl.u32 %v1241, 7
    %v1243 = vsub.s32 %v1240, %v1242
    %v1244 = vrot.slane %v1236, %v1243
    %v1246 = vunpack.c.l.s4 1966171168
    %v1247 = vunpack.c.0.s8 %v1246
    %v1248 = vlaneseq
    %v1249 = vshrl.u32 %v1248, 7
    %v1250 = vsub.s32 %v1247, %v1249
    %v1251 = vrot.slane %v1244, %v1250
    %v1252 = vunpack.i.l.s16 %v1251
    %v1253 = vunpack.i.h.s16 %v1251
    %v1254 = vpack.i.b16 %v1252, %v1252
    %v1255 = vpack.i.b16 %v1253, %v1253
    %v1257 = vunpack.c.l.s4 286326784
    %v1258 = vunpack.c.0.s8 %v1257
    %v1259 = vlaneseq
    %v1260 = vshrl.u32 %v1259, 7
    %v1261 = vsub.s32 %v1258, %v1260
    %v1262 = vrot.slane %v1254, %v1261
    %v1264 = vunpack.c.l.s4 286326784
    %v1265 = vunpack.c.0.s8 %v1264
    %v1266 = vlaneseq
    %v1267 = vshrl.u32 %v1266, 7
    %v1268 = vsub.s32 %v1265, %v1267
    %v1269 = vrot.slane %v1255, %v1268
    %vm1272 = vcmask 1040384
    %vm1273 = vsmask.f32 256
    %vm1274 = vmand %vm1272, %vm1273
    %v1275 = vld [vmem:[%s3] sm:$0x1]
    %v1276 = vsel %vm1274, %v1262, %v1275
    %1277 = vst [vmem:[%s3] sm:$0x1] %v1276
    %v1278 = vld [vmem:[%s3 + $0x4] sm:$0x1]
    %v1279 = vsel %vm1274, %v1269, %v1278
    %1280 = vst [vmem:[%s3 + $0x4] sm:$0x1] %v1279
    %v1281 = vpack.c.bf16 %v1211, %v1211
    %v1284 = vunpack.c.l.s4 1966171168
    %v1285 = vunpack.c.0.s8 %v1284
    %v1286 = vlaneseq
    %v1287 = vshrl.u32 %v1286, 7
    %v1288 = vsub.s32 %v1285, %v1287
    %v1289 = vrot.slane %v1281, %v1288
    %v1291 = vunpack.c.l.s4 1966171168
    %v1292 = vunpack.c.0.s8 %v1291
    %v1293 = vlaneseq
    %v1294 = vshrl.u32 %v1293, 7
    %v1295 = vsub.s32 %v1292, %v1294
    %v1296 = vrot.slane %v1289, %v1295
    %v1297 = vunpack.i.l.s16 %v1296
    %v1298 = vunpack.i.h.s16 %v1296
    %v1299 = vpack.i.b16 %v1297, %v1297
    %v1300 = vpack.i.b16 %v1298, %v1298
    %v1302 = vunpack.c.l.s4 286326784
    %v1303 = vunpack.c.0.s8 %v1302
    %v1304 = vlaneseq
    %v1305 = vshrl.u32 %v1304, 7
    %v1306 = vsub.s32 %v1303, %v1305
    %v1307 = vrot.slane %v1299, %v1306
    %v1309 = vunpack.c.l.s4 286326784
    %v1310 = vunpack.c.0.s8 %v1309
    %v1311 = vlaneseq
    %v1312 = vshrl.u32 %v1311, 7
    %v1313 = vsub.s32 %v1310, %v1312
    %v1314 = vrot.slane %v1300, %v1313
    %vm1317 = vcmask 1043459
    %vm1318 = vsmask.f32 7950
    %vm1319 = vmand %vm1317, %vm1318
    %v1320 = vld [vmem:[%s81] sm:$0x8]
    %v1321 = vsel %vm1319, %v1307, %v1320
    %1322 = vst [vmem:[%s81] sm:$0x8] %v1321
    %v1323 = vld [vmem:[%s81 + $0x4] sm:$0x8]
    %v1324 = vsel %vm1319, %v1314, %v1323
    %1325 = vst [vmem:[%s81 + $0x4] sm:$0x8] %v1324
    %v1326 = vld [vmem:[#allocation4] sm:$0x11]
    %v1327 = vld [vmem:[#allocation4 + $0x8] sm:$0x11]
    %v1328 = vld [vmem:[#allocation4 + $0x10] sm:$0x11]
    %v1329 = vld [vmem:[#allocation4 + $0x18] sm:$0x11]
    %v1330 = vld [vmem:[#allocation5] sm:$0x88]
    %v1331 = vld [vmem:[#allocation5 + $0x8] sm:$0x88]
    %v1332 = vld [vmem:[#allocation5 + $0x10] sm:$0x88]
    %v1333 = vld [vmem:[#allocation5 + $0x18] sm:$0x88]
    %v1338 = vunpack.c.l.b16 %v1326
    %v1339 = vunpack.c.h.b16 %v1326
    %v1340 = vunpack.c.l.b16 %v1327
    %v1341 = vunpack.c.h.b16 %v1327
    %v1342 = vunpack.c.l.b16 %v1328
    %v1343 = vunpack.c.h.b16 %v1328
    %v1344 = vunpack.c.l.b16 %v1329
    %v1345 = vunpack.c.h.b16 %v1329
    %v1346 = vpack.c.b16 %v1338, %v1338
    %v1347 = vpack.c.b16 %v1339, %v1339
    %v1348 = vpack.c.b16 %v1340, %v1340
    %v1349 = vpack.c.b16 %v1341, %v1341
    %v1350 = vpack.c.b16 %v1342, %v1342
    %v1351 = vpack.c.b16 %v1343, %v1343
    %v1352 = vpack.c.b16 %v1344, %v1344
    %v1353 = vpack.c.b16 %v1345, %v1345
    %v1354 = vunpack.c.l.b16 %v1346
    %v1355 = vunpack.c.l.b16 %v1347
    %v1356 = vunpack.c.l.b16 %v1348
    %v1357 = vunpack.c.l.b16 %v1349
    %v1358 = vunpack.c.l.b16 %v1350
    %v1359 = vunpack.c.l.b16 %v1351
    %v1360 = vunpack.c.l.b16 %v1352
    %v1361 = vunpack.c.l.b16 %v1353
    %v1362 = vrot.slane %v1358, 7
    %vm1363 = vcmask 1042434
    %v1364 = vsel %vm1363, %v1362, %v1354
    %v1365 = vrot.slane %v1359, 7
    %v1366 = vsel %vm1363, %v1365, %v1355
    %v1367 = vrot.slane %v1360, 7
    %v1368 = vsel %vm1363, %v1367, %v1356
    %v1369 = vrot.slane %v1361, 7
    %v1370 = vsel %vm1363, %v1369, %v1357
    %v1371 = vpack.c.b16 %v1364, %v1364
    %v1372 = vpack.c.b16 %v1366, %v1366
    %v1373 = vpack.c.b16 %v1368, %v1368
    %v1374 = vpack.c.b16 %v1370, %v1370
    %v1383 = vunpack.c.l.b16 %v1330
    %v1384 = vunpack.c.h.b16 %v1330
    %v1385 = vunpack.c.l.b16 %v1331
    %v1386 = vunpack.c.h.b16 %v1331
    %v1387 = vunpack.c.l.b16 %v1332
    %v1388 = vunpack.c.h.b16 %v1332
    %v1389 = vunpack.c.l.b16 %v1333
    %v1390 = vunpack.c.h.b16 %v1333
    %v1391 = vpack.c.b16 %v1383, %v1383
    %v1392 = vpack.c.b16 %v1384, %v1384
    %v1393 = vpack.c.b16 %v1385, %v1385
    %v1394 = vpack.c.b16 %v1386, %v1386
    %v1395 = vpack.c.b16 %v1387, %v1387
    %v1396 = vpack.c.b16 %v1388, %v1388
    %v1397 = vpack.c.b16 %v1389, %v1389
    %v1398 = vpack.c.b16 %v1390, %v1390
    %v1399 = vunpack.c.l.b16 %v1391
    %v1400 = vunpack.c.l.b16 %v1392
    %v1401 = vunpack.c.l.b16 %v1393
    %v1402 = vunpack.c.l.b16 %v1394
    %v1403 = vunpack.c.l.b16 %v1395
    %v1404 = vunpack.c.l.b16 %v1396
    %v1405 = vunpack.c.l.b16 %v1397
    %v1406 = vunpack.c.l.b16 %v1398
    %v1407 = vrot.slane %v1399, 5
    %v1408 = vrot.slane %v1403, 4
    %v1409 = vsel %vm1363, %v1408, %v1407
    %v1410 = vrot.slane %v1400, 5
    %v1411 = vrot.slane %v1404, 4
    %v1412 = vsel %vm1363, %v1411, %v1410
    %v1413 = vrot.slane %v1401, 5
    %v1414 = vrot.slane %v1405, 4
    %v1415 = vsel %vm1363, %v1414, %v1413
    %v1416 = vrot.slane %v1402, 5
    %v1417 = vrot.slane %v1406, 4
    %v1418 = vsel %vm1363, %v1417, %v1416
    %v1419 = vpack.c.b16 %v1409, %v1409
    %v1420 = vpack.c.b16 %v1412, %v1412
    %v1421 = vpack.c.b16 %v1415, %v1415
    %v1422 = vpack.c.b16 %v1418, %v1418
    %v1427 = vunpack.c.l.bf16 %v1371
    %v1428 = vunpack.c.l.bf16 %v1372
    %v1429 = vunpack.c.l.bf16 %v1373
    %v1430 = vunpack.c.l.bf16 %v1374
    %v1431 = vunpack.c.l.bf16 %v1419
    %v1432 = vunpack.c.l.bf16 %v1420
    %v1433 = vunpack.c.l.bf16 %v1421
    %v1434 = vunpack.c.l.bf16 %v1422
    %v1435 = vld [vmem:[#allocation2] sm:$0xf]
    %v1438 = vunpack.c.l.s4 1983009808
    %v1439 = vunpack.c.0.s8 %v1438
    %v1440 = vlaneseq
    %v1441 = vshrl.u32 %v1440, 7
    %v1442 = vsub.s32 %v1439, %v1441
    %v1443 = vrot.slane %v1435, %v1442
    %v1444 = vcombine.high %v1443, %v1443
    %v1447 = vpack.c.bf16 %v1443, %v1443
    %v1448 = vpack.c.bf16 %v1444, %v1444
    %1449 = vmatprep.subr.bf16.mxu0 %v725
    %1450 = vmatpush1.bf16.msra.mxu0 %v724
    %1451 = vmatprep.subr.bf16.mxu0 %v733
    %1452 = vmatpush1.bf16.msra.mxu0 %v732
    %1453 = vmatprep.subr.bf16.mxu0 %v741
    %1454 = vmatpush1.bf16.msra.mxu0 %v740
    %1455 = vmatprep.subr.bf16.mxu0 %v749
    %1456 = vmatpush1.bf16.msra.mxu0 %v748
    %1457 = vmatprep.subr.bf16.mxu0 %v757
    %1458 = vmatpush1.bf16.msra.mxu0 %v756
    %1459 = vmatprep.subr.bf16.mxu0 %v765
    %1460 = vmatpush1.bf16.msra.mxu0 %v764
    %1461 = vmatprep.subr.bf16.mxu0 %v773
    %1462 = vmatpush1.bf16.msra.mxu0 %v772
    %1463 = vmatprep.subr.bf16.mxu0 %v781
    %1464 = vmatpush1.bf16.msra.mxu0 %v780
    %1465 = vmatprep.subr.bf16.mxu0 %v789
    %1466 = vmatpush1.bf16.msra.mxu0 %v788
    %1467 = vmatprep.subr.bf16.mxu0 %v797
    %1468 = vmatpush1.bf16.msra.mxu0 %v796
    %1469 = vmatprep.subr.bf16.mxu0 %v805
    %1470 = vmatpush1.bf16.msra.mxu0 %v804
    %1471 = vmatprep.subr.bf16.mxu0 %v813
    %1472 = vmatpush1.bf16.msra.mxu0 %v812
    %1473 = vmatprep.subr.bf16.mxu0 %v821
    %1474 = vmatpush1.bf16.msra.mxu0 %v820
    %1475 = vmatprep.subr.bf16.mxu0 %v829
    %1476 = vmatpush1.bf16.msra.mxu0 %v828
    %1477 = vmatprep.subr.bf16.mxu0 %v837
    %1478 = vmatpush1.bf16.msra.mxu0 %v836
    %1479 = vmatprep.subr.bf16.mxu0 %v845
    %1480 = vmatpush1.bf16.msra.mxu0 %v844
    %1481 = vmatprep.mubr.bf16.mxu0 %v1448
    %1482 = vmatmul.mubr.bf16.gmra.mrb[0].mxu0 %v1447
    %v1483 = vpop.f32.mrb[0].mxu0
    %v1484 = vadd.f32 0.0, %v1483
    %v1485 = vpop.f32.mrb[0].mxu0
    %v1486 = vadd.f32 0.0, %v1485
    %v1487 = vpop.f32.mrb[0].mxu0
    %v1488 = vpop.f32.mrb[0].mxu0
    %1489 = vdwg.mxu0
    %1490 = vmatprep.subr.bf16.mxu0 %v727
    %1491 = vmatpush1.bf16.msra.mxu0 %v726
    %1492 = vmatprep.subr.bf16.mxu0 %v735
    %1493 = vmatpush1.bf16.msra.mxu0 %v734
    %1494 = vmatprep.subr.bf16.mxu0 %v743
    %1495 = vmatpush1.bf16.msra.mxu0 %v742
    %1496 = vmatprep.subr.bf16.mxu0 %v751
    %1497 = vmatpush1.bf16.msra.mxu0 %v750
    %1498 = vmatprep.subr.bf16.mxu0 %v759
    %1499 = vmatpush1.bf16.msra.mxu0 %v758
    %1500 = vmatprep.subr.bf16.mxu0 %v767
    %1501 = vmatpush1.bf16.msra.mxu0 %v766
    %1502 = vmatprep.subr.bf16.mxu0 %v775
    %1503 = vmatpush1.bf16.msra.mxu0 %v774
    %1504 = vmatprep.subr.bf16.mxu0 %v783
    %1505 = vmatpush1.bf16.msra.mxu0 %v782
    %1506 = vmatprep.subr.bf16.mxu0 %v791
    %1507 = vmatpush1.bf16.msra.mxu0 %v790
    %1508 = vmatprep.subr.bf16.mxu0 %v799
    %1509 = vmatpush1.bf16.msra.mxu0 %v798
    %1510 = vmatprep.subr.bf16.mxu0 %v807
    %1511 = vmatpush1.bf16.msra.mxu0 %v806
    %1512 = vmatprep.subr.bf16.mxu0 %v815
    %1513 = vmatpush1.bf16.msra.mxu0 %v814
    %1514 = vmatprep.subr.bf16.mxu0 %v823
    %1515 = vmatpush1.bf16.msra.mxu0 %v822
    %1516 = vmatprep.subr.bf16.mxu0 %v831
    %1517 = vmatpush1.bf16.msra.mxu0 %v830
    %1518 = vmatprep.subr.bf16.mxu0 %v839
    %1519 = vmatpush1.bf16.msra.mxu0 %v838
    %1520 = vmatprep.subr.bf16.mxu0 %v847
    %1521 = vmatpush1.bf16.msra.mxu0 %v846
    %1522 = vmatprep.mubr.bf16.mxu0 %v1448
    %1523 = vmatmul.mubr.bf16.gmra.mrb[0].mxu0 %v1447
    %v1524 = vpop.f32.mrb[0].mxu0
    %v1525 = vadd.f32 0.0, %v1524
    %v1526 = vpop.f32.mrb[0].mxu0
    %v1527 = vadd.f32 0.0, %v1526
    %v1528 = vpop.f32.mrb[0].mxu0
    %v1529 = vpop.f32.mrb[0].mxu0
    %1530 = vdwg.mxu0
    %1531 = vmatprep.subr.bf16.mxu0 %v729
    %1532 = vmatpush1.bf16.msra.mxu0 %v728
    %1533 = vmatprep.subr.bf16.mxu0 %v737
    %1534 = vmatpush1.bf16.msra.mxu0 %v736
    %1535 = vmatprep.subr.bf16.mxu0 %v745
    %1536 = vmatpush1.bf16.msra.mxu0 %v744
    %1537 = vmatprep.subr.bf16.mxu0 %v753
    %1538 = vmatpush1.bf16.msra.mxu0 %v752
    %1539 = vmatprep.subr.bf16.mxu0 %v761
    %1540 = vmatpush1.bf16.msra.mxu0 %v760
    %1541 = vmatprep.subr.bf16.mxu0 %v769
    %1542 = vmatpush1.bf16.msra.mxu0 %v768
    %1543 = vmatprep.subr.bf16.mxu0 %v777
    %1544 = vmatpush1.bf16.msra.mxu0 %v776
    %1545 = vmatprep.subr.bf16.mxu0 %v785
    %1546 = vmatpush1.bf16.msra.mxu0 %v784
    %1547 = vmatprep.subr.bf16.mxu0 %v793
    %1548 = vmatpush1.bf16.msra.mxu0 %v792
    %1549 = vmatprep.subr.bf16.mxu0 %v801
    %1550 = vmatpush1.bf16.msra.mxu0 %v800
    %1551 = vmatprep.subr.bf16.mxu0 %v809
    %1552 = vmatpush1.bf16.msra.mxu0 %v808
    %1553 = vmatprep.subr.bf16.mxu0 %v817
    %1554 = vmatpush1.bf16.msra.mxu0 %v816
    %1555 = vmatprep.subr.bf16.mxu0 %v825
    %1556 = vmatpush1.bf16.msra.mxu0 %v824
    %1557 = vmatprep.subr.bf16.mxu0 %v833
    %1558 = vmatpush1.bf16.msra.mxu0 %v832
    %1559 = vmatprep.subr.bf16.mxu0 %v841
    %1560 = vmatpush1.bf16.msra.mxu0 %v840
    %1561 = vmatprep.subr.bf16.mxu0 %v849
    %1562 = vmatpush1.bf16.msra.mxu0 %v848
    %1563 = vmatprep.mubr.bf16.mxu0 %v1448
    %1564 = vmatmul.mubr.bf16.gmra.mrb[0].mxu0 %v1447
    %v1565 = vpop.f32.mrb[0].mxu0
    %v1566 = vadd.f32 0.0, %v1565
    %v1567 = vpop.f32.mrb[0].mxu0
    %v1568 = vadd.f32 0.0, %v1567
    %v1569 = vpop.f32.mrb[0].mxu0
    %v1570 = vpop.f32.mrb[0].mxu0
    %1571 = vdwg.mxu0
    %1572 = vmatprep.subr.bf16.mxu0 %v731
    %1573 = vmatpush1.bf16.msra.mxu0 %v730
    %1574 = vmatprep.subr.bf16.mxu0 %v739
    %1575 = vmatpush1.bf16.msra.mxu0 %v738
    %1576 = vmatprep.subr.bf16.mxu0 %v747
    %1577 = vmatpush1.bf16.msra.mxu0 %v746
    %1578 = vmatprep.subr.bf16.mxu0 %v755
    %1579 = vmatpush1.bf16.msra.mxu0 %v754
    %1580 = vmatprep.subr.bf16.mxu0 %v763
    %1581 = vmatpush1.bf16.msra.mxu0 %v762
    %1582 = vmatprep.subr.bf16.mxu0 %v771
    %1583 = vmatpush1.bf16.msra.mxu0 %v770
    %1584 = vmatprep.subr.bf16.mxu0 %v779
    %1585 = vmatpush1.bf16.msra.mxu0 %v778
    %1586 = vmatprep.subr.bf16.mxu0 %v787
    %1587 = vmatpush1.bf16.msra.mxu0 %v786
    %1588 = vmatprep.subr.bf16.mxu0 %v795
    %1589 = vmatpush1.bf16.msra.mxu0 %v794
    %1590 = vmatprep.subr.bf16.mxu0 %v803
    %1591 = vmatpush1.bf16.msra.mxu0 %v802
    %1592 = vmatprep.subr.bf16.mxu0 %v811
    %1593 = vmatpush1.bf16.msra.mxu0 %v810
    %1594 = vmatprep.subr.bf16.mxu0 %v819
    %1595 = vmatpush1.bf16.msra.mxu0 %v818
    %1596 = vmatprep.subr.bf16.mxu0 %v827
    %1597 = vmatpush1.bf16.msra.mxu0 %v826
    %1598 = vmatprep.subr.bf16.mxu0 %v835
    %1599 = vmatpush1.bf16.msra.mxu0 %v834
    %1600 = vmatprep.subr.bf16.mxu0 %v843
    %1601 = vmatpush1.bf16.msra.mxu0 %v842
    %1602 = vmatprep.subr.bf16.mxu0 %v851
    %1603 = vmatpush1.bf16.msra.mxu0 %v850
    %1604 = vmatprep.mubr.bf16.mxu0 %v1448
    %1605 = vmatmul.mubr.bf16.gmra.mrb[0].mxu0 %v1447
    %v1606 = vpop.f32.mrb[0].mxu0
    %v1607 = vadd.f32 0.0, %v1606
    %v1608 = vpop.f32.mrb[0].mxu0
    %v1609 = vadd.f32 0.0, %v1608
    %v1610 = vpop.f32.mrb[0].mxu0
    %v1611 = vpop.f32.mrb[0].mxu0
    %1612 = vdwg.mxu0
    %v1621 = vrot.slane %v1484, 7
    %v1622 = vrot.slane %v1486, 7
    %v1623 = vrot.slane %v1525, 7
    %v1624 = vrot.slane %v1527, 7
    %v1625 = vrot.slane %v1566, 7
    %v1626 = vrot.slane %v1568, 7
    %v1627 = vrot.slane %v1607, 7
    %v1628 = vrot.slane %v1609, 7
    %v1637 = vadd.f32 %v1427, %v1621
    %v1638 = vadd.f32 %v1428, %v1622
    %v1639 = vadd.f32 %v1429, %v1623
    %v1640 = vadd.f32 %v1430, %v1624
    %v1641 = vadd.f32 %v1431, %v1625
    %v1642 = vadd.f32 %v1432, %v1626
    %v1643 = vadd.f32 %v1433, %v1627
    %v1644 = vadd.f32 %v1434, %v1628
    %v1645 = vxor.u32 %v1637, 2147483648
    %v1646 = vxor.u32 %v1641, 2147483648
    %v1647 = vmul.f32 %v1645, 1.442695
    %v1648 = vpow.pop %v1647
    %v1649 = vmul.f32 %v1646, 1.442695
    %v1650 = vpow.pop %v1649
    %v1651 = vadd.f32 %v1648, 1.0
    %v1652 = vadd.f32 %v1650, 1.0
    %v1653 = vrcp.pop %v1651
    %v1654 = vmul.f32 1.0, %v1653
    %v1655 = vrcp.pop %v1652
    %v1656 = vmul.f32 1.0, %v1655
    %v1657 = vxor.u32 %v1638, 2147483648
    %v1658 = vxor.u32 %v1642, 2147483648
    %v1659 = vmul.f32 %v1657, 1.442695
    %v1660 = vpow.pop %v1659
    %v1661 = vmul.f32 %v1658, 1.442695
    %v1662 = vpow.pop %v1661
    %v1663 = vadd.f32 %v1660, 1.0
    %v1664 = vadd.f32 %v1662, 1.0
    %v1665 = vrcp.pop %v1663
    %v1666 = vmul.f32 1.0, %v1665
    %v1667 = vrcp.pop %v1664
    %v1668 = vmul.f32 1.0, %v1667
    %v1669 = vtanh.pop %v1639
    %v1670 = vtanh.pop %v1643
    %v1671 = vxor.u32 %v1640, 2147483648
    %v1672 = vxor.u32 %v1644, 2147483648
    %v1673 = vmul.f32 %v1671, 1.442695
    %v1674 = vpow.pop %v1673
    %v1675 = vmul.f32 %v1672, 1.442695
    %v1676 = vpow.pop %v1675
    %v1677 = vadd.f32 %v1674, 1.0
    %v1678 = vadd.f32 %v1676, 1.0
    %v1679 = vrcp.pop %v1677
    %v1680 = vmul.f32 1.0, %v1679
    %v1681 = vrcp.pop %v1678
    %v1682 = vmul.f32 1.0, %v1681
    %v1683 = vld [vmem:[#allocation3] sm:$0xf]
    %v1686 = vunpack.c.l.s4 1983009808
    %v1687 = vunpack.c.0.s8 %v1686
    %v1688 = vlaneseq
    %v1689 = vshrl.u32 %v1688, 7
    %v1690 = vsub.s32 %v1687, %v1689
    %v1691 = vrot.slane %v1683, %v1690
    %v1692 = vcombine.high %v1691, %v1691
    %v1693 = vrot.slane %v1691, 7
    %v1694 = vrot.slane %v1692, 7
    %v1697 = vmul.f32 %v1666, %v1693
    %v1698 = vmul.f32 %v1668, %v1694
    %v1699 = vmul.f32 %v1654, %v1669
    %v1700 = vmul.f32 %v1656, %v1670
    %v1701 = vadd.f32 %v1697, %v1699
    %v1702 = vadd.f32 %v1698, %v1700
    %v1703 = vtanh.pop %v1701
    %v1704 = vtanh.pop %v1702
    %v1705 = vmul.f32 %v1680, %v1703
    %v1706 = vmul.f32 %v1682, %v1704
    %v1709 = vcombine.low %v1705, %v1706
    %v1711 = vunpack.c.l.s4 1983009808
    %v1712 = vunpack.c.0.s8 %v1711
    %v1713 = vlaneseq
    %v1714 = vshrl.u32 %v1713, 7
    %v1715 = vsub.s32 %v1712, %v1714
    %v1716 = vrot.slane %v1709, %v1715
    %v1717 = vcombine.high %v1716, %v1716
    %vm1718 = vcmask 1040384
    %vm1719 = vmor %vm1718, %vm1363
    %vm1720 = vcmask 1044484
    %vm1721 = vmor %vm1719, %vm1720
    %vm1722 = vcmask 1046534
    %vm1723 = vmor %vm1721, %vm1722
    %v1724 = vrot.slane %v1716, 7
    %v1725 = vrot.slane %v1724, 2
    %v1726 = vrot.slane %v1717, 7
    %v1727 = vsel %vm1723, %v1725, %v1726
    %1729 = vst [vmem:[#allocation2] sm:$0xf] %v1727
    %v1732 = vcombine.low %v1701, %v1702
    %v1734 = vunpack.c.l.s4 1983009808
    %v1735 = vunpack.c.0.s8 %v1734
    %v1736 = vlaneseq
    %v1737 = vshrl.u32 %v1736, 7
    %v1738 = vsub.s32 %v1735, %v1737
    %v1739 = vrot.slane %v1732, %v1738
    %v1740 = vcombine.high %v1739, %v1739
    %v1741 = vrot.slane %v1739, 7
    %v1742 = vrot.slane %v1741, 2
    %v1743 = vrot.slane %v1740, 7
    %v1744 = vsel %vm1723, %v1742, %v1743
    %1746 = vst [vmem:[#allocation3] sm:$0xf] %v1744
    %v1747 = vpack.c.bf16 %v1705, %v1705
    %v1750 = vunpack.c.l.s4 1966171168
    %v1751 = vunpack.c.0.s8 %v1750
    %v1752 = vlaneseq
    %v1753 = vshrl.u32 %v1752, 7
    %v1754 = vsub.s32 %v1751, %v1753
    %v1755 = vrot.slane %v1747, %v1754
    %v1756 = vcombine.high %v1755, %v1755
    %v1758 = vunpack.c.l.s4 1966171168
    %v1759 = vunpack.c.0.s8 %v1758
    %v1760 = vlaneseq
    %v1761 = vshrl.u32 %v1760, 7
    %v1762 = vsub.s32 %v1759, %v1761
    %v1763 = vrot.slane %v1755, %v1762
    %v1765 = vunpack.c.l.s4 1966171168
    %v1766 = vunpack.c.0.s8 %v1765
    %v1767 = vlaneseq
    %v1768 = vshrl.u32 %v1767, 7
    %v1769 = vsub.s32 %v1766, %v1768
    %v1770 = vrot.slane %v1756, %v1769
    %v1771 = vunpack.i.h.s16 %v1763
    %v1772 = vunpack.i.l.s16 %v1770
    %v1773 = vpack.i.b16 %v1771, %v1771
    %v1774 = vpack.i.b16 %v1772, %v1772
    %v1776 = vunpack.c.l.s4 286326784
    %v1777 = vunpack.c.0.s8 %v1776
    %v1778 = vlaneseq
    %v1779 = vshrl.u32 %v1778, 7
    %v1780 = vsub.s32 %v1777, %v1779
    %v1781 = vrot.slane %v1773, %v1780
    %v1783 = vunpack.c.l.s4 286326784
    %v1784 = vunpack.c.0.s8 %v1783
    %v1785 = vlaneseq
    %v1786 = vshrl.u32 %v1785, 7
    %v1787 = vsub.s32 %v1784, %v1786
    %v1788 = vrot.slane %v1774, %v1787
    %vm1791 = vsmask.f32 7938
    %vm1792 = vmand %vm1272, %vm1791
    %v1793 = vld [vmem:[%s3] sm:$0x1]
    %v1794 = vsel %vm1792, %v1781, %v1793
    %1795 = vst [vmem:[%s3] sm:$0x1] %v1794
    %v1796 = vld [vmem:[%s3 + $0x4] sm:$0x1]
    %v1797 = vsel %vm1792, %v1788, %v1796
    %1798 = vst [vmem:[%s3 + $0x4] sm:$0x1] %v1797
    %v1799 = vpack.c.bf16 %v1706, %v1706
    %v1802 = vunpack.c.l.s4 1966171168
    %v1803 = vunpack.c.0.s8 %v1802
    %v1804 = vlaneseq
    %v1805 = vshrl.u32 %v1804, 7
    %v1806 = vsub.s32 %v1803, %v1805
    %v1807 = vrot.slane %v1799, %v1806
    %v1808 = vcombine.high %v1807, %v1807
    %v1810 = vunpack.c.l.s4 1966171168
    %v1811 = vunpack.c.0.s8 %v1810
    %v1812 = vlaneseq
    %v1813 = vshrl.u32 %v1812, 7
    %v1814 = vsub.s32 %v1811, %v1813
    %v1815 = vrot.slane %v1807, %v1814
    %v1817 = vunpack.c.l.s4 1966171168
    %v1818 = vunpack.c.0.s8 %v1817
    %v1819 = vlaneseq
    %v1820 = vshrl.u32 %v1819, 7
    %v1821 = vsub.s32 %v1818, %v1820
    %v1822 = vrot.slane %v1808, %v1821
    %v1823 = vunpack.i.h.s16 %v1815
    %v1824 = vunpack.i.l.s16 %v1822
    %v1825 = vpack.i.b16 %v1823, %v1823
    %v1826 = vpack.i.b16 %v1824, %v1824
    %v1828 = vunpack.c.l.s4 286326784
    %v1829 = vunpack.c.0.s8 %v1828
    %v1830 = vlaneseq
    %v1831 = vshrl.u32 %v1830, 7
    %v1832 = vsub.s32 %v1829, %v1831
    %v1833 = vrot.slane %v1825, %v1832
    %v1835 = vunpack.c.l.s4 286326784
    %v1836 = vunpack.c.0.s8 %v1835
    %v1837 = vlaneseq
    %v1838 = vshrl.u32 %v1837, 7
    %v1839 = vsub.s32 %v1836, %v1838
    %v1840 = vrot.slane %v1826, %v1839
    %vm1843 = vsmask.f32 3328
    %vm1844 = vmand %vm1317, %vm1843
    %v1845 = vld [vmem:[%s81] sm:$0x8]
    %v1846 = vsel %vm1844, %v1833, %v1845
    %1847 = vst [vmem:[%s81] sm:$0x8] %v1846
    %v1848 = vld [vmem:[%s81 + $0x4] sm:$0x8]
    %v1849 = vsel %vm1844, %v1840, %v1848
    %1850 = vst [vmem:[%s81 + $0x4] sm:$0x8] %v1849
    %v1851 = vld [vmem:[#allocation4] sm:$0x22]
    %v1852 = vld [vmem:[#allocation4 + $0x8] sm:$0x22]
    %v1853 = vld [vmem:[#allocation4 + $0x10] sm:$0x22]
    %v1854 = vld [vmem:[#allocation4 + $0x18] sm:$0x22]
    %v1855 = vld [vmem:[#allocation5] sm:$0x44]
    %v1856 = vld [vmem:[#allocation5 + $0x8] sm:$0x44]
    %v1857 = vld [vmem:[#allocation5 + $0x10] sm:$0x44]
    %v1858 = vld [vmem:[#allocation5 + $0x18] sm:$0x44]
    %v1863 = vunpack.c.l.b16 %v1851
    %v1864 = vunpack.c.h.b16 %v1851
    %v1865 = vunpack.c.l.b16 %v1852
    %v1866 = vunpack.c.h.b16 %v1852
    %v1867 = vunpack.c.l.b16 %v1853
    %v1868 = vunpack.c.h.b16 %v1853
    %v1869 = vunpack.c.l.b16 %v1854
    %v1870 = vunpack.c.h.b16 %v1854
    %v1871 = vpack.c.b16 %v1863, %v1863
    %v1872 = vpack.c.b16 %v1864, %v1864
    %v1873 = vpack.c.b16 %v1865, %v1865
    %v1874 = vpack.c.b16 %v1866, %v1866
    %v1875 = vpack.c.b16 %v1867, %v1867
    %v1876 = vpack.c.b16 %v1868, %v1868
    %v1877 = vpack.c.b16 %v1869, %v1869
    %v1878 = vpack.c.b16 %v1870, %v1870
    %v1879 = vunpack.c.l.b16 %v1871
    %v1880 = vunpack.c.l.b16 %v1872
    %v1881 = vunpack.c.l.b16 %v1873
    %v1882 = vunpack.c.l.b16 %v1874
    %v1883 = vunpack.c.l.b16 %v1875
    %v1884 = vunpack.c.l.b16 %v1876
    %v1885 = vunpack.c.l.b16 %v1877
    %v1886 = vunpack.c.l.b16 %v1878
    %v1887 = vrot.slane %v1883, 7
    %vm1888 = vcmask 1043459
    %v1889 = vsel %vm1888, %v1887, %v1879
    %v1890 = vrot.slane %v1884, 7
    %v1891 = vsel %vm1888, %v1890, %v1880
    %v1892 = vrot.slane %v1885, 7
    %v1893 = vsel %vm1888, %v1892, %v1881
    %v1894 = vrot.slane %v1886, 7
    %v1895 = vsel %vm1888, %v1894, %v1882
    %v1896 = vpack.c.b16 %v1889, %v1889
    %v1897 = vpack.c.b16 %v1891, %v1891
    %v1898 = vpack.c.b16 %v1893, %v1893
    %v1899 = vpack.c.b16 %v1895, %v1895
    %v1908 = vunpack.c.l.b16 %v1855
    %v1909 = vunpack.c.h.b16 %v1855
    %v1910 = vunpack.c.l.b16 %v1856
    %v1911 = vunpack.c.h.b16 %v1856
    %v1912 = vunpack.c.l.b16 %v1857
    %v1913 = vunpack.c.h.b16 %v1857
    %v1914 = vunpack.c.l.b16 %v1858
    %v1915 = vunpack.c.h.b16 %v1858
    %v1916 = vpack.c.b16 %v1908, %v1908
    %v1917 = vpack.c.b16 %v1909, %v1909
    %v1918 = vpack.c.b16 %v1910, %v1910
    %v1919 = vpack.c.b16 %v1911, %v1911
    %v1920 = vpack.c.b16 %v1912, %v1912
    %v1921 = vpack.c.b16 %v1913, %v1913
    %v1922 = vpack.c.b16 %v1914, %v1914
    %v1923 = vpack.c.b16 %v1915, %v1915
    %v1924 = vunpack.c.l.b16 %v1916
    %v1925 = vunpack.c.l.b16 %v1917
    %v1926 = vunpack.c.l.b16 %v1918
    %v1927 = vunpack.c.l.b16 %v1919
    %v1928 = vunpack.c.l.b16 %v1920
    %v1929 = vunpack.c.l.b16 %v1921
    %v1930 = vunpack.c.l.b16 %v1922
    %v1931 = vunpack.c.l.b16 %v1923
    %v1932 = vrot.slane %v1924, 3
    %v1933 = vrot.slane %v1928, 2
    %v1934 = vsel %vm1888, %v1933, %v1932
    %v1935 = vrot.slane %v1925, 3
    %v1936 = vrot.slane %v1929, 2
    %v1937 = vsel %vm1888, %v1936, %v1935
    %v1938 = vrot.slane %v1926, 3
    %v1939 = vrot.slane %v1930, 2
    %v1940 = vsel %vm1888, %v1939, %v1938
    %v1941 = vrot.slane %v1927, 3
    %v1942 = vrot.slane %v1931, 2
    %v1943 = vsel %vm1888, %v1942, %v1941
    %v1944 = vpack.c.b16 %v1934, %v1934
    %v1945 = vpack.c.b16 %v1937, %v1937
    %v1946 = vpack.c.b16 %v1940, %v1940
    %v1947 = vpack.c.b16 %v1943, %v1943
    %v1952 = vunpack.c.l.bf16 %v1896
    %v1953 = vunpack.c.l.bf16 %v1897
    %v1954 = vunpack.c.l.bf16 %v1898
    %v1955 = vunpack.c.l.bf16 %v1899
    %v1956 = vunpack.c.l.bf16 %v1944
    %v1957 = vunpack.c.l.bf16 %v1945
    %v1958 = vunpack.c.l.bf16 %v1946
    %v1959 = vunpack.c.l.bf16 %v1947
    %v1960 = vld [vmem:[#allocation2] sm:$0xf]
    %v1963 = vunpack.c.l.s4 1983009808
    %v1964 = vunpack.c.0.s8 %v1963
    %v1965 = vlaneseq
    %v1966 = vshrl.u32 %v1965, 7
    %v1967 = vsub.s32 %v1964, %v1966
    %v1968 = vrot.slane %v1960, %v1967
    %v1969 = vcombine.high %v1968, %v1968
    %v1972 = vpack.c.bf16 %v1968, %v1968
    %v1973 = vpack.c.bf16 %v1969, %v1969
    %1974 = vmatprep.subr.bf16.mxu0 %v725
    %1975 = vmatpush1.bf16.msra.mxu0 %v724
    %1976 = vmatprep.subr.bf16.mxu0 %v733
    %1977 = vmatpush1.bf16.msra.mxu0 %v732
    %1978 = vmatprep.subr.bf16.mxu0 %v741
    %1979 = vmatpush1.bf16.msra.mxu0 %v740
    %1980 = vmatprep.subr.bf16.mxu0 %v749
    %1981 = vmatpush1.bf16.msra.mxu0 %v748
    %1982 = vmatprep.subr.bf16.mxu0 %v757
    %1983 = vmatpush1.bf16.msra.mxu0 %v756
    %1984 = vmatprep.subr.bf16.mxu0 %v765
    %1985 = vmatpush1.bf16.msra.mxu0 %v764
    %1986 = vmatprep.subr.bf16.mxu0 %v773
    %1987 = vmatpush1.bf16.msra.mxu0 %v772
    %1988 = vmatprep.subr.bf16.mxu0 %v781
    %1989 = vmatpush1.bf16.msra.mxu0 %v780
    %1990 = vmatprep.subr.bf16.mxu0 %v789
    %1991 = vmatpush1.bf16.msra.mxu0 %v788
    %1992 = vmatprep.subr.bf16.mxu0 %v797
    %1993 = vmatpush1.bf16.msra.mxu0 %v796
    %1994 = vmatprep.subr.bf16.mxu0 %v805
    %1995 = vmatpush1.bf16.msra.mxu0 %v804
    %1996 = vmatprep.subr.bf16.mxu0 %v813
    %1997 = vmatpush1.bf16.msra.mxu0 %v812
    %1998 = vmatprep.subr.bf16.mxu0 %v821
    %1999 = vmatpush1.bf16.msra.mxu0 %v820
    %2000 = vmatprep.subr.bf16.mxu0 %v829
    %2001 = vmatpush1.bf16.msra.mxu0 %v828
    %2002 = vmatprep.subr.bf16.mxu0 %v837
    %2003 = vmatpush1.bf16.msra.mxu0 %v836
    %2004 = vmatprep.subr.bf16.mxu0 %v845
    %2005 = vmatpush1.bf16.msra.mxu0 %v844
    %2006 = vmatprep.mubr.bf16.mxu0 %v1973
    %2007 = vmatmul.mubr.bf16.gmra.mrb[0].mxu0 %v1972
    %v2008 = vpop.f32.mrb[0].mxu0
    %v2009 = vadd.f32 0.0, %v2008
    %v2010 = vpop.f32.mrb[0].mxu0
    %v2011 = vadd.f32 0.0, %v2010
    %v2012 = vpop.f32.mrb[0].mxu0
    %v2013 = vpop.f32.mrb[0].mxu0
    %2014 = vdwg.mxu0
    %2015 = vmatprep.subr.bf16.mxu0 %v727
    %2016 = vmatpush1.bf16.msra.mxu0 %v726
    %2017 = vmatprep.subr.bf16.mxu0 %v735
    %2018 = vmatpush1.bf16.msra.mxu0 %v734
    %2019 = vmatprep.subr.bf16.mxu0 %v743
    %2020 = vmatpush1.bf16.msra.mxu0 %v742
    %2021 = vmatprep.subr.bf16.mxu0 %v751
    %2022 = vmatpush1.bf16.msra.mxu0 %v750
    %2023 = vmatprep.subr.bf16.mxu0 %v759
    %2024 = vmatpush1.bf16.msra.mxu0 %v758
    %2025 = vmatprep.subr.bf16.mxu0 %v767
    %2026 = vmatpush1.bf16.msra.mxu0 %v766
    %2027 = vmatprep.subr.bf16.mxu0 %v775
    %2028 = vmatpush1.bf16.msra.mxu0 %v774
    %2029 = vmatprep.subr.bf16.mxu0 %v783
    %2030 = vmatpush1.bf16.msra.mxu0 %v782
    %2031 = vmatprep.subr.bf16.mxu0 %v791
    %2032 = vmatpush1.bf16.msra.mxu0 %v790
    %2033 = vmatprep.subr.bf16.mxu0 %v799
    %2034 = vmatpush1.bf16.msra.mxu0 %v798
    %2035 = vmatprep.subr.bf16.mxu0 %v807
    %2036 = vmatpush1.bf16.msra.mxu0 %v806
    %2037 = vmatprep.subr.bf16.mxu0 %v815
    %2038 = vmatpush1.bf16.msra.mxu0 %v814
    %2039 = vmatprep.subr.bf16.mxu0 %v823
    %2040 = vmatpush1.bf16.msra.mxu0 %v822
    %2041 = vmatprep.subr.bf16.mxu0 %v831
    %2042 = vmatpush1.bf16.msra.mxu0 %v830
    %2043 = vmatprep.subr.bf16.mxu0 %v839
    %2044 = vmatpush1.bf16.msra.mxu0 %v838
    %2045 = vmatprep.subr.bf16.mxu0 %v847
    %2046 = vmatpush1.bf16.msra.mxu0 %v846
    %2047 = vmatprep.mubr.bf16.mxu0 %v1973
    %2048 = vmatmul.mubr.bf16.gmra.mrb[0].mxu0 %v1972
    %v2049 = vpop.f32.mrb[0].mxu0
    %v2050 = vadd.f32 0.0, %v2049
    %v2051 = vpop.f32.mrb[0].mxu0
    %v2052 = vadd.f32 0.0, %v2051
    %v2053 = vpop.f32.mrb[0].mxu0
    %v2054 = vpop.f32.mrb[0].mxu0
    %2055 = vdwg.mxu0
    %2056 = vmatprep.subr.bf16.mxu0 %v729
    %2057 = vmatpush1.bf16.msra.mxu0 %v728
    %2058 = vmatprep.subr.bf16.mxu0 %v737
    %2059 = vmatpush1.bf16.msra.mxu0 %v736
    %2060 = vmatprep.subr.bf16.mxu0 %v745
    %2061 = vmatpush1.bf16.msra.mxu0 %v744
    %2062 = vmatprep.subr.bf16.mxu0 %v753
    %2063 = vmatpush1.bf16.msra.mxu0 %v752
    %2064 = vmatprep.subr.bf16.mxu0 %v761
    %2065 = vmatpush1.bf16.msra.mxu0 %v760
    %2066 = vmatprep.subr.bf16.mxu0 %v769
    %2067 = vmatpush1.bf16.msra.mxu0 %v768
    %2068 = vmatprep.subr.bf16.mxu0 %v777
    %2069 = vmatpush1.bf16.msra.mxu0 %v776
    %2070 = vmatprep.subr.bf16.mxu0 %v785
    %2071 = vmatpush1.bf16.msra.mxu0 %v784
    %2072 = vmatprep.subr.bf16.mxu0 %v793
    %2073 = vmatpush1.bf16.msra.mxu0 %v792
    %2074 = vmatprep.subr.bf16.mxu0 %v801
    %2075 = vmatpush1.bf16.msra.mxu0 %v800
    %2076 = vmatprep.subr.bf16.mxu0 %v809
    %2077 = vmatpush1.bf16.msra.mxu0 %v808
    %2078 = vmatprep.subr.bf16.mxu0 %v817
    %2079 = vmatpush1.bf16.msra.mxu0 %v816
    %2080 = vmatprep.subr.bf16.mxu0 %v825
    %2081 = vmatpush1.bf16.msra.mxu0 %v824
    %2082 = vmatprep.subr.bf16.mxu0 %v833
    %2083 = vmatpush1.bf16.msra.mxu0 %v832
    %2084 = vmatprep.subr.bf16.mxu0 %v841
    %2085 = vmatpush1.bf16.msra.mxu0 %v840
    %2086 = vmatprep.subr.bf16.mxu0 %v849
    %2087 = vmatpush1.bf16.msra.mxu0 %v848
    %2088 = vmatprep.mubr.bf16.mxu0 %v1973
    %2089 = vmatmul.mubr.bf16.gmra.mrb[0].mxu0 %v1972
    %v2090 = vpop.f32.mrb[0].mxu0
    %v2091 = vadd.f32 0.0, %v2090
    %v2092 = vpop.f32.mrb[0].mxu0
    %v2093 = vadd.f32 0.0, %v2092
    %v2094 = vpop.f32.mrb[0].mxu0
    %v2095 = vpop.f32.mrb[0].mxu0
    %2096 = vdwg.mxu0
    %2097 = vmatprep.subr.bf16.mxu0 %v731
    %2098 = vmatpush1.bf16.msra.mxu0 %v730
    %2099 = vmatprep.subr.bf16.mxu0 %v739
    %2100 = vmatpush1.bf16.msra.mxu0 %v738
    %2101 = vmatprep.subr.bf16.mxu0 %v747
    %2102 = vmatpush1.bf16.msra.mxu0 %v746
    %2103 = vmatprep.subr.bf16.mxu0 %v755
    %2104 = vmatpush1.bf16.msra.mxu0 %v754
    %2105 = vmatprep.subr.bf16.mxu0 %v763
    %2106 = vmatpush1.bf16.msra.mxu0 %v762
    %2107 = vmatprep.subr.bf16.mxu0 %v771
    %2108 = vmatpush1.bf16.msra.mxu0 %v770
    %2109 = vmatprep.subr.bf16.mxu0 %v779
    %2110 = vmatpush1.bf16.msra.mxu0 %v778
    %2111 = vmatprep.subr.bf16.mxu0 %v787
    %2112 = vmatpush1.bf16.msra.mxu0 %v786
    %2113 = vmatprep.subr.bf16.mxu0 %v795
    %2114 = vmatpush1.bf16.msra.mxu0 %v794
    %2115 = vmatprep.subr.bf16.mxu0 %v803
    %2116 = vmatpush1.bf16.msra.mxu0 %v802
    %2117 = vmatprep.subr.bf16.mxu0 %v811
    %2118 = vmatpush1.bf16.msra.mxu0 %v810
    %2119 = vmatprep.subr.bf16.mxu0 %v819
    %2120 = vmatpush1.bf16.msra.mxu0 %v818
    %2121 = vmatprep.subr.bf16.mxu0 %v827
    %2122 = vmatpush1.bf16.msra.mxu0 %v826
    %2123 = vmatprep.subr.bf16.mxu0 %v835
    %2124 = vmatpush1.bf16.msra.mxu0 %v834
    %2125 = vmatprep.subr.bf16.mxu0 %v843
    %2126 = vmatpush1.bf16.msra.mxu0 %v842
    %2127 = vmatprep.subr.bf16.mxu0 %v851
    %2128 = vmatpush1.bf16.msra.mxu0 %v850
    %2129 = vmatprep.mubr.bf16.mxu0 %v1973
    %2130 = vmatmul.mubr.bf16.gmra.mrb[0].mxu0 %v1972
    %v2131 = vpop.f32.mrb[0].mxu0
    %v2132 = vadd.f32 0.0, %v2131
    %v2133 = vpop.f32.mrb[0].mxu0
    %v2134 = vadd.f32 0.0, %v2133
    %v2135 = vpop.f32.mrb[0].mxu0
    %v2136 = vpop.f32.mrb[0].mxu0
    %2137 = vdwg.mxu0
    %v2146 = vrot.slane %v2009, 6
    %v2147 = vrot.slane %v2011, 6
    %v2148 = vrot.slane %v2050, 6
    %v2149 = vrot.slane %v2052, 6
    %v2150 = vrot.slane %v2091, 6
    %v2151 = vrot.slane %v2093, 6
    %v2152 = vrot.slane %v2132, 6
    %v2153 = vrot.slane %v2134, 6
    %v2162 = vadd.f32 %v1952, %v2146
    %v2163 = vadd.f32 %v1953, %v2147
    %v2164 = vadd.f32 %v1954, %v2148
    %v2165 = vadd.f32 %v1955, %v2149
    %v2166 = vadd.f32 %v1956, %v2150
    %v2167 = vadd.f32 %v1957, %v2151
    %v2168 = vadd.f32 %v1958, %v2152
    %v2169 = vadd.f32 %v1959, %v2153
    %v2170 = vxor.u32 %v2162, 2147483648
    %v2171 = vxor.u32 %v2166, 2147483648
    %v2172 = vmul.f32 %v2170, 1.442695
    %v2173 = vpow.pop %v2172
    %v2174 = vmul.f32 %v2171, 1.442695
    %v2175 = vpow.pop %v2174
    %v2176 = vadd.f32 %v2173, 1.0
    %v2177 = vadd.f32 %v2175, 1.0
    %v2178 = vrcp.pop %v2176
    %v2179 = vmul.f32 1.0, %v2178
    %v2180 = vrcp.pop %v2177
    %v2181 = vmul.f32 1.0, %v2180
    %v2182 = vxor.u32 %v2163, 2147483648
    %v2183 = vxor.u32 %v2167, 2147483648
    %v2184 = vmul.f32 %v2182, 1.442695
    %v2185 = vpow.pop %v2184
    %v2186 = vmul.f32 %v2183, 1.442695
    %v2187 = vpow.pop %v2186
    %v2188 = vadd.f32 %v2185, 1.0
    %v2189 = vadd.f32 %v2187, 1.0
    %v2190 = vrcp.pop %v2188
    %v2191 = vmul.f32 1.0, %v2190
    %v2192 = vrcp.pop %v2189
    %v2193 = vmul.f32 1.0, %v2192
    %v2194 = vtanh.pop %v2164
    %v2195 = vtanh.pop %v2168
    %v2196 = vxor.u32 %v2165, 2147483648
    %v2197 = vxor.u32 %v2169, 2147483648
    %v2198 = vmul.f32 %v2196, 1.442695
    %v2199 = vpow.pop %v2198
    %v2200 = vmul.f32 %v2197, 1.442695
    %v2201 = vpow.pop %v2200
    %v2202 = vadd.f32 %v2199, 1.0
    %v2203 = vadd.f32 %v2201, 1.0
    %v2204 = vrcp.pop %v2202
    %v2205 = vmul.f32 1.0, %v2204
    %v2206 = vrcp.pop %v2203
    %v2207 = vmul.f32 1.0, %v2206
    %v2208 = vld [vmem:[#allocation3] sm:$0xf]
    %v2210 = vcombine.low %v2208, %v2208
    %v2212 = vunpack.c.l.s4 1983009808
    %v2213 = vunpack.c.0.s8 %v2212
    %v2214 = vlaneseq
    %v2215 = vshrl.u32 %v2214, 7
    %v2216 = vsub.s32 %v2213, %v2215
    %v2217 = vrot.slane %v2210, %v2216
    %v2218 = vcombine.high %v2217, %v2217
    %v2221 = vmul.f32 %v2191, %v2217
    %v2222 = vmul.f32 %v2193, %v2218
    %v2223 = vmul.f32 %v2179, %v2194
    %v2224 = vmul.f32 %v2181, %v2195
    %v2225 = vadd.f32 %v2221, %v2223
    %v2226 = vadd.f32 %v2222, %v2224
    %v2227 = vtanh.pop %v2225
    %v2228 = vtanh.pop %v2226
    %v2229 = vmul.f32 %v2205, %v2227
    %v2230 = vmul.f32 %v2207, %v2228
    %v2233 = vcombine.low %v2229, %v2230
    %v2235 = vunpack.c.l.s4 1983009808
    %v2236 = vunpack.c.0.s8 %v2235
    %v2237 = vlaneseq
    %v2238 = vshrl.u32 %v2237, 7
    %v2239 = vsub.s32 %v2236, %v2238
    %v2240 = vrot.slane %v2233, %v2239
    %v2241 = vcombine.high %v2240, %v2240
    %2243 = vst [vmem:[#allocation2] sm:$0xf] %v2241
    %v2246 = vcombine.low %v2225, %v2226
    %v2248 = vunpack.c.l.s4 1983009808
    %v2249 = vunpack.c.0.s8 %v2248
    %v2250 = vlaneseq
    %v2251 = vshrl.u32 %v2250, 7
    %v2252 = vsub.s32 %v2249, %v2251
    %v2253 = vrot.slane %v2246, %v2252
    %v2254 = vcombine.high %v2253, %v2253
    %2256 = vst [vmem:[#allocation3] sm:$0xf] %v2254
    %v2257 = vpack.c.bf16 %v2229, %v2229
    %v2260 = vunpack.c.l.s4 1966171168
    %v2261 = vunpack.c.0.s8 %v2260
    %v2262 = vlaneseq
    %v2263 = vshrl.u32 %v2262, 7
    %v2264 = vsub.s32 %v2261, %v2263
    %v2265 = vrot.slane %v2257, %v2264
    %v2266 = vcombine.high %v2265, %v2265
    %v2268 = vunpack.c.l.s4 1966171168
    %v2269 = vunpack.c.0.s8 %v2268
    %v2270 = vlaneseq
    %v2271 = vshrl.u32 %v2270, 7
    %v2272 = vsub.s32 %v2269, %v2271
    %v2273 = vrot.slane %v2266, %v2272
    %v2274 = vunpack.i.l.s16 %v2273
    %v2275 = vunpack.i.h.s16 %v2273
    %v2276 = vpack.i.b16 %v2274, %v2274
    %v2277 = vpack.i.b16 %v2275, %v2275
    %v2279 = vunpack.c.l.s4 286326784
    %v2280 = vunpack.c.0.s8 %v2279
    %v2281 = vlaneseq
    %v2282 = vshrl.u32 %v2281, 7
    %v2283 = vsub.s32 %v2280, %v2282
    %v2284 = vrot.slane %v2276, %v2283
    %v2286 = vunpack.c.l.s4 286326784
    %v2287 = vunpack.c.0.s8 %v2286
    %v2288 = vlaneseq
    %v2289 = vshrl.u32 %v2288, 7
    %v2290 = vsub.s32 %v2287, %v2289
    %v2291 = vrot.slane %v2277, %v2290
    %vm2294 = vcmask 1041409
    %vm2295 = vsmask.f32 1280
    %vm2296 = vmand %vm2294, %vm2295
    %v2297 = vld [vmem:[%s3] sm:$0x2]
    %v2298 = vsel %vm2296, %v2284, %v2297
    %2299 = vst [vmem:[%s3] sm:$0x2] %v2298
    %v2300 = vld [vmem:[%s3 + $0x4] sm:$0x2]
    %v2301 = vsel %vm2296, %v2291, %v2300
    %2302 = vst [vmem:[%s3 + $0x4] sm:$0x2] %v2301
    %v2303 = vpack.c.bf16 %v2230, %v2230
    %v2306 = vunpack.c.l.s4 1966171168
    %v2307 = vunpack.c.0.s8 %v2306
    %v2308 = vlaneseq
    %v2309 = vshrl.u32 %v2308, 7
    %v2310 = vsub.s32 %v2307, %v2309
    %v2311 = vrot.slane %v2303, %v2310
    %v2312 = vcombine.high %v2311, %v2311
    %v2314 = vunpack.c.l.s4 1966171168
    %v2315 = vunpack.c.0.s8 %v2314
    %v2316 = vlaneseq
    %v2317 = vshrl.u32 %v2316, 7
    %v2318 = vsub.s32 %v2315, %v2317
    %v2319 = vrot.slane %v2312, %v2318
    %v2320 = vunpack.i.l.s16 %v2319
    %v2321 = vunpack.i.h.s16 %v2319
    %v2322 = vpack.i.b16 %v2320, %v2320
    %v2323 = vpack.i.b16 %v2321, %v2321
    %v2325 = vunpack.c.l.s4 286326784
    %v2326 = vunpack.c.0.s8 %v2325
    %v2327 = vlaneseq
    %v2328 = vshrl.u32 %v2327, 7
    %v2329 = vsub.s32 %v2326, %v2328
    %v2330 = vrot.slane %v2322, %v2329
    %v2332 = vunpack.c.l.s4 286326784
    %v2333 = vunpack.c.0.s8 %v2332
    %v2334 = vlaneseq
    %v2335 = vshrl.u32 %v2334, 7
    %v2336 = vsub.s32 %v2333, %v2335
    %v2337 = vrot.slane %v2323, %v2336
    %vm2340 = vcmask 1042434
    %vm2341 = vsmask.f32 7946
    %vm2342 = vmand %vm2340, %vm2341
    %v2343 = vld [vmem:[%s81] sm:$0x4]
    %v2344 = vsel %vm2342, %v2330, %v2343
    %2345 = vst [vmem:[%s81] sm:$0x4] %v2344
    %v2346 = vld [vmem:[%s81 + $0x4] sm:$0x4]
    %v2347 = vsel %vm2342, %v2337, %v2346
    %2348 = vst [vmem:[%s81 + $0x4] sm:$0x4] %v2347
    %v2349 = vld [vmem:[#allocation4] sm:$0x22]
    %v2350 = vld [vmem:[#allocation4 + $0x8] sm:$0x22]
    %v2351 = vld [vmem:[#allocation4 + $0x10] sm:$0x22]
    %v2352 = vld [vmem:[#allocation4 + $0x18] sm:$0x22]
    %v2353 = vld [vmem:[#allocation5] sm:$0x44]
    %v2354 = vld [vmem:[#allocation5 + $0x8] sm:$0x44]
    %v2355 = vld [vmem:[#allocation5 + $0x10] sm:$0x44]
    %v2356 = vld [vmem:[#allocation5 + $0x18] sm:$0x44]
    %v2361 = vunpack.c.l.b16 %v2349
    %v2362 = vunpack.c.h.b16 %v2349
    %v2363 = vunpack.c.l.b16 %v2350
    %v2364 = vunpack.c.h.b16 %v2350
    %v2365 = vunpack.c.l.b16 %v2351
    %v2366 = vunpack.c.h.b16 %v2351
    %v2367 = vunpack.c.l.b16 %v2352
    %v2368 = vunpack.c.h.b16 %v2352
    %v2369 = vpack.c.b16 %v2361, %v2361
    %v2370 = vpack.c.b16 %v2362, %v2362
    %v2371 = vpack.c.b16 %v2363, %v2363
    %v2372 = vpack.c.b16 %v2364, %v2364
    %v2373 = vpack.c.b16 %v2365, %v2365
    %v2374 = vpack.c.b16 %v2366, %v2366
    %v2375 = vpack.c.b16 %v2367, %v2367
    %v2376 = vpack.c.b16 %v2368, %v2368
    %v2377 = vunpack.c.l.b16 %v2369
    %v2378 = vunpack.c.l.b16 %v2370
    %v2379 = vunpack.c.l.b16 %v2371
    %v2380 = vunpack.c.l.b16 %v2372
    %v2381 = vunpack.c.l.b16 %v2373
    %v2382 = vunpack.c.l.b16 %v2374
    %v2383 = vunpack.c.l.b16 %v2375
    %v2384 = vunpack.c.l.b16 %v2376
    %v2385 = vrot.slane %v2381, 7
    %v2386 = vsel %vm1720, %v2385, %v2377
    %v2387 = vrot.slane %v2382, 7
    %v2388 = vsel %vm1720, %v2387, %v2378
    %v2389 = vrot.slane %v2383, 7
    %v2390 = vsel %vm1720, %v2389, %v2379
    %v2391 = vrot.slane %v2384, 7
    %v2392 = vsel %vm1720, %v2391, %v2380
    %v2393 = vpack.c.b16 %v2386, %v2386
    %v2394 = vpack.c.b16 %v2388, %v2388
    %v2395 = vpack.c.b16 %v2390, %v2390
    %v2396 = vpack.c.b16 %v2392, %v2392
    %v2405 = vunpack.c.l.b16 %v2353
    %v2406 = vunpack.c.h.b16 %v2353
    %v2407 = vunpack.c.l.b16 %v2354
    %v2408 = vunpack.c.h.b16 %v2354
    %v2409 = vunpack.c.l.b16 %v2355
    %v2410 = vunpack.c.h.b16 %v2355
    %v2411 = vunpack.c.l.b16 %v2356
    %v2412 = vunpack.c.h.b16 %v2356
    %v2413 = vpack.c.b16 %v2405, %v2405
    %v2414 = vpack.c.b16 %v2406, %v2406
    %v2415 = vpack.c.b16 %v2407, %v2407
    %v2416 = vpack.c.b16 %v2408, %v2408
    %v2417 = vpack.c.b16 %v2409, %v2409
    %v2418 = vpack.c.b16 %v2410, %v2410
    %v2419 = vpack.c.b16 %v2411, %v2411
    %v2420 = vpack.c.b16 %v2412, %v2412
    %v2421 = vunpack.c.l.b16 %v2413
    %v2422 = vunpack.c.l.b16 %v2414
    %v2423 = vunpack.c.l.b16 %v2415
    %v2424 = vunpack.c.l.b16 %v2416
    %v2425 = vunpack.c.l.b16 %v2417
    %v2426 = vunpack.c.l.b16 %v2418
    %v2427 = vunpack.c.l.b16 %v2419
    %v2428 = vunpack.c.l.b16 %v2420
    %v2429 = vrot.slane %v2421, 1
    %v2430 = vsel %vm1720, %v2425, %v2429
    %v2431 = vrot.slane %v2422, 1
    %v2432 = vsel %vm1720, %v2426, %v2431
    %v2433 = vrot.slane %v2423, 1
    %v2434 = vsel %vm1720, %v2427, %v2433
    %v2435 = vrot.slane %v2424, 1
    %v2436 = vsel %vm1720, %v2428, %v2435
    %v2437 = vpack.c.b16 %v2430, %v2430
    %v2438 = vpack.c.b16 %v2432, %v2432
    %v2439 = vpack.c.b16 %v2434, %v2434
    %v2440 = vpack.c.b16 %v2436, %v2436
    %v2445 = vunpack.c.l.bf16 %v2393
    %v2446 = vunpack.c.l.bf16 %v2394
    %v2447 = vunpack.c.l.bf16 %v2395
    %v2448 = vunpack.c.l.bf16 %v2396
    %v2449 = vunpack.c.l.bf16 %v2437
    %v2450 = vunpack.c.l.bf16 %v2438
    %v2451 = vunpack.c.l.bf16 %v2439
    %v2452 = vunpack.c.l.bf16 %v2440
    %v2453 = vld [vmem:[#allocation2] sm:$0xf]
    %v2456 = vunpack.c.l.s4 1983009808
    %v2457 = vunpack.c.0.s8 %v2456
    %v2458 = vlaneseq
    %v2459 = vshrl.u32 %v2458, 7
    %v2460 = vsub.s32 %v2457, %v2459
    %v2461 = vrot.slane %v2453, %v2460
    %v2462 = vcombine.high %v2461, %v2461
    %v2465 = vpack.c.bf16 %v2461, %v2461
    %v2466 = vpack.c.bf16 %v2462, %v2462
    %2467 = vmatprep.subr.bf16.mxu0 %v725
    %2468 = vmatpush1.bf16.msra.mxu0 %v724
    %2469 = vmatprep.subr.bf16.mxu0 %v733
    %2470 = vmatpush1.bf16.msra.mxu0 %v732
    %2471 = vmatprep.subr.bf16.mxu0 %v741
    %2472 = vmatpush1.bf16.msra.mxu0 %v740
    %2473 = vmatprep.subr.bf16.mxu0 %v749
    %2474 = vmatpush1.bf16.msra.mxu0 %v748
    %2475 = vmatprep.subr.bf16.mxu0 %v757
    %2476 = vmatpush1.bf16.msra.mxu0 %v756
    %2477 = vmatprep.subr.bf16.mxu0 %v765
    %2478 = vmatpush1.bf16.msra.mxu0 %v764
    %2479 = vmatprep.subr.bf16.mxu0 %v773
    %2480 = vmatpush1.bf16.msra.mxu0 %v772
    %2481 = vmatprep.subr.bf16.mxu0 %v781
    %2482 = vmatpush1.bf16.msra.mxu0 %v780
    %2483 = vmatprep.subr.bf16.mxu0 %v789
    %2484 = vmatpush1.bf16.msra.mxu0 %v788
    %2485 = vmatprep.subr.bf16.mxu0 %v797
    %2486 = vmatpush1.bf16.msra.mxu0 %v796
    %2487 = vmatprep.subr.bf16.mxu0 %v805
    %2488 = vmatpush1.bf16.msra.mxu0 %v804
    %2489 = vmatprep.subr.bf16.mxu0 %v813
    %2490 = vmatpush1.bf16.msra.mxu0 %v812
    %2491 = vmatprep.subr.bf16.mxu0 %v821
    %2492 = vmatpush1.bf16.msra.mxu0 %v820
    %2493 = vmatprep.subr.bf16.mxu0 %v829
    %2494 = vmatpush1.bf16.msra.mxu0 %v828
    %2495 = vmatprep.subr.bf16.mxu0 %v837
    %2496 = vmatpush1.bf16.msra.mxu0 %v836
    %2497 = vmatprep.subr.bf16.mxu0 %v845
    %2498 = vmatpush1.bf16.msra.mxu0 %v844
    %2499 = vmatprep.mubr.bf16.mxu0 %v2466
    %2500 = vmatmul.mubr.bf16.gmra.mrb[0].mxu0 %v2465
    %v2501 = vpop.f32.mrb[0].mxu0
    %v2502 = vadd.f32 0.0, %v2501
    %v2503 = vpop.f32.mrb[0].mxu0
    %v2504 = vadd.f32 0.0, %v2503
    %v2505 = vpop.f32.mrb[0].mxu0
    %v2506 = vpop.f32.mrb[0].mxu0
    %2507 = vdwg.mxu0
    %2508 = vmatprep.subr.bf16.mxu0 %v727
    %2509 = vmatpush1.bf16.msra.mxu0 %v726
    %2510 = vmatprep.subr.bf16.mxu0 %v735
    %2511 = vmatpush1.bf16.msra.mxu0 %v734
    %2512 = vmatprep.subr.bf16.mxu0 %v743
    %2513 = vmatpush1.bf16.msra.mxu0 %v742
    %2514 = vmatprep.subr.bf16.mxu0 %v751
    %2515 = vmatpush1.bf16.msra.mxu0 %v750
    %2516 = vmatprep.subr.bf16.mxu0 %v759
    %2517 = vmatpush1.bf16.msra.mxu0 %v758
    %2518 = vmatprep.subr.bf16.mxu0 %v767
    %2519 = vmatpush1.bf16.msra.mxu0 %v766
    %2520 = vmatprep.subr.bf16.mxu0 %v775
    %2521 = vmatpush1.bf16.msra.mxu0 %v774
    %2522 = vmatprep.subr.bf16.mxu0 %v783
    %2523 = vmatpush1.bf16.msra.mxu0 %v782
    %2524 = vmatprep.subr.bf16.mxu0 %v791
    %2525 = vmatpush1.bf16.msra.mxu0 %v790
    %2526 = vmatprep.subr.bf16.mxu0 %v799
    %2527 = vmatpush1.bf16.msra.mxu0 %v798
    %2528 = vmatprep.subr.bf16.mxu0 %v807
    %2529 = vmatpush1.bf16.msra.mxu0 %v806
    %2530 = vmatprep.subr.bf16.mxu0 %v815
    %2531 = vmatpush1.bf16.msra.mxu0 %v814
    %2532 = vmatprep.subr.bf16.mxu0 %v823
    %2533 = vmatpush1.bf16.msra.mxu0 %v822
    %2534 = vmatprep.subr.bf16.mxu0 %v831
    %2535 = vmatpush1.bf16.msra.mxu0 %v830
    %2536 = vmatprep.subr.bf16.mxu0 %v839
    %2537 = vmatpush1.bf16.msra.mxu0 %v838
    %2538 = vmatprep.subr.bf16.mxu0 %v847
    %2539 = vmatpush1.bf16.msra.mxu0 %v846
    %2540 = vmatprep.mubr.bf16.mxu0 %v2466
    %2541 = vmatmul.mubr.bf16.gmra.mrb[0].mxu0 %v2465
    %v2542 = vpop.f32.mrb[0].mxu0
    %v2543 = vadd.f32 0.0, %v2542
    %v2544 = vpop.f32.mrb[0].mxu0
    %v2545 = vadd.f32 0.0, %v2544
    %v2546 = vpop.f32.mrb[0].mxu0
    %v2547 = vpop.f32.mrb[0].mxu0
    %2548 = vdwg.mxu0
    %2549 = vmatprep.subr.bf16.mxu0 %v729
    %2550 = vmatpush1.bf16.msra.mxu0 %v728
    %2551 = vmatprep.subr.bf16.mxu0 %v737
    %2552 = vmatpush1.bf16.msra.mxu0 %v736
    %2553 = vmatprep.subr.bf16.mxu0 %v745
    %2554 = vmatpush1.bf16.msra.mxu0 %v744
    %2555 = vmatprep.subr.bf16.mxu0 %v753
    %2556 = vmatpush1.bf16.msra.mxu0 %v752
    %2557 = vmatprep.subr.bf16.mxu0 %v761
    %2558 = vmatpush1.bf16.msra.mxu0 %v760
    %2559 = vmatprep.subr.bf16.mxu0 %v769
    %2560 = vmatpush1.bf16.msra.mxu0 %v768
    %2561 = vmatprep.subr.bf16.mxu0 %v777
    %2562 = vmatpush1.bf16.msra.mxu0 %v776
    %2563 = vmatprep.subr.bf16.mxu0 %v785
    %2564 = vmatpush1.bf16.msra.mxu0 %v784
    %2565 = vmatprep.subr.bf16.mxu0 %v793
    %2566 = vmatpush1.bf16.msra.mxu0 %v792
    %2567 = vmatprep.subr.bf16.mxu0 %v801
    %2568 = vmatpush1.bf16.msra.mxu0 %v800
    %2569 = vmatprep.subr.bf16.mxu0 %v809
    %2570 = vmatpush1.bf16.msra.mxu0 %v808
    %2571 = vmatprep.subr.bf16.mxu0 %v817
    %2572 = vmatpush1.bf16.msra.mxu0 %v816
    %2573 = vmatprep.subr.bf16.mxu0 %v825
    %2574 = vmatpush1.bf16.msra.mxu0 %v824
    %2575 = vmatprep.subr.bf16.mxu0 %v833
    %2576 = vmatpush1.bf16.msra.mxu0 %v832
    %2577 = vmatprep.subr.bf16.mxu0 %v841
    %2578 = vmatpush1.bf16.msra.mxu0 %v840
    %2579 = vmatprep.subr.bf16.mxu0 %v849
    %2580 = vmatpush1.bf16.msra.mxu0 %v848
    %2581 = vmatprep.mubr.bf16.mxu0 %v2466
    %2582 = vmatmul.mubr.bf16.gmra.mrb[0].mxu0 %v2465
    %v2583 = vpop.f32.mrb[0].mxu0
    %v2584 = vadd.f32 0.0, %v2583
    %v2585 = vpop.f32.mrb[0].mxu0
    %v2586 = vadd.f32 0.0, %v2585
    %v2587 = vpop.f32.mrb[0].mxu0
    %v2588 = vpop.f32.mrb[0].mxu0
    %2589 = vdwg.mxu0
    %2590 = vmatprep.subr.bf16.mxu0 %v731
    %2591 = vmatpush1.bf16.msra.mxu0 %v730
    %2592 = vmatprep.subr.bf16.mxu0 %v739
    %2593 = vmatpush1.bf16.msra.mxu0 %v738
    %2594 = vmatprep.subr.bf16.mxu0 %v747
    %2595 = vmatpush1.bf16.msra.mxu0 %v746
    %2596 = vmatprep.subr.bf16.mxu0 %v755
    %2597 = vmatpush1.bf16.msra.mxu0 %v754
    %2598 = vmatprep.subr.bf16.mxu0 %v763
    %2599 = vmatpush1.bf16.msra.mxu0 %v762
    %2600 = vmatprep.subr.bf16.mxu0 %v771
    %2601 = vmatpush1.bf16.msra.mxu0 %v770
    %2602 = vmatprep.subr.bf16.mxu0 %v779
    %2603 = vmatpush1.bf16.msra.mxu0 %v778
    %2604 = vmatprep.subr.bf16.mxu0 %v787
    %2605 = vmatpush1.bf16.msra.mxu0 %v786
    %2606 = vmatprep.subr.bf16.mxu0 %v795
    %2607 = vmatpush1.bf16.msra.mxu0 %v794
    %2608 = vmatprep.subr.bf16.mxu0 %v803
    %2609 = vmatpush1.bf16.msra.mxu0 %v802
    %2610 = vmatprep.subr.bf16.mxu0 %v811
    %2611 = vmatpush1.bf16.msra.mxu0 %v810
    %2612 = vmatprep.subr.bf16.mxu0 %v819
    %2613 = vmatpush1.bf16.msra.mxu0 %v818
    %2614 = vmatprep.subr.bf16.mxu0 %v827
    %2615 = vmatpush1.bf16.msra.mxu0 %v826
    %2616 = vmatprep.subr.bf16.mxu0 %v835
    %2617 = vmatpush1.bf16.msra.mxu0 %v834
    %2618 = vmatprep.subr.bf16.mxu0 %v843
    %2619 = vmatpush1.bf16.msra.mxu0 %v842
    %2620 = vmatprep.subr.bf16.mxu0 %v851
    %2621 = vmatpush1.bf16.msra.mxu0 %v850
    %2622 = vmatprep.mubr.bf16.mxu0 %v2466
    %2623 = vmatmul.mubr.bf16.gmra.mrb[0].mxu0 %v2465
    %v2624 = vpop.f32.mrb[0].mxu0
    %v2625 = vadd.f32 0.0, %v2624
    %v2626 = vpop.f32.mrb[0].mxu0
    %v2627 = vadd.f32 0.0, %v2626
    %v2628 = vpop.f32.mrb[0].mxu0
    %v2629 = vpop.f32.mrb[0].mxu0
    %2630 = vdwg.mxu0
    %v2639 = vrot.slane %v2502, 5
    %v2640 = vrot.slane %v2504, 5
    %v2641 = vrot.slane %v2543, 5
    %v2642 = vrot.slane %v2545, 5
    %v2643 = vrot.slane %v2584, 5
    %v2644 = vrot.slane %v2586, 5
    %v2645 = vrot.slane %v2625, 5
    %v2646 = vrot.slane %v2627, 5
    %v2655 = vadd.f32 %v2445, %v2639
    %v2656 = vadd.f32 %v2446, %v2640
    %v2657 = vadd.f32 %v2447, %v2641
    %v2658 = vadd.f32 %v2448, %v2642
    %v2659 = vadd.f32 %v2449, %v2643
    %v2660 = vadd.f32 %v2450, %v2644
    %v2661 = vadd.f32 %v2451, %v2645
    %v2662 = vadd.f32 %v2452, %v2646
    %v2663 = vxor.u32 %v2655, 2147483648
    %v2664 = vxor.u32 %v2659, 2147483648
    %v2665 = vmul.f32 %v2663, 1.442695
    %v2666 = vpow.pop %v2665
    %v2667 = vmul.f32 %v2664, 1.442695
    %v2668 = vpow.pop %v2667
    %v2669 = vadd.f32 %v2666, 1.0
    %v2670 = vadd.f32 %v2668, 1.0
    %v2671 = vrcp.pop %v2669
    %v2672 = vmul.f32 1.0, %v2671
    %v2673 = vrcp.pop %v2670
    %v2674 = vmul.f32 1.0, %v2673
    %v2675 = vxor.u32 %v2656, 2147483648
    %v2676 = vxor.u32 %v2660, 2147483648
    %v2677 = vmul.f32 %v2675, 1.442695
    %v2678 = vpow.pop %v2677
    %v2679 = vmul.f32 %v2676, 1.442695
    %v2680 = vpow.pop %v2679
    %v2681 = vadd.f32 %v2678, 1.0
    %v2682 = vadd.f32 %v2680, 1.0
    %v2683 = vrcp.pop %v2681
    %v2684 = vmul.f32 1.0, %v2683
    %v2685 = vrcp.pop %v2682
    %v2686 = vmul.f32 1.0, %v2685
    %v2687 = vtanh.pop %v2657
    %v2688 = vtanh.pop %v2661
    %v2689 = vxor.u32 %v2658, 2147483648
    %v2690 = vxor.u32 %v2662, 2147483648
    %v2691 = vmul.f32 %v2689, 1.442695
    %v2692 = vpow.pop %v2691
    %v2693 = vmul.f32 %v2690, 1.442695
    %v2694 = vpow.pop %v2693
    %v2695 = vadd.f32 %v2692, 1.0
    %v2696 = vadd.f32 %v2694, 1.0
    %v2697 = vrcp.pop %v2695
    %v2698 = vmul.f32 1.0, %v2697
    %v2699 = vrcp.pop %v2696
    %v2700 = vmul.f32 1.0, %v2699
    %v2701 = vld [vmem:[#allocation3] sm:$0xf]
    %v2704 = vunpack.c.l.s4 1983009808
    %v2705 = vunpack.c.0.s8 %v2704
    %v2706 = vlaneseq
    %v2707 = vshrl.u32 %v2706, 7
    %v2708 = vsub.s32 %v2705, %v2707
    %v2709 = vrot.slane %v2701, %v2708
    %v2710 = vcombine.high %v2709, %v2709
    %v2711 = vrot.slane %v2709, 5
    %v2712 = vrot.slane %v2710, 5
    %v2715 = vmul.f32 %v2684, %v2711
    %v2716 = vmul.f32 %v2686, %v2712
    %v2717 = vmul.f32 %v2672, %v2687
    %v2718 = vmul.f32 %v2674, %v2688
    %v2719 = vadd.f32 %v2715, %v2717
    %v2720 = vadd.f32 %v2716, %v2718
    %v2721 = vtanh.pop %v2719
    %v2722 = vtanh.pop %v2720
    %v2723 = vmul.f32 %v2698, %v2721
    %v2724 = vmul.f32 %v2700, %v2722
    %v2727 = vcombine.low %v2723, %v2724
    %v2728 = vcombine.high %v2723, %v2724
    %v2730 = vunpack.c.l.s4 1983009808
    %v2731 = vunpack.c.0.s8 %v2730
    %v2732 = vlaneseq
    %v2733 = vshrl.u32 %v2732, 7
    %v2734 = vsub.s32 %v2731, %v2733
    %v2735 = vrot.slane %v2727, %v2734
    %v2737 = vunpack.c.l.s4 1983009808
    %v2738 = vunpack.c.0.s8 %v2737
    %v2739 = vlaneseq
    %v2740 = vshrl.u32 %v2739, 7
    %v2741 = vsub.s32 %v2738, %v2740
    %v2742 = vrot.slane %v2728, %v2741
    %v2743 = vcombine.high %v2735, %v2735
    %v2744 = vrot.slane %v2743, 7
    %v2745 = vrot.slane %v2744, 2
    %v2746 = vrot.slane %v2742, 7
    %v2747 = vsel %vm1723, %v2745, %v2746
    %2749 = vst [vmem:[#allocation2] sm:$0xf] %v2747
    %v2752 = vcombine.low %v2719, %v2720
    %v2753 = vcombine.high %v2719, %v2720
    %v2755 = vunpack.c.l.s4 1983009808
    %v2756 = vunpack.c.0.s8 %v2755
    %v2757 = vlaneseq
    %v2758 = vshrl.u32 %v2757, 7
    %v2759 = vsub.s32 %v2756, %v2758
    %v2760 = vrot.slane %v2752, %v2759
    %v2762 = vunpack.c.l.s4 1983009808
    %v2763 = vunpack.c.0.s8 %v2762
    %v2764 = vlaneseq
    %v2765 = vshrl.u32 %v2764, 7
    %v2766 = vsub.s32 %v2763, %v2765
    %v2767 = vrot.slane %v2753, %v2766
    %v2768 = vcombine.high %v2760, %v2760
    %v2769 = vrot.slane %v2768, 7
    %v2770 = vrot.slane %v2769, 2
    %v2771 = vrot.slane %v2767, 7
    %v2772 = vsel %vm1723, %v2770, %v2771
    %2774 = vst [vmem:[#allocation3] sm:$0xf] %v2772
    %v2775 = vpack.c.bf16 %v2723, %v2723
    %v2778 = vunpack.c.l.s4 1966171168
    %v2779 = vunpack.c.0.s8 %v2778
    %v2780 = vlaneseq
    %v2781 = vshrl.u32 %v2780, 7
    %v2782 = vsub.s32 %v2779, %v2781
    %v2783 = vrot.slane %v2775, %v2782
    %v2784 = vcombine.high %v2783, %v2783
    %v2786 = vunpack.c.l.s4 1966171168
    %v2787 = vunpack.c.0.s8 %v2786
    %v2788 = vlaneseq
    %v2789 = vshrl.u32 %v2788, 7
    %v2790 = vsub.s32 %v2787, %v2789
    %v2791 = vrot.slane %v2783, %v2790
    %v2793 = vunpack.c.l.s4 1966171168
    %v2794 = vunpack.c.0.s8 %v2793
    %v2795 = vlaneseq
    %v2796 = vshrl.u32 %v2795, 7
    %v2797 = vsub.s32 %v2794, %v2796
    %v2798 = vrot.slane %v2784, %v2797
    %v2799 = vcombine.high %v2791, %v2791
    %v2800 = vunpack.i.h.s16 %v2798
    %v2801 = vunpack.i.l.s16 %v2799
    %v2802 = vpack.i.b16 %v2800, %v2800
    %v2803 = vpack.i.b16 %v2801, %v2801
    %v2805 = vunpack.c.l.s4 286326784
    %v2806 = vunpack.c.0.s8 %v2805
    %v2807 = vlaneseq
    %v2808 = vshrl.u32 %v2807, 7
    %v2809 = vsub.s32 %v2806, %v2808
    %v2810 = vrot.slane %v2802, %v2809
    %v2812 = vunpack.c.l.s4 286326784
    %v2813 = vunpack.c.0.s8 %v2812
    %v2814 = vlaneseq
    %v2815 = vshrl.u32 %v2814, 7
    %v2816 = vsub.s32 %v2813, %v2815
    %v2817 = vrot.slane %v2803, %v2816
    %vm2820 = vsmask.f32 7942
    %vm2821 = vmand %vm2294, %vm2820
    %v2822 = vld [vmem:[%s3] sm:$0x2]
    %v2823 = vsel %vm2821, %v2810, %v2822
    %2824 = vst [vmem:[%s3] sm:$0x2] %v2823
    %v2825 = vld [vmem:[%s3 + $0x4] sm:$0x2]
    %v2826 = vsel %vm2821, %v2817, %v2825
    %2827 = vst [vmem:[%s3 + $0x4] sm:$0x2] %v2826
    %v2828 = vpack.c.bf16 %v2724, %v2724
    %v2831 = vunpack.c.l.s4 1966171168
    %v2832 = vunpack.c.0.s8 %v2831
    %v2833 = vlaneseq
    %v2834 = vshrl.u32 %v2833, 7
    %v2835 = vsub.s32 %v2832, %v2834
    %v2836 = vrot.slane %v2828, %v2835
    %v2837 = vcombine.high %v2836, %v2836
    %v2839 = vunpack.c.l.s4 1966171168
    %v2840 = vunpack.c.0.s8 %v2839
    %v2841 = vlaneseq
    %v2842 = vshrl.u32 %v2841, 7
    %v2843 = vsub.s32 %v2840, %v2842
    %v2844 = vrot.slane %v2836, %v2843
    %v2846 = vunpack.c.l.s4 1966171168
    %v2847 = vunpack.c.0.s8 %v2846
    %v2848 = vlaneseq
    %v2849 = vshrl.u32 %v2848, 7
    %v2850 = vsub.s32 %v2847, %v2849
    %v2851 = vrot.slane %v2837, %v2850
    %v2852 = vcombine.high %v2844, %v2844
    %v2853 = vunpack.i.h.s16 %v2851
    %v2854 = vunpack.i.l.s16 %v2852
    %v2855 = vpack.i.b16 %v2853, %v2853
    %v2856 = vpack.i.b16 %v2854, %v2854
    %v2858 = vunpack.c.l.s4 286326784
    %v2859 = vunpack.c.0.s8 %v2858
    %v2860 = vlaneseq
    %v2861 = vshrl.u32 %v2860, 7
    %v2862 = vsub.s32 %v2859, %v2861
    %v2863 = vrot.slane %v2855, %v2862
    %v2865 = vunpack.c.l.s4 286326784
    %v2866 = vunpack.c.0.s8 %v2865
    %v2867 = vlaneseq
    %v2868 = vshrl.u32 %v2867, 7
    %v2869 = vsub.s32 %v2866, %v2868
    %v2870 = vrot.slane %v2856, %v2869
    %vm2873 = vsmask.f32 2304
    %vm2874 = vmand %vm2340, %vm2873
    %v2875 = vld [vmem:[%s81] sm:$0x4]
    %v2876 = vsel %vm2874, %v2863, %v2875
    %2877 = vst [vmem:[%s81] sm:$0x4] %v2876
    %v2878 = vld [vmem:[%s81 + $0x4] sm:$0x4]
    %v2879 = vsel %vm2874, %v2870, %v2878
    %2880 = vst [vmem:[%s81 + $0x4] sm:$0x4] %v2879
    %v2881 = vld [vmem:[#allocation4] sm:$0x44]
    %v2882 = vld [vmem:[#allocation4 + $0x8] sm:$0x44]
    %v2883 = vld [vmem:[#allocation4 + $0x10] sm:$0x44]
    %v2884 = vld [vmem:[#allocation4 + $0x18] sm:$0x44]
    %v2885 = vld [vmem:[#allocation5] sm:$0x22]
    %v2886 = vld [vmem:[#allocation5 + $0x8] sm:$0x22]
    %v2887 = vld [vmem:[#allocation5 + $0x10] sm:$0x22]
    %v2888 = vld [vmem:[#allocation5 + $0x18] sm:$0x22]
    %v2893 = vunpack.c.l.b16 %v2881
    %v2894 = vunpack.c.h.b16 %v2881
    %v2895 = vunpack.c.l.b16 %v2882
    %v2896 = vunpack.c.h.b16 %v2882
    %v2897 = vunpack.c.l.b16 %v2883
    %v2898 = vunpack.c.h.b16 %v2883
    %v2899 = vunpack.c.l.b16 %v2884
    %v2900 = vunpack.c.h.b16 %v2884
    %v2901 = vpack.c.b16 %v2893, %v2893
    %v2902 = vpack.c.b16 %v2894, %v2894
    %v2903 = vpack.c.b16 %v2895, %v2895
    %v2904 = vpack.c.b16 %v2896, %v2896
    %v2905 = vpack.c.b16 %v2897, %v2897
    %v2906 = vpack.c.b16 %v2898, %v2898
    %v2907 = vpack.c.b16 %v2899, %v2899
    %v2908 = vpack.c.b16 %v2900, %v2900
    %v2909 = vunpack.c.l.b16 %v2901
    %v2910 = vunpack.c.l.b16 %v2902
    %v2911 = vunpack.c.l.b16 %v2903
    %v2912 = vunpack.c.l.b16 %v2904
    %v2913 = vunpack.c.l.b16 %v2905
    %v2914 = vunpack.c.l.b16 %v2906
    %v2915 = vunpack.c.l.b16 %v2907
    %v2916 = vunpack.c.l.b16 %v2908
    %v2917 = vrot.slane %v2913, 7
    %vm2918 = vcmask 1045509
    %v2919 = vsel %vm2918, %v2917, %v2909
    %v2920 = vrot.slane %v2914, 7
    %v2921 = vsel %vm2918, %v2920, %v2910
    %v2922 = vrot.slane %v2915, 7
    %v2923 = vsel %vm2918, %v2922, %v2911
    %v2924 = vrot.slane %v2916, 7
    %v2925 = vsel %vm2918, %v2924, %v2912
    %v2926 = vpack.c.b16 %v2919, %v2919
    %v2927 = vpack.c.b16 %v2921, %v2921
    %v2928 = vpack.c.b16 %v2923, %v2923
    %v2929 = vpack.c.b16 %v2925, %v2925
    %v2938 = vunpack.c.l.b16 %v2885
    %v2939 = vunpack.c.h.b16 %v2885
    %v2940 = vunpack.c.l.b16 %v2886
    %v2941 = vunpack.c.h.b16 %v2886
    %v2942 = vunpack.c.l.b16 %v2887
    %v2943 = vunpack.c.h.b16 %v2887
    %v2944 = vunpack.c.l.b16 %v2888
    %v2945 = vunpack.c.h.b16 %v2888
    %v2946 = vpack.c.b16 %v2938, %v2938
    %v2947 = vpack.c.b16 %v2939, %v2939
    %v2948 = vpack.c.b16 %v2940, %v2940
    %v2949 = vpack.c.b16 %v2941, %v2941
    %v2950 = vpack.c.b16 %v2942, %v2942
    %v2951 = vpack.c.b16 %v2943, %v2943
    %v2952 = vpack.c.b16 %v2944, %v2944
    %v2953 = vpack.c.b16 %v2945, %v2945
    %v2954 = vunpack.c.l.b16 %v2946
    %v2955 = vunpack.c.l.b16 %v2947
    %v2956 = vunpack.c.l.b16 %v2948
    %v2957 = vunpack.c.l.b16 %v2949
    %v2958 = vunpack.c.l.b16 %v2950
    %v2959 = vunpack.c.l.b16 %v2951
    %v2960 = vunpack.c.l.b16 %v2952
    %v2961 = vunpack.c.l.b16 %v2953
    %v2962 = vrot.slane %v2954, 7
    %v2963 = vrot.slane %v2958, 6
    %v2964 = vsel %vm2918, %v2963, %v2962
    %v2965 = vrot.slane %v2955, 7
    %v2966 = vrot.slane %v2959, 6
    %v2967 = vsel %vm2918, %v2966, %v2965
    %v2968 = vrot.slane %v2956, 7
    %v2969 = vrot.slane %v2960, 6
    %v2970 = vsel %vm2918, %v2969, %v2968
    %v2971 = vrot.slane %v2957, 7
    %v2972 = vrot.slane %v2961, 6
    %v2973 = vsel %vm2918, %v2972, %v2971
    %v2974 = vpack.c.b16 %v2964, %v2964
    %v2975 = vpack.c.b16 %v2967, %v2967
    %v2976 = vpack.c.b16 %v2970, %v2970
    %v2977 = vpack.c.b16 %v2973, %v2973
    %v2982 = vunpack.c.l.bf16 %v2926
    %v2983 = vunpack.c.l.bf16 %v2927
    %v2984 = vunpack.c.l.bf16 %v2928
    %v2985 = vunpack.c.l.bf16 %v2929
    %v2986 = vunpack.c.l.bf16 %v2974
    %v2987 = vunpack.c.l.bf16 %v2975
    %v2988 = vunpack.c.l.bf16 %v2976
    %v2989 = vunpack.c.l.bf16 %v2977
    %v2990 = vld [vmem:[#allocation2] sm:$0xf]
    %v2993 = vunpack.c.l.s4 1983009808
    %v2994 = vunpack.c.0.s8 %v2993
    %v2995 = vlaneseq
    %v2996 = vshrl.u32 %v2995, 7
    %v2997 = vsub.s32 %v2994, %v2996
    %v2998 = vrot.slane %v2990, %v2997
    %v2999 = vcombine.high %v2998, %v2998
    %v3002 = vpack.c.bf16 %v2998, %v2998
    %v3003 = vpack.c.bf16 %v2999, %v2999
    %3004 = vmatprep.subr.bf16.mxu0 %v725
    %3005 = vmatpush1.bf16.msra.mxu0 %v724
    %3006 = vmatprep.subr.bf16.mxu0 %v733
    %3007 = vmatpush1.bf16.msra.mxu0 %v732
    %3008 = vmatprep.subr.bf16.mxu0 %v741
    %3009 = vmatpush1.bf16.msra.mxu0 %v740
    %3010 = vmatprep.subr.bf16.mxu0 %v749
    %3011 = vmatpush1.bf16.msra.mxu0 %v748
    %3012 = vmatprep.subr.bf16.mxu0 %v757
    %3013 = vmatpush1.bf16.msra.mxu0 %v756
    %3014 = vmatprep.subr.bf16.mxu0 %v765
    %3015 = vmatpush1.bf16.msra.mxu0 %v764
    %3016 = vmatprep.subr.bf16.mxu0 %v773
    %3017 = vmatpush1.bf16.msra.mxu0 %v772
    %3018 = vmatprep.subr.bf16.mxu0 %v781
    %3019 = vmatpush1.bf16.msra.mxu0 %v780
    %3020 = vmatprep.subr.bf16.mxu0 %v789
    %3021 = vmatpush1.bf16.msra.mxu0 %v788
    %3022 = vmatprep.subr.bf16.mxu0 %v797
    %3023 = vmatpush1.bf16.msra.mxu0 %v796
    %3024 = vmatprep.subr.bf16.mxu0 %v805
    %3025 = vmatpush1.bf16.msra.mxu0 %v804
    %3026 = vmatprep.subr.bf16.mxu0 %v813
    %3027 = vmatpush1.bf16.msra.mxu0 %v812
    %3028 = vmatprep.subr.bf16.mxu0 %v821
    %3029 = vmatpush1.bf16.msra.mxu0 %v820
    %3030 = vmatprep.subr.bf16.mxu0 %v829
    %3031 = vmatpush1.bf16.msra.mxu0 %v828
    %3032 = vmatprep.subr.bf16.mxu0 %v837
    %3033 = vmatpush1.bf16.msra.mxu0 %v836
    %3034 = vmatprep.subr.bf16.mxu0 %v845
    %3035 = vmatpush1.bf16.msra.mxu0 %v844
    %3036 = vmatprep.mubr.bf16.mxu0 %v3003
    %3037 = vmatmul.mubr.bf16.gmra.mrb[0].mxu0 %v3002
    %v3038 = vpop.f32.mrb[0].mxu0
    %v3039 = vadd.f32 0.0, %v3038
    %v3040 = vpop.f32.mrb[0].mxu0
    %v3041 = vadd.f32 0.0, %v3040
    %v3042 = vpop.f32.mrb[0].mxu0
    %v3043 = vpop.f32.mrb[0].mxu0
    %3044 = vdwg.mxu0
    %3045 = vmatprep.subr.bf16.mxu0 %v727
    %3046 = vmatpush1.bf16.msra.mxu0 %v726
    %3047 = vmatprep.subr.bf16.mxu0 %v735
    %3048 = vmatpush1.bf16.msra.mxu0 %v734
    %3049 = vmatprep.subr.bf16.mxu0 %v743
    %3050 = vmatpush1.bf16.msra.mxu0 %v742
    %3051 = vmatprep.subr.bf16.mxu0 %v751
    %3052 = vmatpush1.bf16.msra.mxu0 %v750
    %3053 = vmatprep.subr.bf16.mxu0 %v759
    %3054 = vmatpush1.bf16.msra.mxu0 %v758
    %3055 = vmatprep.subr.bf16.mxu0 %v767
    %3056 = vmatpush1.bf16.msra.mxu0 %v766
    %3057 = vmatprep.subr.bf16.mxu0 %v775
    %3058 = vmatpush1.bf16.msra.mxu0 %v774
    %3059 = vmatprep.subr.bf16.mxu0 %v783
    %3060 = vmatpush1.bf16.msra.mxu0 %v782
    %3061 = vmatprep.subr.bf16.mxu0 %v791
    %3062 = vmatpush1.bf16.msra.mxu0 %v790
    %3063 = vmatprep.subr.bf16.mxu0 %v799
    %3064 = vmatpush1.bf16.msra.mxu0 %v798
    %3065 = vmatprep.subr.bf16.mxu0 %v807
    %3066 = vmatpush1.bf16.msra.mxu0 %v806
    %3067 = vmatprep.subr.bf16.mxu0 %v815
    %3068 = vmatpush1.bf16.msra.mxu0 %v814
    %3069 = vmatprep.subr.bf16.mxu0 %v823
    %3070 = vmatpush1.bf16.msra.mxu0 %v822
    %3071 = vmatprep.subr.bf16.mxu0 %v831
    %3072 = vmatpush1.bf16.msra.mxu0 %v830
    %3073 = vmatprep.subr.bf16.mxu0 %v839
    %3074 = vmatpush1.bf16.msra.mxu0 %v838
    %3075 = vmatprep.subr.bf16.mxu0 %v847
    %3076 = vmatpush1.bf16.msra.mxu0 %v846
    %3077 = vmatprep.mubr.bf16.mxu0 %v3003
    %3078 = vmatmul.mubr.bf16.gmra.mrb[0].mxu0 %v3002
    %v3079 = vpop.f32.mrb[0].mxu0
    %v3080 = vadd.f32 0.0, %v3079
    %v3081 = vpop.f32.mrb[0].mxu0
    %v3082 = vadd.f32 0.0, %v3081
    %v3083 = vpop.f32.mrb[0].mxu0
    %v3084 = vpop.f32.mrb[0].mxu0
    %3085 = vdwg.mxu0
    %3086 = vmatprep.subr.bf16.mxu0 %v729
    %3087 = vmatpush1.bf16.msra.mxu0 %v728
    %3088 = vmatprep.subr.bf16.mxu0 %v737
    %3089 = vmatpush1.bf16.msra.mxu0 %v736
    %3090 = vmatprep.subr.bf16.mxu0 %v745
    %3091 = vmatpush1.bf16.msra.mxu0 %v744
    %3092 = vmatprep.subr.bf16.mxu0 %v753
    %3093 = vmatpush1.bf16.msra.mxu0 %v752
    %3094 = vmatprep.subr.bf16.mxu0 %v761
    %3095 = vmatpush1.bf16.msra.mxu0 %v760
    %3096 = vmatprep.subr.bf16.mxu0 %v769
    %3097 = vmatpush1.bf16.msra.mxu0 %v768
    %3098 = vmatprep.subr.bf16.mxu0 %v777
    %3099 = vmatpush1.bf16.msra.mxu0 %v776
    %3100 = vmatprep.subr.bf16.mxu0 %v785
    %3101 = vmatpush1.bf16.msra.mxu0 %v784
    %3102 = vmatprep.subr.bf16.mxu0 %v793
    %3103 = vmatpush1.bf16.msra.mxu0 %v792
    %3104 = vmatprep.subr.bf16.mxu0 %v801
    %3105 = vmatpush1.bf16.msra.mxu0 %v800
    %3106 = vmatprep.subr.bf16.mxu0 %v809
    %3107 = vmatpush1.bf16.msra.mxu0 %v808
    %3108 = vmatprep.subr.bf16.mxu0 %v817
    %3109 = vmatpush1.bf16.msra.mxu0 %v816
    %3110 = vmatprep.subr.bf16.mxu0 %v825
    %3111 = vmatpush1.bf16.msra.mxu0 %v824
    %3112 = vmatprep.subr.bf16.mxu0 %v833
    %3113 = vmatpush1.bf16.msra.mxu0 %v832
    %3114 = vmatprep.subr.bf16.mxu0 %v841
    %3115 = vmatpush1.bf16.msra.mxu0 %v840
    %3116 = vmatprep.subr.bf16.mxu0 %v849
    %3117 = vmatpush1.bf16.msra.mxu0 %v848
    %3118 = vmatprep.mubr.bf16.mxu0 %v3003
    %3119 = vmatmul.mubr.bf16.gmra.mrb[0].mxu0 %v3002
    %v3120 = vpop.f32.mrb[0].mxu0
    %v3121 = vadd.f32 0.0, %v3120
    %v3122 = vpop.f32.mrb[0].mxu0
    %v3123 = vadd.f32 0.0, %v3122
    %v3124 = vpop.f32.mrb[0].mxu0
    %v3125 = vpop.f32.mrb[0].mxu0
    %3126 = vdwg.mxu0
    %3127 = vmatprep.subr.bf16.mxu0 %v731
    %3128 = vmatpush1.bf16.msra.mxu0 %v730
    %3129 = vmatprep.subr.bf16.mxu0 %v739
    %3130 = vmatpush1.bf16.msra.mxu0 %v738
    %3131 = vmatprep.subr.bf16.mxu0 %v747
    %3132 = vmatpush1.bf16.msra.mxu0 %v746
    %3133 = vmatprep.subr.bf16.mxu0 %v755
    %3134 = vmatpush1.bf16.msra.mxu0 %v754
    %3135 = vmatprep.subr.bf16.mxu0 %v763
    %3136 = vmatpush1.bf16.msra.mxu0 %v762
    %3137 = vmatprep.subr.bf16.mxu0 %v771
    %3138 = vmatpush1.bf16.msra.mxu0 %v770
    %3139 = vmatprep.subr.bf16.mxu0 %v779
    %3140 = vmatpush1.bf16.msra.mxu0 %v778
    %3141 = vmatprep.subr.bf16.mxu0 %v787
    %3142 = vmatpush1.bf16.msra.mxu0 %v786
    %3143 = vmatprep.subr.bf16.mxu0 %v795
    %3144 = vmatpush1.bf16.msra.mxu0 %v794
    %3145 = vmatprep.subr.bf16.mxu0 %v803
    %3146 = vmatpush1.bf16.msra.mxu0 %v802
    %3147 = vmatprep.subr.bf16.mxu0 %v811
    %3148 = vmatpush1.bf16.msra.mxu0 %v810
    %3149 = vmatprep.subr.bf16.mxu0 %v819
    %3150 = vmatpush1.bf16.msra.mxu0 %v818
    %3151 = vmatprep.subr.bf16.mxu0 %v827
    %3152 = vmatpush1.bf16.msra.mxu0 %v826
    %3153 = vmatprep.subr.bf16.mxu0 %v835
    %3154 = vmatpush1.bf16.msra.mxu0 %v834
    %3155 = vmatprep.subr.bf16.mxu0 %v843
    %3156 = vmatpush1.bf16.msra.mxu0 %v842
    %3157 = vmatprep.subr.bf16.mxu0 %v851
    %3158 = vmatpush1.bf16.msra.mxu0 %v850
    %3159 = vmatprep.mubr.bf16.mxu0 %v3003
    %3160 = vmatmul.mubr.bf16.gmra.mrb[0].mxu0 %v3002
    %v3161 = vpop.f32.mrb[0].mxu0
    %v3162 = vadd.f32 0.0, %v3161
    %v3163 = vpop.f32.mrb[0].mxu0
    %v3164 = vadd.f32 0.0, %v3163
    %v3165 = vpop.f32.mrb[0].mxu0
    %v3166 = vpop.f32.mrb[0].mxu0
    %3167 = vdwg.mxu0
    %v3176 = vrot.slane %v3039, 4
    %v3177 = vrot.slane %v3041, 4
    %v3178 = vrot.slane %v3080, 4
    %v3179 = vrot.slane %v3082, 4
    %v3180 = vrot.slane %v3121, 4
    %v3181 = vrot.slane %v3123, 4
    %v3182 = vrot.slane %v3162, 4
    %v3183 = vrot.slane %v3164, 4
    %v3192 = vadd.f32 %v2982, %v3176
    %v3193 = vadd.f32 %v2983, %v3177
    %v3194 = vadd.f32 %v2984, %v3178
    %v3195 = vadd.f32 %v2985, %v3179
    %v3196 = vadd.f32 %v2986, %v3180
    %v3197 = vadd.f32 %v2987, %v3181
    %v3198 = vadd.f32 %v2988, %v3182
    %v3199 = vadd.f32 %v2989, %v3183
    %v3200 = vxor.u32 %v3192, 2147483648
    %v3201 = vxor.u32 %v3196, 2147483648
    %v3202 = vmul.f32 %v3200, 1.442695
    %v3203 = vpow.pop %v3202
    %v3204 = vmul.f32 %v3201, 1.442695
    %v3205 = vpow.pop %v3204
    %v3206 = vadd.f32 %v3203, 1.0
    %v3207 = vadd.f32 %v3205, 1.0
    %v3208 = vrcp.pop %v3206
    %v3209 = vmul.f32 1.0, %v3208
    %v3210 = vrcp.pop %v3207
    %v3211 = vmul.f32 1.0, %v3210
    %v3212 = vxor.u32 %v3193, 2147483648
    %v3213 = vxor.u32 %v3197, 2147483648
    %v3214 = vmul.f32 %v3212, 1.442695
    %v3215 = vpow.pop %v3214
    %v3216 = vmul.f32 %v3213, 1.442695
    %v3217 = vpow.pop %v3216
    %v3218 = vadd.f32 %v3215, 1.0
    %v3219 = vadd.f32 %v3217, 1.0
    %v3220 = vrcp.pop %v3218
    %v3221 = vmul.f32 1.0, %v3220
    %v3222 = vrcp.pop %v3219
    %v3223 = vmul.f32 1.0, %v3222
    %v3224 = vtanh.pop %v3194
    %v3225 = vtanh.pop %v3198
    %v3226 = vxor.u32 %v3195, 2147483648
    %v3227 = vxor.u32 %v3199, 2147483648
    %v3228 = vmul.f32 %v3226, 1.442695
    %v3229 = vpow.pop %v3228
    %v3230 = vmul.f32 %v3227, 1.442695
    %v3231 = vpow.pop %v3230
    %v3232 = vadd.f32 %v3229, 1.0
    %v3233 = vadd.f32 %v3231, 1.0
    %v3234 = vrcp.pop %v3232
    %v3235 = vmul.f32 1.0, %v3234
    %v3236 = vrcp.pop %v3233
    %v3237 = vmul.f32 1.0, %v3236
    %v3238 = vld [vmem:[#allocation3] sm:$0xf]
    %v3241 = vunpack.c.l.s4 1983009808
    %v3242 = vunpack.c.0.s8 %v3241
    %v3243 = vlaneseq
    %v3244 = vshrl.u32 %v3243, 7
    %v3245 = vsub.s32 %v3242, %v3244
    %v3246 = vrot.slane %v3238, %v3245
    %v3247 = vcombine.low %v3246, %v3246
    %v3250 = vmul.f32 %v3221, %v3247
    %v3251 = vmul.f32 %v3223, %v3246
    %v3252 = vmul.f32 %v3209, %v3224
    %v3253 = vmul.f32 %v3211, %v3225
    %v3254 = vadd.f32 %v3250, %v3252
    %v3255 = vadd.f32 %v3251, %v3253
    %v3256 = vtanh.pop %v3254
    %v3257 = vtanh.pop %v3255
    %v3258 = vmul.f32 %v3235, %v3256
    %v3259 = vmul.f32 %v3237, %v3257
    %v3262 = vcombine.high %v3258, %v3259
    %v3264 = vunpack.c.l.s4 1983009808
    %v3265 = vunpack.c.0.s8 %v3264
    %v3266 = vlaneseq
    %v3267 = vshrl.u32 %v3266, 7
    %v3268 = vsub.s32 %v3265, %v3267
    %v3269 = vrot.slane %v3262, %v3268
    %3271 = vst [vmem:[#allocation2] sm:$0xf] %v3269
    %v3274 = vcombine.high %v3254, %v3255
    %v3276 = vunpack.c.l.s4 1983009808
    %v3277 = vunpack.c.0.s8 %v3276
    %v3278 = vlaneseq
    %v3279 = vshrl.u32 %v3278, 7
    %v3280 = vsub.s32 %v3277, %v3279
    %v3281 = vrot.slane %v3274, %v3280
    %3283 = vst [vmem:[#allocation3] sm:$0xf] %v3281
    %v3284 = vpack.c.bf16 %v3258, %v3258
    %v3287 = vunpack.c.l.s4 1966171168
    %v3288 = vunpack.c.0.s8 %v3287
    %v3289 = vlaneseq
    %v3290 = vshrl.u32 %v3289, 7
    %v3291 = vsub.s32 %v3288, %v3290
    %v3292 = vrot.slane %v3284, %v3291
    %v3294 = vunpack.c.l.s4 1966171168
    %v3295 = vunpack.c.0.s8 %v3294
    %v3296 = vlaneseq
    %v3297 = vshrl.u32 %v3296, 7
    %v3298 = vsub.s32 %v3295, %v3297
    %v3299 = vrot.slane %v3292, %v3298
    %v3300 = vcombine.high %v3299, %v3299
    %v3301 = vunpack.i.l.s16 %v3300
    %v3302 = vunpack.i.h.s16 %v3300
    %v3303 = vpack.i.b16 %v3301, %v3301
    %v3304 = vpack.i.b16 %v3302, %v3302
    %v3306 = vunpack.c.l.s4 286326784
    %v3307 = vunpack.c.0.s8 %v3306
    %v3308 = vlaneseq
    %v3309 = vshrl.u32 %v3308, 7
    %v3310 = vsub.s32 %v3307, %v3309
    %v3311 = vrot.slane %v3303, %v3310
    %v3313 = vunpack.c.l.s4 286326784
    %v3314 = vunpack.c.0.s8 %v3313
    %v3315 = vlaneseq
    %v3316 = vshrl.u32 %v3315, 7
    %v3317 = vsub.s32 %v3314, %v3316
    %v3318 = vrot.slane %v3304, %v3317
    %v3321 = vld [vmem:[%s3] sm:$0x4]
    %v3322 = vsel %vm2874, %v3311, %v3321
    %3323 = vst [vmem:[%s3] sm:$0x4] %v3322
    %v3324 = vld [vmem:[%s3 + $0x4] sm:$0x4]
    %v3325 = vsel %vm2874, %v3318, %v3324
    %3326 = vst [vmem:[%s3 + $0x4] sm:$0x4] %v3325
    %v3327 = vpack.c.bf16 %v3259, %v3259
    %v3330 = vunpack.c.l.s4 1966171168
    %v3331 = vunpack.c.0.s8 %v3330
    %v3332 = vlaneseq
    %v3333 = vshrl.u32 %v3332, 7
    %v3334 = vsub.s32 %v3331, %v3333
    %v3335 = vrot.slane %v3327, %v3334
    %v3337 = vunpack.c.l.s4 1966171168
    %v3338 = vunpack.c.0.s8 %v3337
    %v3339 = vlaneseq
    %v3340 = vshrl.u32 %v3339, 7
    %v3341 = vsub.s32 %v3338, %v3340
    %v3342 = vrot.slane %v3335, %v3341
    %v3343 = vcombine.high %v3342, %v3342
    %v3344 = vunpack.i.l.s16 %v3343
    %v3345 = vunpack.i.h.s16 %v3343
    %v3346 = vpack.i.b16 %v3344, %v3344
    %v3347 = vpack.i.b16 %v3345, %v3345
    %v3349 = vunpack.c.l.s4 286326784
    %v3350 = vunpack.c.0.s8 %v3349
    %v3351 = vlaneseq
    %v3352 = vshrl.u32 %v3351, 7
    %v3353 = vsub.s32 %v3350, %v3352
    %v3354 = vrot.slane %v3346, %v3353
    %v3356 = vunpack.c.l.s4 286326784
    %v3357 = vunpack.c.0.s8 %v3356
    %v3358 = vlaneseq
    %v3359 = vshrl.u32 %v3358, 7
    %v3360 = vsub.s32 %v3357, %v3359
    %v3361 = vrot.slane %v3347, %v3360
    %v3364 = vld [vmem:[%s81] sm:$0x2]
    %v3365 = vsel %vm2821, %v3354, %v3364
    %3366 = vst [vmem:[%s81] sm:$0x2] %v3365
    %v3367 = vld [vmem:[%s81 + $0x4] sm:$0x2]
    %v3368 = vsel %vm2821, %v3361, %v3367
    %3369 = vst [vmem:[%s81 + $0x4] sm:$0x2] %v3368
    %v3370 = vld [vmem:[#allocation4] sm:$0x44]
    %v3371 = vld [vmem:[#allocation4 + $0x8] sm:$0x44]
    %v3372 = vld [vmem:[#allocation4 + $0x10] sm:$0x44]
    %v3373 = vld [vmem:[#allocation4 + $0x18] sm:$0x44]
    %v3374 = vld [vmem:[#allocation5] sm:$0x22]
    %v3375 = vld [vmem:[#allocation5 + $0x8] sm:$0x22]
    %v3376 = vld [vmem:[#allocation5 + $0x10] sm:$0x22]
    %v3377 = vld [vmem:[#allocation5 + $0x18] sm:$0x22]
    %v3382 = vunpack.c.l.b16 %v3370
    %v3383 = vunpack.c.h.b16 %v3370
    %v3384 = vunpack.c.l.b16 %v3371
    %v3385 = vunpack.c.h.b16 %v3371
    %v3386 = vunpack.c.l.b16 %v3372
    %v3387 = vunpack.c.h.b16 %v3372
    %v3388 = vunpack.c.l.b16 %v3373
    %v3389 = vunpack.c.h.b16 %v3373
    %v3390 = vpack.c.b16 %v3382, %v3382
    %v3391 = vpack.c.b16 %v3383, %v3383
    %v3392 = vpack.c.b16 %v3384, %v3384
    %v3393 = vpack.c.b16 %v3385, %v3385
    %v3394 = vpack.c.b16 %v3386, %v3386
    %v3395 = vpack.c.b16 %v3387, %v3387
    %v3396 = vpack.c.b16 %v3388, %v3388
    %v3397 = vpack.c.b16 %v3389, %v3389
    %v3398 = vunpack.c.l.b16 %v3390
    %v3399 = vunpack.c.l.b16 %v3391
    %v3400 = vunpack.c.l.b16 %v3392
    %v3401 = vunpack.c.l.b16 %v3393
    %v3402 = vunpack.c.l.b16 %v3394
    %v3403 = vunpack.c.l.b16 %v3395
    %v3404 = vunpack.c.l.b16 %v3396
    %v3405 = vunpack.c.l.b16 %v3397
    %v3406 = vrot.slane %v3402, 7
    %v3407 = vsel %vm1722, %v3406, %v3398
    %v3408 = vrot.slane %v3403, 7
    %v3409 = vsel %vm1722, %v3408, %v3399
    %v3410 = vrot.slane %v3404, 7
    %v3411 = vsel %vm1722, %v3410, %v3400
    %v3412 = vrot.slane %v3405, 7
    %v3413 = vsel %vm1722, %v3412, %v3401
    %v3414 = vpack.c.b16 %v3407, %v3407
    %v3415 = vpack.c.b16 %v3409, %v3409
    %v3416 = vpack.c.b16 %v3411, %v3411
    %v3417 = vpack.c.b16 %v3413, %v3413
    %v3426 = vunpack.c.l.b16 %v3374
    %v3427 = vunpack.c.h.b16 %v3374
    %v3428 = vunpack.c.l.b16 %v3375
    %v3429 = vunpack.c.h.b16 %v3375
    %v3430 = vunpack.c.l.b16 %v3376
    %v3431 = vunpack.c.h.b16 %v3376
    %v3432 = vunpack.c.l.b16 %v3377
    %v3433 = vunpack.c.h.b16 %v3377
    %v3434 = vpack.c.b16 %v3426, %v3426
    %v3435 = vpack.c.b16 %v3427, %v3427
    %v3436 = vpack.c.b16 %v3428, %v3428
    %v3437 = vpack.c.b16 %v3429, %v3429
    %v3438 = vpack.c.b16 %v3430, %v3430
    %v3439 = vpack.c.b16 %v3431, %v3431
    %v3440 = vpack.c.b16 %v3432, %v3432
    %v3441 = vpack.c.b16 %v3433, %v3433
    %v3442 = vunpack.c.l.b16 %v3434
    %v3443 = vunpack.c.l.b16 %v3435
    %v3444 = vunpack.c.l.b16 %v3436
    %v3445 = vunpack.c.l.b16 %v3437
    %v3446 = vunpack.c.l.b16 %v3438
    %v3447 = vunpack.c.l.b16 %v3439
    %v3448 = vunpack.c.l.b16 %v3440
    %v3449 = vunpack.c.l.b16 %v3441
    %v3450 = vrot.slane %v3442, 5
    %v3451 = vrot.slane %v3446, 4
    %v3452 = vsel %vm1722, %v3451, %v3450
    %v3453 = vrot.slane %v3443, 5
    %v3454 = vrot.slane %v3447, 4
    %v3455 = vsel %vm1722, %v3454, %v3453
    %v3456 = vrot.slane %v3444, 5
    %v3457 = vrot.slane %v3448, 4
    %v3458 = vsel %vm1722, %v3457, %v3456
    %v3459 = vrot.slane %v3445, 5
    %v3460 = vrot.slane %v3449, 4
    %v3461 = vsel %vm1722, %v3460, %v3459
    %v3462 = vpack.c.b16 %v3452, %v3452
    %v3463 = vpack.c.b16 %v3455, %v3455
    %v3464 = vpack.c.b16 %v3458, %v3458
    %v3465 = vpack.c.b16 %v3461, %v3461
    %v3470 = vunpack.c.l.bf16 %v3414
    %v3471 = vunpack.c.l.bf16 %v3415
    %v3472 = vunpack.c.l.bf16 %v3416
    %v3473 = vunpack.c.l.bf16 %v3417
    %v3474 = vunpack.c.l.bf16 %v3462
    %v3475 = vunpack.c.l.bf16 %v3463
    %v3476 = vunpack.c.l.bf16 %v3464
    %v3477 = vunpack.c.l.bf16 %v3465
    %v3478 = vld [vmem:[#allocation2] sm:$0xf]
    %v3481 = vunpack.c.l.s4 1983009808
    %v3482 = vunpack.c.0.s8 %v3481
    %v3483 = vlaneseq
    %v3484 = vshrl.u32 %v3483, 7
    %v3485 = vsub.s32 %v3482, %v3484
    %v3486 = vrot.slane %v3478, %v3485
    %v3487 = vcombine.high %v3486, %v3486
    %v3490 = vpack.c.bf16 %v3486, %v3486
    %v3491 = vpack.c.bf16 %v3487, %v3487
    %3492 = vmatprep.subr.bf16.mxu0 %v725
    %3493 = vmatpush1.bf16.msra.mxu0 %v724
    %3494 = vmatprep.subr.bf16.mxu0 %v733
    %3495 = vmatpush1.bf16.msra.mxu0 %v732
    %3496 = vmatprep.subr.bf16.mxu0 %v741
    %3497 = vmatpush1.bf16.msra.mxu0 %v740
    %3498 = vmatprep.subr.bf16.mxu0 %v749
    %3499 = vmatpush1.bf16.msra.mxu0 %v748
    %3500 = vmatprep.subr.bf16.mxu0 %v757
    %3501 = vmatpush1.bf16.msra.mxu0 %v756
    %3502 = vmatprep.subr.bf16.mxu0 %v765
    %3503 = vmatpush1.bf16.msra.mxu0 %v764
    %3504 = vmatprep.subr.bf16.mxu0 %v773
    %3505 = vmatpush1.bf16.msra.mxu0 %v772
    %3506 = vmatprep.subr.bf16.mxu0 %v781
    %3507 = vmatpush1.bf16.msra.mxu0 %v780
    %3508 = vmatprep.subr.bf16.mxu0 %v789
    %3509 = vmatpush1.bf16.msra.mxu0 %v788
    %3510 = vmatprep.subr.bf16.mxu0 %v797
    %3511 = vmatpush1.bf16.msra.mxu0 %v796
    %3512 = vmatprep.subr.bf16.mxu0 %v805
    %3513 = vmatpush1.bf16.msra.mxu0 %v804
    %3514 = vmatprep.subr.bf16.mxu0 %v813
    %3515 = vmatpush1.bf16.msra.mxu0 %v812
    %3516 = vmatprep.subr.bf16.mxu0 %v821
    %3517 = vmatpush1.bf16.msra.mxu0 %v820
    %3518 = vmatprep.subr.bf16.mxu0 %v829
    %3519 = vmatpush1.bf16.msra.mxu0 %v828
    %3520 = vmatprep.subr.bf16.mxu0 %v837
    %3521 = vmatpush1.bf16.msra.mxu0 %v836
    %3522 = vmatprep.subr.bf16.mxu0 %v845
    %3523 = vmatpush1.bf16.msra.mxu0 %v844
    %3524 = vmatprep.mubr.bf16.mxu0 %v3491
    %3525 = vmatmul.mubr.bf16.gmra.mrb[0].mxu0 %v3490
    %v3526 = vpop.f32.mrb[0].mxu0
    %v3527 = vadd.f32 0.0, %v3526
    %v3528 = vpop.f32.mrb[0].mxu0
    %v3529 = vadd.f32 0.0, %v3528
    %v3530 = vpop.f32.mrb[0].mxu0
    %v3531 = vpop.f32.mrb[0].mxu0
    %3532 = vdwg.mxu0
    %3533 = vmatprep.subr.bf16.mxu0 %v727
    %3534 = vmatpush1.bf16.msra.mxu0 %v726
    %3535 = vmatprep.subr.bf16.mxu0 %v735
    %3536 = vmatpush1.bf16.msra.mxu0 %v734
    %3537 = vmatprep.subr.bf16.mxu0 %v743
    %3538 = vmatpush1.bf16.msra.mxu0 %v742
    %3539 = vmatprep.subr.bf16.mxu0 %v751
    %3540 = vmatpush1.bf16.msra.mxu0 %v750
    %3541 = vmatprep.subr.bf16.mxu0 %v759
    %3542 = vmatpush1.bf16.msra.mxu0 %v758
    %3543 = vmatprep.subr.bf16.mxu0 %v767
    %3544 = vmatpush1.bf16.msra.mxu0 %v766
    %3545 = vmatprep.subr.bf16.mxu0 %v775
    %3546 = vmatpush1.bf16.msra.mxu0 %v774
    %3547 = vmatprep.subr.bf16.mxu0 %v783
    %3548 = vmatpush1.bf16.msra.mxu0 %v782
    %3549 = vmatprep.subr.bf16.mxu0 %v791
    %3550 = vmatpush1.bf16.msra.mxu0 %v790
    %3551 = vmatprep.subr.bf16.mxu0 %v799
    %3552 = vmatpush1.bf16.msra.mxu0 %v798
    %3553 = vmatprep.subr.bf16.mxu0 %v807
    %3554 = vmatpush1.bf16.msra.mxu0 %v806
    %3555 = vmatprep.subr.bf16.mxu0 %v815
    %3556 = vmatpush1.bf16.msra.mxu0 %v814
    %3557 = vmatprep.subr.bf16.mxu0 %v823
    %3558 = vmatpush1.bf16.msra.mxu0 %v822
    %3559 = vmatprep.subr.bf16.mxu0 %v831
    %3560 = vmatpush1.bf16.msra.mxu0 %v830
    %3561 = vmatprep.subr.bf16.mxu0 %v839
    %3562 = vmatpush1.bf16.msra.mxu0 %v838
    %3563 = vmatprep.subr.bf16.mxu0 %v847
    %3564 = vmatpush1.bf16.msra.mxu0 %v846
    %3565 = vmatprep.mubr.bf16.mxu0 %v3491
    %3566 = vmatmul.mubr.bf16.gmra.mrb[0].mxu0 %v3490
    %v3567 = vpop.f32.mrb[0].mxu0
    %v3568 = vadd.f32 0.0, %v3567
    %v3569 = vpop.f32.mrb[0].mxu0
    %v3570 = vadd.f32 0.0, %v3569
    %v3571 = vpop.f32.mrb[0].mxu0
    %v3572 = vpop.f32.mrb[0].mxu0
    %3573 = vdwg.mxu0
    %3574 = vmatprep.subr.bf16.mxu0 %v729
    %3575 = vmatpush1.bf16.msra.mxu0 %v728
    %3576 = vmatprep.subr.bf16.mxu0 %v737
    %3577 = vmatpush1.bf16.msra.mxu0 %v736
    %3578 = vmatprep.subr.bf16.mxu0 %v745
    %3579 = vmatpush1.bf16.msra.mxu0 %v744
    %3580 = vmatprep.subr.bf16.mxu0 %v753
    %3581 = vmatpush1.bf16.msra.mxu0 %v752
    %3582 = vmatprep.subr.bf16.mxu0 %v761
    %3583 = vmatpush1.bf16.msra.mxu0 %v760
    %3584 = vmatprep.subr.bf16.mxu0 %v769
    %3585 = vmatpush1.bf16.msra.mxu0 %v768
    %3586 = vmatprep.subr.bf16.mxu0 %v777
    %3587 = vmatpush1.bf16.msra.mxu0 %v776
    %3588 = vmatprep.subr.bf16.mxu0 %v785
    %3589 = vmatpush1.bf16.msra.mxu0 %v784
    %3590 = vmatprep.subr.bf16.mxu0 %v793
    %3591 = vmatpush1.bf16.msra.mxu0 %v792
    %3592 = vmatprep.subr.bf16.mxu0 %v801
    %3593 = vmatpush1.bf16.msra.mxu0 %v800
    %3594 = vmatprep.subr.bf16.mxu0 %v809
    %3595 = vmatpush1.bf16.msra.mxu0 %v808
    %3596 = vmatprep.subr.bf16.mxu0 %v817
    %3597 = vmatpush1.bf16.msra.mxu0 %v816
    %3598 = vmatprep.subr.bf16.mxu0 %v825
    %3599 = vmatpush1.bf16.msra.mxu0 %v824
    %3600 = vmatprep.subr.bf16.mxu0 %v833
    %3601 = vmatpush1.bf16.msra.mxu0 %v832
    %3602 = vmatprep.subr.bf16.mxu0 %v841
    %3603 = vmatpush1.bf16.msra.mxu0 %v840
    %3604 = vmatprep.subr.bf16.mxu0 %v849
    %3605 = vmatpush1.bf16.msra.mxu0 %v848
    %3606 = vmatprep.mubr.bf16.mxu0 %v3491
    %3607 = vmatmul.mubr.bf16.gmra.mrb[0].mxu0 %v3490
    %v3608 = vpop.f32.mrb[0].mxu0
    %v3609 = vadd.f32 0.0, %v3608
    %v3610 = vpop.f32.mrb[0].mxu0
    %v3611 = vadd.f32 0.0, %v3610
    %v3612 = vpop.f32.mrb[0].mxu0
    %v3613 = vpop.f32.mrb[0].mxu0
    %3614 = vdwg.mxu0
    %3615 = vmatprep.subr.bf16.mxu0 %v731
    %3616 = vmatpush1.bf16.msra.mxu0 %v730
    %3617 = vmatprep.subr.bf16.mxu0 %v739
    %3618 = vmatpush1.bf16.msra.mxu0 %v738
    %3619 = vmatprep.subr.bf16.mxu0 %v747
    %3620 = vmatpush1.bf16.msra.mxu0 %v746
    %3621 = vmatprep.subr.bf16.mxu0 %v755
    %3622 = vmatpush1.bf16.msra.mxu0 %v754
    %3623 = vmatprep.subr.bf16.mxu0 %v763
    %3624 = vmatpush1.bf16.msra.mxu0 %v762
    %3625 = vmatprep.subr.bf16.mxu0 %v771
    %3626 = vmatpush1.bf16.msra.mxu0 %v770
    %3627 = vmatprep.subr.bf16.mxu0 %v779
    %3628 = vmatpush1.bf16.msra.mxu0 %v778
    %3629 = vmatprep.subr.bf16.mxu0 %v787
    %3630 = vmatpush1.bf16.msra.mxu0 %v786
    %3631 = vmatprep.subr.bf16.mxu0 %v795
    %3632 = vmatpush1.bf16.msra.mxu0 %v794
    %3633 = vmatprep.subr.bf16.mxu0 %v803
    %3634 = vmatpush1.bf16.msra.mxu0 %v802
    %3635 = vmatprep.subr.bf16.mxu0 %v811
    %3636 = vmatpush1.bf16.msra.mxu0 %v810
    %3637 = vmatprep.subr.bf16.mxu0 %v819
    %3638 = vmatpush1.bf16.msra.mxu0 %v818
    %3639 = vmatprep.subr.bf16.mxu0 %v827
    %3640 = vmatpush1.bf16.msra.mxu0 %v826
    %3641 = vmatprep.subr.bf16.mxu0 %v835
    %3642 = vmatpush1.bf16.msra.mxu0 %v834
    %3643 = vmatprep.subr.bf16.mxu0 %v843
    %3644 = vmatpush1.bf16.msra.mxu0 %v842
    %3645 = vmatprep.subr.bf16.mxu0 %v851
    %3646 = vmatpush1.bf16.msra.mxu0 %v850
    %3647 = vmatprep.mubr.bf16.mxu0 %v3491
    %3648 = vmatmul.mubr.bf16.gmra.mrb[0].mxu0 %v3490
    %v3649 = vpop.f32.mrb[0].mxu0
    %v3650 = vadd.f32 0.0, %v3649
    %v3651 = vpop.f32.mrb[0].mxu0
    %v3652 = vadd.f32 0.0, %v3651
    %v3653 = vpop.f32.mrb[0].mxu0
    %v3654 = vpop.f32.mrb[0].mxu0
    %3655 = vdwg.mxu0
    %v3664 = vrot.slane %v3527, 3
    %v3665 = vrot.slane %v3529, 3
    %v3666 = vrot.slane %v3568, 3
    %v3667 = vrot.slane %v3570, 3
    %v3668 = vrot.slane %v3609, 3
    %v3669 = vrot.slane %v3611, 3
    %v3670 = vrot.slane %v3650, 3
    %v3671 = vrot.slane %v3652, 3
    %v3680 = vadd.f32 %v3470, %v3664
    %v3681 = vadd.f32 %v3471, %v3665
    %v3682 = vadd.f32 %v3472, %v3666
    %v3683 = vadd.f32 %v3473, %v3667
    %v3684 = vadd.f32 %v3474, %v3668
    %v3685 = vadd.f32 %v3475, %v3669
    %v3686 = vadd.f32 %v3476, %v3670
    %v3687 = vadd.f32 %v3477, %v3671
    %v3688 = vxor.u32 %v3680, 2147483648
    %v3689 = vxor.u32 %v3684, 2147483648
    %v3690 = vmul.f32 %v3688, 1.442695
    %v3691 = vpow.pop %v3690
    %v3692 = vmul.f32 %v3689, 1.442695
    %v3693 = vpow.pop %v3692
    %v3694 = vadd.f32 %v3691, 1.0
    %v3695 = vadd.f32 %v3693, 1.0
    %v3696 = vrcp.pop %v3694
    %v3697 = vmul.f32 1.0, %v3696
    %v3698 = vrcp.pop %v3695
    %v3699 = vmul.f32 1.0, %v3698
    %v3700 = vxor.u32 %v3681, 2147483648
    %v3701 = vxor.u32 %v3685, 2147483648
    %v3702 = vmul.f32 %v3700, 1.442695
    %v3703 = vpow.pop %v3702
    %v3704 = vmul.f32 %v3701, 1.442695
    %v3705 = vpow.pop %v3704
    %v3706 = vadd.f32 %v3703, 1.0
    %v3707 = vadd.f32 %v3705, 1.0
    %v3708 = vrcp.pop %v3706
    %v3709 = vmul.f32 1.0, %v3708
    %v3710 = vrcp.pop %v3707
    %v3711 = vmul.f32 1.0, %v3710
    %v3712 = vtanh.pop %v3682
    %v3713 = vtanh.pop %v3686
    %v3714 = vxor.u32 %v3683, 2147483648
    %v3715 = vxor.u32 %v3687, 2147483648
    %v3716 = vmul.f32 %v3714, 1.442695
    %v3717 = vpow.pop %v3716
    %v3718 = vmul.f32 %v3715, 1.442695
    %v3719 = vpow.pop %v3718
    %v3720 = vadd.f32 %v3717, 1.0
    %v3721 = vadd.f32 %v3719, 1.0
    %v3722 = vrcp.pop %v3720
    %v3723 = vmul.f32 1.0, %v3722
    %v3724 = vrcp.pop %v3721
    %v3725 = vmul.f32 1.0, %v3724
    %v3726 = vld [vmem:[#allocation3] sm:$0xf]
    %v3729 = vunpack.c.l.s4 1983009808
    %v3730 = vunpack.c.0.s8 %v3729
    %v3731 = vlaneseq
    %v3732 = vshrl.u32 %v3731, 7
    %v3733 = vsub.s32 %v3730, %v3732
    %v3734 = vrot.slane %v3726, %v3733
    %v3735 = vcombine.high %v3734, %v3734
    %v3736 = vrot.slane %v3734, 3
    %v3737 = vrot.slane %v3735, 3
    %v3740 = vmul.f32 %v3709, %v3736
    %v3741 = vmul.f32 %v3711, %v3737
    %v3742 = vmul.f32 %v3697, %v3712
    %v3743 = vmul.f32 %v3699, %v3713
    %v3744 = vadd.f32 %v3740, %v3742
    %v3745 = vadd.f32 %v3741, %v3743
    %v3746 = vtanh.pop %v3744
    %v3747 = vtanh.pop %v3745
    %v3748 = vmul.f32 %v3723, %v3746
    %v3749 = vmul.f32 %v3725, %v3747
    %v3752 = vcombine.high %v3748, %v3749
    %v3754 = vunpack.c.l.s4 1983009808
    %v3755 = vunpack.c.0.s8 %v3754
    %v3756 = vlaneseq
    %v3757 = vshrl.u32 %v3756, 7
    %v3758 = vsub.s32 %v3755, %v3757
    %v3759 = vrot.slane %v3752, %v3758
    %v3760 = vcombine.high %v3759, %v3759
    %v3761 = vrot.slane %v3759, 7
    %v3762 = vrot.slane %v3761, 2
    %v3763 = vrot.slane %v3760, 7
    %v3764 = vsel %vm1723, %v3762, %v3763
    %3766 = vst [vmem:[#allocation2] sm:$0xf] %v3764
    %v3769 = vcombine.high %v3744, %v3745
    %v3771 = vunpack.c.l.s4 1983009808
    %v3772 = vunpack.c.0.s8 %v3771
    %v3773 = vlaneseq
    %v3774 = vshrl.u32 %v3773, 7
    %v3775 = vsub.s32 %v3772, %v3774
    %v3776 = vrot.slane %v3769, %v3775
    %v3777 = vcombine.high %v3776, %v3776
    %v3778 = vrot.slane %v3776, 7
    %v3779 = vrot.slane %v3778, 2
    %v3780 = vrot.slane %v3777, 7
    %v3781 = vsel %vm1723, %v3779, %v3780
    %3783 = vst [vmem:[#allocation3] sm:$0xf] %v3781
    %v3784 = vpack.c.bf16 %v3748, %v3748
    %v3787 = vunpack.c.l.s4 1966171168
    %v3788 = vunpack.c.0.s8 %v3787
    %v3789 = vlaneseq
    %v3790 = vshrl.u32 %v3789, 7
    %v3791 = vsub.s32 %v3788, %v3790
    %v3792 = vrot.slane %v3784, %v3791
    %v3793 = vcombine.high %v3792, %v3792
    %v3795 = vunpack.c.l.s4 1966171168
    %v3796 = vunpack.c.0.s8 %v3795
    %v3797 = vlaneseq
    %v3798 = vshrl.u32 %v3797, 7
    %v3799 = vsub.s32 %v3796, %v3798
    %v3800 = vrot.slane %v3792, %v3799
    %v3802 = vunpack.c.l.s4 1966171168
    %v3803 = vunpack.c.0.s8 %v3802
    %v3804 = vlaneseq
    %v3805 = vshrl.u32 %v3804, 7
    %v3806 = vsub.s32 %v3803, %v3805
    %v3807 = vrot.slane %v3793, %v3806
    %v3808 = vcombine.high %v3800, %v3800
    %v3809 = vcombine.high %v3807, %v3807
    %v3810 = vunpack.i.h.s16 %v3808
    %v3811 = vunpack.i.l.s16 %v3809
    %v3812 = vpack.i.b16 %v3810, %v3810
    %v3813 = vpack.i.b16 %v3811, %v3811
    %v3815 = vunpack.c.l.s4 286326784
    %v3816 = vunpack.c.0.s8 %v3815
    %v3817 = vlaneseq
    %v3818 = vshrl.u32 %v3817, 7
    %v3819 = vsub.s32 %v3816, %v3818
    %v3820 = vrot.slane %v3812, %v3819
    %v3822 = vunpack.c.l.s4 286326784
    %v3823 = vunpack.c.0.s8 %v3822
    %v3824 = vlaneseq
    %v3825 = vshrl.u32 %v3824, 7
    %v3826 = vsub.s32 %v3823, %v3825
    %v3827 = vrot.slane %v3813, %v3826
    %v3830 = vld [vmem:[%s3] sm:$0x4]
    %v3831 = vsel %vm2342, %v3820, %v3830
    %3832 = vst [vmem:[%s3] sm:$0x4] %v3831
    %v3833 = vld [vmem:[%s3 + $0x4] sm:$0x4]
    %v3834 = vsel %vm2342, %v3827, %v3833
    %3835 = vst [vmem:[%s3 + $0x4] sm:$0x4] %v3834
    %v3836 = vpack.c.bf16 %v3749, %v3749
    %v3839 = vunpack.c.l.s4 1966171168
    %v3840 = vunpack.c.0.s8 %v3839
    %v3841 = vlaneseq
    %v3842 = vshrl.u32 %v3841, 7
    %v3843 = vsub.s32 %v3840, %v3842
    %v3844 = vrot.slane %v3836, %v3843
    %v3845 = vcombine.high %v3844, %v3844
    %v3847 = vunpack.c.l.s4 1966171168
    %v3848 = vunpack.c.0.s8 %v3847
    %v3849 = vlaneseq
    %v3850 = vshrl.u32 %v3849, 7
    %v3851 = vsub.s32 %v3848, %v3850
    %v3852 = vrot.slane %v3844, %v3851
    %v3854 = vunpack.c.l.s4 1966171168
    %v3855 = vunpack.c.0.s8 %v3854
    %v3856 = vlaneseq
    %v3857 = vshrl.u32 %v3856, 7
    %v3858 = vsub.s32 %v3855, %v3857
    %v3859 = vrot.slane %v3845, %v3858
    %v3860 = vcombine.high %v3852, %v3852
    %v3861 = vcombine.high %v3859, %v3859
    %v3862 = vunpack.i.h.s16 %v3860
    %v3863 = vunpack.i.l.s16 %v3861
    %v3864 = vpack.i.b16 %v3862, %v3862
    %v3865 = vpack.i.b16 %v3863, %v3863
    %v3867 = vunpack.c.l.s4 286326784
    %v3868 = vunpack.c.0.s8 %v3867
    %v3869 = vlaneseq
    %v3870 = vshrl.u32 %v3869, 7
    %v3871 = vsub.s32 %v3868, %v3870
    %v3872 = vrot.slane %v3864, %v3871
    %v3874 = vunpack.c.l.s4 286326784
    %v3875 = vunpack.c.0.s8 %v3874
    %v3876 = vlaneseq
    %v3877 = vshrl.u32 %v3876, 7
    %v3878 = vsub.s32 %v3875, %v3877
    %v3879 = vrot.slane %v3865, %v3878
    %v3882 = vld [vmem:[%s81] sm:$0x2]
    %v3883 = vsel %vm2296, %v3872, %v3882
    %3884 = vst [vmem:[%s81] sm:$0x2] %v3883
    %v3885 = vld [vmem:[%s81 + $0x4] sm:$0x2]
    %v3886 = vsel %vm2296, %v3879, %v3885
    %3887 = vst [vmem:[%s81 + $0x4] sm:$0x2] %v3886
    %v3888 = vld [vmem:[#allocation4] sm:$0x88]
    %v3889 = vld [vmem:[#allocation4 + $0x8] sm:$0x88]
    %v3890 = vld [vmem:[#allocation4 + $0x10] sm:$0x88]
    %v3891 = vld [vmem:[#allocation4 + $0x18] sm:$0x88]
    %v3892 = vld [vmem:[#allocation5] sm:$0x11]
    %v3893 = vld [vmem:[#allocation5 + $0x8] sm:$0x11]
    %v3894 = vld [vmem:[#allocation5 + $0x10] sm:$0x11]
    %v3895 = vld [vmem:[#allocation5 + $0x18] sm:$0x11]
    %v3900 = vunpack.c.l.b16 %v3888
    %v3901 = vunpack.c.h.b16 %v3888
    %v3902 = vunpack.c.l.b16 %v3889
    %v3903 = vunpack.c.h.b16 %v3889
    %v3904 = vunpack.c.l.b16 %v3890
    %v3905 = vunpack.c.h.b16 %v3890
    %v3906 = vunpack.c.l.b16 %v3891
    %v3907 = vunpack.c.h.b16 %v3891
    %v3908 = vpack.c.b16 %v3900, %v3900
    %v3909 = vpack.c.b16 %v3901, %v3901
    %v3910 = vpack.c.b16 %v3902, %v3902
    %v3911 = vpack.c.b16 %v3903, %v3903
    %v3912 = vpack.c.b16 %v3904, %v3904
    %v3913 = vpack.c.b16 %v3905, %v3905
    %v3914 = vpack.c.b16 %v3906, %v3906
    %v3915 = vpack.c.b16 %v3907, %v3907
    %v3916 = vunpack.c.l.b16 %v3908
    %v3917 = vunpack.c.l.b16 %v3909
    %v3918 = vunpack.c.l.b16 %v3910
    %v3919 = vunpack.c.l.b16 %v3911
    %v3920 = vunpack.c.l.b16 %v3912
    %v3921 = vunpack.c.l.b16 %v3913
    %v3922 = vunpack.c.l.b16 %v3914
    %v3923 = vunpack.c.l.b16 %v3915
    %v3924 = vrot.slane %v3920, 7
    %vm3925 = vcmask 1047559
    %v3926 = vsel %vm3925, %v3924, %v3916
    %v3927 = vrot.slane %v3921, 7
    %v3928 = vsel %vm3925, %v3927, %v3917
    %v3929 = vrot.slane %v3922, 7
    %v3930 = vsel %vm3925, %v3929, %v3918
    %v3931 = vrot.slane %v3923, 7
    %v3932 = vsel %vm3925, %v3931, %v3919
    %v3933 = vpack.c.b16 %v3926, %v3926
    %v3934 = vpack.c.b16 %v3928, %v3928
    %v3935 = vpack.c.b16 %v3930, %v3930
    %v3936 = vpack.c.b16 %v3932, %v3932
    %v3945 = vunpack.c.l.b16 %v3892
    %v3946 = vunpack.c.h.b16 %v3892
    %v3947 = vunpack.c.l.b16 %v3893
    %v3948 = vunpack.c.h.b16 %v3893
    %v3949 = vunpack.c.l.b16 %v3894
    %v3950 = vunpack.c.h.b16 %v3894
    %v3951 = vunpack.c.l.b16 %v3895
    %v3952 = vunpack.c.h.b16 %v3895
    %v3953 = vpack.c.b16 %v3945, %v3945
    %v3954 = vpack.c.b16 %v3946, %v3946
    %v3955 = vpack.c.b16 %v3947, %v3947
    %v3956 = vpack.c.b16 %v3948, %v3948
    %v3957 = vpack.c.b16 %v3949, %v3949
    %v3958 = vpack.c.b16 %v3950, %v3950
    %v3959 = vpack.c.b16 %v3951, %v3951
    %v3960 = vpack.c.b16 %v3952, %v3952
    %v3961 = vunpack.c.l.b16 %v3953
    %v3962 = vunpack.c.l.b16 %v3954
    %v3963 = vunpack.c.l.b16 %v3955
    %v3964 = vunpack.c.l.b16 %v3956
    %v3965 = vunpack.c.l.b16 %v3957
    %v3966 = vunpack.c.l.b16 %v3958
    %v3967 = vunpack.c.l.b16 %v3959
    %v3968 = vunpack.c.l.b16 %v3960
    %v3969 = vrot.slane %v3961, 3
    %v3970 = vrot.slane %v3965, 2
    %v3971 = vsel %vm3925, %v3970, %v3969
    %v3972 = vrot.slane %v3962, 3
    %v3973 = vrot.slane %v3966, 2
    %v3974 = vsel %vm3925, %v3973, %v3972
    %v3975 = vrot.slane %v3963, 3
    %v3976 = vrot.slane %v3967, 2
    %v3977 = vsel %vm3925, %v3976, %v3975
    %v3978 = vrot.slane %v3964, 3
    %v3979 = vrot.slane %v3968, 2
    %v3980 = vsel %vm3925, %v3979, %v3978
    %v3981 = vpack.c.b16 %v3971, %v3971
    %v3982 = vpack.c.b16 %v3974, %v3974
    %v3983 = vpack.c.b16 %v3977, %v3977
    %v3984 = vpack.c.b16 %v3980, %v3980
    %v3989 = vunpack.c.l.bf16 %v3933
    %v3990 = vunpack.c.l.bf16 %v3934
    %v3991 = vunpack.c.l.bf16 %v3935
    %v3992 = vunpack.c.l.bf16 %v3936
    %v3993 = vunpack.c.l.bf16 %v3981
    %v3994 = vunpack.c.l.bf16 %v3982
    %v3995 = vunpack.c.l.bf16 %v3983
    %v3996 = vunpack.c.l.bf16 %v3984
    %v3997 = vld [vmem:[#allocation2] sm:$0xf]
    %v4000 = vunpack.c.l.s4 1983009808
    %v4001 = vunpack.c.0.s8 %v4000
    %v4002 = vlaneseq
    %v4003 = vshrl.u32 %v4002, 7
    %v4004 = vsub.s32 %v4001, %v4003
    %v4005 = vrot.slane %v3997, %v4004
    %v4006 = vcombine.high %v4005, %v4005
    %v4009 = vpack.c.bf16 %v4005, %v4005
    %v4010 = vpack.c.bf16 %v4006, %v4006
    %4011 = vmatprep.subr.bf16.mxu0 %v725
    %4012 = vmatpush1.bf16.msra.mxu0 %v724
    %4013 = vmatprep.subr.bf16.mxu0 %v733
    %4014 = vmatpush1.bf16.msra.mxu0 %v732
    %4015 = vmatprep.subr.bf16.mxu0 %v741
    %4016 = vmatpush1.bf16.msra.mxu0 %v740
    %4017 = vmatprep.subr.bf16.mxu0 %v749
    %4018 = vmatpush1.bf16.msra.mxu0 %v748
    %4019 = vmatprep.subr.bf16.mxu0 %v757
    %4020 = vmatpush1.bf16.msra.mxu0 %v756
    %4021 = vmatprep.subr.bf16.mxu0 %v765
    %4022 = vmatpush1.bf16.msra.mxu0 %v764
    %4023 = vmatprep.subr.bf16.mxu0 %v773
    %4024 = vmatpush1.bf16.msra.mxu0 %v772
    %4025 = vmatprep.subr.bf16.mxu0 %v781
    %4026 = vmatpush1.bf16.msra.mxu0 %v780
    %4027 = vmatprep.subr.bf16.mxu0 %v789
    %4028 = vmatpush1.bf16.msra.mxu0 %v788
    %4029 = vmatprep.subr.bf16.mxu0 %v797
    %4030 = vmatpush1.bf16.msra.mxu0 %v796
    %4031 = vmatprep.subr.bf16.mxu0 %v805
    %4032 = vmatpush1.bf16.msra.mxu0 %v804
    %4033 = vmatprep.subr.bf16.mxu0 %v813
    %4034 = vmatpush1.bf16.msra.mxu0 %v812
    %4035 = vmatprep.subr.bf16.mxu0 %v821
    %4036 = vmatpush1.bf16.msra.mxu0 %v820
    %4037 = vmatprep.subr.bf16.mxu0 %v829
    %4038 = vmatpush1.bf16.msra.mxu0 %v828
    %4039 = vmatprep.subr.bf16.mxu0 %v837
    %4040 = vmatpush1.bf16.msra.mxu0 %v836
    %4041 = vmatprep.subr.bf16.mxu0 %v845
    %4042 = vmatpush1.bf16.msra.mxu0 %v844
    %4043 = vmatprep.mubr.bf16.mxu0 %v4010
    %4044 = vmatmul.mubr.bf16.gmra.mrb[0].mxu0 %v4009
    %v4045 = vpop.f32.mrb[0].mxu0
    %v4046 = vadd.f32 0.0, %v4045
    %v4047 = vpop.f32.mrb[0].mxu0
    %v4048 = vadd.f32 0.0, %v4047
    %v4049 = vpop.f32.mrb[0].mxu0
    %v4050 = vpop.f32.mrb[0].mxu0
    %4051 = vdwg.mxu0
    %4052 = vmatprep.subr.bf16.mxu0 %v727
    %4053 = vmatpush1.bf16.msra.mxu0 %v726
    %4054 = vmatprep.subr.bf16.mxu0 %v735
    %4055 = vmatpush1.bf16.msra.mxu0 %v734
    %4056 = vmatprep.subr.bf16.mxu0 %v743
    %4057 = vmatpush1.bf16.msra.mxu0 %v742
    %4058 = vmatprep.subr.bf16.mxu0 %v751
    %4059 = vmatpush1.bf16.msra.mxu0 %v750
    %4060 = vmatprep.subr.bf16.mxu0 %v759
    %4061 = vmatpush1.bf16.msra.mxu0 %v758
    %4062 = vmatprep.subr.bf16.mxu0 %v767
    %4063 = vmatpush1.bf16.msra.mxu0 %v766
    %4064 = vmatprep.subr.bf16.mxu0 %v775
    %4065 = vmatpush1.bf16.msra.mxu0 %v774
    %4066 = vmatprep.subr.bf16.mxu0 %v783
    %4067 = vmatpush1.bf16.msra.mxu0 %v782
    %4068 = vmatprep.subr.bf16.mxu0 %v791
    %4069 = vmatpush1.bf16.msra.mxu0 %v790
    %4070 = vmatprep.subr.bf16.mxu0 %v799
    %4071 = vmatpush1.bf16.msra.mxu0 %v798
    %4072 = vmatprep.subr.bf16.mxu0 %v807
    %4073 = vmatpush1.bf16.msra.mxu0 %v806
    %4074 = vmatprep.subr.bf16.mxu0 %v815
    %4075 = vmatpush1.bf16.msra.mxu0 %v814
    %4076 = vmatprep.subr.bf16.mxu0 %v823
    %4077 = vmatpush1.bf16.msra.mxu0 %v822
    %4078 = vmatprep.subr.bf16.mxu0 %v831
    %4079 = vmatpush1.bf16.msra.mxu0 %v830
    %4080 = vmatprep.subr.bf16.mxu0 %v839
    %4081 = vmatpush1.bf16.msra.mxu0 %v838
    %4082 = vmatprep.subr.bf16.mxu0 %v847
    %4083 = vmatpush1.bf16.msra.mxu0 %v846
    %4084 = vmatprep.mubr.bf16.mxu0 %v4010
    %4085 = vmatmul.mubr.bf16.gmra.mrb[0].mxu0 %v4009
    %v4086 = vpop.f32.mrb[0].mxu0
    %v4087 = vadd.f32 0.0, %v4086
    %v4088 = vpop.f32.mrb[0].mxu0
    %v4089 = vadd.f32 0.0, %v4088
    %v4090 = vpop.f32.mrb[0].mxu0
    %v4091 = vpop.f32.mrb[0].mxu0
    %4092 = vdwg.mxu0
    %4093 = vmatprep.subr.bf16.mxu0 %v729
    %4094 = vmatpush1.bf16.msra.mxu0 %v728
    %4095 = vmatprep.subr.bf16.mxu0 %v737
    %4096 = vmatpush1.bf16.msra.mxu0 %v736
    %4097 = vmatprep.subr.bf16.mxu0 %v745
    %4098 = vmatpush1.bf16.msra.mxu0 %v744
    %4099 = vmatprep.subr.bf16.mxu0 %v753
    %4100 = vmatpush1.bf16.msra.mxu0 %v752
    %4101 = vmatprep.subr.bf16.mxu0 %v761
    %4102 = vmatpush1.bf16.msra.mxu0 %v760
    %4103 = vmatprep.subr.bf16.mxu0 %v769
    %4104 = vmatpush1.bf16.msra.mxu0 %v768
    %4105 = vmatprep.subr.bf16.mxu0 %v777
    %4106 = vmatpush1.bf16.msra.mxu0 %v776
    %4107 = vmatprep.subr.bf16.mxu0 %v785
    %4108 = vmatpush1.bf16.msra.mxu0 %v784
    %4109 = vmatprep.subr.bf16.mxu0 %v793
    %4110 = vmatpush1.bf16.msra.mxu0 %v792
    %4111 = vmatprep.subr.bf16.mxu0 %v801
    %4112 = vmatpush1.bf16.msra.mxu0 %v800
    %4113 = vmatprep.subr.bf16.mxu0 %v809
    %4114 = vmatpush1.bf16.msra.mxu0 %v808
    %4115 = vmatprep.subr.bf16.mxu0 %v817
    %4116 = vmatpush1.bf16.msra.mxu0 %v816
    %4117 = vmatprep.subr.bf16.mxu0 %v825
    %4118 = vmatpush1.bf16.msra.mxu0 %v824
    %4119 = vmatprep.subr.bf16.mxu0 %v833
    %4120 = vmatpush1.bf16.msra.mxu0 %v832
    %4121 = vmatprep.subr.bf16.mxu0 %v841
    %4122 = vmatpush1.bf16.msra.mxu0 %v840
    %4123 = vmatprep.subr.bf16.mxu0 %v849
    %4124 = vmatpush1.bf16.msra.mxu0 %v848
    %4125 = vmatprep.mubr.bf16.mxu0 %v4010
    %4126 = vmatmul.mubr.bf16.gmra.mrb[0].mxu0 %v4009
    %v4127 = vpop.f32.mrb[0].mxu0
    %v4128 = vadd.f32 0.0, %v4127
    %v4129 = vpop.f32.mrb[0].mxu0
    %v4130 = vadd.f32 0.0, %v4129
    %v4131 = vpop.f32.mrb[0].mxu0
    %v4132 = vpop.f32.mrb[0].mxu0
    %4133 = vdwg.mxu0
    %4134 = vmatprep.subr.bf16.mxu0 %v731
    %4135 = vmatpush1.bf16.msra.mxu0 %v730
    %4136 = vmatprep.subr.bf16.mxu0 %v739
    %4137 = vmatpush1.bf16.msra.mxu0 %v738
    %4138 = vmatprep.subr.bf16.mxu0 %v747
    %4139 = vmatpush1.bf16.msra.mxu0 %v746
    %4140 = vmatprep.subr.bf16.mxu0 %v755
    %4141 = vmatpush1.bf16.msra.mxu0 %v754
    %4142 = vmatprep.subr.bf16.mxu0 %v763
    %4143 = vmatpush1.bf16.msra.mxu0 %v762
    %4144 = vmatprep.subr.bf16.mxu0 %v771
    %4145 = vmatpush1.bf16.msra.mxu0 %v770
    %4146 = vmatprep.subr.bf16.mxu0 %v779
    %4147 = vmatpush1.bf16.msra.mxu0 %v778
    %4148 = vmatprep.subr.bf16.mxu0 %v787
    %4149 = vmatpush1.bf16.msra.mxu0 %v786
    %4150 = vmatprep.subr.bf16.mxu0 %v795
    %4151 = vmatpush1.bf16.msra.mxu0 %v794
    %4152 = vmatprep.subr.bf16.mxu0 %v803
    %4153 = vmatpush1.bf16.msra.mxu0 %v802
    %4154 = vmatprep.subr.bf16.mxu0 %v811
    %4155 = vmatpush1.bf16.msra.mxu0 %v810
    %4156 = vmatprep.subr.bf16.mxu0 %v819
    %4157 = vmatpush1.bf16.msra.mxu0 %v818
    %4158 = vmatprep.subr.bf16.mxu0 %v827
    %4159 = vmatpush1.bf16.msra.mxu0 %v826
    %4160 = vmatprep.subr.bf16.mxu0 %v835
    %4161 = vmatpush1.bf16.msra.mxu0 %v834
    %4162 = vmatprep.subr.bf16.mxu0 %v843
    %4163 = vmatpush1.bf16.msra.mxu0 %v842
    %4164 = vmatprep.subr.bf16.mxu0 %v851
    %4165 = vmatpush1.bf16.msra.mxu0 %v850
    %4166 = vmatprep.mubr.bf16.mxu0 %v4010
    %4167 = vmatmul.mubr.bf16.gmra.mrb[0].mxu0 %v4009
    %v4168 = vpop.f32.mrb[0].mxu0
    %v4169 = vadd.f32 0.0, %v4168
    %v4170 = vpop.f32.mrb[0].mxu0
    %v4171 = vadd.f32 0.0, %v4170
    %v4172 = vpop.f32.mrb[0].mxu0
    %v4173 = vpop.f32.mrb[0].mxu0
    %4174 = vdwg.mxu0
    %v4183 = vrot.slane %v4046, 2
    %v4184 = vrot.slane %v4048, 2
    %v4185 = vrot.slane %v4087, 2
    %v4186 = vrot.slane %v4089, 2
    %v4187 = vrot.slane %v4128, 2
    %v4188 = vrot.slane %v4130, 2
    %v4189 = vrot.slane %v4169, 2
    %v4190 = vrot.slane %v4171, 2
    %v4199 = vadd.f32 %v3989, %v4183
    %v4200 = vadd.f32 %v3990, %v4184
    %v4201 = vadd.f32 %v3991, %v4185
    %v4202 = vadd.f32 %v3992, %v4186
    %v4203 = vadd.f32 %v3993, %v4187
    %v4204 = vadd.f32 %v3994, %v4188
    %v4205 = vadd.f32 %v3995, %v4189
    %v4206 = vadd.f32 %v3996, %v4190
    %v4207 = vxor.u32 %v4199, 2147483648
    %v4208 = vxor.u32 %v4203, 2147483648
    %v4209 = vmul.f32 %v4207, 1.442695
    %v4210 = vpow.pop %v4209
    %v4211 = vmul.f32 %v4208, 1.442695
    %v4212 = vpow.pop %v4211
    %v4213 = vadd.f32 %v4210, 1.0
    %v4214 = vadd.f32 %v4212, 1.0
    %v4215 = vrcp.pop %v4213
    %v4216 = vmul.f32 1.0, %v4215
    %v4217 = vrcp.pop %v4214
    %v4218 = vmul.f32 1.0, %v4217
    %v4219 = vxor.u32 %v4200, 2147483648
    %v4220 = vxor.u32 %v4204, 2147483648
    %v4221 = vmul.f32 %v4219, 1.442695
    %v4222 = vpow.pop %v4221
    %v4223 = vmul.f32 %v4220, 1.442695
    %v4224 = vpow.pop %v4223
    %v4225 = vadd.f32 %v4222, 1.0
    %v4226 = vadd.f32 %v4224, 1.0
    %v4227 = vrcp.pop %v4225
    %v4228 = vmul.f32 1.0, %v4227
    %v4229 = vrcp.pop %v4226
    %v4230 = vmul.f32 1.0, %v4229
    %v4231 = vtanh.pop %v4201
    %v4232 = vtanh.pop %v4205
    %v4233 = vxor.u32 %v4202, 2147483648
    %v4234 = vxor.u32 %v4206, 2147483648
    %v4235 = vmul.f32 %v4233, 1.442695
    %v4236 = vpow.pop %v4235
    %v4237 = vmul.f32 %v4234, 1.442695
    %v4238 = vpow.pop %v4237
    %v4239 = vadd.f32 %v4236, 1.0
    %v4240 = vadd.f32 %v4238, 1.0
    %v4241 = vrcp.pop %v4239
    %v4242 = vmul.f32 1.0, %v4241
    %v4243 = vrcp.pop %v4240
    %v4244 = vmul.f32 1.0, %v4243
    %v4245 = vld [vmem:[#allocation3] sm:$0xf]
    %v4247 = vcombine.low %v4245, %v4245
    %v4249 = vunpack.c.l.s4 1983009808
    %v4250 = vunpack.c.0.s8 %v4249
    %v4251 = vlaneseq
    %v4252 = vshrl.u32 %v4251, 7
    %v4253 = vsub.s32 %v4250, %v4252
    %v4254 = vrot.slane %v4247, %v4253
    %v4255 = vcombine.low %v4254, %v4254
    %v4258 = vmul.f32 %v4228, %v4255
    %v4259 = vmul.f32 %v4230, %v4254
    %v4260 = vmul.f32 %v4216, %v4231
    %v4261 = vmul.f32 %v4218, %v4232
    %v4262 = vadd.f32 %v4258, %v4260
    %v4263 = vadd.f32 %v4259, %v4261
    %v4264 = vtanh.pop %v4262
    %v4265 = vtanh.pop %v4263
    %v4266 = vmul.f32 %v4242, %v4264
    %v4267 = vmul.f32 %v4244, %v4265
    %v4270 = vcombine.high %v4266, %v4267
    %v4272 = vunpack.c.l.s4 1983009808
    %v4273 = vunpack.c.0.s8 %v4272
    %v4274 = vlaneseq
    %v4275 = vshrl.u32 %v4274, 7
    %v4276 = vsub.s32 %v4273, %v4275
    %v4277 = vrot.slane %v4270, %v4276
    %v4278 = vcombine.high %v4277, %v4277
    %4280 = vst [vmem:[#allocation2] sm:$0xf] %v4278
    %v4283 = vcombine.high %v4262, %v4263
    %v4285 = vunpack.c.l.s4 1983009808
    %v4286 = vunpack.c.0.s8 %v4285
    %v4287 = vlaneseq
    %v4288 = vshrl.u32 %v4287, 7
    %v4289 = vsub.s32 %v4286, %v4288
    %v4290 = vrot.slane %v4283, %v4289
    %v4291 = vcombine.high %v4290, %v4290
    %4293 = vst [vmem:[#allocation3] sm:$0xf] %v4291
    %v4294 = vpack.c.bf16 %v4266, %v4266
    %v4297 = vunpack.c.l.s4 1966171168
    %v4298 = vunpack.c.0.s8 %v4297
    %v4299 = vlaneseq
    %v4300 = vshrl.u32 %v4299, 7
    %v4301 = vsub.s32 %v4298, %v4300
    %v4302 = vrot.slane %v4294, %v4301
    %v4303 = vcombine.high %v4302, %v4302
    %v4305 = vunpack.c.l.s4 1966171168
    %v4306 = vunpack.c.0.s8 %v4305
    %v4307 = vlaneseq
    %v4308 = vshrl.u32 %v4307, 7
    %v4309 = vsub.s32 %v4306, %v4308
    %v4310 = vrot.slane %v4303, %v4309
    %v4311 = vcombine.high %v4310, %v4310
    %v4312 = vunpack.i.l.s16 %v4311
    %v4313 = vunpack.i.h.s16 %v4311
    %v4314 = vpack.i.b16 %v4312, %v4312
    %v4315 = vpack.i.b16 %v4313, %v4313
    %v4317 = vunpack.c.l.s4 286326784
    %v4318 = vunpack.c.0.s8 %v4317
    %v4319 = vlaneseq
    %v4320 = vshrl.u32 %v4319, 7
    %v4321 = vsub.s32 %v4318, %v4320
    %v4322 = vrot.slane %v4314, %v4321
    %v4324 = vunpack.c.l.s4 286326784
    %v4325 = vunpack.c.0.s8 %v4324
    %v4326 = vlaneseq
    %v4327 = vshrl.u32 %v4326, 7
    %v4328 = vsub.s32 %v4325, %v4327
    %v4329 = vrot.slane %v4315, %v4328
    %v4332 = vld [vmem:[%s3] sm:$0x8]
    %v4333 = vsel %vm1844, %v4322, %v4332
    %4334 = vst [vmem:[%s3] sm:$0x8] %v4333
    %v4335 = vld [vmem:[%s3 + $0x4] sm:$0x8]
    %v4336 = vsel %vm1844, %v4329, %v4335
    %4337 = vst [vmem:[%s3 + $0x4] sm:$0x8] %v4336
    %v4338 = vpack.c.bf16 %v4267, %v4267
    %v4341 = vunpack.c.l.s4 1966171168
    %v4342 = vunpack.c.0.s8 %v4341
    %v4343 = vlaneseq
    %v4344 = vshrl.u32 %v4343, 7
    %v4345 = vsub.s32 %v4342, %v4344
    %v4346 = vrot.slane %v4338, %v4345
    %v4347 = vcombine.high %v4346, %v4346
    %v4349 = vunpack.c.l.s4 1966171168
    %v4350 = vunpack.c.0.s8 %v4349
    %v4351 = vlaneseq
    %v4352 = vshrl.u32 %v4351, 7
    %v4353 = vsub.s32 %v4350, %v4352
    %v4354 = vrot.slane %v4347, %v4353
    %v4355 = vcombine.high %v4354, %v4354
    %v4356 = vunpack.i.l.s16 %v4355
    %v4357 = vunpack.i.h.s16 %v4355
    %v4358 = vpack.i.b16 %v4356, %v4356
    %v4359 = vpack.i.b16 %v4357, %v4357
    %v4361 = vunpack.c.l.s4 286326784
    %v4362 = vunpack.c.0.s8 %v4361
    %v4363 = vlaneseq
    %v4364 = vshrl.u32 %v4363, 7
    %v4365 = vsub.s32 %v4362, %v4364
    %v4366 = vrot.slane %v4358, %v4365
    %v4368 = vunpack.c.l.s4 286326784
    %v4369 = vunpack.c.0.s8 %v4368
    %v4370 = vlaneseq
    %v4371 = vshrl.u32 %v4370, 7
    %v4372 = vsub.s32 %v4369, %v4371
    %v4373 = vrot.slane %v4359, %v4372
    %v4376 = vld [vmem:[%s81] sm:$0x1]
    %v4377 = vsel %vm1792, %v4366, %v4376
    %4378 = vst [vmem:[%s81] sm:$0x1] %v4377
    %v4379 = vld [vmem:[%s81 + $0x4] sm:$0x1]
    %v4380 = vsel %vm1792, %v4373, %v4379
    %4381 = vst [vmem:[%s81 + $0x4] sm:$0x1] %v4380
    %v4382 = vld [vmem:[#allocation4] sm:$0x88]
    %v4383 = vld [vmem:[#allocation4 + $0x8] sm:$0x88]
    %v4384 = vld [vmem:[#allocation4 + $0x10] sm:$0x88]
    %v4385 = vld [vmem:[#allocation4 + $0x18] sm:$0x88]
    %v4386 = vld [vmem:[#allocation5] sm:$0x11]
    %v4387 = vld [vmem:[#allocation5 + $0x8] sm:$0x11]
    %v4388 = vld [vmem:[#allocation5 + $0x10] sm:$0x11]
    %v4389 = vld [vmem:[#allocation5 + $0x18] sm:$0x11]
    %v4394 = vunpack.c.l.b16 %v4382
    %v4395 = vunpack.c.h.b16 %v4382
    %v4396 = vunpack.c.l.b16 %v4383
    %v4397 = vunpack.c.h.b16 %v4383
    %v4398 = vunpack.c.l.b16 %v4384
    %v4399 = vunpack.c.h.b16 %v4384
    %v4400 = vunpack.c.l.b16 %v4385
    %v4401 = vunpack.c.h.b16 %v4385
    %v4402 = vpack.c.b16 %v4394, %v4394
    %v4403 = vpack.c.b16 %v4395, %v4395
    %v4404 = vpack.c.b16 %v4396, %v4396
    %v4405 = vpack.c.b16 %v4397, %v4397
    %v4406 = vpack.c.b16 %v4398, %v4398
    %v4407 = vpack.c.b16 %v4399, %v4399
    %v4408 = vpack.c.b16 %v4400, %v4400
    %v4409 = vpack.c.b16 %v4401, %v4401
    %v4410 = vunpack.c.l.b16 %v4402
    %v4411 = vunpack.c.l.b16 %v4403
    %v4412 = vunpack.c.l.b16 %v4404
    %v4413 = vunpack.c.l.b16 %v4405
    %v4414 = vunpack.c.l.b16 %v4406
    %v4415 = vunpack.c.l.b16 %v4407
    %v4416 = vunpack.c.l.b16 %v4408
    %v4417 = vunpack.c.l.b16 %v4409
    %v4418 = vrot.slane %v4414, 7
    %v4419 = vrot.slane %v4415, 7
    %v4420 = vrot.slane %v4416, 7
    %v4421 = vrot.slane %v4417, 7
    %v4422 = vpack.c.b16 %v4418, %v4410
    %v4423 = vpack.c.b16 %v4419, %v4411
    %v4424 = vpack.c.b16 %v4420, %v4412
    %v4425 = vpack.c.b16 %v4421, %v4413
    %v4434 = vunpack.c.l.b16 %v4386
    %v4435 = vunpack.c.h.b16 %v4386
    %v4436 = vunpack.c.l.b16 %v4387
    %v4437 = vunpack.c.h.b16 %v4387
    %v4438 = vunpack.c.l.b16 %v4388
    %v4439 = vunpack.c.h.b16 %v4388
    %v4440 = vunpack.c.l.b16 %v4389
    %v4441 = vunpack.c.h.b16 %v4389
    %v4442 = vpack.c.b16 %v4434, %v4434
    %v4443 = vpack.c.b16 %v4435, %v4435
    %v4444 = vpack.c.b16 %v4436, %v4436
    %v4445 = vpack.c.b16 %v4437, %v4437
    %v4446 = vpack.c.b16 %v4438, %v4438
    %v4447 = vpack.c.b16 %v4439, %v4439
    %v4448 = vpack.c.b16 %v4440, %v4440
    %v4449 = vpack.c.b16 %v4441, %v4441
    %v4450 = vunpack.c.l.b16 %v4442
    %v4451 = vunpack.c.l.b16 %v4443
    %v4452 = vunpack.c.l.b16 %v4444
    %v4453 = vunpack.c.l.b16 %v4445
    %v4454 = vunpack.c.l.b16 %v4446
    %v4455 = vunpack.c.l.b16 %v4447
    %v4456 = vunpack.c.l.b16 %v4448
    %v4457 = vunpack.c.l.b16 %v4449
    %v4458 = vrot.slane %v4450, 1
    %v4459 = vrot.slane %v4451, 1
    %v4460 = vrot.slane %v4452, 1
    %v4461 = vrot.slane %v4453, 1
    %v4462 = vpack.c.b16 %v4454, %v4458
    %v4463 = vpack.c.b16 %v4455, %v4459
    %v4464 = vpack.c.b16 %v4456, %v4460
    %v4465 = vpack.c.b16 %v4457, %v4461
    %v4470 = vunpack.c.l.bf16 %v4422
    %v4471 = vunpack.c.l.bf16 %v4423
    %v4472 = vunpack.c.l.bf16 %v4424
    %v4473 = vunpack.c.l.bf16 %v4425
    %v4474 = vunpack.c.l.bf16 %v4462
    %v4475 = vunpack.c.l.bf16 %v4463
    %v4476 = vunpack.c.l.bf16 %v4464
    %v4477 = vunpack.c.l.bf16 %v4465
    %v4478 = vunpack.c.h.bf16 %v4422
    %v4479 = vunpack.c.h.bf16 %v4423
    %v4480 = vunpack.c.h.bf16 %v4424
    %v4481 = vunpack.c.h.bf16 %v4425
    %v4482 = vunpack.c.h.bf16 %v4462
    %v4483 = vunpack.c.h.bf16 %v4463
    %v4484 = vunpack.c.h.bf16 %v4464
    %v4485 = vunpack.c.h.bf16 %v4465
    %v4486 = vld [vmem:[#allocation2] sm:$0xf]
    %v4489 = vunpack.c.l.s4 1983009808
    %v4490 = vunpack.c.0.s8 %v4489
    %v4491 = vlaneseq
    %v4492 = vshrl.u32 %v4491, 7
    %v4493 = vsub.s32 %v4490, %v4492
    %v4494 = vrot.slane %v4486, %v4493
    %v4495 = vcombine.high %v4494, %v4494
    %v4498 = vpack.c.bf16 %v4494, %v4494
    %v4499 = vpack.c.bf16 %v4495, %v4495
    %4500 = vmatprep.subr.bf16.mxu0 %v725
    %4501 = vmatpush1.bf16.msra.mxu0 %v724
    %4502 = vmatprep.subr.bf16.mxu0 %v733
    %4503 = vmatpush1.bf16.msra.mxu0 %v732
    %4504 = vmatprep.subr.bf16.mxu0 %v741
    %4505 = vmatpush1.bf16.msra.mxu0 %v740
    %4506 = vmatprep.subr.bf16.mxu0 %v749
    %4507 = vmatpush1.bf16.msra.mxu0 %v748
    %4508 = vmatprep.subr.bf16.mxu0 %v757
    %4509 = vmatpush1.bf16.msra.mxu0 %v756
    %4510 = vmatprep.subr.bf16.mxu0 %v765
    %4511 = vmatpush1.bf16.msra.mxu0 %v764
    %4512 = vmatprep.subr.bf16.mxu0 %v773
    %4513 = vmatpush1.bf16.msra.mxu0 %v772
    %4514 = vmatprep.subr.bf16.mxu0 %v781
    %4515 = vmatpush1.bf16.msra.mxu0 %v780
    %4516 = vmatprep.subr.bf16.mxu0 %v789
    %4517 = vmatpush1.bf16.msra.mxu0 %v788
    %4518 = vmatprep.subr.bf16.mxu0 %v797
    %4519 = vmatpush1.bf16.msra.mxu0 %v796
    %4520 = vmatprep.subr.bf16.mxu0 %v805
    %4521 = vmatpush1.bf16.msra.mxu0 %v804
    %4522 = vmatprep.subr.bf16.mxu0 %v813
    %4523 = vmatpush1.bf16.msra.mxu0 %v812
    %4524 = vmatprep.subr.bf16.mxu0 %v821
    %4525 = vmatpush1.bf16.msra.mxu0 %v820
    %4526 = vmatprep.subr.bf16.mxu0 %v829
    %4527 = vmatpush1.bf16.msra.mxu0 %v828
    %4528 = vmatprep.subr.bf16.mxu0 %v837
    %4529 = vmatpush1.bf16.msra.mxu0 %v836
    %4530 = vmatprep.subr.bf16.mxu0 %v845
    %4531 = vmatpush1.bf16.msra.mxu0 %v844
    %4532 = vmatprep.mubr.bf16.mxu0 %v4499
    %4533 = vmatmul.mubr.bf16.gmra.mrb[0].mxu0 %v4498
    %v4534 = vpop.f32.mrb[0].mxu0
    %v4535 = vadd.f32 0.0, %v4534
    %v4536 = vpop.f32.mrb[0].mxu0
    %v4537 = vadd.f32 0.0, %v4536
    %v4538 = vpop.f32.mrb[0].mxu0
    %v4539 = vpop.f32.mrb[0].mxu0
    %4540 = vdwg.mxu0
    %4541 = vmatprep.subr.bf16.mxu0 %v727
    %4542 = vmatpush1.bf16.msra.mxu0 %v726
    %4543 = vmatprep.subr.bf16.mxu0 %v735
    %4544 = vmatpush1.bf16.msra.mxu0 %v734
    %4545 = vmatprep.subr.bf16.mxu0 %v743
    %4546 = vmatpush1.bf16.msra.mxu0 %v742
    %4547 = vmatprep.subr.bf16.mxu0 %v751
    %4548 = vmatpush1.bf16.msra.mxu0 %v750
    %4549 = vmatprep.subr.bf16.mxu0 %v759
    %4550 = vmatpush1.bf16.msra.mxu0 %v758
    %4551 = vmatprep.subr.bf16.mxu0 %v767
    %4552 = vmatpush1.bf16.msra.mxu0 %v766
    %4553 = vmatprep.subr.bf16.mxu0 %v775
    %4554 = vmatpush1.bf16.msra.mxu0 %v774
    %4555 = vmatprep.subr.bf16.mxu0 %v783
    %4556 = vmatpush1.bf16.msra.mxu0 %v782
    %4557 = vmatprep.subr.bf16.mxu0 %v791
    %4558 = vmatpush1.bf16.msra.mxu0 %v790
    %4559 = vmatprep.subr.bf16.mxu0 %v799
    %4560 = vmatpush1.bf16.msra.mxu0 %v798
    %4561 = vmatprep.subr.bf16.mxu0 %v807
    %4562 = vmatpush1.bf16.msra.mxu0 %v806
    %4563 = vmatprep.subr.bf16.mxu0 %v815
    %4564 = vmatpush1.bf16.msra.mxu0 %v814
    %4565 = vmatprep.subr.bf16.mxu0 %v823
    %4566 = vmatpush1.bf16.msra.mxu0 %v822
    %4567 = vmatprep.subr.bf16.mxu0 %v831
    %4568 = vmatpush1.bf16.msra.mxu0 %v830
    %4569 = vmatprep.subr.bf16.mxu0 %v839
    %4570 = vmatpush1.bf16.msra.mxu0 %v838
    %4571 = vmatprep.subr.bf16.mxu0 %v847
    %4572 = vmatpush1.bf16.msra.mxu0 %v846
    %4573 = vmatprep.mubr.bf16.mxu0 %v4499
    %4574 = vmatmul.mubr.bf16.gmra.mrb[0].mxu0 %v4498
    %v4575 = vpop.f32.mrb[0].mxu0
    %v4576 = vadd.f32 0.0, %v4575
    %v4577 = vpop.f32.mrb[0].mxu0
    %v4578 = vadd.f32 0.0, %v4577
    %v4579 = vpop.f32.mrb[0].mxu0
    %v4580 = vpop.f32.mrb[0].mxu0
    %4581 = vdwg.mxu0
    %4582 = vmatprep.subr.bf16.mxu0 %v729
    %4583 = vmatpush1.bf16.msra.mxu0 %v728
    %4584 = vmatprep.subr.bf16.mxu0 %v737
    %4585 = vmatpush1.bf16.msra.mxu0 %v736
    %4586 = vmatprep.subr.bf16.mxu0 %v745
    %4587 = vmatpush1.bf16.msra.mxu0 %v744
    %4588 = vmatprep.subr.bf16.mxu0 %v753
    %4589 = vmatpush1.bf16.msra.mxu0 %v752
    %4590 = vmatprep.subr.bf16.mxu0 %v761
    %4591 = vmatpush1.bf16.msra.mxu0 %v760
    %4592 = vmatprep.subr.bf16.mxu0 %v769
    %4593 = vmatpush1.bf16.msra.mxu0 %v768
    %4594 = vmatprep.subr.bf16.mxu0 %v777
    %4595 = vmatpush1.bf16.msra.mxu0 %v776
    %4596 = vmatprep.subr.bf16.mxu0 %v785
    %4597 = vmatpush1.bf16.msra.mxu0 %v784
    %4598 = vmatprep.subr.bf16.mxu0 %v793
    %4599 = vmatpush1.bf16.msra.mxu0 %v792
    %4600 = vmatprep.subr.bf16.mxu0 %v801
    %4601 = vmatpush1.bf16.msra.mxu0 %v800
    %4602 = vmatprep.subr.bf16.mxu0 %v809
    %4603 = vmatpush1.bf16.msra.mxu0 %v808
    %4604 = vmatprep.subr.bf16.mxu0 %v817
    %4605 = vmatpush1.bf16.msra.mxu0 %v816
    %4606 = vmatprep.subr.bf16.mxu0 %v825
    %4607 = vmatpush1.bf16.msra.mxu0 %v824
    %4608 = vmatprep.subr.bf16.mxu0 %v833
    %4609 = vmatpush1.bf16.msra.mxu0 %v832
    %4610 = vmatprep.subr.bf16.mxu0 %v841
    %4611 = vmatpush1.bf16.msra.mxu0 %v840
    %4612 = vmatprep.subr.bf16.mxu0 %v849
    %4613 = vmatpush1.bf16.msra.mxu0 %v848
    %4614 = vmatprep.mubr.bf16.mxu0 %v4499
    %4615 = vmatmul.mubr.bf16.gmra.mrb[0].mxu0 %v4498
    %v4616 = vpop.f32.mrb[0].mxu0
    %v4617 = vadd.f32 0.0, %v4616
    %v4618 = vpop.f32.mrb[0].mxu0
    %v4619 = vadd.f32 0.0, %v4618
    %v4620 = vpop.f32.mrb[0].mxu0
    %v4621 = vpop.f32.mrb[0].mxu0
    %4622 = vdwg.mxu0
    %4623 = vmatprep.subr.bf16.mxu0 %v731
    %4624 = vmatpush1.bf16.msra.mxu0 %v730
    %4625 = vmatprep.subr.bf16.mxu0 %v739
    %4626 = vmatpush1.bf16.msra.mxu0 %v738
    %4627 = vmatprep.subr.bf16.mxu0 %v747
    %4628 = vmatpush1.bf16.msra.mxu0 %v746
    %4629 = vmatprep.subr.bf16.mxu0 %v755
    %4630 = vmatpush1.bf16.msra.mxu0 %v754
    %4631 = vmatprep.subr.bf16.mxu0 %v763
    %4632 = vmatpush1.bf16.msra.mxu0 %v762
    %4633 = vmatprep.subr.bf16.mxu0 %v771
    %4634 = vmatpush1.bf16.msra.mxu0 %v770
    %4635 = vmatprep.subr.bf16.mxu0 %v779
    %4636 = vmatpush1.bf16.msra.mxu0 %v778
    %4637 = vmatprep.subr.bf16.mxu0 %v787
    %4638 = vmatpush1.bf16.msra.mxu0 %v786
    %4639 = vmatprep.subr.bf16.mxu0 %v795
    %4640 = vmatpush1.bf16.msra.mxu0 %v794
    %4641 = vmatprep.subr.bf16.mxu0 %v803
    %4642 = vmatpush1.bf16.msra.mxu0 %v802
    %4643 = vmatprep.subr.bf16.mxu0 %v811
    %4644 = vmatpush1.bf16.msra.mxu0 %v810
    %4645 = vmatprep.subr.bf16.mxu0 %v819
    %4646 = vmatpush1.bf16.msra.mxu0 %v818
    %4647 = vmatprep.subr.bf16.mxu0 %v827
    %4648 = vmatpush1.bf16.msra.mxu0 %v826
    %4649 = vmatprep.subr.bf16.mxu0 %v835
    %4650 = vmatpush1.bf16.msra.mxu0 %v834
    %4651 = vmatprep.subr.bf16.mxu0 %v843
    %4652 = vmatpush1.bf16.msra.mxu0 %v842
    %4653 = vmatprep.subr.bf16.mxu0 %v851
    %4654 = vmatpush1.bf16.msra.mxu0 %v850
    %4655 = vmatprep.mubr.bf16.mxu0 %v4499
    %4656 = vmatmul.mubr.bf16.gmra.mrb[0].mxu0 %v4498
    %v4657 = vpop.f32.mrb[0].mxu0
    %v4658 = vadd.f32 0.0, %v4657
    %v4659 = vpop.f32.mrb[0].mxu0
    %v4660 = vadd.f32 0.0, %v4659
    %v4661 = vpop.f32.mrb[0].mxu0
    %v4662 = vpop.f32.mrb[0].mxu0
    %4663 = vdwg.mxu0
    %v4672 = vrot.slane %v4535, 1
    %v4673 = vrot.slane %v4537, 1
    %v4674 = vrot.slane %v4576, 1
    %v4675 = vrot.slane %v4578, 1
    %v4676 = vrot.slane %v4617, 1
    %v4677 = vrot.slane %v4619, 1
    %v4678 = vrot.slane %v4658, 1
    %v4679 = vrot.slane %v4660, 1
    %v4688 = vadd.f32 %v4470, %v4672
    %v4689 = vadd.f32 %v4471, %v4673
    %v4690 = vadd.f32 %v4472, %v4674
    %v4691 = vadd.f32 %v4473, %v4675
    %v4692 = vadd.f32 %v4474, %v4676
    %v4693 = vadd.f32 %v4475, %v4677
    %v4694 = vadd.f32 %v4476, %v4678
    %v4695 = vadd.f32 %v4477, %v4679
    %v4696 = vadd.f32 %v4478, %v4672
    %v4697 = vadd.f32 %v4479, %v4673
    %v4698 = vadd.f32 %v4480, %v4674
    %v4699 = vadd.f32 %v4481, %v4675
    %v4700 = vadd.f32 %v4482, %v4676
    %v4701 = vadd.f32 %v4483, %v4677
    %v4702 = vadd.f32 %v4484, %v4678
    %v4703 = vadd.f32 %v4485, %v4679
    %v4704 = vxor.u32 %v4688, 2147483648
    %v4705 = vxor.u32 %v4692, 2147483648
    %v4706 = vxor.u32 %v4696, 2147483648
    %v4707 = vxor.u32 %v4700, 2147483648
    %v4708 = vmul.f32 %v4704, 1.442695
    %v4709 = vpow.pop %v4708
    %v4710 = vmul.f32 %v4705, 1.442695
    %v4711 = vpow.pop %v4710
    %v4712 = vmul.f32 %v4706, 1.442695
    %v4713 = vpow.pop %v4712
    %v4714 = vmul.f32 %v4707, 1.442695
    %v4715 = vpow.pop %v4714
    %v4716 = vadd.f32 %v4709, 1.0
    %v4717 = vadd.f32 %v4711, 1.0
    %v4718 = vadd.f32 %v4713, 1.0
    %v4719 = vadd.f32 %v4715, 1.0
    %v4720 = vrcp.pop %v4716
    %v4721 = vmul.f32 1.0, %v4720
    %v4722 = vrcp.pop %v4717
    %v4723 = vmul.f32 1.0, %v4722
    %v4724 = vrcp.pop %v4718
    %v4725 = vmul.f32 1.0, %v4724
    %v4726 = vrcp.pop %v4719
    %v4727 = vmul.f32 1.0, %v4726
    %v4728 = vxor.u32 %v4689, 2147483648
    %v4729 = vxor.u32 %v4693, 2147483648
    %v4730 = vxor.u32 %v4697, 2147483648
    %v4731 = vxor.u32 %v4701, 2147483648
    %v4732 = vmul.f32 %v4728, 1.442695
    %v4733 = vpow.pop %v4732
    %v4734 = vmul.f32 %v4729, 1.442695
    %v4735 = vpow.pop %v4734
    %v4736 = vmul.f32 %v4730, 1.442695
    %v4737 = vpow.pop %v4736
    %v4738 = vmul.f32 %v4731, 1.442695
    %v4739 = vpow.pop %v4738
    %v4740 = vadd.f32 %v4733, 1.0
    %v4741 = vadd.f32 %v4735, 1.0
    %v4742 = vadd.f32 %v4737, 1.0
    %v4743 = vadd.f32 %v4739, 1.0
    %v4744 = vrcp.pop %v4740
    %v4745 = vmul.f32 1.0, %v4744
    %v4746 = vrcp.pop %v4741
    %v4747 = vmul.f32 1.0, %v4746
    %v4748 = vrcp.pop %v4742
    %v4749 = vmul.f32 1.0, %v4748
    %v4750 = vrcp.pop %v4743
    %v4751 = vmul.f32 1.0, %v4750
    %v4752 = vtanh.pop %v4690
    %v4753 = vtanh.pop %v4694
    %v4754 = vtanh.pop %v4698
    %v4755 = vtanh.pop %v4702
    %v4756 = vxor.u32 %v4691, 2147483648
    %v4757 = vxor.u32 %v4695, 2147483648
    %v4758 = vxor.u32 %v4699, 2147483648
    %v4759 = vxor.u32 %v4703, 2147483648
    %v4760 = vmul.f32 %v4756, 1.442695
    %v4761 = vpow.pop %v4760
    %v4762 = vmul.f32 %v4757, 1.442695
    %v4763 = vpow.pop %v4762
    %v4764 = vmul.f32 %v4758, 1.442695
    %v4765 = vpow.pop %v4764
    %v4766 = vmul.f32 %v4759, 1.442695
    %v4767 = vpow.pop %v4766
    %v4768 = vadd.f32 %v4761, 1.0
    %v4769 = vadd.f32 %v4763, 1.0
    %v4770 = vadd.f32 %v4765, 1.0
    %v4771 = vadd.f32 %v4767, 1.0
    %v4772 = vrcp.pop %v4768
    %v4773 = vmul.f32 1.0, %v4772
    %v4774 = vrcp.pop %v4769
    %v4775 = vmul.f32 1.0, %v4774
    %v4776 = vrcp.pop %v4770
    %v4777 = vmul.f32 1.0, %v4776
    %v4778 = vrcp.pop %v4771
    %v4779 = vmul.f32 1.0, %v4778
    %v4780 = vld [vmem:[#allocation3] sm:$0xf]
    %v4783 = vunpack.c.l.s4 1983009808
    %v4784 = vunpack.c.0.s8 %v4783
    %v4785 = vlaneseq
    %v4786 = vshrl.u32 %v4785, 7
    %v4787 = vsub.s32 %v4784, %v4786
    %v4788 = vrot.slane %v4780, %v4787
    %v4789 = vcombine.high %v4788, %v4788
    %v4790 = vrot.slane %v4788, 1
    %v4791 = vrot.slane %v4789, 1
    %v4794 = vmul.f32 %v4745, %v4790
    %v4795 = vmul.f32 %v4747, %v4791
    %v4796 = vmul.f32 %v4749, %v4790
    %v4797 = vmul.f32 %v4751, %v4791
    %v4798 = vmul.f32 %v4721, %v4752
    %v4799 = vmul.f32 %v4723, %v4753
    %v4800 = vmul.f32 %v4725, %v4754
    %v4801 = vmul.f32 %v4727, %v4755
    %v4802 = vadd.f32 %v4794, %v4798
    %v4803 = vadd.f32 %v4795, %v4799
    %v4804 = vadd.f32 %v4796, %v4800
    %v4805 = vadd.f32 %v4797, %v4801
    %v4806 = vtanh.pop %v4802
    %v4807 = vtanh.pop %v4803
    %v4808 = vtanh.pop %v4804
    %v4809 = vtanh.pop %v4805
    %v4810 = vmul.f32 %v4773, %v4806
    %v4811 = vmul.f32 %v4775, %v4807
    %v4812 = vmul.f32 %v4777, %v4808
    %v4813 = vmul.f32 %v4779, %v4809
    %v4818 = vcombine.high %v4810, %v4811
    %v4820 = vunpack.c.l.s4 1983009808
    %v4821 = vunpack.c.0.s8 %v4820
    %v4822 = vlaneseq
    %v4823 = vshrl.u32 %v4822, 7
    %v4824 = vsub.s32 %v4821, %v4823
    %v4825 = vrot.slane %v4818, %v4824
    %v4826 = vcombine.high %v4825, %v4825
    %v4827 = vcombine.low %v4812, %v4813
    %v4829 = vunpack.c.l.s4 1983009808
    %v4830 = vunpack.c.0.s8 %v4829
    %v4831 = vlaneseq
    %v4832 = vshrl.u32 %v4831, 7
    %v4833 = vsub.s32 %v4830, %v4832
    %v4834 = vrot.slane %v4827, %v4833
    %v4835 = vrot.slane %v4826, 7
    %v4836 = vrot.slane %v4835, 2
    %v4837 = vrot.slane %v4834, 7
    %v4838 = vsel %vm1723, %v4836, %v4837
    %4840 = vst [vmem:[#allocation2] sm:$0xf] %v4838
    %v4845 = vcombine.high %v4802, %v4803
    %v4847 = vunpack.c.l.s4 1983009808
    %v4848 = vunpack.c.0.s8 %v4847
    %v4849 = vlaneseq
    %v4850 = vshrl.u32 %v4849, 7
    %v4851 = vsub.s32 %v4848, %v4850
    %v4852 = vrot.slane %v4845, %v4851
    %v4853 = vcombine.high %v4852, %v4852
    %v4854 = vcombine.low %v4804, %v4805
    %v4856 = vunpack.c.l.s4 1983009808
    %v4857 = vunpack.c.0.s8 %v4856
    %v4858 = vlaneseq
    %v4859 = vshrl.u32 %v4858, 7
    %v4860 = vsub.s32 %v4857, %v4859
    %v4861 = vrot.slane %v4854, %v4860
    %v4862 = vrot.slane %v4853, 7
    %v4863 = vrot.slane %v4862, 2
    %v4864 = vrot.slane %v4861, 7
    %v4865 = vsel %vm1723, %v4863, %v4864
    %4867 = vst [vmem:[#allocation3] sm:$0xf] %v4865
    %v4868 = vpack.c.bf16 %v4812, %v4810
    %v4870 = vcombine.high %v4868, %v4868
    %v4872 = vunpack.c.l.s4 1966171168
    %v4873 = vunpack.c.0.s8 %v4872
    %v4874 = vlaneseq
    %v4875 = vshrl.u32 %v4874, 7
    %v4876 = vsub.s32 %v4873, %v4875
    %v4877 = vrot.slane %v4868, %v4876
    %v4879 = vunpack.c.l.s4 1966171168
    %v4880 = vunpack.c.0.s8 %v4879
    %v4881 = vlaneseq
    %v4882 = vshrl.u32 %v4881, 7
    %v4883 = vsub.s32 %v4880, %v4882
    %v4884 = vrot.slane %v4870, %v4883
    %v4885 = vcombine.high %v4877, %v4877
    %v4887 = vunpack.c.l.s4 1966171168
    %v4888 = vunpack.c.0.s8 %v4887
    %v4889 = vlaneseq
    %v4890 = vshrl.u32 %v4889, 7
    %v4891 = vsub.s32 %v4888, %v4890
    %v4892 = vrot.slane %v4884, %v4891
    %v4894 = vunpack.c.l.s4 1966171168
    %v4895 = vunpack.c.0.s8 %v4894
    %v4896 = vlaneseq
    %v4897 = vshrl.u32 %v4896, 7
    %v4898 = vsub.s32 %v4895, %v4897
    %v4899 = vrot.slane %v4885, %v4898
    %v4900 = vcombine.high %v4899, %v4899
    %v4901 = vunpack.i.h.s16 %v4900
    %v4902 = vunpack.i.l.s16 %v4892
    %v4903 = vpack.i.b16 %v4901, %v4901
    %v4904 = vpack.i.b16 %v4902, %v4902
    %v4906 = vunpack.c.l.s4 286326784
    %v4907 = vunpack.c.0.s8 %v4906
    %v4908 = vlaneseq
    %v4909 = vshrl.u32 %v4908, 7
    %v4910 = vsub.s32 %v4907, %v4909
    %v4911 = vrot.slane %v4903, %v4910
    %v4913 = vunpack.c.l.s4 286326784
    %v4914 = vunpack.c.0.s8 %v4913
    %v4915 = vlaneseq
    %v4916 = vshrl.u32 %v4915, 7
    %v4917 = vsub.s32 %v4914, %v4916
    %v4918 = vrot.slane %v4904, %v4917
    %v4921 = vld [vmem:[%s3] sm:$0x8]
    %v4922 = vsel %vm1319, %v4911, %v4921
    %4923 = vst [vmem:[%s3] sm:$0x8] %v4922
    %v4924 = vld [vmem:[%s3 + $0x4] sm:$0x8]
    %v4925 = vsel %vm1319, %v4918, %v4924
    %4926 = vst [vmem:[%s3 + $0x4] sm:$0x8] %v4925
    %v4927 = vpack.c.bf16 %v4813, %v4811
    %v4929 = vcombine.high %v4927, %v4927
    %v4931 = vunpack.c.l.s4 1966171168
    %v4932 = vunpack.c.0.s8 %v4931
    %v4933 = vlaneseq
    %v4934 = vshrl.u32 %v4933, 7
    %v4935 = vsub.s32 %v4932, %v4934
    %v4936 = vrot.slane %v4927, %v4935
    %v4938 = vunpack.c.l.s4 1966171168
    %v4939 = vunpack.c.0.s8 %v4938
    %v4940 = vlaneseq
    %v4941 = vshrl.u32 %v4940, 7
    %v4942 = vsub.s32 %v4939, %v4941
    %v4943 = vrot.slane %v4929, %v4942
    %v4944 = vcombine.high %v4936, %v4936
    %v4946 = vunpack.c.l.s4 1966171168
    %v4947 = vunpack.c.0.s8 %v4946
    %v4948 = vlaneseq
    %v4949 = vshrl.u32 %v4948, 7
    %v4950 = vsub.s32 %v4947, %v4949
    %v4951 = vrot.slane %v4943, %v4950
    %v4953 = vunpack.c.l.s4 1966171168
    %v4954 = vunpack.c.0.s8 %v4953
    %v4955 = vlaneseq
    %v4956 = vshrl.u32 %v4955, 7
    %v4957 = vsub.s32 %v4954, %v4956
    %v4958 = vrot.slane %v4944, %v4957
    %v4959 = vcombine.high %v4958, %v4958
    %v4960 = vunpack.i.h.s16 %v4959
    %v4961 = vunpack.i.l.s16 %v4951
    %v4962 = vpack.i.b16 %v4960, %v4960
    %v4963 = vpack.i.b16 %v4961, %v4961
    %v4965 = vunpack.c.l.s4 286326784
    %v4966 = vunpack.c.0.s8 %v4965
    %v4967 = vlaneseq
    %v4968 = vshrl.u32 %v4967, 7
    %v4969 = vsub.s32 %v4966, %v4968
    %v4970 = vrot.slane %v4962, %v4969
    %v4972 = vunpack.c.l.s4 286326784
    %v4973 = vunpack.c.0.s8 %v4972
    %v4974 = vlaneseq
    %v4975 = vshrl.u32 %v4974, 7
    %v4976 = vsub.s32 %v4973, %v4975
    %v4977 = vrot.slane %v4963, %v4976
    %v4980 = vld [vmem:[%s81] sm:$0x1]
    %v4981 = vsel %vm1274, %v4970, %v4980
    %4982 = vst [vmem:[%s81] sm:$0x1] %v4981
    %v4983 = vld [vmem:[%s81 + $0x4] sm:$0x1]
    %v4984 = vsel %vm1274, %v4977, %v4983
    %4985 = vst [vmem:[%s81 + $0x4] sm:$0x1] %v4984
    %s4986 = ssub.s32 0, 0
    %p4987 = scmp.lt.s32.totalorder %s4986, 0
    %s4988 = scalar_select %p4987, %s4986, 0
    %s4989 = smul.addr %s4988, 4
    %s4990 = scalar_lea.vmem %s4, %s4989
    // Predicated region
    $region64: #{bilstm_model_forward.6} parent=1 // pred_check
      _
    $region65: #{bilstm_model_forward.6} parent=1 // pred_check_branch
      %4992 = sbr.rel (0) target = $region67
    $region66: #{bilstm_model_forward.6} parent=1 // pred_region
      _
    $region67: #{bilstm_model_forward.6} parent=1 // pred_fallthru
      _
    // Predicated region
    $region68: #{bilstm_model_forward.6} parent=1 // pred_check
      _
    $region69: #{bilstm_model_forward.6} parent=1 // pred_check_branch
      %4994 = sbr.rel (0) target = $region71
    $region70: #{bilstm_model_forward.6} parent=1 // pred_region
      %s4995 = ssub.s32 0, 0
    $region71: #{bilstm_model_forward.6} parent=1 // pred_fallthru
      _
    // Predicated region
    $region72: #{bilstm_model_forward.6} parent=1 // pred_check
      _
    $region73: #{bilstm_model_forward.6} parent=1 // pred_check_branch
      %4997 = sbr.rel (0) target = $region75
    $region74: #{bilstm_model_forward.6} parent=1 // pred_region
      _
    $region75: #{bilstm_model_forward.6} parent=1 // pred_fallthru
      _
    // Predicated region
    $region76: #{bilstm_model_forward.6} parent=1 // pred_check
      _
    $region77: #{bilstm_model_forward.6} parent=1 // pred_check_branch
      %4999 = sbr.rel (0) target = $region79
    $region78: #{bilstm_model_forward.6} parent=1 // pred_region
      %s5000 = ssub.s32 0, 0
      %p5001 = scmp.lt.s32.totalorder %s5000, 0
      %s5002 = scalar_select %p5001, %s5000, 0
      %s5003 = smul.addr %s5002, 4
      %s5004 = scalar_lea.vmem %s4, %s5003
    $region79: #{bilstm_model_forward.6} parent=1 // pred_fallthru
      _

</llo_original>
